<compile_context>
chip_gen: v5e
topology: v5e:2x2
jax: 0.10.0
libtpu: 0.0.40
codegen_flags: <defaults>
</compile_context>

<pallas_src>
import jax
import jax.numpy as jnp
from jax.experimental import pallas as pl
from jax.experimental.pallas import tpu as pltpu

F32 = jnp.float32
BF16 = jnp.bfloat16


# ---------------- fused kernel (nb images per grid step) ----------------

def _lenet_kernel(patch_ref, w1_ref, b1_ref, w2_ref, b2_ref, w3_ref, b3_ref,
                  fw1_ref, fb1_ref, fw2_ref, fb2_ref, fw3_ref, fb3_ref,
                  out_ref,
                  a1_ref, q1_ref, a2_ref, q2_ref, a3_ref):
    nb = out_ref.shape[0]
    b1 = b1_ref[...]
    b2 = b2_ref[...]
    b3 = b3_ref[...]

    feats = []
    for i in range(nb):
        # ---- conv1: one (1600,32)@(32,32) bf16 MXU matmul (taps padded 25->32).
        # bias + ReLU are deferred into pool1 (max is monotone, bias per-channel).
        a1_ref[...] = jnp.dot(patch_ref[i], w1_ref[...],
                              preferred_element_type=F32)          # (1600,32) f32

        # ---- pool1 (2x2/2) + bias + ReLU, writing conv2's width-im2col q1.
        # a1 rows are h*40 + w' with w' = all-even-w block then all-odd-w block
        # (set up host-side), so the four 2x2 operands are contiguous 20-row
        # slices.  q1[hp*16 + w, kw*32 + c] = relu(pool1)[hp, w+kw, c].
        for hp in range(20):
            r = 80 * hp
            v = jnp.maximum(jnp.maximum(a1_ref[r:r + 20, :],
                                        a1_ref[r + 20:r + 40, :]),
                            jnp.maximum(a1_ref[r + 40:r + 60, :],
                                        a1_ref[r + 60:r + 80, :]))
            v = jnp.maximum(v + b1, 0.0).astype(BF16)               # (20, 32)
            for kw in range(5):
                q1_ref[16 * hp:16 * hp + 16, 32 * kw:32 * kw + 32] = v[kw:kw + 16, :]

        # ---- conv2: 5 deep-K (K=5*32=160) MXU matmuls, 16-row-aligned slices.
        acc = jnp.zeros((256, 64), F32)
        for kh in range(5):
            acc = acc + jnp.dot(q1_ref[16 * kh:16 * kh + 256, :], w2_ref[kh],
                                preferred_element_type=F32)
        a2_ref[...] = acc                                           # (256,64)=16x16

        # ---- pool2 + bias + ReLU, writing conv3's width-im2col q2.
        # q2[hp*4 + w, kw*64 + c] = relu(pool2)[hp, w+kw, c].
        for hp in range(8):
            r = 32 * hp
            v = jnp.maximum(
                jnp.maximum(a2_ref[pl.ds(r, 8, stride=2), :],
                            a2_ref[pl.ds(r + 1, 8, stride=2), :]),
                jnp.maximum(a2_ref[pl.ds(r + 16, 8, stride=2), :],
                            a2_ref[pl.ds(r + 17, 8, stride=2), :]))
            v = jnp.maximum(v + b2, 0.0).astype(BF16)               # (8, 64)
            for kw in range(5):
                q2_ref[4 * hp:4 * hp + 4, 64 * kw:64 * kw + 64] = v[kw:kw + 4, :]

        # ---- conv3: 5 deep-K (K=5*64=320) MXU matmuls.
        acc = jnp.zeros((16, 64), F32)
        for kh in range(5):
            acc = acc + jnp.dot(q2_ref[4 * kh:4 * kh + 16, :], w3_ref[kh],
                                preferred_element_type=F32)
        a3_ref[...] = acc                                           # (16,64)=4x4

        # ---- pool3 + bias + ReLU -> (1,256) feature row, torch flatten order
        # (feature lane = (h*2+w)*64 + c; fw1 rows are reordered host-side).
        blocks = []
        for hp in range(2):
            for wp in range(2):
                r = 8 * hp + 2 * wp
                m = jnp.maximum(
                    jnp.maximum(a3_ref[r:r + 1, :], a3_ref[r + 1:r + 2, :]),
                    jnp.maximum(a3_ref[r + 4:r + 5, :], a3_ref[r + 5:r + 6, :]))
                blocks.append(jnp.maximum(m + b3, 0.0).astype(BF16))
        feats.append(jnp.concatenate(blocks, axis=-1))              # (1,256) bf16

    # ---- batched FC head: M = nb, all dims zero-padded to 128 lanes.
    feat = jnp.concatenate(feats, axis=0)                           # (nb,256) bf16
    h = jnp.dot(feat, fw1_ref[...], preferred_element_type=F32) + fb1_ref[...]
    h = jnp.maximum(h, 0.0).astype(BF16)
    h = jnp.dot(h, fw2_ref[...], preferred_element_type=F32) + fb2_ref[...]
    h = jnp.maximum(h, 0.0).astype(BF16)
    out_ref[...] = (jnp.dot(h, fw3_ref[...], preferred_element_type=F32)
                    + fb3_ref[...])                                 # (nb,128) f32


# ---------------- host wrapper (layout prep + single pallas_call) ----------------

def _pick_images_per_step(batch):
    """Largest nb in {1,2,4,8} dividing batch while keeping grid >= 2 steps."""
    nb = 1
    for cand in (2, 4, 8):
        if batch % cand == 0 and batch // cand >= 2:
            nb = cand
    return nb


def _prep_params(p):
    """Reshape / zero-pad / bf16-cast weights into the kernel's layouts."""
    # fc1: torch flatten order is (c, h, w); regroup rows to (h*2+w)*64 + c.
    fw1 = p["fw1"].reshape(64, 4, 120).transpose(1, 0, 2).reshape(256, 120)
    return dict(
        w1=jnp.pad(p["w1"].reshape(25, 32), ((0, 7), (0, 0))).astype(BF16),
        b1=p["b1"].reshape(1, 32).astype(F32),
        w2=p["w2"].reshape(5, 160, 64).astype(BF16),   # (kh, kw*32+cin, cout)
        b2=p["b2"].reshape(1, 64).astype(F32),
        w3=p["w3"].reshape(5, 320, 64).astype(BF16),   # (kh, kw*64+cin, cout)
        b3=p["b3"].reshape(1, 64).astype(F32),
        fw1=jnp.pad(fw1, ((0, 0), (0, 8))).astype(BF16),               # 120->128
        fb1=jnp.pad(p["fb1"], (0, 8)).reshape(1, 128).astype(F32),
        fw2=jnp.pad(p["fw2"], ((0, 8), (0, 44))).astype(BF16),         # ->(128,128)
        fb2=jnp.pad(p["fb2"], (0, 44)).reshape(1, 128).astype(F32),
        fw3=jnp.pad(p["fw3"], ((0, 44), (0, 118))).astype(BF16),       # ->(128,128)
        fb3=jnp.pad(p["fb3"], (0, 118)).reshape(1, 128).astype(F32),
    )


@jax.jit
def lenet_forward(x_nchw, params):
    B = x_nchw.shape[0]
    nb = _pick_images_per_step(B)
    G = B // nb

    # conv1 im2col on the host (pure data movement), shipped as bf16.  Within
    # each output row the 40 w positions are stored even-w first then odd-w so
    # the in-kernel pool1 reads contiguous row blocks (no strided gathers).
    x = x_nchw.astype(F32).reshape(B, 44, 44)                        # Cin == 1
    cols = jnp.stack([x[:, kh:kh + 40, kw:kw + 40]
                      for kh in range(5) for kw in range(5)], axis=-1)  # (B,40,40,25)
    cols = jnp.concatenate([cols[:, :, 0::2, :], cols[:, :, 1::2, :]], axis=2)
    patches = jnp.pad(cols.reshape(B, 1600, 25), ((0, 0), (0, 0), (0, 7)))
    patches = patches.astype(BF16)                                   # taps 25->32

    w = _prep_params(params)

    out = pl.pallas_call(
        _lenet_kernel,
        out_shape=jax.ShapeDtypeStruct((G, nb, 128), F32),
        grid=(G,),
        in_specs=[
            pl.BlockSpec((nb, 1600, 32), lambda g: (g, 0, 0)),       # conv1 patches
            pl.BlockSpec((32, 32), lambda g: (0, 0)),                # w1
            pl.BlockSpec((1, 32), lambda g: (0, 0)),                 # b1
            pl.BlockSpec((5, 160, 64), lambda g: (0, 0, 0)),         # w2 (deep-K)
            pl.BlockSpec((1, 64), lambda g: (0, 0)),                 # b2
            pl.BlockSpec((5, 320, 64), lambda g: (0, 0, 0)),         # w3 (deep-K)
            pl.BlockSpec((1, 64), lambda g: (0, 0)),                 # b3
            pl.BlockSpec((256, 128), lambda g: (0, 0)),              # fc1 w
            pl.BlockSpec((1, 128), lambda g: (0, 0)),                # fc1 b
            pl.BlockSpec((128, 128), lambda g: (0, 0)),              # fc2 w
            pl.BlockSpec((1, 128), lambda g: (0, 0)),                # fc2 b
            pl.BlockSpec((128, 128), lambda g: (0, 0)),              # fc3 w
            pl.BlockSpec((1, 128), lambda g: (0, 0)),                # fc3 b
        ],
        out_specs=pl.BlockSpec((None, nb, 128), lambda g: (g, 0, 0)),
        scratch_shapes=[
            pltpu.VMEM((1600, 32), F32),    # a1: conv1 out (40x40x32)
            pltpu.VMEM((320, 160), BF16),   # q1: conv2 width-im2col (20x16, 5*32)
            pltpu.VMEM((256, 64), F32),     # a2: conv2 out (16x16x64)
            pltpu.VMEM((32, 320), BF16),    # q2: conv3 width-im2col (8x4, 5*64)
            pltpu.VMEM((16, 64), F32),      # a3: conv3 out (4x4x64)
        ],
        compiler_params=pltpu.CompilerParams(
            dimension_semantics=("parallel",),
            vmem_limit_bytes=32 * 1024 * 1024),
    )(patches, w["w1"], w["b1"], w["w2"], w["b2"], w["w3"], w["b3"],
      w["fw1"], w["fb1"], w["fw2"], w["fb2"], w["fw3"], w["fb3"])

    return out.reshape(B, 128)[:, :10]


# ---------------- synthetic params + pure-JAX reference ----------------

def init_params(key):
    """Deterministic PyTorch-default-style uniform init (synthetic weights)."""
    def uni(k, shape, fan_in):
        bound = 1.0 / jnp.sqrt(float(fan_in))
        return jax.random.uniform(k, shape, jnp.float32, -bound, bound)
    ks = jax.random.split(key, 12)
    return {
        # conv weights stored as (kh, kw, Cin, Cout)
        "w1": uni(ks[0], (5, 5, 1, 32), 25),    "b1": uni(ks[1], (32,), 25),
        "w2": uni(ks[2], (5, 5, 32, 64), 800),  "b2": uni(ks[3], (64,), 800),
        "w3": uni(ks[4], (5, 5, 64, 64), 1600), "b3": uni(ks[5], (64,), 1600),
        # fc weights stored as (in, out)  (transpose of torch nn.Linear.weight)
        "fw1": uni(ks[6], (256, 120), 256), "fb1": uni(ks[7], (120,), 256),
        "fw2": uni(ks[8], (120, 84), 120),  "fb2": uni(ks[9], (84,), 120),
        "fw3": uni(ks[10], (84, 10), 84),   "fb3": uni(ks[11], (10,), 84),
    }


def lenet_reference(x_nchw, params):
    hi = jax.lax.Precision.HIGHEST
    x = jnp.transpose(x_nchw, (0, 2, 3, 1)).astype(jnp.float32)      # NHWC

    def conv(z, w, b):
        y = jax.lax.conv_general_dilated(
            z, w, window_strides=(1, 1), padding="VALID",
            dimension_numbers=("NHWC", "HWIO", "NHWC"), precision=hi)
        return jax.nn.relu(y + b)

    def pool(z):
        return jax.lax.reduce_window(z, -jnp.inf, jax.lax.max,
                                     (1, 2, 2, 1), (1, 2, 2, 1), "VALID")

    y = pool(conv(x, params["w1"], params["b1"]))
    y = pool(conv(y, params["w2"], params["b2"]))
    y = pool(conv(y, params["w3"], params["b3"]))
    B = y.shape[0]
    y = jnp.transpose(y, (0, 3, 1, 2)).reshape(B, 256)               # NCHW flatten
    y = jax.nn.relu(jnp.dot(y, params["fw1"], precision=hi) + params["fb1"])
    y = jax.nn.relu(jnp.dot(y, params["fw2"], precision=hi) + params["fb2"])
    return jnp.dot(y, params["fw3"], precision=hi) + params["fb3"]


if __name__ == "__main__":
    key = jax.random.PRNGKey(0)
    kx, kp = jax.random.split(key)
    params = init_params(kp)

    # B=2 -> 1 image per step, grid=2 (keeps both TensorCores busy on v7x).
    x2 = jax.random.normal(kx, (2, 1, 44, 44), dtype=jnp.float32)
    y2 = lenet_forward(x2, params)
    jax.block_until_ready(y2)
    assert y2.shape == (2, 10) and y2.dtype == jnp.float32
    r2 = lenet_reference(x2, params)
    e2 = float(jnp.max(jnp.abs(y2 - r2)))
    assert bool(jnp.allclose(y2, r2, atol=3e-2, rtol=3e-2)), f"max abs err {e2}"

    # B=4 -> 2 images per step (exercises the batched FC head / dense out store).
    x4 = jax.random.normal(kx, (4, 1, 44, 44), dtype=jnp.float32)
    y4 = lenet_forward(x4, params)
    jax.block_until_ready(y4)
    r4 = lenet_reference(x4, params)
    e4 = float(jnp.max(jnp.abs(y4 - r4)))
    assert bool(jnp.allclose(y4, r4, atol=3e-2, rtol=3e-2)), f"max abs err {e4}"

    print("KERNEL_OK")
</pallas_src>

<mosaic_0001>
module attributes {stable_mosaic.version = 11 : i64} {
  func.func @_lenet_kernel(%arg0: i32, %arg1: memref<1x1600x32xbf16, #tpu.memory_space<vmem>>, %arg2: memref<32x32xbf16, #tpu.memory_space<vmem>>, %arg3: memref<1x32xf32, #tpu.memory_space<vmem>>, %arg4: memref<5x160x64xbf16, #tpu.memory_space<vmem>>, %arg5: memref<1x64xf32, #tpu.memory_space<vmem>>, %arg6: memref<5x320x64xbf16, #tpu.memory_space<vmem>>, %arg7: memref<1x64xf32, #tpu.memory_space<vmem>>, %arg8: memref<256x128xbf16, #tpu.memory_space<vmem>>, %arg9: memref<1x128xf32, #tpu.memory_space<vmem>>, %arg10: memref<128x128xbf16, #tpu.memory_space<vmem>>, %arg11: memref<1x128xf32, #tpu.memory_space<vmem>>, %arg12: memref<128x128xbf16, #tpu.memory_space<vmem>>, %arg13: memref<1x128xf32, #tpu.memory_space<vmem>>, %arg14: memref<1x1x128xf32, #tpu.memory_space<vmem>>, %arg15: memref<1600x32xf32, #tpu.memory_space<vmem>>, %arg16: memref<320x160xbf16, #tpu.memory_space<vmem>>, %arg17: memref<256x64xf32, #tpu.memory_space<vmem>>, %arg18: memref<32x320xbf16, #tpu.memory_space<vmem>>, %arg19: memref<16x64xf32, #tpu.memory_space<vmem>>) attributes {dimension_semantics = [#tpu.dimension_semantics<parallel>], iteration_bounds = array<i64: 2>, scalar_prefetch = 0 : i64, scratch_operands = 5 : i64, tpu.core_type = #tpu.core_type<tc>, window_params = [{transform_indices = @transform_0, window_bounds = array<i64: 1, 1600, 32>}, {pipeline_mode = #tpu.pipeline_mode<synchronous>, transform_indices = @transform_1, window_bounds = array<i64: 32, 32>}, {pipeline_mode = #tpu.pipeline_mode<synchronous>, transform_indices = @transform_2, window_bounds = array<i64: 1, 32>}, {pipeline_mode = #tpu.pipeline_mode<synchronous>, transform_indices = @transform_3, window_bounds = array<i64: 5, 160, 64>}, {pipeline_mode = #tpu.pipeline_mode<synchronous>, transform_indices = @transform_4, window_bounds = array<i64: 1, 64>}, {pipeline_mode = #tpu.pipeline_mode<synchronous>, transform_indices = @transform_5, window_bounds = array<i64: 5, 320, 64>}, {pipeline_mode = #tpu.pipeline_mode<synchronous>, transform_indices = @transform_6, window_bounds = array<i64: 1, 64>}, {pipeline_mode = #tpu.pipeline_mode<synchronous>, transform_indices = @transform_7, window_bounds = array<i64: 256, 128>}, {pipeline_mode = #tpu.pipeline_mode<synchronous>, transform_indices = @transform_8, window_bounds = array<i64: 1, 128>}, {pipeline_mode = #tpu.pipeline_mode<synchronous>, transform_indices = @transform_9, window_bounds = array<i64: 128, 128>}, {pipeline_mode = #tpu.pipeline_mode<synchronous>, transform_indices = @transform_10, window_bounds = array<i64: 1, 128>}, {pipeline_mode = #tpu.pipeline_mode<synchronous>, transform_indices = @transform_11, window_bounds = array<i64: 128, 128>}, {pipeline_mode = #tpu.pipeline_mode<synchronous>, transform_indices = @transform_12, window_bounds = array<i64: 1, 128>}, {transform_indices = @transform_13, window_bounds = array<i64: 1, 1, 128>}]} {
    %c0 = arith.constant 0 : index
    %c0_0 = arith.constant 0 : index
    %0 = vector.load %arg3[%c0, %c0_0] : memref<1x32xf32, #tpu.memory_space<vmem>>, vector<1x32xf32>
    %c0_1 = arith.constant 0 : index
    %c0_2 = arith.constant 0 : index
    %1 = vector.load %arg5[%c0_1, %c0_2] : memref<1x64xf32, #tpu.memory_space<vmem>>, vector<1x64xf32>
    %c0_3 = arith.constant 0 : index
    %c0_4 = arith.constant 0 : index
    %2 = vector.load %arg7[%c0_3, %c0_4] : memref<1x64xf32, #tpu.memory_space<vmem>>, vector<1x64xf32>
    %c0_5 = arith.constant 0 : index
    %c0_6 = arith.constant 0 : index
    %c0_7 = arith.constant 0 : index
    %3 = vector.load %arg1[%c0_5, %c0_6, %c0_7] : memref<1x1600x32xbf16, #tpu.memory_space<vmem>>, vector<1x1600x32xbf16>
    %4 = vector.shape_cast %3 : vector<1x1600x32xbf16> to vector<1600x32xbf16>
    %c0_8 = arith.constant 0 : index
    %c0_9 = arith.constant 0 : index
    %5 = vector.load %arg2[%c0_8, %c0_9] : memref<32x32xbf16, #tpu.memory_space<vmem>>, vector<32x32xbf16>
    %cst = arith.constant dense<0.000000e+00> : vector<1600x32xf32>
    %6 = tpu.matmul %4, %5, %cst {dimension_numbers = #tpu.dot_dimension_numbers<[1], [0], [0], [1], [0, 0, 1, 1], [], []>} : vector<1600x32xbf16>, vector<32x32xbf16>, vector<1600x32xf32> -> vector<1600x32xf32>
    %c0_10 = arith.constant 0 : index
    %c0_11 = arith.constant 0 : index
    %7 = vector.load %arg15[%c0_10, %c0_11] : memref<1600x32xf32, #tpu.memory_space<vmem>>, vector<1600x32xf32>
    tpu.vector_store %arg15[%c0_10, %c0_11], %6 {strides = array<i32>} : memref<1600x32xf32, #tpu.memory_space<vmem>>, vector<1600x32xf32>,
    %c0_12 = arith.constant 0 : index
    %c0_13 = arith.constant 0 : index
    %8 = vector.load %arg15[%c0_12, %c0_13] : memref<1600x32xf32, #tpu.memory_space<vmem>>, vector<20x32xf32>
    %c20 = arith.constant 20 : index
    %c0_14 = arith.constant 0 : index
    %9 = vector.load %arg15[%c20, %c0_14] : memref<1600x32xf32, #tpu.memory_space<vmem>>, vector<20x32xf32>
    %10 = arith.maximumf %8, %9 : vector<20x32xf32>
    %c40 = arith.constant 40 : index
    %c0_15 = arith.constant 0 : index
    %11 = vector.load %arg15[%c40, %c0_15] : memref<1600x32xf32, #tpu.memory_space<vmem>>, vector<20x32xf32>
    %c60 = arith.constant 60 : index
    %c0_16 = arith.constant 0 : index
    %12 = vector.load %arg15[%c60, %c0_16] : memref<1600x32xf32, #tpu.memory_space<vmem>>, vector<20x32xf32>
    %13 = arith.maximumf %11, %12 : vector<20x32xf32>
    %14 = arith.maximumf %10, %13 : vector<20x32xf32>
    %15 = vector.broadcast %0 : vector<1x32xf32> to vector<20x32xf32>
    %16 = arith.addf %14, %15 : vector<20x32xf32>
    %cst_17 = arith.constant 0.000000e+00 : f32
    %17 = vector.broadcast %cst_17 : f32 to vector<20x32xf32>
    %18 = arith.maximumf %16, %17 : vector<20x32xf32>
    %19 = arith.truncf %18 : vector<20x32xf32> to vector<20x32xbf16>
    %20 = vector.extract_strided_slice %19 {offsets = [0, 0], sizes = [16, 32], strides = [1, 1]} : vector<20x32xbf16> to vector<16x32xbf16>
    %c0_18 = arith.constant 0 : index
    %c0_19 = arith.constant 0 : index
    %21 = vector.load %arg16[%c0_18, %c0_19] : memref<320x160xbf16, #tpu.memory_space<vmem>>, vector<16x32xbf16>
    tpu.vector_store %arg16[%c0_18, %c0_19], %20 {strides = array<i32>} : memref<320x160xbf16, #tpu.memory_space<vmem>>, vector<16x32xbf16>,
    %22 = vector.extract_strided_slice %19 {offsets = [1, 0], sizes = [16, 32], strides = [1, 1]} : vector<20x32xbf16> to vector<16x32xbf16>
    %c0_20 = arith.constant 0 : index
    %c32 = arith.constant 32 : index
    %23 = vector.load %arg16[%c0_20, %c32] : memref<320x160xbf16, #tpu.memory_space<vmem>>, vector<16x32xbf16>
    tpu.vector_store %arg16[%c0_20, %c32], %22 {strides = array<i32>} : memref<320x160xbf16, #tpu.memory_space<vmem>>, vector<16x32xbf16>,
    %24 = vector.extract_strided_slice %19 {offsets = [2, 0], sizes = [16, 32], strides = [1, 1]} : vector<20x32xbf16> to vector<16x32xbf16>
    %c0_21 = arith.constant 0 : index
    %c64 = arith.constant 64 : index
    %25 = vector.load %arg16[%c0_21, %c64] : memref<320x160xbf16, #tpu.memory_space<vmem>>, vector<16x32xbf16>
    tpu.vector_store %arg16[%c0_21, %c64], %24 {strides = array<i32>} : memref<320x160xbf16, #tpu.memory_space<vmem>>, vector<16x32xbf16>,
    %26 = vector.extract_strided_slice %19 {offsets = [3, 0], sizes = [16, 32], strides = [1, 1]} : vector<20x32xbf16> to vector<16x32xbf16>
    %c0_22 = arith.constant 0 : index
    %c96 = arith.constant 96 : index
    %27 = vector.load %arg16[%c0_22, %c96] : memref<320x160xbf16, #tpu.memory_space<vmem>>, vector<16x32xbf16>
    tpu.vector_store %arg16[%c0_22, %c96], %26 {strides = array<i32>} : memref<320x160xbf16, #tpu.memory_space<vmem>>, vector<16x32xbf16>,
    %28 = vector.extract_strided_slice %19 {offsets = [4, 0], sizes = [16, 32], strides = [1, 1]} : vector<20x32xbf16> to vector<16x32xbf16>
    %c0_23 = arith.constant 0 : index
    %c128 = arith.constant 128 : index
    %29 = vector.load %arg16[%c0_23, %c128] : memref<320x160xbf16, #tpu.memory_space<vmem>>, vector<16x32xbf16>
    tpu.vector_store %arg16[%c0_23, %c128], %28 {strides = array<i32>} : memref<320x160xbf16, #tpu.memory_space<vmem>>, vector<16x32xbf16>,
    %c80 = arith.constant 80 : index
    %c0_24 = arith.constant 0 : index
    %30 = vector.load %arg15[%c80, %c0_24] : memref<1600x32xf32, #tpu.memory_space<vmem>>, vector<20x32xf32>
    %c100 = arith.constant 100 : index
    %c0_25 = arith.constant 0 : index
    %31 = vector.load %arg15[%c100, %c0_25] : memref<1600x32xf32, #tpu.memory_space<vmem>>, vector<20x32xf32>
    %32 = arith.maximumf %30, %31 : vector<20x32xf32>
    %c120 = arith.constant 120 : index
    %c0_26 = arith.constant 0 : index
    %33 = vector.load %arg15[%c120, %c0_26] : memref<1600x32xf32, #tpu.memory_space<vmem>>, vector<20x32xf32>
    %c140 = arith.constant 140 : index
    %c0_27 = arith.constant 0 : index
    %34 = vector.load %arg15[%c140, %c0_27] : memref<1600x32xf32, #tpu.memory_space<vmem>>, vector<20x32xf32>
    %35 = arith.maximumf %33, %34 : vector<20x32xf32>
    %36 = arith.maximumf %32, %35 : vector<20x32xf32>
    %37 = vector.broadcast %0 : vector<1x32xf32> to vector<20x32xf32>
    %38 = arith.addf %36, %37 : vector<20x32xf32>
    %cst_28 = arith.constant 0.000000e+00 : f32
    %39 = vector.broadcast %cst_28 : f32 to vector<20x32xf32>
    %40 = arith.maximumf %38, %39 : vector<20x32xf32>
    %41 = arith.truncf %40 : vector<20x32xf32> to vector<20x32xbf16>
    %42 = vector.extract_strided_slice %41 {offsets = [0, 0], sizes = [16, 32], strides = [1, 1]} : vector<20x32xbf16> to vector<16x32xbf16>
    %c16 = arith.constant 16 : index
    %c0_29 = arith.constant 0 : index
    %43 = vector.load %arg16[%c16, %c0_29] : memref<320x160xbf16, #tpu.memory_space<vmem>>, vector<16x32xbf16>
    tpu.vector_store %arg16[%c16, %c0_29], %42 {strides = array<i32>} : memref<320x160xbf16, #tpu.memory_space<vmem>>, vector<16x32xbf16>,
    %44 = vector.extract_strided_slice %41 {offsets = [1, 0], sizes = [16, 32], strides = [1, 1]} : vector<20x32xbf16> to vector<16x32xbf16>
    %c16_30 = arith.constant 16 : index
    %c32_31 = arith.constant 32 : index
    %45 = vector.load %arg16[%c16_30, %c32_31] : memref<320x160xbf16, #tpu.memory_space<vmem>>, vector<16x32xbf16>
    tpu.vector_store %arg16[%c16_30, %c32_31], %44 {strides = array<i32>} : memref<320x160xbf16, #tpu.memory_space<vmem>>, vector<16x32xbf16>,
    %46 = vector.extract_strided_slice %41 {offsets = [2, 0], sizes = [16, 32], strides = [1, 1]} : vector<20x32xbf16> to vector<16x32xbf16>
    %c16_32 = arith.constant 16 : index
    %c64_33 = arith.constant 64 : index
    %47 = vector.load %arg16[%c16_32, %c64_33] : memref<320x160xbf16, #tpu.memory_space<vmem>>, vector<16x32xbf16>
    tpu.vector_store %arg16[%c16_32, %c64_33], %46 {strides = array<i32>} : memref<320x160xbf16, #tpu.memory_space<vmem>>, vector<16x32xbf16>,
    %48 = vector.extract_strided_slice %41 {offsets = [3, 0], sizes = [16, 32], strides = [1, 1]} : vector<20x32xbf16> to vector<16x32xbf16>
    %c16_34 = arith.constant 16 : index
    %c96_35 = arith.constant 96 : index
    %49 = vector.load %arg16[%c16_34, %c96_35] : memref<320x160xbf16, #tpu.memory_space<vmem>>, vector<16x32xbf16>
    tpu.vector_store %arg16[%c16_34, %c96_35], %48 {strides = array<i32>} : memref<320x160xbf16, #tpu.memory_space<vmem>>, vector<16x32xbf16>,
    %50 = vector.extract_strided_slice %41 {offsets = [4, 0], sizes = [16, 32], strides = [1, 1]} : vector<20x32xbf16> to vector<16x32xbf16>
    %c16_36 = arith.constant 16 : index
    %c128_37 = arith.constant 128 : index
    %51 = vector.load %arg16[%c16_36, %c128_37] : memref<320x160xbf16, #tpu.memory_space<vmem>>, vector<16x32xbf16>
    tpu.vector_store %arg16[%c16_36, %c128_37], %50 {strides = array<i32>} : memref<320x160xbf16, #tpu.memory_space<vmem>>, vector<16x32xbf16>,
    %c160 = arith.constant 160 : index
    %c0_38 = arith.constant 0 : index
    %52 = vector.load %arg15[%c160, %c0_38] : memref<1600x32xf32, #tpu.memory_space<vmem>>, vector<20x32xf32>
    %c180 = arith.constant 180 : index
    %c0_39 = arith.constant 0 : index
    %53 = vector.load %arg15[%c180, %c0_39] : memref<1600x32xf32, #tpu.memory_space<vmem>>, vector<20x32xf32>
    %54 = arith.maximumf %52, %53 : vector<20x32xf32>
    %c200 = arith.constant 200 : index
    %c0_40 = arith.constant 0 : index
    %55 = vector.load %arg15[%c200, %c0_40] : memref<1600x32xf32, #tpu.memory_space<vmem>>, vector<20x32xf32>
    %c220 = arith.constant 220 : index
    %c0_41 = arith.constant 0 : index
    %56 = vector.load %arg15[%c220, %c0_41] : memref<1600x32xf32, #tpu.memory_space<vmem>>, vector<20x32xf32>
    %57 = arith.maximumf %55, %56 : vector<20x32xf32>
    %58 = arith.maximumf %54, %57 : vector<20x32xf32>
    %59 = vector.broadcast %0 : vector<1x32xf32> to vector<20x32xf32>
    %60 = arith.addf %58, %59 : vector<20x32xf32>
    %cst_42 = arith.constant 0.000000e+00 : f32
    %61 = vector.broadcast %cst_42 : f32 to vector<20x32xf32>
    %62 = arith.maximumf %60, %61 : vector<20x32xf32>
    %63 = arith.truncf %62 : vector<20x32xf32> to vector<20x32xbf16>
    %64 = vector.extract_strided_slice %63 {offsets = [0, 0], sizes = [16, 32], strides = [1, 1]} : vector<20x32xbf16> to vector<16x32xbf16>
    %c32_43 = arith.constant 32 : index
    %c0_44 = arith.constant 0 : index
    %65 = vector.load %arg16[%c32_43, %c0_44] : memref<320x160xbf16, #tpu.memory_space<vmem>>, vector<16x32xbf16>
    tpu.vector_store %arg16[%c32_43, %c0_44], %64 {strides = array<i32>} : memref<320x160xbf16, #tpu.memory_space<vmem>>, vector<16x32xbf16>,
    %66 = vector.extract_strided_slice %63 {offsets = [1, 0], sizes = [16, 32], strides = [1, 1]} : vector<20x32xbf16> to vector<16x32xbf16>
    %c32_45 = arith.constant 32 : index
    %c32_46 = arith.constant 32 : index
    %67 = vector.load %arg16[%c32_45, %c32_46] : memref<320x160xbf16, #tpu.memory_space<vmem>>, vector<16x32xbf16>
    tpu.vector_store %arg16[%c32_45, %c32_46], %66 {strides = array<i32>} : memref<320x160xbf16, #tpu.memory_space<vmem>>, vector<16x32xbf16>,
    %68 = vector.extract_strided_slice %63 {offsets = [2, 0], sizes = [16, 32], strides = [1, 1]} : vector<20x32xbf16> to vector<16x32xbf16>
    %c32_47 = arith.constant 32 : index
    %c64_48 = arith.constant 64 : index
    %69 = vector.load %arg16[%c32_47, %c64_48] : memref<320x160xbf16, #tpu.memory_space<vmem>>, vector<16x32xbf16>
    tpu.vector_store %arg16[%c32_47, %c64_48], %68 {strides = array<i32>} : memref<320x160xbf16, #tpu.memory_space<vmem>>, vector<16x32xbf16>,
    %70 = vector.extract_strided_slice %63 {offsets = [3, 0], sizes = [16, 32], strides = [1, 1]} : vector<20x32xbf16> to vector<16x32xbf16>
    %c32_49 = arith.constant 32 : index
    %c96_50 = arith.constant 96 : index
    %71 = vector.load %arg16[%c32_49, %c96_50] : memref<320x160xbf16, #tpu.memory_space<vmem>>, vector<16x32xbf16>
    tpu.vector_store %arg16[%c32_49, %c96_50], %70 {strides = array<i32>} : memref<320x160xbf16, #tpu.memory_space<vmem>>, vector<16x32xbf16>,
    %72 = vector.extract_strided_slice %63 {offsets = [4, 0], sizes = [16, 32], strides = [1, 1]} : vector<20x32xbf16> to vector<16x32xbf16>
    %c32_51 = arith.constant 32 : index
    %c128_52 = arith.constant 128 : index
    %73 = vector.load %arg16[%c32_51, %c128_52] : memref<320x160xbf16, #tpu.memory_space<vmem>>, vector<16x32xbf16>
    tpu.vector_store %arg16[%c32_51, %c128_52], %72 {strides = array<i32>} : memref<320x160xbf16, #tpu.memory_space<vmem>>, vector<16x32xbf16>,
    %c240 = arith.constant 240 : index
    %c0_53 = arith.constant 0 : index
    %74 = vector.load %arg15[%c240, %c0_53] : memref<1600x32xf32, #tpu.memory_space<vmem>>, vector<20x32xf32>
    %c260 = arith.constant 260 : index
    %c0_54 = arith.constant 0 : index
    %75 = vector.load %arg15[%c260, %c0_54] : memref<1600x32xf32, #tpu.memory_space<vmem>>, vector<20x32xf32>
    %76 = arith.maximumf %74, %75 : vector<20x32xf32>
    %c280 = arith.constant 280 : index
    %c0_55 = arith.constant 0 : index
    %77 = vector.load %arg15[%c280, %c0_55] : memref<1600x32xf32, #tpu.memory_space<vmem>>, vector<20x32xf32>
    %c300 = arith.constant 300 : index
    %c0_56 = arith.constant 0 : index
    %78 = vector.load %arg15[%c300, %c0_56] : memref<1600x32xf32, #tpu.memory_space<vmem>>, vector<20x32xf32>
    %79 = arith.maximumf %77, %78 : vector<20x32xf32>
    %80 = arith.maximumf %76, %79 : vector<20x32xf32>
    %81 = vector.broadcast %0 : vector<1x32xf32> to vector<20x32xf32>
    %82 = arith.addf %80, %81 : vector<20x32xf32>
    %cst_57 = arith.constant 0.000000e+00 : f32
    %83 = vector.broadcast %cst_57 : f32 to vector<20x32xf32>
    %84 = arith.maximumf %82, %83 : vector<20x32xf32>
    %85 = arith.truncf %84 : vector<20x32xf32> to vector<20x32xbf16>
    %86 = vector.extract_strided_slice %85 {offsets = [0, 0], sizes = [16, 32], strides = [1, 1]} : vector<20x32xbf16> to vector<16x32xbf16>
    %c48 = arith.constant 48 : index
    %c0_58 = arith.constant 0 : index
    %87 = vector.load %arg16[%c48, %c0_58] : memref<320x160xbf16, #tpu.memory_space<vmem>>, vector<16x32xbf16>
    tpu.vector_store %arg16[%c48, %c0_58], %86 {strides = array<i32>} : memref<320x160xbf16, #tpu.memory_space<vmem>>, vector<16x32xbf16>,
    %88 = vector.extract_strided_slice %85 {offsets = [1, 0], sizes = [16, 32], strides = [1, 1]} : vector<20x32xbf16> to vector<16x32xbf16>
    %c48_59 = arith.constant 48 : index
    %c32_60 = arith.constant 32 : index
    %89 = vector.load %arg16[%c48_59, %c32_60] : memref<320x160xbf16, #tpu.memory_space<vmem>>, vector<16x32xbf16>
    tpu.vector_store %arg16[%c48_59, %c32_60], %88 {strides = array<i32>} : memref<320x160xbf16, #tpu.memory_space<vmem>>, vector<16x32xbf16>,
    %90 = vector.extract_strided_slice %85 {offsets = [2, 0], sizes = [16, 32], strides = [1, 1]} : vector<20x32xbf16> to vector<16x32xbf16>
    %c48_61 = arith.constant 48 : index
    %c64_62 = arith.constant 64 : index
    %91 = vector.load %arg16[%c48_61, %c64_62] : memref<320x160xbf16, #tpu.memory_space<vmem>>, vector<16x32xbf16>
    tpu.vector_store %arg16[%c48_61, %c64_62], %90 {strides = array<i32>} : memref<320x160xbf16, #tpu.memory_space<vmem>>, vector<16x32xbf16>,
    %92 = vector.extract_strided_slice %85 {offsets = [3, 0], sizes = [16, 32], strides = [1, 1]} : vector<20x32xbf16> to vector<16x32xbf16>
    %c48_63 = arith.constant 48 : index
    %c96_64 = arith.constant 96 : index
    %93 = vector.load %arg16[%c48_63, %c96_64] : memref<320x160xbf16, #tpu.memory_space<vmem>>, vector<16x32xbf16>
    tpu.vector_store %arg16[%c48_63, %c96_64], %92 {strides = array<i32>} : memref<320x160xbf16, #tpu.memory_space<vmem>>, vector<16x32xbf16>,
    %94 = vector.extract_strided_slice %85 {offsets = [4, 0], sizes = [16, 32], strides = [1, 1]} : vector<20x32xbf16> to vector<16x32xbf16>
    %c48_65 = arith.constant 48 : index
    %c128_66 = arith.constant 128 : index
    %95 = vector.load %arg16[%c48_65, %c128_66] : memref<320x160xbf16, #tpu.memory_space<vmem>>, vector<16x32xbf16>
    tpu.vector_store %arg16[%c48_65, %c128_66], %94 {strides = array<i32>} : memref<320x160xbf16, #tpu.memory_space<vmem>>, vector<16x32xbf16>,
    %c320 = arith.constant 320 : index
    %c0_67 = arith.constant 0 : index
    %96 = vector.load %arg15[%c320, %c0_67] : memref<1600x32xf32, #tpu.memory_space<vmem>>, vector<20x32xf32>
    %c340 = arith.constant 340 : index
    %c0_68 = arith.constant 0 : index
    %97 = vector.load %arg15[%c340, %c0_68] : memref<1600x32xf32, #tpu.memory_space<vmem>>, vector<20x32xf32>
    %98 = arith.maximumf %96, %97 : vector<20x32xf32>
    %c360 = arith.constant 360 : index
    %c0_69 = arith.constant 0 : index
    %99 = vector.load %arg15[%c360, %c0_69] : memref<1600x32xf32, #tpu.memory_space<vmem>>, vector<20x32xf32>
    %c380 = arith.constant 380 : index
    %c0_70 = arith.constant 0 : index
    %100 = vector.load %arg15[%c380, %c0_70] : memref<1600x32xf32, #tpu.memory_space<vmem>>, vector<20x32xf32>
    %101 = arith.maximumf %99, %100 : vector<20x32xf32>
    %102 = arith.maximumf %98, %101 : vector<20x32xf32>
    %103 = vector.broadcast %0 : vector<1x32xf32> to vector<20x32xf32>
    %104 = arith.addf %102, %103 : vector<20x32xf32>
    %cst_71 = arith.constant 0.000000e+00 : f32
    %105 = vector.broadcast %cst_71 : f32 to vector<20x32xf32>
    %106 = arith.maximumf %104, %105 : vector<20x32xf32>
    %107 = arith.truncf %106 : vector<20x32xf32> to vector<20x32xbf16>
    %108 = vector.extract_strided_slice %107 {offsets = [0, 0], sizes = [16, 32], strides = [1, 1]} : vector<20x32xbf16> to vector<16x32xbf16>
    %c64_72 = arith.constant 64 : index
    %c0_73 = arith.constant 0 : index
    %109 = vector.load %arg16[%c64_72, %c0_73] : memref<320x160xbf16, #tpu.memory_space<vmem>>, vector<16x32xbf16>
    tpu.vector_store %arg16[%c64_72, %c0_73], %108 {strides = array<i32>} : memref<320x160xbf16, #tpu.memory_space<vmem>>, vector<16x32xbf16>,
    %110 = vector.extract_strided_slice %107 {offsets = [1, 0], sizes = [16, 32], strides = [1, 1]} : vector<20x32xbf16> to vector<16x32xbf16>
    %c64_74 = arith.constant 64 : index
    %c32_75 = arith.constant 32 : index
    %111 = vector.load %arg16[%c64_74, %c32_75] : memref<320x160xbf16, #tpu.memory_space<vmem>>, vector<16x32xbf16>
    tpu.vector_store %arg16[%c64_74, %c32_75], %110 {strides = array<i32>} : memref<320x160xbf16, #tpu.memory_space<vmem>>, vector<16x32xbf16>,
    %112 = vector.extract_strided_slice %107 {offsets = [2, 0], sizes = [16, 32], strides = [1, 1]} : vector<20x32xbf16> to vector<16x32xbf16>
    %c64_76 = arith.constant 64 : index
    %c64_77 = arith.constant 64 : index
    %113 = vector.load %arg16[%c64_76, %c64_77] : memref<320x160xbf16, #tpu.memory_space<vmem>>, vector<16x32xbf16>
    tpu.vector_store %arg16[%c64_76, %c64_77], %112 {strides = array<i32>} : memref<320x160xbf16, #tpu.memory_space<vmem>>, vector<16x32xbf16>,
    %114 = vector.extract_strided_slice %107 {offsets = [3, 0], sizes = [16, 32], strides = [1, 1]} : vector<20x32xbf16> to vector<16x32xbf16>
    %c64_78 = arith.constant 64 : index
    %c96_79 = arith.constant 96 : index
    %115 = vector.load %arg16[%c64_78, %c96_79] : memref<320x160xbf16, #tpu.memory_space<vmem>>, vector<16x32xbf16>
    tpu.vector_store %arg16[%c64_78, %c96_79], %114 {strides = array<i32>} : memref<320x160xbf16, #tpu.memory_space<vmem>>, vector<16x32xbf16>,
    %116 = vector.extract_strided_slice %107 {offsets = [4, 0], sizes = [16, 32], strides = [1, 1]} : vector<20x32xbf16> to vector<16x32xbf16>
    %c64_80 = arith.constant 64 : index
    %c128_81 = arith.constant 128 : index
    %117 = vector.load %arg16[%c64_80, %c128_81] : memref<320x160xbf16, #tpu.memory_space<vmem>>, vector<16x32xbf16>
    tpu.vector_store %arg16[%c64_80, %c128_81], %116 {strides = array<i32>} : memref<320x160xbf16, #tpu.memory_space<vmem>>, vector<16x32xbf16>,
    %c400 = arith.constant 400 : index
    %c0_82 = arith.constant 0 : index
    %118 = vector.load %arg15[%c400, %c0_82] : memref<1600x32xf32, #tpu.memory_space<vmem>>, vector<20x32xf32>
    %c420 = arith.constant 420 : index
    %c0_83 = arith.constant 0 : index
    %119 = vector.load %arg15[%c420, %c0_83] : memref<1600x32xf32, #tpu.memory_space<vmem>>, vector<20x32xf32>
    %120 = arith.maximumf %118, %119 : vector<20x32xf32>
    %c440 = arith.constant 440 : index
    %c0_84 = arith.constant 0 : index
    %121 = vector.load %arg15[%c440, %c0_84] : memref<1600x32xf32, #tpu.memory_space<vmem>>, vector<20x32xf32>
    %c460 = arith.constant 460 : index
    %c0_85 = arith.constant 0 : index
    %122 = vector.load %arg15[%c460, %c0_85] : memref<1600x32xf32, #tpu.memory_space<vmem>>, vector<20x32xf32>
    %123 = arith.maximumf %121, %122 : vector<20x32xf32>
    %124 = arith.maximumf %120, %123 : vector<20x32xf32>
    %125 = vector.broadcast %0 : vector<1x32xf32> to vector<20x32xf32>
    %126 = arith.addf %124, %125 : vector<20x32xf32>
    %cst_86 = arith.constant 0.000000e+00 : f32
    %127 = vector.broadcast %cst_86 : f32 to vector<20x32xf32>
    %128 = arith.maximumf %126, %127 : vector<20x32xf32>
    %129 = arith.truncf %128 : vector<20x32xf32> to vector<20x32xbf16>
    %130 = vector.extract_strided_slice %129 {offsets = [0, 0], sizes = [16, 32], strides = [1, 1]} : vector<20x32xbf16> to vector<16x32xbf16>
    %c80_87 = arith.constant 80 : index
    %c0_88 = arith.constant 0 : index
    %131 = vector.load %arg16[%c80_87, %c0_88] : memref<320x160xbf16, #tpu.memory_space<vmem>>, vector<16x32xbf16>
    tpu.vector_store %arg16[%c80_87, %c0_88], %130 {strides = array<i32>} : memref<320x160xbf16, #tpu.memory_space<vmem>>, vector<16x32xbf16>,
    %132 = vector.extract_strided_slice %129 {offsets = [1, 0], sizes = [16, 32], strides = [1, 1]} : vector<20x32xbf16> to vector<16x32xbf16>
    %c80_89 = arith.constant 80 : index
    %c32_90 = arith.constant 32 : index
    %133 = vector.load %arg16[%c80_89, %c32_90] : memref<320x160xbf16, #tpu.memory_space<vmem>>, vector<16x32xbf16>
    tpu.vector_store %arg16[%c80_89, %c32_90], %132 {strides = array<i32>} : memref<320x160xbf16, #tpu.memory_space<vmem>>, vector<16x32xbf16>,
    %134 = vector.extract_strided_slice %129 {offsets = [2, 0], sizes = [16, 32], strides = [1, 1]} : vector<20x32xbf16> to vector<16x32xbf16>
    %c80_91 = arith.constant 80 : index
    %c64_92 = arith.constant 64 : index
    %135 = vector.load %arg16[%c80_91, %c64_92] : memref<320x160xbf16, #tpu.memory_space<vmem>>, vector<16x32xbf16>
    tpu.vector_store %arg16[%c80_91, %c64_92], %134 {strides = array<i32>} : memref<320x160xbf16, #tpu.memory_space<vmem>>, vector<16x32xbf16>,
    %136 = vector.extract_strided_slice %129 {offsets = [3, 0], sizes = [16, 32], strides = [1, 1]} : vector<20x32xbf16> to vector<16x32xbf16>
    %c80_93 = arith.constant 80 : index
    %c96_94 = arith.constant 96 : index
    %137 = vector.load %arg16[%c80_93, %c96_94] : memref<320x160xbf16, #tpu.memory_space<vmem>>, vector<16x32xbf16>
    tpu.vector_store %arg16[%c80_93, %c96_94], %136 {strides = array<i32>} : memref<320x160xbf16, #tpu.memory_space<vmem>>, vector<16x32xbf16>,
    %138 = vector.extract_strided_slice %129 {offsets = [4, 0], sizes = [16, 32], strides = [1, 1]} : vector<20x32xbf16> to vector<16x32xbf16>
    %c80_95 = arith.constant 80 : index
    %c128_96 = arith.constant 128 : index
    %139 = vector.load %arg16[%c80_95, %c128_96] : memref<320x160xbf16, #tpu.memory_space<vmem>>, vector<16x32xbf16>
    tpu.vector_store %arg16[%c80_95, %c128_96], %138 {strides = array<i32>} : memref<320x160xbf16, #tpu.memory_space<vmem>>, vector<16x32xbf16>,
    %c480 = arith.constant 480 : index
    %c0_97 = arith.constant 0 : index
    %140 = vector.load %arg15[%c480, %c0_97] : memref<1600x32xf32, #tpu.memory_space<vmem>>, vector<20x32xf32>
    %c500 = arith.constant 500 : index
    %c0_98 = arith.constant 0 : index
    %141 = vector.load %arg15[%c500, %c0_98] : memref<1600x32xf32, #tpu.memory_space<vmem>>, vector<20x32xf32>
    %142 = arith.maximumf %140, %141 : vector<20x32xf32>
    %c520 = arith.constant 520 : index
    %c0_99 = arith.constant 0 : index
    %143 = vector.load %arg15[%c520, %c0_99] : memref<1600x32xf32, #tpu.memory_space<vmem>>, vector<20x32xf32>
    %c540 = arith.constant 540 : index
    %c0_100 = arith.constant 0 : index
    %144 = vector.load %arg15[%c540, %c0_100] : memref<1600x32xf32, #tpu.memory_space<vmem>>, vector<20x32xf32>
    %145 = arith.maximumf %143, %144 : vector<20x32xf32>
    %146 = arith.maximumf %142, %145 : vector<20x32xf32>
    %147 = vector.broadcast %0 : vector<1x32xf32> to vector<20x32xf32>
    %148 = arith.addf %146, %147 : vector<20x32xf32>
    %cst_101 = arith.constant 0.000000e+00 : f32
    %149 = vector.broadcast %cst_101 : f32 to vector<20x32xf32>
    %150 = arith.maximumf %148, %149 : vector<20x32xf32>
    %151 = arith.truncf %150 : vector<20x32xf32> to vector<20x32xbf16>
    %152 = vector.extract_strided_slice %151 {offsets = [0, 0], sizes = [16, 32], strides = [1, 1]} : vector<20x32xbf16> to vector<16x32xbf16>
    %c96_102 = arith.constant 96 : index
    %c0_103 = arith.constant 0 : index
    %153 = vector.load %arg16[%c96_102, %c0_103] : memref<320x160xbf16, #tpu.memory_space<vmem>>, vector<16x32xbf16>
    tpu.vector_store %arg16[%c96_102, %c0_103], %152 {strides = array<i32>} : memref<320x160xbf16, #tpu.memory_space<vmem>>, vector<16x32xbf16>,
    %154 = vector.extract_strided_slice %151 {offsets = [1, 0], sizes = [16, 32], strides = [1, 1]} : vector<20x32xbf16> to vector<16x32xbf16>
    %c96_104 = arith.constant 96 : index
    %c32_105 = arith.constant 32 : index
    %155 = vector.load %arg16[%c96_104, %c32_105] : memref<320x160xbf16, #tpu.memory_space<vmem>>, vector<16x32xbf16>
    tpu.vector_store %arg16[%c96_104, %c32_105], %154 {strides = array<i32>} : memref<320x160xbf16, #tpu.memory_space<vmem>>, vector<16x32xbf16>,
    %156 = vector.extract_strided_slice %151 {offsets = [2, 0], sizes = [16, 32], strides = [1, 1]} : vector<20x32xbf16> to vector<16x32xbf16>
    %c96_106 = arith.constant 96 : index
    %c64_107 = arith.constant 64 : index
    %157 = vector.load %arg16[%c96_106, %c64_107] : memref<320x160xbf16, #tpu.memory_space<vmem>>, vector<16x32xbf16>
    tpu.vector_store %arg16[%c96_106, %c64_107], %156 {strides = array<i32>} : memref<320x160xbf16, #tpu.memory_space<vmem>>, vector<16x32xbf16>,
    %158 = vector.extract_strided_slice %151 {offsets = [3, 0], sizes = [16, 32], strides = [1, 1]} : vector<20x32xbf16> to vector<16x32xbf16>
    %c96_108 = arith.constant 96 : index
    %c96_109 = arith.constant 96 : index
    %159 = vector.load %arg16[%c96_108, %c96_109] : memref<320x160xbf16, #tpu.memory_space<vmem>>, vector<16x32xbf16>
    tpu.vector_store %arg16[%c96_108, %c96_109], %158 {strides = array<i32>} : memref<320x160xbf16, #tpu.memory_space<vmem>>, vector<16x32xbf16>,
    %160 = vector.extract_strided_slice %151 {offsets = [4, 0], sizes = [16, 32], strides = [1, 1]} : vector<20x32xbf16> to vector<16x32xbf16>
    %c96_110 = arith.constant 96 : index
    %c128_111 = arith.constant 128 : index
    %161 = vector.load %arg16[%c96_110, %c128_111] : memref<320x160xbf16, #tpu.memory_space<vmem>>, vector<16x32xbf16>
    tpu.vector_store %arg16[%c96_110, %c128_111], %160 {strides = array<i32>} : memref<320x160xbf16, #tpu.memory_space<vmem>>, vector<16x32xbf16>,
    %c560 = arith.constant 560 : index
    %c0_112 = arith.constant 0 : index
    %162 = vector.load %arg15[%c560, %c0_112] : memref<1600x32xf32, #tpu.memory_space<vmem>>, vector<20x32xf32>
    %c580 = arith.constant 580 : index
    %c0_113 = arith.constant 0 : index
    %163 = vector.load %arg15[%c580, %c0_113] : memref<1600x32xf32, #tpu.memory_space<vmem>>, vector<20x32xf32>
    %164 = arith.maximumf %162, %163 : vector<20x32xf32>
    %c600 = arith.constant 600 : index
    %c0_114 = arith.constant 0 : index
    %165 = vector.load %arg15[%c600, %c0_114] : memref<1600x32xf32, #tpu.memory_space<vmem>>, vector<20x32xf32>
    %c620 = arith.constant 620 : index
    %c0_115 = arith.constant 0 : index
    %166 = vector.load %arg15[%c620, %c0_115] : memref<1600x32xf32, #tpu.memory_space<vmem>>, vector<20x32xf32>
    %167 = arith.maximumf %165, %166 : vector<20x32xf32>
    %168 = arith.maximumf %164, %167 : vector<20x32xf32>
    %169 = vector.broadcast %0 : vector<1x32xf32> to vector<20x32xf32>
    %170 = arith.addf %168, %169 : vector<20x32xf32>
    %cst_116 = arith.constant 0.000000e+00 : f32
    %171 = vector.broadcast %cst_116 : f32 to vector<20x32xf32>
    %172 = arith.maximumf %170, %171 : vector<20x32xf32>
    %173 = arith.truncf %172 : vector<20x32xf32> to vector<20x32xbf16>
    %174 = vector.extract_strided_slice %173 {offsets = [0, 0], sizes = [16, 32], strides = [1, 1]} : vector<20x32xbf16> to vector<16x32xbf16>
    %c112 = arith.constant 112 : index
    %c0_117 = arith.constant 0 : index
    %175 = vector.load %arg16[%c112, %c0_117] : memref<320x160xbf16, #tpu.memory_space<vmem>>, vector<16x32xbf16>
    tpu.vector_store %arg16[%c112, %c0_117], %174 {strides = array<i32>} : memref<320x160xbf16, #tpu.memory_space<vmem>>, vector<16x32xbf16>,
    %176 = vector.extract_strided_slice %173 {offsets = [1, 0], sizes = [16, 32], strides = [1, 1]} : vector<20x32xbf16> to vector<16x32xbf16>
    %c112_118 = arith.constant 112 : index
    %c32_119 = arith.constant 32 : index
    %177 = vector.load %arg16[%c112_118, %c32_119] : memref<320x160xbf16, #tpu.memory_space<vmem>>, vector<16x32xbf16>
    tpu.vector_store %arg16[%c112_118, %c32_119], %176 {strides = array<i32>} : memref<320x160xbf16, #tpu.memory_space<vmem>>, vector<16x32xbf16>,
    %178 = vector.extract_strided_slice %173 {offsets = [2, 0], sizes = [16, 32], strides = [1, 1]} : vector<20x32xbf16> to vector<16x32xbf16>
    %c112_120 = arith.constant 112 : index
    %c64_121 = arith.constant 64 : index
    %179 = vector.load %arg16[%c112_120, %c64_121] : memref<320x160xbf16, #tpu.memory_space<vmem>>, vector<16x32xbf16>
    tpu.vector_store %arg16[%c112_120, %c64_121], %178 {strides = array<i32>} : memref<320x160xbf16, #tpu.memory_space<vmem>>, vector<16x32xbf16>,
    %180 = vector.extract_strided_slice %173 {offsets = [3, 0], sizes = [16, 32], strides = [1, 1]} : vector<20x32xbf16> to vector<16x32xbf16>
    %c112_122 = arith.constant 112 : index
    %c96_123 = arith.constant 96 : index
    %181 = vector.load %arg16[%c112_122, %c96_123] : memref<320x160xbf16, #tpu.memory_space<vmem>>, vector<16x32xbf16>
    tpu.vector_store %arg16[%c112_122, %c96_123], %180 {strides = array<i32>} : memref<320x160xbf16, #tpu.memory_space<vmem>>, vector<16x32xbf16>,
    %182 = vector.extract_strided_slice %173 {offsets = [4, 0], sizes = [16, 32], strides = [1, 1]} : vector<20x32xbf16> to vector<16x32xbf16>
    %c112_124 = arith.constant 112 : index
    %c128_125 = arith.constant 128 : index
    %183 = vector.load %arg16[%c112_124, %c128_125] : memref<320x160xbf16, #tpu.memory_space<vmem>>, vector<16x32xbf16>
    tpu.vector_store %arg16[%c112_124, %c128_125], %182 {strides = array<i32>} : memref<320x160xbf16, #tpu.memory_space<vmem>>, vector<16x32xbf16>,
    %c640 = arith.constant 640 : index
    %c0_126 = arith.constant 0 : index
    %184 = vector.load %arg15[%c640, %c0_126] : memref<1600x32xf32, #tpu.memory_space<vmem>>, vector<20x32xf32>
    %c660 = arith.constant 660 : index
    %c0_127 = arith.constant 0 : index
    %185 = vector.load %arg15[%c660, %c0_127] : memref<1600x32xf32, #tpu.memory_space<vmem>>, vector<20x32xf32>
    %186 = arith.maximumf %184, %185 : vector<20x32xf32>
    %c680 = arith.constant 680 : index
    %c0_128 = arith.constant 0 : index
    %187 = vector.load %arg15[%c680, %c0_128] : memref<1600x32xf32, #tpu.memory_space<vmem>>, vector<20x32xf32>
    %c700 = arith.constant 700 : index
    %c0_129 = arith.constant 0 : index
    %188 = vector.load %arg15[%c700, %c0_129] : memref<1600x32xf32, #tpu.memory_space<vmem>>, vector<20x32xf32>
    %189 = arith.maximumf %187, %188 : vector<20x32xf32>
    %190 = arith.maximumf %186, %189 : vector<20x32xf32>
    %191 = vector.broadcast %0 : vector<1x32xf32> to vector<20x32xf32>
    %192 = arith.addf %190, %191 : vector<20x32xf32>
    %cst_130 = arith.constant 0.000000e+00 : f32
    %193 = vector.broadcast %cst_130 : f32 to vector<20x32xf32>
    %194 = arith.maximumf %192, %193 : vector<20x32xf32>
    %195 = arith.truncf %194 : vector<20x32xf32> to vector<20x32xbf16>
    %196 = vector.extract_strided_slice %195 {offsets = [0, 0], sizes = [16, 32], strides = [1, 1]} : vector<20x32xbf16> to vector<16x32xbf16>
    %c128_131 = arith.constant 128 : index
    %c0_132 = arith.constant 0 : index
    %197 = vector.load %arg16[%c128_131, %c0_132] : memref<320x160xbf16, #tpu.memory_space<vmem>>, vector<16x32xbf16>
    tpu.vector_store %arg16[%c128_131, %c0_132], %196 {strides = array<i32>} : memref<320x160xbf16, #tpu.memory_space<vmem>>, vector<16x32xbf16>,
    %198 = vector.extract_strided_slice %195 {offsets = [1, 0], sizes = [16, 32], strides = [1, 1]} : vector<20x32xbf16> to vector<16x32xbf16>
    %c128_133 = arith.constant 128 : index
    %c32_134 = arith.constant 32 : index
    %199 = vector.load %arg16[%c128_133, %c32_134] : memref<320x160xbf16, #tpu.memory_space<vmem>>, vector<16x32xbf16>
    tpu.vector_store %arg16[%c128_133, %c32_134], %198 {strides = array<i32>} : memref<320x160xbf16, #tpu.memory_space<vmem>>, vector<16x32xbf16>,
    %200 = vector.extract_strided_slice %195 {offsets = [2, 0], sizes = [16, 32], strides = [1, 1]} : vector<20x32xbf16> to vector<16x32xbf16>
    %c128_135 = arith.constant 128 : index
    %c64_136 = arith.constant 64 : index
    %201 = vector.load %arg16[%c128_135, %c64_136] : memref<320x160xbf16, #tpu.memory_space<vmem>>, vector<16x32xbf16>
    tpu.vector_store %arg16[%c128_135, %c64_136], %200 {strides = array<i32>} : memref<320x160xbf16, #tpu.memory_space<vmem>>, vector<16x32xbf16>,
    %202 = vector.extract_strided_slice %195 {offsets = [3, 0], sizes = [16, 32], strides = [1, 1]} : vector<20x32xbf16> to vector<16x32xbf16>
    %c128_137 = arith.constant 128 : index
    %c96_138 = arith.constant 96 : index
    %203 = vector.load %arg16[%c128_137, %c96_138] : memref<320x160xbf16, #tpu.memory_space<vmem>>, vector<16x32xbf16>
    tpu.vector_store %arg16[%c128_137, %c96_138], %202 {strides = array<i32>} : memref<320x160xbf16, #tpu.memory_space<vmem>>, vector<16x32xbf16>,
    %204 = vector.extract_strided_slice %195 {offsets = [4, 0], sizes = [16, 32], strides = [1, 1]} : vector<20x32xbf16> to vector<16x32xbf16>
    %c128_139 = arith.constant 128 : index
    %c128_140 = arith.constant 128 : index
    %205 = vector.load %arg16[%c128_139, %c128_140] : memref<320x160xbf16, #tpu.memory_space<vmem>>, vector<16x32xbf16>
    tpu.vector_store %arg16[%c128_139, %c128_140], %204 {strides = array<i32>} : memref<320x160xbf16, #tpu.memory_space<vmem>>, vector<16x32xbf16>,
    %c720 = arith.constant 720 : index
    %c0_141 = arith.constant 0 : index
    %206 = vector.load %arg15[%c720, %c0_141] : memref<1600x32xf32, #tpu.memory_space<vmem>>, vector<20x32xf32>
    %c740 = arith.constant 740 : index
    %c0_142 = arith.constant 0 : index
    %207 = vector.load %arg15[%c740, %c0_142] : memref<1600x32xf32, #tpu.memory_space<vmem>>, vector<20x32xf32>
    %208 = arith.maximumf %206, %207 : vector<20x32xf32>
    %c760 = arith.constant 760 : index
    %c0_143 = arith.constant 0 : index
    %209 = vector.load %arg15[%c760, %c0_143] : memref<1600x32xf32, #tpu.memory_space<vmem>>, vector<20x32xf32>
    %c780 = arith.constant 780 : index
    %c0_144 = arith.constant 0 : index
    %210 = vector.load %arg15[%c780, %c0_144] : memref<1600x32xf32, #tpu.memory_space<vmem>>, vector<20x32xf32>
    %211 = arith.maximumf %209, %210 : vector<20x32xf32>
    %212 = arith.maximumf %208, %211 : vector<20x32xf32>
    %213 = vector.broadcast %0 : vector<1x32xf32> to vector<20x32xf32>
    %214 = arith.addf %212, %213 : vector<20x32xf32>
    %cst_145 = arith.constant 0.000000e+00 : f32
    %215 = vector.broadcast %cst_145 : f32 to vector<20x32xf32>
    %216 = arith.maximumf %214, %215 : vector<20x32xf32>
    %217 = arith.truncf %216 : vector<20x32xf32> to vector<20x32xbf16>
    %218 = vector.extract_strided_slice %217 {offsets = [0, 0], sizes = [16, 32], strides = [1, 1]} : vector<20x32xbf16> to vector<16x32xbf16>
    %c144 = arith.constant 144 : index
    %c0_146 = arith.constant 0 : index
    %219 = vector.load %arg16[%c144, %c0_146] : memref<320x160xbf16, #tpu.memory_space<vmem>>, vector<16x32xbf16>
    tpu.vector_store %arg16[%c144, %c0_146], %218 {strides = array<i32>} : memref<320x160xbf16, #tpu.memory_space<vmem>>, vector<16x32xbf16>,
    %220 = vector.extract_strided_slice %217 {offsets = [1, 0], sizes = [16, 32], strides = [1, 1]} : vector<20x32xbf16> to vector<16x32xbf16>
    %c144_147 = arith.constant 144 : index
    %c32_148 = arith.constant 32 : index
    %221 = vector.load %arg16[%c144_147, %c32_148] : memref<320x160xbf16, #tpu.memory_space<vmem>>, vector<16x32xbf16>
    tpu.vector_store %arg16[%c144_147, %c32_148], %220 {strides = array<i32>} : memref<320x160xbf16, #tpu.memory_space<vmem>>, vector<16x32xbf16>,
    %222 = vector.extract_strided_slice %217 {offsets = [2, 0], sizes = [16, 32], strides = [1, 1]} : vector<20x32xbf16> to vector<16x32xbf16>
    %c144_149 = arith.constant 144 : index
    %c64_150 = arith.constant 64 : index
    %223 = vector.load %arg16[%c144_149, %c64_150] : memref<320x160xbf16, #tpu.memory_space<vmem>>, vector<16x32xbf16>
    tpu.vector_store %arg16[%c144_149, %c64_150], %222 {strides = array<i32>} : memref<320x160xbf16, #tpu.memory_space<vmem>>, vector<16x32xbf16>,
    %224 = vector.extract_strided_slice %217 {offsets = [3, 0], sizes = [16, 32], strides = [1, 1]} : vector<20x32xbf16> to vector<16x32xbf16>
    %c144_151 = arith.constant 144 : index
    %c96_152 = arith.constant 96 : index
    %225 = vector.load %arg16[%c144_151, %c96_152] : memref<320x160xbf16, #tpu.memory_space<vmem>>, vector<16x32xbf16>
    tpu.vector_store %arg16[%c144_151, %c96_152], %224 {strides = array<i32>} : memref<320x160xbf16, #tpu.memory_space<vmem>>, vector<16x32xbf16>,
    %226 = vector.extract_strided_slice %217 {offsets = [4, 0], sizes = [16, 32], strides = [1, 1]} : vector<20x32xbf16> to vector<16x32xbf16>
    %c144_153 = arith.constant 144 : index
    %c128_154 = arith.constant 128 : index
    %227 = vector.load %arg16[%c144_153, %c128_154] : memref<320x160xbf16, #tpu.memory_space<vmem>>, vector<16x32xbf16>
    tpu.vector_store %arg16[%c144_153, %c128_154], %226 {strides = array<i32>} : memref<320x160xbf16, #tpu.memory_space<vmem>>, vector<16x32xbf16>,
    %c800 = arith.constant 800 : index
    %c0_155 = arith.constant 0 : index
    %228 = vector.load %arg15[%c800, %c0_155] : memref<1600x32xf32, #tpu.memory_space<vmem>>, vector<20x32xf32>
    %c820 = arith.constant 820 : index
    %c0_156 = arith.constant 0 : index
    %229 = vector.load %arg15[%c820, %c0_156] : memref<1600x32xf32, #tpu.memory_space<vmem>>, vector<20x32xf32>
    %230 = arith.maximumf %228, %229 : vector<20x32xf32>
    %c840 = arith.constant 840 : index
    %c0_157 = arith.constant 0 : index
    %231 = vector.load %arg15[%c840, %c0_157] : memref<1600x32xf32, #tpu.memory_space<vmem>>, vector<20x32xf32>
    %c860 = arith.constant 860 : index
    %c0_158 = arith.constant 0 : index
    %232 = vector.load %arg15[%c860, %c0_158] : memref<1600x32xf32, #tpu.memory_space<vmem>>, vector<20x32xf32>
    %233 = arith.maximumf %231, %232 : vector<20x32xf32>
    %234 = arith.maximumf %230, %233 : vector<20x32xf32>
    %235 = vector.broadcast %0 : vector<1x32xf32> to vector<20x32xf32>
    %236 = arith.addf %234, %235 : vector<20x32xf32>
    %cst_159 = arith.constant 0.000000e+00 : f32
    %237 = vector.broadcast %cst_159 : f32 to vector<20x32xf32>
    %238 = arith.maximumf %236, %237 : vector<20x32xf32>
    %239 = arith.truncf %238 : vector<20x32xf32> to vector<20x32xbf16>
    %240 = vector.extract_strided_slice %239 {offsets = [0, 0], sizes = [16, 32], strides = [1, 1]} : vector<20x32xbf16> to vector<16x32xbf16>
    %c160_160 = arith.constant 160 : index
    %c0_161 = arith.constant 0 : index
    %241 = vector.load %arg16[%c160_160, %c0_161] : memref<320x160xbf16, #tpu.memory_space<vmem>>, vector<16x32xbf16>
    tpu.vector_store %arg16[%c160_160, %c0_161], %240 {strides = array<i32>} : memref<320x160xbf16, #tpu.memory_space<vmem>>, vector<16x32xbf16>,
    %242 = vector.extract_strided_slice %239 {offsets = [1, 0], sizes = [16, 32], strides = [1, 1]} : vector<20x32xbf16> to vector<16x32xbf16>
    %c160_162 = arith.constant 160 : index
    %c32_163 = arith.constant 32 : index
    %243 = vector.load %arg16[%c160_162, %c32_163] : memref<320x160xbf16, #tpu.memory_space<vmem>>, vector<16x32xbf16>
    tpu.vector_store %arg16[%c160_162, %c32_163], %242 {strides = array<i32>} : memref<320x160xbf16, #tpu.memory_space<vmem>>, vector<16x32xbf16>,
    %244 = vector.extract_strided_slice %239 {offsets = [2, 0], sizes = [16, 32], strides = [1, 1]} : vector<20x32xbf16> to vector<16x32xbf16>
    %c160_164 = arith.constant 160 : index
    %c64_165 = arith.constant 64 : index
    %245 = vector.load %arg16[%c160_164, %c64_165] : memref<320x160xbf16, #tpu.memory_space<vmem>>, vector<16x32xbf16>
    tpu.vector_store %arg16[%c160_164, %c64_165], %244 {strides = array<i32>} : memref<320x160xbf16, #tpu.memory_space<vmem>>, vector<16x32xbf16>,
    %246 = vector.extract_strided_slice %239 {offsets = [3, 0], sizes = [16, 32], strides = [1, 1]} : vector<20x32xbf16> to vector<16x32xbf16>
    %c160_166 = arith.constant 160 : index
    %c96_167 = arith.constant 96 : index
    %247 = vector.load %arg16[%c160_166, %c96_167] : memref<320x160xbf16, #tpu.memory_space<vmem>>, vector<16x32xbf16>
    tpu.vector_store %arg16[%c160_166, %c96_167], %246 {strides = array<i32>} : memref<320x160xbf16, #tpu.memory_space<vmem>>, vector<16x32xbf16>,
    %248 = vector.extract_strided_slice %239 {offsets = [4, 0], sizes = [16, 32], strides = [1, 1]} : vector<20x32xbf16> to vector<16x32xbf16>
    %c160_168 = arith.constant 160 : index
    %c128_169 = arith.constant 128 : index
    %249 = vector.load %arg16[%c160_168, %c128_169] : memref<320x160xbf16, #tpu.memory_space<vmem>>, vector<16x32xbf16>
    tpu.vector_store %arg16[%c160_168, %c128_169], %248 {strides = array<i32>} : memref<320x160xbf16, #tpu.memory_space<vmem>>, vector<16x32xbf16>,
    %c880 = arith.constant 880 : index
    %c0_170 = arith.constant 0 : index
    %250 = vector.load %arg15[%c880, %c0_170] : memref<1600x32xf32, #tpu.memory_space<vmem>>, vector<20x32xf32>
    %c900 = arith.constant 900 : index
    %c0_171 = arith.constant 0 : index
    %251 = vector.load %arg15[%c900, %c0_171] : memref<1600x32xf32, #tpu.memory_space<vmem>>, vector<20x32xf32>
    %252 = arith.maximumf %250, %251 : vector<20x32xf32>
    %c920 = arith.constant 920 : index
    %c0_172 = arith.constant 0 : index
    %253 = vector.load %arg15[%c920, %c0_172] : memref<1600x32xf32, #tpu.memory_space<vmem>>, vector<20x32xf32>
    %c940 = arith.constant 940 : index
    %c0_173 = arith.constant 0 : index
    %254 = vector.load %arg15[%c940, %c0_173] : memref<1600x32xf32, #tpu.memory_space<vmem>>, vector<20x32xf32>
    %255 = arith.maximumf %253, %254 : vector<20x32xf32>
    %256 = arith.maximumf %252, %255 : vector<20x32xf32>
    %257 = vector.broadcast %0 : vector<1x32xf32> to vector<20x32xf32>
    %258 = arith.addf %256, %257 : vector<20x32xf32>
    %cst_174 = arith.constant 0.000000e+00 : f32
    %259 = vector.broadcast %cst_174 : f32 to vector<20x32xf32>
    %260 = arith.maximumf %258, %259 : vector<20x32xf32>
    %261 = arith.truncf %260 : vector<20x32xf32> to vector<20x32xbf16>
    %262 = vector.extract_strided_slice %261 {offsets = [0, 0], sizes = [16, 32], strides = [1, 1]} : vector<20x32xbf16> to vector<16x32xbf16>
    %c176 = arith.constant 176 : index
    %c0_175 = arith.constant 0 : index
    %263 = vector.load %arg16[%c176, %c0_175] : memref<320x160xbf16, #tpu.memory_space<vmem>>, vector<16x32xbf16>
    tpu.vector_store %arg16[%c176, %c0_175], %262 {strides = array<i32>} : memref<320x160xbf16, #tpu.memory_space<vmem>>, vector<16x32xbf16>,
    %264 = vector.extract_strided_slice %261 {offsets = [1, 0], sizes = [16, 32], strides = [1, 1]} : vector<20x32xbf16> to vector<16x32xbf16>
    %c176_176 = arith.constant 176 : index
    %c32_177 = arith.constant 32 : index
    %265 = vector.load %arg16[%c176_176, %c32_177] : memref<320x160xbf16, #tpu.memory_space<vmem>>, vector<16x32xbf16>
    tpu.vector_store %arg16[%c176_176, %c32_177], %264 {strides = array<i32>} : memref<320x160xbf16, #tpu.memory_space<vmem>>, vector<16x32xbf16>,
    %266 = vector.extract_strided_slice %261 {offsets = [2, 0], sizes = [16, 32], strides = [1, 1]} : vector<20x32xbf16> to vector<16x32xbf16>
    %c176_178 = arith.constant 176 : index
    %c64_179 = arith.constant 64 : index
    %267 = vector.load %arg16[%c176_178, %c64_179] : memref<320x160xbf16, #tpu.memory_space<vmem>>, vector<16x32xbf16>
    tpu.vector_store %arg16[%c176_178, %c64_179], %266 {strides = array<i32>} : memref<320x160xbf16, #tpu.memory_space<vmem>>, vector<16x32xbf16>,
    %268 = vector.extract_strided_slice %261 {offsets = [3, 0], sizes = [16, 32], strides = [1, 1]} : vector<20x32xbf16> to vector<16x32xbf16>
    %c176_180 = arith.constant 176 : index
    %c96_181 = arith.constant 96 : index
    %269 = vector.load %arg16[%c176_180, %c96_181] : memref<320x160xbf16, #tpu.memory_space<vmem>>, vector<16x32xbf16>
    tpu.vector_store %arg16[%c176_180, %c96_181], %268 {strides = array<i32>} : memref<320x160xbf16, #tpu.memory_space<vmem>>, vector<16x32xbf16>,
    %270 = vector.extract_strided_slice %261 {offsets = [4, 0], sizes = [16, 32], strides = [1, 1]} : vector<20x32xbf16> to vector<16x32xbf16>
    %c176_182 = arith.constant 176 : index
    %c128_183 = arith.constant 128 : index
    %271 = vector.load %arg16[%c176_182, %c128_183] : memref<320x160xbf16, #tpu.memory_space<vmem>>, vector<16x32xbf16>
    tpu.vector_store %arg16[%c176_182, %c128_183], %270 {strides = array<i32>} : memref<320x160xbf16, #tpu.memory_space<vmem>>, vector<16x32xbf16>,
    %c960 = arith.constant 960 : index
    %c0_184 = arith.constant 0 : index
    %272 = vector.load %arg15[%c960, %c0_184] : memref<1600x32xf32, #tpu.memory_space<vmem>>, vector<20x32xf32>
    %c980 = arith.constant 980 : index
    %c0_185 = arith.constant 0 : index
    %273 = vector.load %arg15[%c980, %c0_185] : memref<1600x32xf32, #tpu.memory_space<vmem>>, vector<20x32xf32>
    %274 = arith.maximumf %272, %273 : vector<20x32xf32>
    %c1000 = arith.constant 1000 : index
    %c0_186 = arith.constant 0 : index
    %275 = vector.load %arg15[%c1000, %c0_186] : memref<1600x32xf32, #tpu.memory_space<vmem>>, vector<20x32xf32>
    %c1020 = arith.constant 1020 : index
    %c0_187 = arith.constant 0 : index
    %276 = vector.load %arg15[%c1020, %c0_187] : memref<1600x32xf32, #tpu.memory_space<vmem>>, vector<20x32xf32>
    %277 = arith.maximumf %275, %276 : vector<20x32xf32>
    %278 = arith.maximumf %274, %277 : vector<20x32xf32>
    %279 = vector.broadcast %0 : vector<1x32xf32> to vector<20x32xf32>
    %280 = arith.addf %278, %279 : vector<20x32xf32>
    %cst_188 = arith.constant 0.000000e+00 : f32
    %281 = vector.broadcast %cst_188 : f32 to vector<20x32xf32>
    %282 = arith.maximumf %280, %281 : vector<20x32xf32>
    %283 = arith.truncf %282 : vector<20x32xf32> to vector<20x32xbf16>
    %284 = vector.extract_strided_slice %283 {offsets = [0, 0], sizes = [16, 32], strides = [1, 1]} : vector<20x32xbf16> to vector<16x32xbf16>
    %c192 = arith.constant 192 : index
    %c0_189 = arith.constant 0 : index
    %285 = vector.load %arg16[%c192, %c0_189] : memref<320x160xbf16, #tpu.memory_space<vmem>>, vector<16x32xbf16>
    tpu.vector_store %arg16[%c192, %c0_189], %284 {strides = array<i32>} : memref<320x160xbf16, #tpu.memory_space<vmem>>, vector<16x32xbf16>,
    %286 = vector.extract_strided_slice %283 {offsets = [1, 0], sizes = [16, 32], strides = [1, 1]} : vector<20x32xbf16> to vector<16x32xbf16>
    %c192_190 = arith.constant 192 : index
    %c32_191 = arith.constant 32 : index
    %287 = vector.load %arg16[%c192_190, %c32_191] : memref<320x160xbf16, #tpu.memory_space<vmem>>, vector<16x32xbf16>
    tpu.vector_store %arg16[%c192_190, %c32_191], %286 {strides = array<i32>} : memref<320x160xbf16, #tpu.memory_space<vmem>>, vector<16x32xbf16>,
    %288 = vector.extract_strided_slice %283 {offsets = [2, 0], sizes = [16, 32], strides = [1, 1]} : vector<20x32xbf16> to vector<16x32xbf16>
    %c192_192 = arith.constant 192 : index
    %c64_193 = arith.constant 64 : index
    %289 = vector.load %arg16[%c192_192, %c64_193] : memref<320x160xbf16, #tpu.memory_space<vmem>>, vector<16x32xbf16>
    tpu.vector_store %arg16[%c192_192, %c64_193], %288 {strides = array<i32>} : memref<320x160xbf16, #tpu.memory_space<vmem>>, vector<16x32xbf16>,
    %290 = vector.extract_strided_slice %283 {offsets = [3, 0], sizes = [16, 32], strides = [1, 1]} : vector<20x32xbf16> to vector<16x32xbf16>
    %c192_194 = arith.constant 192 : index
    %c96_195 = arith.constant 96 : index
    %291 = vector.load %arg16[%c192_194, %c96_195] : memref<320x160xbf16, #tpu.memory_space<vmem>>, vector<16x32xbf16>
    tpu.vector_store %arg16[%c192_194, %c96_195], %290 {strides = array<i32>} : memref<320x160xbf16, #tpu.memory_space<vmem>>, vector<16x32xbf16>,
    %292 = vector.extract_strided_slice %283 {offsets = [4, 0], sizes = [16, 32], strides = [1, 1]} : vector<20x32xbf16> to vector<16x32xbf16>
    %c192_196 = arith.constant 192 : index
    %c128_197 = arith.constant 128 : index
    %293 = vector.load %arg16[%c192_196, %c128_197] : memref<320x160xbf16, #tpu.memory_space<vmem>>, vector<16x32xbf16>
    tpu.vector_store %arg16[%c192_196, %c128_197], %292 {strides = array<i32>} : memref<320x160xbf16, #tpu.memory_space<vmem>>, vector<16x32xbf16>,
    %c1040 = arith.constant 1040 : index
    %c0_198 = arith.constant 0 : index
    %294 = vector.load %arg15[%c1040, %c0_198] : memref<1600x32xf32, #tpu.memory_space<vmem>>, vector<20x32xf32>
    %c1060 = arith.constant 1060 : index
    %c0_199 = arith.constant 0 : index
    %295 = vector.load %arg15[%c1060, %c0_199] : memref<1600x32xf32, #tpu.memory_space<vmem>>, vector<20x32xf32>
    %296 = arith.maximumf %294, %295 : vector<20x32xf32>
    %c1080 = arith.constant 1080 : index
    %c0_200 = arith.constant 0 : index
    %297 = vector.load %arg15[%c1080, %c0_200] : memref<1600x32xf32, #tpu.memory_space<vmem>>, vector<20x32xf32>
    %c1100 = arith.constant 1100 : index
    %c0_201 = arith.constant 0 : index
    %298 = vector.load %arg15[%c1100, %c0_201] : memref<1600x32xf32, #tpu.memory_space<vmem>>, vector<20x32xf32>
    %299 = arith.maximumf %297, %298 : vector<20x32xf32>
    %300 = arith.maximumf %296, %299 : vector<20x32xf32>
    %301 = vector.broadcast %0 : vector<1x32xf32> to vector<20x32xf32>
    %302 = arith.addf %300, %301 : vector<20x32xf32>
    %cst_202 = arith.constant 0.000000e+00 : f32
    %303 = vector.broadcast %cst_202 : f32 to vector<20x32xf32>
    %304 = arith.maximumf %302, %303 : vector<20x32xf32>
    %305 = arith.truncf %304 : vector<20x32xf32> to vector<20x32xbf16>
    %306 = vector.extract_strided_slice %305 {offsets = [0, 0], sizes = [16, 32], strides = [1, 1]} : vector<20x32xbf16> to vector<16x32xbf16>
    %c208 = arith.constant 208 : index
    %c0_203 = arith.constant 0 : index
    %307 = vector.load %arg16[%c208, %c0_203] : memref<320x160xbf16, #tpu.memory_space<vmem>>, vector<16x32xbf16>
    tpu.vector_store %arg16[%c208, %c0_203], %306 {strides = array<i32>} : memref<320x160xbf16, #tpu.memory_space<vmem>>, vector<16x32xbf16>,
    %308 = vector.extract_strided_slice %305 {offsets = [1, 0], sizes = [16, 32], strides = [1, 1]} : vector<20x32xbf16> to vector<16x32xbf16>
    %c208_204 = arith.constant 208 : index
    %c32_205 = arith.constant 32 : index
    %309 = vector.load %arg16[%c208_204, %c32_205] : memref<320x160xbf16, #tpu.memory_space<vmem>>, vector<16x32xbf16>
    tpu.vector_store %arg16[%c208_204, %c32_205], %308 {strides = array<i32>} : memref<320x160xbf16, #tpu.memory_space<vmem>>, vector<16x32xbf16>,
    %310 = vector.extract_strided_slice %305 {offsets = [2, 0], sizes = [16, 32], strides = [1, 1]} : vector<20x32xbf16> to vector<16x32xbf16>
    %c208_206 = arith.constant 208 : index
    %c64_207 = arith.constant 64 : index
    %311 = vector.load %arg16[%c208_206, %c64_207] : memref<320x160xbf16, #tpu.memory_space<vmem>>, vector<16x32xbf16>
    tpu.vector_store %arg16[%c208_206, %c64_207], %310 {strides = array<i32>} : memref<320x160xbf16, #tpu.memory_space<vmem>>, vector<16x32xbf16>,
    %312 = vector.extract_strided_slice %305 {offsets = [3, 0], sizes = [16, 32], strides = [1, 1]} : vector<20x32xbf16> to vector<16x32xbf16>
    %c208_208 = arith.constant 208 : index
    %c96_209 = arith.constant 96 : index
    %313 = vector.load %arg16[%c208_208, %c96_209] : memref<320x160xbf16, #tpu.memory_space<vmem>>, vector<16x32xbf16>
    tpu.vector_store %arg16[%c208_208, %c96_209], %312 {strides = array<i32>} : memref<320x160xbf16, #tpu.memory_space<vmem>>, vector<16x32xbf16>,
    %314 = vector.extract_strided_slice %305 {offsets = [4, 0], sizes = [16, 32], strides = [1, 1]} : vector<20x32xbf16> to vector<16x32xbf16>
    %c208_210 = arith.constant 208 : index
    %c128_211 = arith.constant 128 : index
    %315 = vector.load %arg16[%c208_210, %c128_211] : memref<320x160xbf16, #tpu.memory_space<vmem>>, vector<16x32xbf16>
    tpu.vector_store %arg16[%c208_210, %c128_211], %314 {strides = array<i32>} : memref<320x160xbf16, #tpu.memory_space<vmem>>, vector<16x32xbf16>,
    %c1120 = arith.constant 1120 : index
    %c0_212 = arith.constant 0 : index
    %316 = vector.load %arg15[%c1120, %c0_212] : memref<1600x32xf32, #tpu.memory_space<vmem>>, vector<20x32xf32>
    %c1140 = arith.constant 1140 : index
    %c0_213 = arith.constant 0 : index
    %317 = vector.load %arg15[%c1140, %c0_213] : memref<1600x32xf32, #tpu.memory_space<vmem>>, vector<20x32xf32>
    %318 = arith.maximumf %316, %317 : vector<20x32xf32>
    %c1160 = arith.constant 1160 : index
    %c0_214 = arith.constant 0 : index
    %319 = vector.load %arg15[%c1160, %c0_214] : memref<1600x32xf32, #tpu.memory_space<vmem>>, vector<20x32xf32>
    %c1180 = arith.constant 1180 : index
    %c0_215 = arith.constant 0 : index
    %320 = vector.load %arg15[%c1180, %c0_215] : memref<1600x32xf32, #tpu.memory_space<vmem>>, vector<20x32xf32>
    %321 = arith.maximumf %319, %320 : vector<20x32xf32>
    %322 = arith.maximumf %318, %321 : vector<20x32xf32>
    %323 = vector.broadcast %0 : vector<1x32xf32> to vector<20x32xf32>
    %324 = arith.addf %322, %323 : vector<20x32xf32>
    %cst_216 = arith.constant 0.000000e+00 : f32
    %325 = vector.broadcast %cst_216 : f32 to vector<20x32xf32>
    %326 = arith.maximumf %324, %325 : vector<20x32xf32>
    %327 = arith.truncf %326 : vector<20x32xf32> to vector<20x32xbf16>
    %328 = vector.extract_strided_slice %327 {offsets = [0, 0], sizes = [16, 32], strides = [1, 1]} : vector<20x32xbf16> to vector<16x32xbf16>
    %c224 = arith.constant 224 : index
    %c0_217 = arith.constant 0 : index
    %329 = vector.load %arg16[%c224, %c0_217] : memref<320x160xbf16, #tpu.memory_space<vmem>>, vector<16x32xbf16>
    tpu.vector_store %arg16[%c224, %c0_217], %328 {strides = array<i32>} : memref<320x160xbf16, #tpu.memory_space<vmem>>, vector<16x32xbf16>,
    %330 = vector.extract_strided_slice %327 {offsets = [1, 0], sizes = [16, 32], strides = [1, 1]} : vector<20x32xbf16> to vector<16x32xbf16>
    %c224_218 = arith.constant 224 : index
    %c32_219 = arith.constant 32 : index
    %331 = vector.load %arg16[%c224_218, %c32_219] : memref<320x160xbf16, #tpu.memory_space<vmem>>, vector<16x32xbf16>
    tpu.vector_store %arg16[%c224_218, %c32_219], %330 {strides = array<i32>} : memref<320x160xbf16, #tpu.memory_space<vmem>>, vector<16x32xbf16>,
    %332 = vector.extract_strided_slice %327 {offsets = [2, 0], sizes = [16, 32], strides = [1, 1]} : vector<20x32xbf16> to vector<16x32xbf16>
    %c224_220 = arith.constant 224 : index
    %c64_221 = arith.constant 64 : index
    %333 = vector.load %arg16[%c224_220, %c64_221] : memref<320x160xbf16, #tpu.memory_space<vmem>>, vector<16x32xbf16>
    tpu.vector_store %arg16[%c224_220, %c64_221], %332 {strides = array<i32>} : memref<320x160xbf16, #tpu.memory_space<vmem>>, vector<16x32xbf16>,
    %334 = vector.extract_strided_slice %327 {offsets = [3, 0], sizes = [16, 32], strides = [1, 1]} : vector<20x32xbf16> to vector<16x32xbf16>
    %c224_222 = arith.constant 224 : index
    %c96_223 = arith.constant 96 : index
    %335 = vector.load %arg16[%c224_222, %c96_223] : memref<320x160xbf16, #tpu.memory_space<vmem>>, vector<16x32xbf16>
    tpu.vector_store %arg16[%c224_222, %c96_223], %334 {strides = array<i32>} : memref<320x160xbf16, #tpu.memory_space<vmem>>, vector<16x32xbf16>,
    %336 = vector.extract_strided_slice %327 {offsets = [4, 0], sizes = [16, 32], strides = [1, 1]} : vector<20x32xbf16> to vector<16x32xbf16>
    %c224_224 = arith.constant 224 : index
    %c128_225 = arith.constant 128 : index
    %337 = vector.load %arg16[%c224_224, %c128_225] : memref<320x160xbf16, #tpu.memory_space<vmem>>, vector<16x32xbf16>
    tpu.vector_store %arg16[%c224_224, %c128_225], %336 {strides = array<i32>} : memref<320x160xbf16, #tpu.memory_space<vmem>>, vector<16x32xbf16>,
    %c1200 = arith.constant 1200 : index
    %c0_226 = arith.constant 0 : index
    %338 = vector.load %arg15[%c1200, %c0_226] : memref<1600x32xf32, #tpu.memory_space<vmem>>, vector<20x32xf32>
    %c1220 = arith.constant 1220 : index
    %c0_227 = arith.constant 0 : index
    %339 = vector.load %arg15[%c1220, %c0_227] : memref<1600x32xf32, #tpu.memory_space<vmem>>, vector<20x32xf32>
    %340 = arith.maximumf %338, %339 : vector<20x32xf32>
    %c1240 = arith.constant 1240 : index
    %c0_228 = arith.constant 0 : index
    %341 = vector.load %arg15[%c1240, %c0_228] : memref<1600x32xf32, #tpu.memory_space<vmem>>, vector<20x32xf32>
    %c1260 = arith.constant 1260 : index
    %c0_229 = arith.constant 0 : index
    %342 = vector.load %arg15[%c1260, %c0_229] : memref<1600x32xf32, #tpu.memory_space<vmem>>, vector<20x32xf32>
    %343 = arith.maximumf %341, %342 : vector<20x32xf32>
    %344 = arith.maximumf %340, %343 : vector<20x32xf32>
    %345 = vector.broadcast %0 : vector<1x32xf32> to vector<20x32xf32>
    %346 = arith.addf %344, %345 : vector<20x32xf32>
    %cst_230 = arith.constant 0.000000e+00 : f32
    %347 = vector.broadcast %cst_230 : f32 to vector<20x32xf32>
    %348 = arith.maximumf %346, %347 : vector<20x32xf32>
    %349 = arith.truncf %348 : vector<20x32xf32> to vector<20x32xbf16>
    %350 = vector.extract_strided_slice %349 {offsets = [0, 0], sizes = [16, 32], strides = [1, 1]} : vector<20x32xbf16> to vector<16x32xbf16>
    %c240_231 = arith.constant 240 : index
    %c0_232 = arith.constant 0 : index
    %351 = vector.load %arg16[%c240_231, %c0_232] : memref<320x160xbf16, #tpu.memory_space<vmem>>, vector<16x32xbf16>
    tpu.vector_store %arg16[%c240_231, %c0_232], %350 {strides = array<i32>} : memref<320x160xbf16, #tpu.memory_space<vmem>>, vector<16x32xbf16>,
    %352 = vector.extract_strided_slice %349 {offsets = [1, 0], sizes = [16, 32], strides = [1, 1]} : vector<20x32xbf16> to vector<16x32xbf16>
    %c240_233 = arith.constant 240 : index
    %c32_234 = arith.constant 32 : index
    %353 = vector.load %arg16[%c240_233, %c32_234] : memref<320x160xbf16, #tpu.memory_space<vmem>>, vector<16x32xbf16>
    tpu.vector_store %arg16[%c240_233, %c32_234], %352 {strides = array<i32>} : memref<320x160xbf16, #tpu.memory_space<vmem>>, vector<16x32xbf16>,
    %354 = vector.extract_strided_slice %349 {offsets = [2, 0], sizes = [16, 32], strides = [1, 1]} : vector<20x32xbf16> to vector<16x32xbf16>
    %c240_235 = arith.constant 240 : index
    %c64_236 = arith.constant 64 : index
    %355 = vector.load %arg16[%c240_235, %c64_236] : memref<320x160xbf16, #tpu.memory_space<vmem>>, vector<16x32xbf16>
    tpu.vector_store %arg16[%c240_235, %c64_236], %354 {strides = array<i32>} : memref<320x160xbf16, #tpu.memory_space<vmem>>, vector<16x32xbf16>,
    %356 = vector.extract_strided_slice %349 {offsets = [3, 0], sizes = [16, 32], strides = [1, 1]} : vector<20x32xbf16> to vector<16x32xbf16>
    %c240_237 = arith.constant 240 : index
    %c96_238 = arith.constant 96 : index
    %357 = vector.load %arg16[%c240_237, %c96_238] : memref<320x160xbf16, #tpu.memory_space<vmem>>, vector<16x32xbf16>
    tpu.vector_store %arg16[%c240_237, %c96_238], %356 {strides = array<i32>} : memref<320x160xbf16, #tpu.memory_space<vmem>>, vector<16x32xbf16>,
    %358 = vector.extract_strided_slice %349 {offsets = [4, 0], sizes = [16, 32], strides = [1, 1]} : vector<20x32xbf16> to vector<16x32xbf16>
    %c240_239 = arith.constant 240 : index
    %c128_240 = arith.constant 128 : index
    %359 = vector.load %arg16[%c240_239, %c128_240] : memref<320x160xbf16, #tpu.memory_space<vmem>>, vector<16x32xbf16>
    tpu.vector_store %arg16[%c240_239, %c128_240], %358 {strides = array<i32>} : memref<320x160xbf16, #tpu.memory_space<vmem>>, vector<16x32xbf16>,
    %c1280 = arith.constant 1280 : index
    %c0_241 = arith.constant 0 : index
    %360 = vector.load %arg15[%c1280, %c0_241] : memref<1600x32xf32, #tpu.memory_space<vmem>>, vector<20x32xf32>
    %c1300 = arith.constant 1300 : index
    %c0_242 = arith.constant 0 : index
    %361 = vector.load %arg15[%c1300, %c0_242] : memref<1600x32xf32, #tpu.memory_space<vmem>>, vector<20x32xf32>
    %362 = arith.maximumf %360, %361 : vector<20x32xf32>
    %c1320 = arith.constant 1320 : index
    %c0_243 = arith.constant 0 : index
    %363 = vector.load %arg15[%c1320, %c0_243] : memref<1600x32xf32, #tpu.memory_space<vmem>>, vector<20x32xf32>
    %c1340 = arith.constant 1340 : index
    %c0_244 = arith.constant 0 : index
    %364 = vector.load %arg15[%c1340, %c0_244] : memref<1600x32xf32, #tpu.memory_space<vmem>>, vector<20x32xf32>
    %365 = arith.maximumf %363, %364 : vector<20x32xf32>
    %366 = arith.maximumf %362, %365 : vector<20x32xf32>
    %367 = vector.broadcast %0 : vector<1x32xf32> to vector<20x32xf32>
    %368 = arith.addf %366, %367 : vector<20x32xf32>
    %cst_245 = arith.constant 0.000000e+00 : f32
    %369 = vector.broadcast %cst_245 : f32 to vector<20x32xf32>
    %370 = arith.maximumf %368, %369 : vector<20x32xf32>
    %371 = arith.truncf %370 : vector<20x32xf32> to vector<20x32xbf16>
    %372 = vector.extract_strided_slice %371 {offsets = [0, 0], sizes = [16, 32], strides = [1, 1]} : vector<20x32xbf16> to vector<16x32xbf16>
    %c256 = arith.constant 256 : index
    %c0_246 = arith.constant 0 : index
    %373 = vector.load %arg16[%c256, %c0_246] : memref<320x160xbf16, #tpu.memory_space<vmem>>, vector<16x32xbf16>
    tpu.vector_store %arg16[%c256, %c0_246], %372 {strides = array<i32>} : memref<320x160xbf16, #tpu.memory_space<vmem>>, vector<16x32xbf16>,
    %374 = vector.extract_strided_slice %371 {offsets = [1, 0], sizes = [16, 32], strides = [1, 1]} : vector<20x32xbf16> to vector<16x32xbf16>
    %c256_247 = arith.constant 256 : index
    %c32_248 = arith.constant 32 : index
    %375 = vector.load %arg16[%c256_247, %c32_248] : memref<320x160xbf16, #tpu.memory_space<vmem>>, vector<16x32xbf16>
    tpu.vector_store %arg16[%c256_247, %c32_248], %374 {strides = array<i32>} : memref<320x160xbf16, #tpu.memory_space<vmem>>, vector<16x32xbf16>,
    %376 = vector.extract_strided_slice %371 {offsets = [2, 0], sizes = [16, 32], strides = [1, 1]} : vector<20x32xbf16> to vector<16x32xbf16>
    %c256_249 = arith.constant 256 : index
    %c64_250 = arith.constant 64 : index
    %377 = vector.load %arg16[%c256_249, %c64_250] : memref<320x160xbf16, #tpu.memory_space<vmem>>, vector<16x32xbf16>
    tpu.vector_store %arg16[%c256_249, %c64_250], %376 {strides = array<i32>} : memref<320x160xbf16, #tpu.memory_space<vmem>>, vector<16x32xbf16>,
    %378 = vector.extract_strided_slice %371 {offsets = [3, 0], sizes = [16, 32], strides = [1, 1]} : vector<20x32xbf16> to vector<16x32xbf16>
    %c256_251 = arith.constant 256 : index
    %c96_252 = arith.constant 96 : index
    %379 = vector.load %arg16[%c256_251, %c96_252] : memref<320x160xbf16, #tpu.memory_space<vmem>>, vector<16x32xbf16>
    tpu.vector_store %arg16[%c256_251, %c96_252], %378 {strides = array<i32>} : memref<320x160xbf16, #tpu.memory_space<vmem>>, vector<16x32xbf16>,
    %380 = vector.extract_strided_slice %371 {offsets = [4, 0], sizes = [16, 32], strides = [1, 1]} : vector<20x32xbf16> to vector<16x32xbf16>
    %c256_253 = arith.constant 256 : index
    %c128_254 = arith.constant 128 : index
    %381 = vector.load %arg16[%c256_253, %c128_254] : memref<320x160xbf16, #tpu.memory_space<vmem>>, vector<16x32xbf16>
    tpu.vector_store %arg16[%c256_253, %c128_254], %380 {strides = array<i32>} : memref<320x160xbf16, #tpu.memory_space<vmem>>, vector<16x32xbf16>,
    %c1360 = arith.constant 1360 : index
    %c0_255 = arith.constant 0 : index
    %382 = vector.load %arg15[%c1360, %c0_255] : memref<1600x32xf32, #tpu.memory_space<vmem>>, vector<20x32xf32>
    %c1380 = arith.constant 1380 : index
    %c0_256 = arith.constant 0 : index
    %383 = vector.load %arg15[%c1380, %c0_256] : memref<1600x32xf32, #tpu.memory_space<vmem>>, vector<20x32xf32>
    %384 = arith.maximumf %382, %383 : vector<20x32xf32>
    %c1400 = arith.constant 1400 : index
    %c0_257 = arith.constant 0 : index
    %385 = vector.load %arg15[%c1400, %c0_257] : memref<1600x32xf32, #tpu.memory_space<vmem>>, vector<20x32xf32>
    %c1420 = arith.constant 1420 : index
    %c0_258 = arith.constant 0 : index
    %386 = vector.load %arg15[%c1420, %c0_258] : memref<1600x32xf32, #tpu.memory_space<vmem>>, vector<20x32xf32>
    %387 = arith.maximumf %385, %386 : vector<20x32xf32>
    %388 = arith.maximumf %384, %387 : vector<20x32xf32>
    %389 = vector.broadcast %0 : vector<1x32xf32> to vector<20x32xf32>
    %390 = arith.addf %388, %389 : vector<20x32xf32>
    %cst_259 = arith.constant 0.000000e+00 : f32
    %391 = vector.broadcast %cst_259 : f32 to vector<20x32xf32>
    %392 = arith.maximumf %390, %391 : vector<20x32xf32>
    %393 = arith.truncf %392 : vector<20x32xf32> to vector<20x32xbf16>
    %394 = vector.extract_strided_slice %393 {offsets = [0, 0], sizes = [16, 32], strides = [1, 1]} : vector<20x32xbf16> to vector<16x32xbf16>
    %c272 = arith.constant 272 : index
    %c0_260 = arith.constant 0 : index
    %395 = vector.load %arg16[%c272, %c0_260] : memref<320x160xbf16, #tpu.memory_space<vmem>>, vector<16x32xbf16>
    tpu.vector_store %arg16[%c272, %c0_260], %394 {strides = array<i32>} : memref<320x160xbf16, #tpu.memory_space<vmem>>, vector<16x32xbf16>,
    %396 = vector.extract_strided_slice %393 {offsets = [1, 0], sizes = [16, 32], strides = [1, 1]} : vector<20x32xbf16> to vector<16x32xbf16>
    %c272_261 = arith.constant 272 : index
    %c32_262 = arith.constant 32 : index
    %397 = vector.load %arg16[%c272_261, %c32_262] : memref<320x160xbf16, #tpu.memory_space<vmem>>, vector<16x32xbf16>
    tpu.vector_store %arg16[%c272_261, %c32_262], %396 {strides = array<i32>} : memref<320x160xbf16, #tpu.memory_space<vmem>>, vector<16x32xbf16>,
    %398 = vector.extract_strided_slice %393 {offsets = [2, 0], sizes = [16, 32], strides = [1, 1]} : vector<20x32xbf16> to vector<16x32xbf16>
    %c272_263 = arith.constant 272 : index
    %c64_264 = arith.constant 64 : index
    %399 = vector.load %arg16[%c272_263, %c64_264] : memref<320x160xbf16, #tpu.memory_space<vmem>>, vector<16x32xbf16>
    tpu.vector_store %arg16[%c272_263, %c64_264], %398 {strides = array<i32>} : memref<320x160xbf16, #tpu.memory_space<vmem>>, vector<16x32xbf16>,
    %400 = vector.extract_strided_slice %393 {offsets = [3, 0], sizes = [16, 32], strides = [1, 1]} : vector<20x32xbf16> to vector<16x32xbf16>
    %c272_265 = arith.constant 272 : index
    %c96_266 = arith.constant 96 : index
    %401 = vector.load %arg16[%c272_265, %c96_266] : memref<320x160xbf16, #tpu.memory_space<vmem>>, vector<16x32xbf16>
    tpu.vector_store %arg16[%c272_265, %c96_266], %400 {strides = array<i32>} : memref<320x160xbf16, #tpu.memory_space<vmem>>, vector<16x32xbf16>,
    %402 = vector.extract_strided_slice %393 {offsets = [4, 0], sizes = [16, 32], strides = [1, 1]} : vector<20x32xbf16> to vector<16x32xbf16>
    %c272_267 = arith.constant 272 : index
    %c128_268 = arith.constant 128 : index
    %403 = vector.load %arg16[%c272_267, %c128_268] : memref<320x160xbf16, #tpu.memory_space<vmem>>, vector<16x32xbf16>
    tpu.vector_store %arg16[%c272_267, %c128_268], %402 {strides = array<i32>} : memref<320x160xbf16, #tpu.memory_space<vmem>>, vector<16x32xbf16>,
    %c1440 = arith.constant 1440 : index
    %c0_269 = arith.constant 0 : index
    %404 = vector.load %arg15[%c1440, %c0_269] : memref<1600x32xf32, #tpu.memory_space<vmem>>, vector<20x32xf32>
    %c1460 = arith.constant 1460 : index
    %c0_270 = arith.constant 0 : index
    %405 = vector.load %arg15[%c1460, %c0_270] : memref<1600x32xf32, #tpu.memory_space<vmem>>, vector<20x32xf32>
    %406 = arith.maximumf %404, %405 : vector<20x32xf32>
    %c1480 = arith.constant 1480 : index
    %c0_271 = arith.constant 0 : index
    %407 = vector.load %arg15[%c1480, %c0_271] : memref<1600x32xf32, #tpu.memory_space<vmem>>, vector<20x32xf32>
    %c1500 = arith.constant 1500 : index
    %c0_272 = arith.constant 0 : index
    %408 = vector.load %arg15[%c1500, %c0_272] : memref<1600x32xf32, #tpu.memory_space<vmem>>, vector<20x32xf32>
    %409 = arith.maximumf %407, %408 : vector<20x32xf32>
    %410 = arith.maximumf %406, %409 : vector<20x32xf32>
    %411 = vector.broadcast %0 : vector<1x32xf32> to vector<20x32xf32>
    %412 = arith.addf %410, %411 : vector<20x32xf32>
    %cst_273 = arith.constant 0.000000e+00 : f32
    %413 = vector.broadcast %cst_273 : f32 to vector<20x32xf32>
    %414 = arith.maximumf %412, %413 : vector<20x32xf32>
    %415 = arith.truncf %414 : vector<20x32xf32> to vector<20x32xbf16>
    %416 = vector.extract_strided_slice %415 {offsets = [0, 0], sizes = [16, 32], strides = [1, 1]} : vector<20x32xbf16> to vector<16x32xbf16>
    %c288 = arith.constant 288 : index
    %c0_274 = arith.constant 0 : index
    %417 = vector.load %arg16[%c288, %c0_274] : memref<320x160xbf16, #tpu.memory_space<vmem>>, vector<16x32xbf16>
    tpu.vector_store %arg16[%c288, %c0_274], %416 {strides = array<i32>} : memref<320x160xbf16, #tpu.memory_space<vmem>>, vector<16x32xbf16>,
    %418 = vector.extract_strided_slice %415 {offsets = [1, 0], sizes = [16, 32], strides = [1, 1]} : vector<20x32xbf16> to vector<16x32xbf16>
    %c288_275 = arith.constant 288 : index
    %c32_276 = arith.constant 32 : index
    %419 = vector.load %arg16[%c288_275, %c32_276] : memref<320x160xbf16, #tpu.memory_space<vmem>>, vector<16x32xbf16>
    tpu.vector_store %arg16[%c288_275, %c32_276], %418 {strides = array<i32>} : memref<320x160xbf16, #tpu.memory_space<vmem>>, vector<16x32xbf16>,
    %420 = vector.extract_strided_slice %415 {offsets = [2, 0], sizes = [16, 32], strides = [1, 1]} : vector<20x32xbf16> to vector<16x32xbf16>
    %c288_277 = arith.constant 288 : index
    %c64_278 = arith.constant 64 : index
    %421 = vector.load %arg16[%c288_277, %c64_278] : memref<320x160xbf16, #tpu.memory_space<vmem>>, vector<16x32xbf16>
    tpu.vector_store %arg16[%c288_277, %c64_278], %420 {strides = array<i32>} : memref<320x160xbf16, #tpu.memory_space<vmem>>, vector<16x32xbf16>,
    %422 = vector.extract_strided_slice %415 {offsets = [3, 0], sizes = [16, 32], strides = [1, 1]} : vector<20x32xbf16> to vector<16x32xbf16>
    %c288_279 = arith.constant 288 : index
    %c96_280 = arith.constant 96 : index
    %423 = vector.load %arg16[%c288_279, %c96_280] : memref<320x160xbf16, #tpu.memory_space<vmem>>, vector<16x32xbf16>
    tpu.vector_store %arg16[%c288_279, %c96_280], %422 {strides = array<i32>} : memref<320x160xbf16, #tpu.memory_space<vmem>>, vector<16x32xbf16>,
    %424 = vector.extract_strided_slice %415 {offsets = [4, 0], sizes = [16, 32], strides = [1, 1]} : vector<20x32xbf16> to vector<16x32xbf16>
    %c288_281 = arith.constant 288 : index
    %c128_282 = arith.constant 128 : index
    %425 = vector.load %arg16[%c288_281, %c128_282] : memref<320x160xbf16, #tpu.memory_space<vmem>>, vector<16x32xbf16>
    tpu.vector_store %arg16[%c288_281, %c128_282], %424 {strides = array<i32>} : memref<320x160xbf16, #tpu.memory_space<vmem>>, vector<16x32xbf16>,
    %c1520 = arith.constant 1520 : index
    %c0_283 = arith.constant 0 : index
    %426 = vector.load %arg15[%c1520, %c0_283] : memref<1600x32xf32, #tpu.memory_space<vmem>>, vector<20x32xf32>
    %c1540 = arith.constant 1540 : index
    %c0_284 = arith.constant 0 : index
    %427 = vector.load %arg15[%c1540, %c0_284] : memref<1600x32xf32, #tpu.memory_space<vmem>>, vector<20x32xf32>
    %428 = arith.maximumf %426, %427 : vector<20x32xf32>
    %c1560 = arith.constant 1560 : index
    %c0_285 = arith.constant 0 : index
    %429 = vector.load %arg15[%c1560, %c0_285] : memref<1600x32xf32, #tpu.memory_space<vmem>>, vector<20x32xf32>
    %c1580 = arith.constant 1580 : index
    %c0_286 = arith.constant 0 : index
    %430 = vector.load %arg15[%c1580, %c0_286] : memref<1600x32xf32, #tpu.memory_space<vmem>>, vector<20x32xf32>
    %431 = arith.maximumf %429, %430 : vector<20x32xf32>
    %432 = arith.maximumf %428, %431 : vector<20x32xf32>
    %433 = vector.broadcast %0 : vector<1x32xf32> to vector<20x32xf32>
    %434 = arith.addf %432, %433 : vector<20x32xf32>
    %cst_287 = arith.constant 0.000000e+00 : f32
    %435 = vector.broadcast %cst_287 : f32 to vector<20x32xf32>
    %436 = arith.maximumf %434, %435 : vector<20x32xf32>
    %437 = arith.truncf %436 : vector<20x32xf32> to vector<20x32xbf16>
    %438 = vector.extract_strided_slice %437 {offsets = [0, 0], sizes = [16, 32], strides = [1, 1]} : vector<20x32xbf16> to vector<16x32xbf16>
    %c304 = arith.constant 304 : index
    %c0_288 = arith.constant 0 : index
    %439 = vector.load %arg16[%c304, %c0_288] : memref<320x160xbf16, #tpu.memory_space<vmem>>, vector<16x32xbf16>
    tpu.vector_store %arg16[%c304, %c0_288], %438 {strides = array<i32>} : memref<320x160xbf16, #tpu.memory_space<vmem>>, vector<16x32xbf16>,
    %440 = vector.extract_strided_slice %437 {offsets = [1, 0], sizes = [16, 32], strides = [1, 1]} : vector<20x32xbf16> to vector<16x32xbf16>
    %c304_289 = arith.constant 304 : index
    %c32_290 = arith.constant 32 : index
    %441 = vector.load %arg16[%c304_289, %c32_290] : memref<320x160xbf16, #tpu.memory_space<vmem>>, vector<16x32xbf16>
    tpu.vector_store %arg16[%c304_289, %c32_290], %440 {strides = array<i32>} : memref<320x160xbf16, #tpu.memory_space<vmem>>, vector<16x32xbf16>,
    %442 = vector.extract_strided_slice %437 {offsets = [2, 0], sizes = [16, 32], strides = [1, 1]} : vector<20x32xbf16> to vector<16x32xbf16>
    %c304_291 = arith.constant 304 : index
    %c64_292 = arith.constant 64 : index
    %443 = vector.load %arg16[%c304_291, %c64_292] : memref<320x160xbf16, #tpu.memory_space<vmem>>, vector<16x32xbf16>
    tpu.vector_store %arg16[%c304_291, %c64_292], %442 {strides = array<i32>} : memref<320x160xbf16, #tpu.memory_space<vmem>>, vector<16x32xbf16>,
    %444 = vector.extract_strided_slice %437 {offsets = [3, 0], sizes = [16, 32], strides = [1, 1]} : vector<20x32xbf16> to vector<16x32xbf16>
    %c304_293 = arith.constant 304 : index
    %c96_294 = arith.constant 96 : index
    %445 = vector.load %arg16[%c304_293, %c96_294] : memref<320x160xbf16, #tpu.memory_space<vmem>>, vector<16x32xbf16>
    tpu.vector_store %arg16[%c304_293, %c96_294], %444 {strides = array<i32>} : memref<320x160xbf16, #tpu.memory_space<vmem>>, vector<16x32xbf16>,
    %446 = vector.extract_strided_slice %437 {offsets = [4, 0], sizes = [16, 32], strides = [1, 1]} : vector<20x32xbf16> to vector<16x32xbf16>
    %c304_295 = arith.constant 304 : index
    %c128_296 = arith.constant 128 : index
    %447 = vector.load %arg16[%c304_295, %c128_296] : memref<320x160xbf16, #tpu.memory_space<vmem>>, vector<16x32xbf16>
    tpu.vector_store %arg16[%c304_295, %c128_296], %446 {strides = array<i32>} : memref<320x160xbf16, #tpu.memory_space<vmem>>, vector<16x32xbf16>,
    %cst_297 = arith.constant 0.000000e+00 : f32
    %448 = vector.broadcast %cst_297 : f32 to vector<256x64xf32>
    %c0_298 = arith.constant 0 : index
    %c0_299 = arith.constant 0 : index
    %449 = vector.load %arg16[%c0_298, %c0_299] : memref<320x160xbf16, #tpu.memory_space<vmem>>, vector<256x160xbf16>
    %c0_300 = arith.constant 0 : index
    %c0_301 = arith.constant 0 : index
    %c0_302 = arith.constant 0 : index
    %450 = vector.load %arg4[%c0_300, %c0_301, %c0_302] : memref<5x160x64xbf16, #tpu.memory_space<vmem>>, vector<1x160x64xbf16>
    %451 = vector.shape_cast %450 : vector<1x160x64xbf16> to vector<160x64xbf16>
    %cst_303 = arith.constant dense<0.000000e+00> : vector<256x64xf32>
    %452 = tpu.matmul %449, %451, %cst_303 {dimension_numbers = #tpu.dot_dimension_numbers<[1], [0], [0], [1], [0, 0, 1, 1], [], []>} : vector<256x160xbf16>, vector<160x64xbf16>, vector<256x64xf32> -> vector<256x64xf32>
    %453 = arith.addf %448, %452 : vector<256x64xf32>
    %c16_304 = arith.constant 16 : index
    %c0_305 = arith.constant 0 : index
    %454 = vector.load %arg16[%c16_304, %c0_305] : memref<320x160xbf16, #tpu.memory_space<vmem>>, vector<256x160xbf16>
    %c1 = arith.constant 1 : index
    %c0_306 = arith.constant 0 : index
    %c0_307 = arith.constant 0 : index
    %455 = vector.load %arg4[%c1, %c0_306, %c0_307] : memref<5x160x64xbf16, #tpu.memory_space<vmem>>, vector<1x160x64xbf16>
    %456 = vector.shape_cast %455 : vector<1x160x64xbf16> to vector<160x64xbf16>
    %cst_308 = arith.constant dense<0.000000e+00> : vector<256x64xf32>
    %457 = tpu.matmul %454, %456, %cst_308 {dimension_numbers = #tpu.dot_dimension_numbers<[1], [0], [0], [1], [0, 0, 1, 1], [], []>} : vector<256x160xbf16>, vector<160x64xbf16>, vector<256x64xf32> -> vector<256x64xf32>
    %458 = arith.addf %453, %457 : vector<256x64xf32>
    %c32_309 = arith.constant 32 : index
    %c0_310 = arith.constant 0 : index
    %459 = vector.load %arg16[%c32_309, %c0_310] : memref<320x160xbf16, #tpu.memory_space<vmem>>, vector<256x160xbf16>
    %c2 = arith.constant 2 : index
    %c0_311 = arith.constant 0 : index
    %c0_312 = arith.constant 0 : index
    %460 = vector.load %arg4[%c2, %c0_311, %c0_312] : memref<5x160x64xbf16, #tpu.memory_space<vmem>>, vector<1x160x64xbf16>
    %461 = vector.shape_cast %460 : vector<1x160x64xbf16> to vector<160x64xbf16>
    %cst_313 = arith.constant dense<0.000000e+00> : vector<256x64xf32>
    %462 = tpu.matmul %459, %461, %cst_313 {dimension_numbers = #tpu.dot_dimension_numbers<[1], [0], [0], [1], [0, 0, 1, 1], [], []>} : vector<256x160xbf16>, vector<160x64xbf16>, vector<256x64xf32> -> vector<256x64xf32>
    %463 = arith.addf %458, %462 : vector<256x64xf32>
    %c48_314 = arith.constant 48 : index
    %c0_315 = arith.constant 0 : index
    %464 = vector.load %arg16[%c48_314, %c0_315] : memref<320x160xbf16, #tpu.memory_space<vmem>>, vector<256x160xbf16>
    %c3 = arith.constant 3 : index
    %c0_316 = arith.constant 0 : index
    %c0_317 = arith.constant 0 : index
    %465 = vector.load %arg4[%c3, %c0_316, %c0_317] : memref<5x160x64xbf16, #tpu.memory_space<vmem>>, vector<1x160x64xbf16>
    %466 = vector.shape_cast %465 : vector<1x160x64xbf16> to vector<160x64xbf16>
    %cst_318 = arith.constant dense<0.000000e+00> : vector<256x64xf32>
    %467 = tpu.matmul %464, %466, %cst_318 {dimension_numbers = #tpu.dot_dimension_numbers<[1], [0], [0], [1], [0, 0, 1, 1], [], []>} : vector<256x160xbf16>, vector<160x64xbf16>, vector<256x64xf32> -> vector<256x64xf32>
    %468 = arith.addf %463, %467 : vector<256x64xf32>
    %c64_319 = arith.constant 64 : index
    %c0_320 = arith.constant 0 : index
    %469 = vector.load %arg16[%c64_319, %c0_320] : memref<320x160xbf16, #tpu.memory_space<vmem>>, vector<256x160xbf16>
    %c4 = arith.constant 4 : index
    %c0_321 = arith.constant 0 : index
    %c0_322 = arith.constant 0 : index
    %470 = vector.load %arg4[%c4, %c0_321, %c0_322] : memref<5x160x64xbf16, #tpu.memory_space<vmem>>, vector<1x160x64xbf16>
    %471 = vector.shape_cast %470 : vector<1x160x64xbf16> to vector<160x64xbf16>
    %cst_323 = arith.constant dense<0.000000e+00> : vector<256x64xf32>
    %472 = tpu.matmul %469, %471, %cst_323 {dimension_numbers = #tpu.dot_dimension_numbers<[1], [0], [0], [1], [0, 0, 1, 1], [], []>} : vector<256x160xbf16>, vector<160x64xbf16>, vector<256x64xf32> -> vector<256x64xf32>
    %473 = arith.addf %468, %472 : vector<256x64xf32>
    %c0_324 = arith.constant 0 : index
    %c0_325 = arith.constant 0 : index
    %474 = vector.load %arg17[%c0_324, %c0_325] : memref<256x64xf32, #tpu.memory_space<vmem>>, vector<256x64xf32>
    tpu.vector_store %arg17[%c0_324, %c0_325], %473 {strides = array<i32>} : memref<256x64xf32, #tpu.memory_space<vmem>>, vector<256x64xf32>,
    %c0_326 = arith.constant 0 : index
    %c0_327 = arith.constant 0 : index
    %475 = tpu.strided_load %arg17[%c0_326, %c0_327] {strides = array<i32: 2, 1>} : memref<256x64xf32, #tpu.memory_space<vmem>>, vector<8x64xf32>
    %c1_328 = arith.constant 1 : index
    %c0_329 = arith.constant 0 : index
    %476 = tpu.strided_load %arg17[%c1_328, %c0_329] {strides = array<i32: 2, 1>} : memref<256x64xf32, #tpu.memory_space<vmem>>, vector<8x64xf32>
    %477 = arith.maximumf %475, %476 : vector<8x64xf32>
    %c16_330 = arith.constant 16 : index
    %c0_331 = arith.constant 0 : index
    %478 = tpu.strided_load %arg17[%c16_330, %c0_331] {strides = array<i32: 2, 1>} : memref<256x64xf32, #tpu.memory_space<vmem>>, vector<8x64xf32>
    %c17 = arith.constant 17 : index
    %c0_332 = arith.constant 0 : index
    %479 = tpu.strided_load %arg17[%c17, %c0_332] {strides = array<i32: 2, 1>} : memref<256x64xf32, #tpu.memory_space<vmem>>, vector<8x64xf32>
    %480 = arith.maximumf %478, %479 : vector<8x64xf32>
    %481 = arith.maximumf %477, %480 : vector<8x64xf32>
    %482 = vector.broadcast %1 : vector<1x64xf32> to vector<8x64xf32>
    %483 = arith.addf %481, %482 : vector<8x64xf32>
    %cst_333 = arith.constant 0.000000e+00 : f32
    %484 = vector.broadcast %cst_333 : f32 to vector<8x64xf32>
    %485 = arith.maximumf %483, %484 : vector<8x64xf32>
    %486 = arith.truncf %485 : vector<8x64xf32> to vector<8x64xbf16>
    %487 = vector.extract_strided_slice %486 {offsets = [0, 0], sizes = [4, 64], strides = [1, 1]} : vector<8x64xbf16> to vector<4x64xbf16>
    %c0_334 = arith.constant 0 : index
    %c0_335 = arith.constant 0 : index
    %488 = vector.load %arg18[%c0_334, %c0_335] : memref<32x320xbf16, #tpu.memory_space<vmem>>, vector<4x64xbf16>
    tpu.vector_store %arg18[%c0_334, %c0_335], %487 {strides = array<i32>} : memref<32x320xbf16, #tpu.memory_space<vmem>>, vector<4x64xbf16>,
    %489 = vector.extract_strided_slice %486 {offsets = [1, 0], sizes = [4, 64], strides = [1, 1]} : vector<8x64xbf16> to vector<4x64xbf16>
    %c0_336 = arith.constant 0 : index
    %c64_337 = arith.constant 64 : index
    %490 = vector.load %arg18[%c0_336, %c64_337] : memref<32x320xbf16, #tpu.memory_space<vmem>>, vector<4x64xbf16>
    tpu.vector_store %arg18[%c0_336, %c64_337], %489 {strides = array<i32>} : memref<32x320xbf16, #tpu.memory_space<vmem>>, vector<4x64xbf16>,
    %491 = vector.extract_strided_slice %486 {offsets = [2, 0], sizes = [4, 64], strides = [1, 1]} : vector<8x64xbf16> to vector<4x64xbf16>
    %c0_338 = arith.constant 0 : index
    %c128_339 = arith.constant 128 : index
    %492 = vector.load %arg18[%c0_338, %c128_339] : memref<32x320xbf16, #tpu.memory_space<vmem>>, vector<4x64xbf16>
    tpu.vector_store %arg18[%c0_338, %c128_339], %491 {strides = array<i32>} : memref<32x320xbf16, #tpu.memory_space<vmem>>, vector<4x64xbf16>,
    %493 = vector.extract_strided_slice %486 {offsets = [3, 0], sizes = [4, 64], strides = [1, 1]} : vector<8x64xbf16> to vector<4x64xbf16>
    %c0_340 = arith.constant 0 : index
    %c192_341 = arith.constant 192 : index
    %494 = vector.load %arg18[%c0_340, %c192_341] : memref<32x320xbf16, #tpu.memory_space<vmem>>, vector<4x64xbf16>
    tpu.vector_store %arg18[%c0_340, %c192_341], %493 {strides = array<i32>} : memref<32x320xbf16, #tpu.memory_space<vmem>>, vector<4x64xbf16>,
    %495 = vector.extract_strided_slice %486 {offsets = [4, 0], sizes = [4, 64], strides = [1, 1]} : vector<8x64xbf16> to vector<4x64xbf16>
    %c0_342 = arith.constant 0 : index
    %c256_343 = arith.constant 256 : index
    %496 = vector.load %arg18[%c0_342, %c256_343] : memref<32x320xbf16, #tpu.memory_space<vmem>>, vector<4x64xbf16>
    tpu.vector_store %arg18[%c0_342, %c256_343], %495 {strides = array<i32>} : memref<32x320xbf16, #tpu.memory_space<vmem>>, vector<4x64xbf16>,
    %c32_344 = arith.constant 32 : index
    %c0_345 = arith.constant 0 : index
    %497 = tpu.strided_load %arg17[%c32_344, %c0_345] {strides = array<i32: 2, 1>} : memref<256x64xf32, #tpu.memory_space<vmem>>, vector<8x64xf32>
    %c33 = arith.constant 33 : index
    %c0_346 = arith.constant 0 : index
    %498 = tpu.strided_load %arg17[%c33, %c0_346] {strides = array<i32: 2, 1>} : memref<256x64xf32, #tpu.memory_space<vmem>>, vector<8x64xf32>
    %499 = arith.maximumf %497, %498 : vector<8x64xf32>
    %c48_347 = arith.constant 48 : index
    %c0_348 = arith.constant 0 : index
    %500 = tpu.strided_load %arg17[%c48_347, %c0_348] {strides = array<i32: 2, 1>} : memref<256x64xf32, #tpu.memory_space<vmem>>, vector<8x64xf32>
    %c49 = arith.constant 49 : index
    %c0_349 = arith.constant 0 : index
    %501 = tpu.strided_load %arg17[%c49, %c0_349] {strides = array<i32: 2, 1>} : memref<256x64xf32, #tpu.memory_space<vmem>>, vector<8x64xf32>
    %502 = arith.maximumf %500, %501 : vector<8x64xf32>
    %503 = arith.maximumf %499, %502 : vector<8x64xf32>
    %504 = vector.broadcast %1 : vector<1x64xf32> to vector<8x64xf32>
    %505 = arith.addf %503, %504 : vector<8x64xf32>
    %cst_350 = arith.constant 0.000000e+00 : f32
    %506 = vector.broadcast %cst_350 : f32 to vector<8x64xf32>
    %507 = arith.maximumf %505, %506 : vector<8x64xf32>
    %508 = arith.truncf %507 : vector<8x64xf32> to vector<8x64xbf16>
    %509 = vector.extract_strided_slice %508 {offsets = [0, 0], sizes = [4, 64], strides = [1, 1]} : vector<8x64xbf16> to vector<4x64xbf16>
    %c4_351 = arith.constant 4 : index
    %c0_352 = arith.constant 0 : index
    %510 = vector.load %arg18[%c4_351, %c0_352] : memref<32x320xbf16, #tpu.memory_space<vmem>>, vector<4x64xbf16>
    tpu.vector_store %arg18[%c4_351, %c0_352], %509 {strides = array<i32>} : memref<32x320xbf16, #tpu.memory_space<vmem>>, vector<4x64xbf16>,
    %511 = vector.extract_strided_slice %508 {offsets = [1, 0], sizes = [4, 64], strides = [1, 1]} : vector<8x64xbf16> to vector<4x64xbf16>
    %c4_353 = arith.constant 4 : index
    %c64_354 = arith.constant 64 : index
    %512 = vector.load %arg18[%c4_353, %c64_354] : memref<32x320xbf16, #tpu.memory_space<vmem>>, vector<4x64xbf16>
    tpu.vector_store %arg18[%c4_353, %c64_354], %511 {strides = array<i32>} : memref<32x320xbf16, #tpu.memory_space<vmem>>, vector<4x64xbf16>,
    %513 = vector.extract_strided_slice %508 {offsets = [2, 0], sizes = [4, 64], strides = [1, 1]} : vector<8x64xbf16> to vector<4x64xbf16>
    %c4_355 = arith.constant 4 : index
    %c128_356 = arith.constant 128 : index
    %514 = vector.load %arg18[%c4_355, %c128_356] : memref<32x320xbf16, #tpu.memory_space<vmem>>, vector<4x64xbf16>
    tpu.vector_store %arg18[%c4_355, %c128_356], %513 {strides = array<i32>} : memref<32x320xbf16, #tpu.memory_space<vmem>>, vector<4x64xbf16>,
    %515 = vector.extract_strided_slice %508 {offsets = [3, 0], sizes = [4, 64], strides = [1, 1]} : vector<8x64xbf16> to vector<4x64xbf16>
    %c4_357 = arith.constant 4 : index
    %c192_358 = arith.constant 192 : index
    %516 = vector.load %arg18[%c4_357, %c192_358] : memref<32x320xbf16, #tpu.memory_space<vmem>>, vector<4x64xbf16>
    tpu.vector_store %arg18[%c4_357, %c192_358], %515 {strides = array<i32>} : memref<32x320xbf16, #tpu.memory_space<vmem>>, vector<4x64xbf16>,
    %517 = vector.extract_strided_slice %508 {offsets = [4, 0], sizes = [4, 64], strides = [1, 1]} : vector<8x64xbf16> to vector<4x64xbf16>
    %c4_359 = arith.constant 4 : index
    %c256_360 = arith.constant 256 : index
    %518 = vector.load %arg18[%c4_359, %c256_360] : memref<32x320xbf16, #tpu.memory_space<vmem>>, vector<4x64xbf16>
    tpu.vector_store %arg18[%c4_359, %c256_360], %517 {strides = array<i32>} : memref<32x320xbf16, #tpu.memory_space<vmem>>, vector<4x64xbf16>,
    %c64_361 = arith.constant 64 : index
    %c0_362 = arith.constant 0 : index
    %519 = tpu.strided_load %arg17[%c64_361, %c0_362] {strides = array<i32: 2, 1>} : memref<256x64xf32, #tpu.memory_space<vmem>>, vector<8x64xf32>
    %c65 = arith.constant 65 : index
    %c0_363 = arith.constant 0 : index
    %520 = tpu.strided_load %arg17[%c65, %c0_363] {strides = array<i32: 2, 1>} : memref<256x64xf32, #tpu.memory_space<vmem>>, vector<8x64xf32>
    %521 = arith.maximumf %519, %520 : vector<8x64xf32>
    %c80_364 = arith.constant 80 : index
    %c0_365 = arith.constant 0 : index
    %522 = tpu.strided_load %arg17[%c80_364, %c0_365] {strides = array<i32: 2, 1>} : memref<256x64xf32, #tpu.memory_space<vmem>>, vector<8x64xf32>
    %c81 = arith.constant 81 : index
    %c0_366 = arith.constant 0 : index
    %523 = tpu.strided_load %arg17[%c81, %c0_366] {strides = array<i32: 2, 1>} : memref<256x64xf32, #tpu.memory_space<vmem>>, vector<8x64xf32>
    %524 = arith.maximumf %522, %523 : vector<8x64xf32>
    %525 = arith.maximumf %521, %524 : vector<8x64xf32>
    %526 = vector.broadcast %1 : vector<1x64xf32> to vector<8x64xf32>
    %527 = arith.addf %525, %526 : vector<8x64xf32>
    %cst_367 = arith.constant 0.000000e+00 : f32
    %528 = vector.broadcast %cst_367 : f32 to vector<8x64xf32>
    %529 = arith.maximumf %527, %528 : vector<8x64xf32>
    %530 = arith.truncf %529 : vector<8x64xf32> to vector<8x64xbf16>
    %531 = vector.extract_strided_slice %530 {offsets = [0, 0], sizes = [4, 64], strides = [1, 1]} : vector<8x64xbf16> to vector<4x64xbf16>
    %c8 = arith.constant 8 : index
    %c0_368 = arith.constant 0 : index
    %532 = vector.load %arg18[%c8, %c0_368] : memref<32x320xbf16, #tpu.memory_space<vmem>>, vector<4x64xbf16>
    tpu.vector_store %arg18[%c8, %c0_368], %531 {strides = array<i32>} : memref<32x320xbf16, #tpu.memory_space<vmem>>, vector<4x64xbf16>,
    %533 = vector.extract_strided_slice %530 {offsets = [1, 0], sizes = [4, 64], strides = [1, 1]} : vector<8x64xbf16> to vector<4x64xbf16>
    %c8_369 = arith.constant 8 : index
    %c64_370 = arith.constant 64 : index
    %534 = vector.load %arg18[%c8_369, %c64_370] : memref<32x320xbf16, #tpu.memory_space<vmem>>, vector<4x64xbf16>
    tpu.vector_store %arg18[%c8_369, %c64_370], %533 {strides = array<i32>} : memref<32x320xbf16, #tpu.memory_space<vmem>>, vector<4x64xbf16>,
    %535 = vector.extract_strided_slice %530 {offsets = [2, 0], sizes = [4, 64], strides = [1, 1]} : vector<8x64xbf16> to vector<4x64xbf16>
    %c8_371 = arith.constant 8 : index
    %c128_372 = arith.constant 128 : index
    %536 = vector.load %arg18[%c8_371, %c128_372] : memref<32x320xbf16, #tpu.memory_space<vmem>>, vector<4x64xbf16>
    tpu.vector_store %arg18[%c8_371, %c128_372], %535 {strides = array<i32>} : memref<32x320xbf16, #tpu.memory_space<vmem>>, vector<4x64xbf16>,
    %537 = vector.extract_strided_slice %530 {offsets = [3, 0], sizes = [4, 64], strides = [1, 1]} : vector<8x64xbf16> to vector<4x64xbf16>
    %c8_373 = arith.constant 8 : index
    %c192_374 = arith.constant 192 : index
    %538 = vector.load %arg18[%c8_373, %c192_374] : memref<32x320xbf16, #tpu.memory_space<vmem>>, vector<4x64xbf16>
    tpu.vector_store %arg18[%c8_373, %c192_374], %537 {strides = array<i32>} : memref<32x320xbf16, #tpu.memory_space<vmem>>, vector<4x64xbf16>,
    %539 = vector.extract_strided_slice %530 {offsets = [4, 0], sizes = [4, 64], strides = [1, 1]} : vector<8x64xbf16> to vector<4x64xbf16>
    %c8_375 = arith.constant 8 : index
    %c256_376 = arith.constant 256 : index
    %540 = vector.load %arg18[%c8_375, %c256_376] : memref<32x320xbf16, #tpu.memory_space<vmem>>, vector<4x64xbf16>
    tpu.vector_store %arg18[%c8_375, %c256_376], %539 {strides = array<i32>} : memref<32x320xbf16, #tpu.memory_space<vmem>>, vector<4x64xbf16>,
    %c96_377 = arith.constant 96 : index
    %c0_378 = arith.constant 0 : index
    %541 = tpu.strided_load %arg17[%c96_377, %c0_378] {strides = array<i32: 2, 1>} : memref<256x64xf32, #tpu.memory_space<vmem>>, vector<8x64xf32>
    %c97 = arith.constant 97 : index
    %c0_379 = arith.constant 0 : index
    %542 = tpu.strided_load %arg17[%c97, %c0_379] {strides = array<i32: 2, 1>} : memref<256x64xf32, #tpu.memory_space<vmem>>, vector<8x64xf32>
    %543 = arith.maximumf %541, %542 : vector<8x64xf32>
    %c112_380 = arith.constant 112 : index
    %c0_381 = arith.constant 0 : index
    %544 = tpu.strided_load %arg17[%c112_380, %c0_381] {strides = array<i32: 2, 1>} : memref<256x64xf32, #tpu.memory_space<vmem>>, vector<8x64xf32>
    %c113 = arith.constant 113 : index
    %c0_382 = arith.constant 0 : index
    %545 = tpu.strided_load %arg17[%c113, %c0_382] {strides = array<i32: 2, 1>} : memref<256x64xf32, #tpu.memory_space<vmem>>, vector<8x64xf32>
    %546 = arith.maximumf %544, %545 : vector<8x64xf32>
    %547 = arith.maximumf %543, %546 : vector<8x64xf32>
    %548 = vector.broadcast %1 : vector<1x64xf32> to vector<8x64xf32>
    %549 = arith.addf %547, %548 : vector<8x64xf32>
    %cst_383 = arith.constant 0.000000e+00 : f32
    %550 = vector.broadcast %cst_383 : f32 to vector<8x64xf32>
    %551 = arith.maximumf %549, %550 : vector<8x64xf32>
    %552 = arith.truncf %551 : vector<8x64xf32> to vector<8x64xbf16>
    %553 = vector.extract_strided_slice %552 {offsets = [0, 0], sizes = [4, 64], strides = [1, 1]} : vector<8x64xbf16> to vector<4x64xbf16>
    %c12 = arith.constant 12 : index
    %c0_384 = arith.constant 0 : index
    %554 = vector.load %arg18[%c12, %c0_384] : memref<32x320xbf16, #tpu.memory_space<vmem>>, vector<4x64xbf16>
    tpu.vector_store %arg18[%c12, %c0_384], %553 {strides = array<i32>} : memref<32x320xbf16, #tpu.memory_space<vmem>>, vector<4x64xbf16>,
    %555 = vector.extract_strided_slice %552 {offsets = [1, 0], sizes = [4, 64], strides = [1, 1]} : vector<8x64xbf16> to vector<4x64xbf16>
    %c12_385 = arith.constant 12 : index
    %c64_386 = arith.constant 64 : index
    %556 = vector.load %arg18[%c12_385, %c64_386] : memref<32x320xbf16, #tpu.memory_space<vmem>>, vector<4x64xbf16>
    tpu.vector_store %arg18[%c12_385, %c64_386], %555 {strides = array<i32>} : memref<32x320xbf16, #tpu.memory_space<vmem>>, vector<4x64xbf16>,
    %557 = vector.extract_strided_slice %552 {offsets = [2, 0], sizes = [4, 64], strides = [1, 1]} : vector<8x64xbf16> to vector<4x64xbf16>
    %c12_387 = arith.constant 12 : index
    %c128_388 = arith.constant 128 : index
    %558 = vector.load %arg18[%c12_387, %c128_388] : memref<32x320xbf16, #tpu.memory_space<vmem>>, vector<4x64xbf16>
    tpu.vector_store %arg18[%c12_387, %c128_388], %557 {strides = array<i32>} : memref<32x320xbf16, #tpu.memory_space<vmem>>, vector<4x64xbf16>,
    %559 = vector.extract_strided_slice %552 {offsets = [3, 0], sizes = [4, 64], strides = [1, 1]} : vector<8x64xbf16> to vector<4x64xbf16>
    %c12_389 = arith.constant 12 : index
    %c192_390 = arith.constant 192 : index
    %560 = vector.load %arg18[%c12_389, %c192_390] : memref<32x320xbf16, #tpu.memory_space<vmem>>, vector<4x64xbf16>
    tpu.vector_store %arg18[%c12_389, %c192_390], %559 {strides = array<i32>} : memref<32x320xbf16, #tpu.memory_space<vmem>>, vector<4x64xbf16>,
    %561 = vector.extract_strided_slice %552 {offsets = [4, 0], sizes = [4, 64], strides = [1, 1]} : vector<8x64xbf16> to vector<4x64xbf16>
    %c12_391 = arith.constant 12 : index
    %c256_392 = arith.constant 256 : index
    %562 = vector.load %arg18[%c12_391, %c256_392] : memref<32x320xbf16, #tpu.memory_space<vmem>>, vector<4x64xbf16>
    tpu.vector_store %arg18[%c12_391, %c256_392], %561 {strides = array<i32>} : memref<32x320xbf16, #tpu.memory_space<vmem>>, vector<4x64xbf16>,
    %c128_393 = arith.constant 128 : index
    %c0_394 = arith.constant 0 : index
    %563 = tpu.strided_load %arg17[%c128_393, %c0_394] {strides = array<i32: 2, 1>} : memref<256x64xf32, #tpu.memory_space<vmem>>, vector<8x64xf32>
    %c129 = arith.constant 129 : index
    %c0_395 = arith.constant 0 : index
    %564 = tpu.strided_load %arg17[%c129, %c0_395] {strides = array<i32: 2, 1>} : memref<256x64xf32, #tpu.memory_space<vmem>>, vector<8x64xf32>
    %565 = arith.maximumf %563, %564 : vector<8x64xf32>
    %c144_396 = arith.constant 144 : index
    %c0_397 = arith.constant 0 : index
    %566 = tpu.strided_load %arg17[%c144_396, %c0_397] {strides = array<i32: 2, 1>} : memref<256x64xf32, #tpu.memory_space<vmem>>, vector<8x64xf32>
    %c145 = arith.constant 145 : index
    %c0_398 = arith.constant 0 : index
    %567 = tpu.strided_load %arg17[%c145, %c0_398] {strides = array<i32: 2, 1>} : memref<256x64xf32, #tpu.memory_space<vmem>>, vector<8x64xf32>
    %568 = arith.maximumf %566, %567 : vector<8x64xf32>
    %569 = arith.maximumf %565, %568 : vector<8x64xf32>
    %570 = vector.broadcast %1 : vector<1x64xf32> to vector<8x64xf32>
    %571 = arith.addf %569, %570 : vector<8x64xf32>
    %cst_399 = arith.constant 0.000000e+00 : f32
    %572 = vector.broadcast %cst_399 : f32 to vector<8x64xf32>
    %573 = arith.maximumf %571, %572 : vector<8x64xf32>
    %574 = arith.truncf %573 : vector<8x64xf32> to vector<8x64xbf16>
    %575 = vector.extract_strided_slice %574 {offsets = [0, 0], sizes = [4, 64], strides = [1, 1]} : vector<8x64xbf16> to vector<4x64xbf16>
    %c16_400 = arith.constant 16 : index
    %c0_401 = arith.constant 0 : index
    %576 = vector.load %arg18[%c16_400, %c0_401] : memref<32x320xbf16, #tpu.memory_space<vmem>>, vector<4x64xbf16>
    tpu.vector_store %arg18[%c16_400, %c0_401], %575 {strides = array<i32>} : memref<32x320xbf16, #tpu.memory_space<vmem>>, vector<4x64xbf16>,
    %577 = vector.extract_strided_slice %574 {offsets = [1, 0], sizes = [4, 64], strides = [1, 1]} : vector<8x64xbf16> to vector<4x64xbf16>
    %c16_402 = arith.constant 16 : index
    %c64_403 = arith.constant 64 : index
    %578 = vector.load %arg18[%c16_402, %c64_403] : memref<32x320xbf16, #tpu.memory_space<vmem>>, vector<4x64xbf16>
    tpu.vector_store %arg18[%c16_402, %c64_403], %577 {strides = array<i32>} : memref<32x320xbf16, #tpu.memory_space<vmem>>, vector<4x64xbf16>,
    %579 = vector.extract_strided_slice %574 {offsets = [2, 0], sizes = [4, 64], strides = [1, 1]} : vector<8x64xbf16> to vector<4x64xbf16>
    %c16_404 = arith.constant 16 : index
    %c128_405 = arith.constant 128 : index
    %580 = vector.load %arg18[%c16_404, %c128_405] : memref<32x320xbf16, #tpu.memory_space<vmem>>, vector<4x64xbf16>
    tpu.vector_store %arg18[%c16_404, %c128_405], %579 {strides = array<i32>} : memref<32x320xbf16, #tpu.memory_space<vmem>>, vector<4x64xbf16>,
    %581 = vector.extract_strided_slice %574 {offsets = [3, 0], sizes = [4, 64], strides = [1, 1]} : vector<8x64xbf16> to vector<4x64xbf16>
    %c16_406 = arith.constant 16 : index
    %c192_407 = arith.constant 192 : index
    %582 = vector.load %arg18[%c16_406, %c192_407] : memref<32x320xbf16, #tpu.memory_space<vmem>>, vector<4x64xbf16>
    tpu.vector_store %arg18[%c16_406, %c192_407], %581 {strides = array<i32>} : memref<32x320xbf16, #tpu.memory_space<vmem>>, vector<4x64xbf16>,
    %583 = vector.extract_strided_slice %574 {offsets = [4, 0], sizes = [4, 64], strides = [1, 1]} : vector<8x64xbf16> to vector<4x64xbf16>
    %c16_408 = arith.constant 16 : index
    %c256_409 = arith.constant 256 : index
    %584 = vector.load %arg18[%c16_408, %c256_409] : memref<32x320xbf16, #tpu.memory_space<vmem>>, vector<4x64xbf16>
    tpu.vector_store %arg18[%c16_408, %c256_409], %583 {strides = array<i32>} : memref<32x320xbf16, #tpu.memory_space<vmem>>, vector<4x64xbf16>,
    %c160_410 = arith.constant 160 : index
    %c0_411 = arith.constant 0 : index
    %585 = tpu.strided_load %arg17[%c160_410, %c0_411] {strides = array<i32: 2, 1>} : memref<256x64xf32, #tpu.memory_space<vmem>>, vector<8x64xf32>
    %c161 = arith.constant 161 : index
    %c0_412 = arith.constant 0 : index
    %586 = tpu.strided_load %arg17[%c161, %c0_412] {strides = array<i32: 2, 1>} : memref<256x64xf32, #tpu.memory_space<vmem>>, vector<8x64xf32>
    %587 = arith.maximumf %585, %586 : vector<8x64xf32>
    %c176_413 = arith.constant 176 : index
    %c0_414 = arith.constant 0 : index
    %588 = tpu.strided_load %arg17[%c176_413, %c0_414] {strides = array<i32: 2, 1>} : memref<256x64xf32, #tpu.memory_space<vmem>>, vector<8x64xf32>
    %c177 = arith.constant 177 : index
    %c0_415 = arith.constant 0 : index
    %589 = tpu.strided_load %arg17[%c177, %c0_415] {strides = array<i32: 2, 1>} : memref<256x64xf32, #tpu.memory_space<vmem>>, vector<8x64xf32>
    %590 = arith.maximumf %588, %589 : vector<8x64xf32>
    %591 = arith.maximumf %587, %590 : vector<8x64xf32>
    %592 = vector.broadcast %1 : vector<1x64xf32> to vector<8x64xf32>
    %593 = arith.addf %591, %592 : vector<8x64xf32>
    %cst_416 = arith.constant 0.000000e+00 : f32
    %594 = vector.broadcast %cst_416 : f32 to vector<8x64xf32>
    %595 = arith.maximumf %593, %594 : vector<8x64xf32>
    %596 = arith.truncf %595 : vector<8x64xf32> to vector<8x64xbf16>
    %597 = vector.extract_strided_slice %596 {offsets = [0, 0], sizes = [4, 64], strides = [1, 1]} : vector<8x64xbf16> to vector<4x64xbf16>
    %c20_417 = arith.constant 20 : index
    %c0_418 = arith.constant 0 : index
    %598 = vector.load %arg18[%c20_417, %c0_418] : memref<32x320xbf16, #tpu.memory_space<vmem>>, vector<4x64xbf16>
    tpu.vector_store %arg18[%c20_417, %c0_418], %597 {strides = array<i32>} : memref<32x320xbf16, #tpu.memory_space<vmem>>, vector<4x64xbf16>,
    %599 = vector.extract_strided_slice %596 {offsets = [1, 0], sizes = [4, 64], strides = [1, 1]} : vector<8x64xbf16> to vector<4x64xbf16>
    %c20_419 = arith.constant 20 : index
    %c64_420 = arith.constant 64 : index
    %600 = vector.load %arg18[%c20_419, %c64_420] : memref<32x320xbf16, #tpu.memory_space<vmem>>, vector<4x64xbf16>
    tpu.vector_store %arg18[%c20_419, %c64_420], %599 {strides = array<i32>} : memref<32x320xbf16, #tpu.memory_space<vmem>>, vector<4x64xbf16>,
    %601 = vector.extract_strided_slice %596 {offsets = [2, 0], sizes = [4, 64], strides = [1, 1]} : vector<8x64xbf16> to vector<4x64xbf16>
    %c20_421 = arith.constant 20 : index
    %c128_422 = arith.constant 128 : index
    %602 = vector.load %arg18[%c20_421, %c128_422] : memref<32x320xbf16, #tpu.memory_space<vmem>>, vector<4x64xbf16>
    tpu.vector_store %arg18[%c20_421, %c128_422], %601 {strides = array<i32>} : memref<32x320xbf16, #tpu.memory_space<vmem>>, vector<4x64xbf16>,
    %603 = vector.extract_strided_slice %596 {offsets = [3, 0], sizes = [4, 64], strides = [1, 1]} : vector<8x64xbf16> to vector<4x64xbf16>
    %c20_423 = arith.constant 20 : index
    %c192_424 = arith.constant 192 : index
    %604 = vector.load %arg18[%c20_423, %c192_424] : memref<32x320xbf16, #tpu.memory_space<vmem>>, vector<4x64xbf16>
    tpu.vector_store %arg18[%c20_423, %c192_424], %603 {strides = array<i32>} : memref<32x320xbf16, #tpu.memory_space<vmem>>, vector<4x64xbf16>,
    %605 = vector.extract_strided_slice %596 {offsets = [4, 0], sizes = [4, 64], strides = [1, 1]} : vector<8x64xbf16> to vector<4x64xbf16>
    %c20_425 = arith.constant 20 : index
    %c256_426 = arith.constant 256 : index
    %606 = vector.load %arg18[%c20_425, %c256_426] : memref<32x320xbf16, #tpu.memory_space<vmem>>, vector<4x64xbf16>
    tpu.vector_store %arg18[%c20_425, %c256_426], %605 {strides = array<i32>} : memref<32x320xbf16, #tpu.memory_space<vmem>>, vector<4x64xbf16>,
    %c192_427 = arith.constant 192 : index
    %c0_428 = arith.constant 0 : index
    %607 = tpu.strided_load %arg17[%c192_427, %c0_428] {strides = array<i32: 2, 1>} : memref<256x64xf32, #tpu.memory_space<vmem>>, vector<8x64xf32>
    %c193 = arith.constant 193 : index
    %c0_429 = arith.constant 0 : index
    %608 = tpu.strided_load %arg17[%c193, %c0_429] {strides = array<i32: 2, 1>} : memref<256x64xf32, #tpu.memory_space<vmem>>, vector<8x64xf32>
    %609 = arith.maximumf %607, %608 : vector<8x64xf32>
    %c208_430 = arith.constant 208 : index
    %c0_431 = arith.constant 0 : index
    %610 = tpu.strided_load %arg17[%c208_430, %c0_431] {strides = array<i32: 2, 1>} : memref<256x64xf32, #tpu.memory_space<vmem>>, vector<8x64xf32>
    %c209 = arith.constant 209 : index
    %c0_432 = arith.constant 0 : index
    %611 = tpu.strided_load %arg17[%c209, %c0_432] {strides = array<i32: 2, 1>} : memref<256x64xf32, #tpu.memory_space<vmem>>, vector<8x64xf32>
    %612 = arith.maximumf %610, %611 : vector<8x64xf32>
    %613 = arith.maximumf %609, %612 : vector<8x64xf32>
    %614 = vector.broadcast %1 : vector<1x64xf32> to vector<8x64xf32>
    %615 = arith.addf %613, %614 : vector<8x64xf32>
    %cst_433 = arith.constant 0.000000e+00 : f32
    %616 = vector.broadcast %cst_433 : f32 to vector<8x64xf32>
    %617 = arith.maximumf %615, %616 : vector<8x64xf32>
    %618 = arith.truncf %617 : vector<8x64xf32> to vector<8x64xbf16>
    %619 = vector.extract_strided_slice %618 {offsets = [0, 0], sizes = [4, 64], strides = [1, 1]} : vector<8x64xbf16> to vector<4x64xbf16>
    %c24 = arith.constant 24 : index
    %c0_434 = arith.constant 0 : index
    %620 = vector.load %arg18[%c24, %c0_434] : memref<32x320xbf16, #tpu.memory_space<vmem>>, vector<4x64xbf16>
    tpu.vector_store %arg18[%c24, %c0_434], %619 {strides = array<i32>} : memref<32x320xbf16, #tpu.memory_space<vmem>>, vector<4x64xbf16>,
    %621 = vector.extract_strided_slice %618 {offsets = [1, 0], sizes = [4, 64], strides = [1, 1]} : vector<8x64xbf16> to vector<4x64xbf16>
    %c24_435 = arith.constant 24 : index
    %c64_436 = arith.constant 64 : index
    %622 = vector.load %arg18[%c24_435, %c64_436] : memref<32x320xbf16, #tpu.memory_space<vmem>>, vector<4x64xbf16>
    tpu.vector_store %arg18[%c24_435, %c64_436], %621 {strides = array<i32>} : memref<32x320xbf16, #tpu.memory_space<vmem>>, vector<4x64xbf16>,
    %623 = vector.extract_strided_slice %618 {offsets = [2, 0], sizes = [4, 64], strides = [1, 1]} : vector<8x64xbf16> to vector<4x64xbf16>
    %c24_437 = arith.constant 24 : index
    %c128_438 = arith.constant 128 : index
    %624 = vector.load %arg18[%c24_437, %c128_438] : memref<32x320xbf16, #tpu.memory_space<vmem>>, vector<4x64xbf16>
    tpu.vector_store %arg18[%c24_437, %c128_438], %623 {strides = array<i32>} : memref<32x320xbf16, #tpu.memory_space<vmem>>, vector<4x64xbf16>,
    %625 = vector.extract_strided_slice %618 {offsets = [3, 0], sizes = [4, 64], strides = [1, 1]} : vector<8x64xbf16> to vector<4x64xbf16>
    %c24_439 = arith.constant 24 : index
    %c192_440 = arith.constant 192 : index
    %626 = vector.load %arg18[%c24_439, %c192_440] : memref<32x320xbf16, #tpu.memory_space<vmem>>, vector<4x64xbf16>
    tpu.vector_store %arg18[%c24_439, %c192_440], %625 {strides = array<i32>} : memref<32x320xbf16, #tpu.memory_space<vmem>>, vector<4x64xbf16>,
    %627 = vector.extract_strided_slice %618 {offsets = [4, 0], sizes = [4, 64], strides = [1, 1]} : vector<8x64xbf16> to vector<4x64xbf16>
    %c24_441 = arith.constant 24 : index
    %c256_442 = arith.constant 256 : index
    %628 = vector.load %arg18[%c24_441, %c256_442] : memref<32x320xbf16, #tpu.memory_space<vmem>>, vector<4x64xbf16>
    tpu.vector_store %arg18[%c24_441, %c256_442], %627 {strides = array<i32>} : memref<32x320xbf16, #tpu.memory_space<vmem>>, vector<4x64xbf16>,
    %c224_443 = arith.constant 224 : index
    %c0_444 = arith.constant 0 : index
    %629 = tpu.strided_load %arg17[%c224_443, %c0_444] {strides = array<i32: 2, 1>} : memref<256x64xf32, #tpu.memory_space<vmem>>, vector<8x64xf32>
    %c225 = arith.constant 225 : index
    %c0_445 = arith.constant 0 : index
    %630 = tpu.strided_load %arg17[%c225, %c0_445] {strides = array<i32: 2, 1>} : memref<256x64xf32, #tpu.memory_space<vmem>>, vector<8x64xf32>
    %631 = arith.maximumf %629, %630 : vector<8x64xf32>
    %c240_446 = arith.constant 240 : index
    %c0_447 = arith.constant 0 : index
    %632 = tpu.strided_load %arg17[%c240_446, %c0_447] {strides = array<i32: 2, 1>} : memref<256x64xf32, #tpu.memory_space<vmem>>, vector<8x64xf32>
    %c241 = arith.constant 241 : index
    %c0_448 = arith.constant 0 : index
    %633 = tpu.strided_load %arg17[%c241, %c0_448] {strides = array<i32: 2, 1>} : memref<256x64xf32, #tpu.memory_space<vmem>>, vector<8x64xf32>
    %634 = arith.maximumf %632, %633 : vector<8x64xf32>
    %635 = arith.maximumf %631, %634 : vector<8x64xf32>
    %636 = vector.broadcast %1 : vector<1x64xf32> to vector<8x64xf32>
    %637 = arith.addf %635, %636 : vector<8x64xf32>
    %cst_449 = arith.constant 0.000000e+00 : f32
    %638 = vector.broadcast %cst_449 : f32 to vector<8x64xf32>
    %639 = arith.maximumf %637, %638 : vector<8x64xf32>
    %640 = arith.truncf %639 : vector<8x64xf32> to vector<8x64xbf16>
    %641 = vector.extract_strided_slice %640 {offsets = [0, 0], sizes = [4, 64], strides = [1, 1]} : vector<8x64xbf16> to vector<4x64xbf16>
    %c28 = arith.constant 28 : index
    %c0_450 = arith.constant 0 : index
    %642 = vector.load %arg18[%c28, %c0_450] : memref<32x320xbf16, #tpu.memory_space<vmem>>, vector<4x64xbf16>
    tpu.vector_store %arg18[%c28, %c0_450], %641 {strides = array<i32>} : memref<32x320xbf16, #tpu.memory_space<vmem>>, vector<4x64xbf16>,
    %643 = vector.extract_strided_slice %640 {offsets = [1, 0], sizes = [4, 64], strides = [1, 1]} : vector<8x64xbf16> to vector<4x64xbf16>
    %c28_451 = arith.constant 28 : index
    %c64_452 = arith.constant 64 : index
    %644 = vector.load %arg18[%c28_451, %c64_452] : memref<32x320xbf16, #tpu.memory_space<vmem>>, vector<4x64xbf16>
    tpu.vector_store %arg18[%c28_451, %c64_452], %643 {strides = array<i32>} : memref<32x320xbf16, #tpu.memory_space<vmem>>, vector<4x64xbf16>,
    %645 = vector.extract_strided_slice %640 {offsets = [2, 0], sizes = [4, 64], strides = [1, 1]} : vector<8x64xbf16> to vector<4x64xbf16>
    %c28_453 = arith.constant 28 : index
    %c128_454 = arith.constant 128 : index
    %646 = vector.load %arg18[%c28_453, %c128_454] : memref<32x320xbf16, #tpu.memory_space<vmem>>, vector<4x64xbf16>
    tpu.vector_store %arg18[%c28_453, %c128_454], %645 {strides = array<i32>} : memref<32x320xbf16, #tpu.memory_space<vmem>>, vector<4x64xbf16>,
    %647 = vector.extract_strided_slice %640 {offsets = [3, 0], sizes = [4, 64], strides = [1, 1]} : vector<8x64xbf16> to vector<4x64xbf16>
    %c28_455 = arith.constant 28 : index
    %c192_456 = arith.constant 192 : index
    %648 = vector.load %arg18[%c28_455, %c192_456] : memref<32x320xbf16, #tpu.memory_space<vmem>>, vector<4x64xbf16>
    tpu.vector_store %arg18[%c28_455, %c192_456], %647 {strides = array<i32>} : memref<32x320xbf16, #tpu.memory_space<vmem>>, vector<4x64xbf16>,
    %649 = vector.extract_strided_slice %640 {offsets = [4, 0], sizes = [4, 64], strides = [1, 1]} : vector<8x64xbf16> to vector<4x64xbf16>
    %c28_457 = arith.constant 28 : index
    %c256_458 = arith.constant 256 : index
    %650 = vector.load %arg18[%c28_457, %c256_458] : memref<32x320xbf16, #tpu.memory_space<vmem>>, vector<4x64xbf16>
    tpu.vector_store %arg18[%c28_457, %c256_458], %649 {strides = array<i32>} : memref<32x320xbf16, #tpu.memory_space<vmem>>, vector<4x64xbf16>,
    %cst_459 = arith.constant 0.000000e+00 : f32
    %651 = vector.broadcast %cst_459 : f32 to vector<16x64xf32>
    %c0_460 = arith.constant 0 : index
    %c0_461 = arith.constant 0 : index
    %652 = vector.load %arg18[%c0_460, %c0_461] : memref<32x320xbf16, #tpu.memory_space<vmem>>, vector<16x320xbf16>
    %c0_462 = arith.constant 0 : index
    %c0_463 = arith.constant 0 : index
    %c0_464 = arith.constant 0 : index
    %653 = vector.load %arg6[%c0_462, %c0_463, %c0_464] : memref<5x320x64xbf16, #tpu.memory_space<vmem>>, vector<1x320x64xbf16>
    %654 = vector.shape_cast %653 : vector<1x320x64xbf16> to vector<320x64xbf16>
    %cst_465 = arith.constant dense<0.000000e+00> : vector<16x64xf32>
    %655 = tpu.matmul %652, %654, %cst_465 {dimension_numbers = #tpu.dot_dimension_numbers<[1], [0], [0], [1], [0, 0, 1, 1], [], []>} : vector<16x320xbf16>, vector<320x64xbf16>, vector<16x64xf32> -> vector<16x64xf32>
    %656 = arith.addf %651, %655 : vector<16x64xf32>
    %c4_466 = arith.constant 4 : index
    %c0_467 = arith.constant 0 : index
    %657 = vector.load %arg18[%c4_466, %c0_467] : memref<32x320xbf16, #tpu.memory_space<vmem>>, vector<16x320xbf16>
    %c1_468 = arith.constant 1 : index
    %c0_469 = arith.constant 0 : index
    %c0_470 = arith.constant 0 : index
    %658 = vector.load %arg6[%c1_468, %c0_469, %c0_470] : memref<5x320x64xbf16, #tpu.memory_space<vmem>>, vector<1x320x64xbf16>
    %659 = vector.shape_cast %658 : vector<1x320x64xbf16> to vector<320x64xbf16>
    %cst_471 = arith.constant dense<0.000000e+00> : vector<16x64xf32>
    %660 = tpu.matmul %657, %659, %cst_471 {dimension_numbers = #tpu.dot_dimension_numbers<[1], [0], [0], [1], [0, 0, 1, 1], [], []>} : vector<16x320xbf16>, vector<320x64xbf16>, vector<16x64xf32> -> vector<16x64xf32>
    %661 = arith.addf %656, %660 : vector<16x64xf32>
    %c8_472 = arith.constant 8 : index
    %c0_473 = arith.constant 0 : index
    %662 = vector.load %arg18[%c8_472, %c0_473] : memref<32x320xbf16, #tpu.memory_space<vmem>>, vector<16x320xbf16>
    %c2_474 = arith.constant 2 : index
    %c0_475 = arith.constant 0 : index
    %c0_476 = arith.constant 0 : index
    %663 = vector.load %arg6[%c2_474, %c0_475, %c0_476] : memref<5x320x64xbf16, #tpu.memory_space<vmem>>, vector<1x320x64xbf16>
    %664 = vector.shape_cast %663 : vector<1x320x64xbf16> to vector<320x64xbf16>
    %cst_477 = arith.constant dense<0.000000e+00> : vector<16x64xf32>
    %665 = tpu.matmul %662, %664, %cst_477 {dimension_numbers = #tpu.dot_dimension_numbers<[1], [0], [0], [1], [0, 0, 1, 1], [], []>} : vector<16x320xbf16>, vector<320x64xbf16>, vector<16x64xf32> -> vector<16x64xf32>
    %666 = arith.addf %661, %665 : vector<16x64xf32>
    %c12_478 = arith.constant 12 : index
    %c0_479 = arith.constant 0 : index
    %667 = vector.load %arg18[%c12_478, %c0_479] : memref<32x320xbf16, #tpu.memory_space<vmem>>, vector<16x320xbf16>
    %c3_480 = arith.constant 3 : index
    %c0_481 = arith.constant 0 : index
    %c0_482 = arith.constant 0 : index
    %668 = vector.load %arg6[%c3_480, %c0_481, %c0_482] : memref<5x320x64xbf16, #tpu.memory_space<vmem>>, vector<1x320x64xbf16>
    %669 = vector.shape_cast %668 : vector<1x320x64xbf16> to vector<320x64xbf16>
    %cst_483 = arith.constant dense<0.000000e+00> : vector<16x64xf32>
    %670 = tpu.matmul %667, %669, %cst_483 {dimension_numbers = #tpu.dot_dimension_numbers<[1], [0], [0], [1], [0, 0, 1, 1], [], []>} : vector<16x320xbf16>, vector<320x64xbf16>, vector<16x64xf32> -> vector<16x64xf32>
    %671 = arith.addf %666, %670 : vector<16x64xf32>
    %c16_484 = arith.constant 16 : index
    %c0_485 = arith.constant 0 : index
    %672 = vector.load %arg18[%c16_484, %c0_485] : memref<32x320xbf16, #tpu.memory_space<vmem>>, vector<16x320xbf16>
    %c4_486 = arith.constant 4 : index
    %c0_487 = arith.constant 0 : index
    %c0_488 = arith.constant 0 : index
    %673 = vector.load %arg6[%c4_486, %c0_487, %c0_488] : memref<5x320x64xbf16, #tpu.memory_space<vmem>>, vector<1x320x64xbf16>
    %674 = vector.shape_cast %673 : vector<1x320x64xbf16> to vector<320x64xbf16>
    %cst_489 = arith.constant dense<0.000000e+00> : vector<16x64xf32>
    %675 = tpu.matmul %672, %674, %cst_489 {dimension_numbers = #tpu.dot_dimension_numbers<[1], [0], [0], [1], [0, 0, 1, 1], [], []>} : vector<16x320xbf16>, vector<320x64xbf16>, vector<16x64xf32> -> vector<16x64xf32>
    %676 = arith.addf %671, %675 : vector<16x64xf32>
    %c0_490 = arith.constant 0 : index
    %c0_491 = arith.constant 0 : index
    %677 = vector.load %arg19[%c0_490, %c0_491] : memref<16x64xf32, #tpu.memory_space<vmem>>, vector<16x64xf32>
    tpu.vector_store %arg19[%c0_490, %c0_491], %676 {strides = array<i32>} : memref<16x64xf32, #tpu.memory_space<vmem>>, vector<16x64xf32>,
    %c0_492 = arith.constant 0 : index
    %c0_493 = arith.constant 0 : index
    %678 = vector.load %arg19[%c0_492, %c0_493] : memref<16x64xf32, #tpu.memory_space<vmem>>, vector<1x64xf32>
    %c1_494 = arith.constant 1 : index
    %c0_495 = arith.constant 0 : index
    %679 = vector.load %arg19[%c1_494, %c0_495] : memref<16x64xf32, #tpu.memory_space<vmem>>, vector<1x64xf32>
    %680 = arith.maximumf %678, %679 : vector<1x64xf32>
    %c4_496 = arith.constant 4 : index
    %c0_497 = arith.constant 0 : index
    %681 = vector.load %arg19[%c4_496, %c0_497] : memref<16x64xf32, #tpu.memory_space<vmem>>, vector<1x64xf32>
    %c5 = arith.constant 5 : index
    %c0_498 = arith.constant 0 : index
    %682 = vector.load %arg19[%c5, %c0_498] : memref<16x64xf32, #tpu.memory_space<vmem>>, vector<1x64xf32>
    %683 = arith.maximumf %681, %682 : vector<1x64xf32>
    %684 = arith.maximumf %680, %683 : vector<1x64xf32>
    %685 = arith.addf %684, %2 : vector<1x64xf32>
    %cst_499 = arith.constant 0.000000e+00 : f32
    %686 = vector.broadcast %cst_499 : f32 to vector<1x64xf32>
    %687 = arith.maximumf %685, %686 : vector<1x64xf32>
    %688 = arith.truncf %687 : vector<1x64xf32> to vector<1x64xbf16>
    %c2_500 = arith.constant 2 : index
    %c0_501 = arith.constant 0 : index
    %689 = vector.load %arg19[%c2_500, %c0_501] : memref<16x64xf32, #tpu.memory_space<vmem>>, vector<1x64xf32>
    %c3_502 = arith.constant 3 : index
    %c0_503 = arith.constant 0 : index
    %690 = vector.load %arg19[%c3_502, %c0_503] : memref<16x64xf32, #tpu.memory_space<vmem>>, vector<1x64xf32>
    %691 = arith.maximumf %689, %690 : vector<1x64xf32>
    %c6 = arith.constant 6 : index
    %c0_504 = arith.constant 0 : index
    %692 = vector.load %arg19[%c6, %c0_504] : memref<16x64xf32, #tpu.memory_space<vmem>>, vector<1x64xf32>
    %c7 = arith.constant 7 : index
    %c0_505 = arith.constant 0 : index
    %693 = vector.load %arg19[%c7, %c0_505] : memref<16x64xf32, #tpu.memory_space<vmem>>, vector<1x64xf32>
    %694 = arith.maximumf %692, %693 : vector<1x64xf32>
    %695 = arith.maximumf %691, %694 : vector<1x64xf32>
    %696 = arith.addf %695, %2 : vector<1x64xf32>
    %cst_506 = arith.constant 0.000000e+00 : f32
    %697 = vector.broadcast %cst_506 : f32 to vector<1x64xf32>
    %698 = arith.maximumf %696, %697 : vector<1x64xf32>
    %699 = arith.truncf %698 : vector<1x64xf32> to vector<1x64xbf16>
    %c8_507 = arith.constant 8 : index
    %c0_508 = arith.constant 0 : index
    %700 = vector.load %arg19[%c8_507, %c0_508] : memref<16x64xf32, #tpu.memory_space<vmem>>, vector<1x64xf32>
    %c9 = arith.constant 9 : index
    %c0_509 = arith.constant 0 : index
    %701 = vector.load %arg19[%c9, %c0_509] : memref<16x64xf32, #tpu.memory_space<vmem>>, vector<1x64xf32>
    %702 = arith.maximumf %700, %701 : vector<1x64xf32>
    %c12_510 = arith.constant 12 : index
    %c0_511 = arith.constant 0 : index
    %703 = vector.load %arg19[%c12_510, %c0_511] : memref<16x64xf32, #tpu.memory_space<vmem>>, vector<1x64xf32>
    %c13 = arith.constant 13 : index
    %c0_512 = arith.constant 0 : index
    %704 = vector.load %arg19[%c13, %c0_512] : memref<16x64xf32, #tpu.memory_space<vmem>>, vector<1x64xf32>
    %705 = arith.maximumf %703, %704 : vector<1x64xf32>
    %706 = arith.maximumf %702, %705 : vector<1x64xf32>
    %707 = arith.addf %706, %2 : vector<1x64xf32>
    %cst_513 = arith.constant 0.000000e+00 : f32
    %708 = vector.broadcast %cst_513 : f32 to vector<1x64xf32>
    %709 = arith.maximumf %707, %708 : vector<1x64xf32>
    %710 = arith.truncf %709 : vector<1x64xf32> to vector<1x64xbf16>
    %c10 = arith.constant 10 : index
    %c0_514 = arith.constant 0 : index
    %711 = vector.load %arg19[%c10, %c0_514] : memref<16x64xf32, #tpu.memory_space<vmem>>, vector<1x64xf32>
    %c11 = arith.constant 11 : index
    %c0_515 = arith.constant 0 : index
    %712 = vector.load %arg19[%c11, %c0_515] : memref<16x64xf32, #tpu.memory_space<vmem>>, vector<1x64xf32>
    %713 = arith.maximumf %711, %712 : vector<1x64xf32>
    %c14 = arith.constant 14 : index
    %c0_516 = arith.constant 0 : index
    %714 = vector.load %arg19[%c14, %c0_516] : memref<16x64xf32, #tpu.memory_space<vmem>>, vector<1x64xf32>
    %c15 = arith.constant 15 : index
    %c0_517 = arith.constant 0 : index
    %715 = vector.load %arg19[%c15, %c0_517] : memref<16x64xf32, #tpu.memory_space<vmem>>, vector<1x64xf32>
    %716 = arith.maximumf %714, %715 : vector<1x64xf32>
    %717 = arith.maximumf %713, %716 : vector<1x64xf32>
    %718 = arith.addf %717, %2 : vector<1x64xf32>
    %cst_518 = arith.constant 0.000000e+00 : f32
    %719 = vector.broadcast %cst_518 : f32 to vector<1x64xf32>
    %720 = arith.maximumf %718, %719 : vector<1x64xf32>
    %721 = arith.truncf %720 : vector<1x64xf32> to vector<1x64xbf16>
    %722 = tpu.concatenate %688, %699, %710, %721 in 1 : vector<1x64xbf16>, vector<1x64xbf16>, vector<1x64xbf16>, vector<1x64xbf16> -> vector<1x256xbf16>
    %c0_519 = arith.constant 0 : index
    %c0_520 = arith.constant 0 : index
    %723 = vector.load %arg8[%c0_519, %c0_520] : memref<256x128xbf16, #tpu.memory_space<vmem>>, vector<256x128xbf16>
    %cst_521 = arith.constant dense<0.000000e+00> : vector<1x128xf32>
    %724 = tpu.matmul %722, %723, %cst_521 {dimension_numbers = #tpu.dot_dimension_numbers<[1], [0], [0], [1], [0, 0, 1, 1], [], []>} : vector<1x256xbf16>, vector<256x128xbf16>, vector<1x128xf32> -> vector<1x128xf32>
    %c0_522 = arith.constant 0 : index
    %c0_523 = arith.constant 0 : index
    %725 = vector.load %arg9[%c0_522, %c0_523] : memref<1x128xf32, #tpu.memory_space<vmem>>, vector<1x128xf32>
    %726 = arith.addf %724, %725 : vector<1x128xf32>
    %cst_524 = arith.constant 0.000000e+00 : f32
    %727 = vector.broadcast %cst_524 : f32 to vector<1x128xf32>
    %728 = arith.maximumf %726, %727 : vector<1x128xf32>
    %729 = arith.truncf %728 : vector<1x128xf32> to vector<1x128xbf16>
    %c0_525 = arith.constant 0 : index
    %c0_526 = arith.constant 0 : index
    %730 = vector.load %arg10[%c0_525, %c0_526] : memref<128x128xbf16, #tpu.memory_space<vmem>>, vector<128x128xbf16>
    %cst_527 = arith.constant dense<0.000000e+00> : vector<1x128xf32>
    %731 = tpu.matmul %729, %730, %cst_527 {dimension_numbers = #tpu.dot_dimension_numbers<[1], [0], [0], [1], [0, 0, 1, 1], [], []>} : vector<1x128xbf16>, vector<128x128xbf16>, vector<1x128xf32> -> vector<1x128xf32>
    %c0_528 = arith.constant 0 : index
    %c0_529 = arith.constant 0 : index
    %732 = vector.load %arg11[%c0_528, %c0_529] : memref<1x128xf32, #tpu.memory_space<vmem>>, vector<1x128xf32>
    %733 = arith.addf %731, %732 : vector<1x128xf32>
    %cst_530 = arith.constant 0.000000e+00 : f32
    %734 = vector.broadcast %cst_530 : f32 to vector<1x128xf32>
    %735 = arith.maximumf %733, %734 : vector<1x128xf32>
    %736 = arith.truncf %735 : vector<1x128xf32> to vector<1x128xbf16>
    %c0_531 = arith.constant 0 : index
    %c0_532 = arith.constant 0 : index
    %737 = vector.load %arg12[%c0_531, %c0_532] : memref<128x128xbf16, #tpu.memory_space<vmem>>, vector<128x128xbf16>
    %cst_533 = arith.constant dense<0.000000e+00> : vector<1x128xf32>
    %738 = tpu.matmul %736, %737, %cst_533 {dimension_numbers = #tpu.dot_dimension_numbers<[1], [0], [0], [1], [0, 0, 1, 1], [], []>} : vector<1x128xbf16>, vector<128x128xbf16>, vector<1x128xf32> -> vector<1x128xf32>
    %c0_534 = arith.constant 0 : index
    %c0_535 = arith.constant 0 : index
    %739 = vector.load %arg13[%c0_534, %c0_535] : memref<1x128xf32, #tpu.memory_space<vmem>>, vector<1x128xf32>
    %740 = arith.addf %738, %739 : vector<1x128xf32>
    %c0_536 = arith.constant 0 : index
    %c0_537 = arith.constant 0 : index
    %c0_538 = arith.constant 0 : index
    %741 = vector.load %arg14[%c0_536, %c0_537, %c0_538] : memref<1x1x128xf32, #tpu.memory_space<vmem>>, vector<1x1x128xf32>
    %742 = vector.shape_cast %741 : vector<1x1x128xf32> to vector<1x128xf32>
    %743 = vector.shape_cast %740 : vector<1x128xf32> to vector<1x1x128xf32>
    tpu.vector_store %arg14[%c0_536, %c0_537, %c0_538], %743 {strides = array<i32>} : memref<1x1x128xf32, #tpu.memory_space<vmem>>, vector<1x1x128xf32>,
    return
  }
  func.func @transform_0(%arg0: i32) -> (i32, i32, i32) {
    %c0_i32 = arith.constant 0 : i32
    %c0_i32_0 = arith.constant 0 : i32
    %c0_i32_1 = arith.constant 0 : i32
    return %arg0, %c0_i32, %c0_i32_0 : i32, i32, i32
  }
  func.func @transform_1(%arg0: i32) -> (i32, i32) {
    %c0_i32 = arith.constant 0 : i32
    %c0_i32_0 = arith.constant 0 : i32
    %c0_i32_1 = arith.constant 0 : i32
    return %c0_i32, %c0_i32_0 : i32, i32
  }
  func.func @transform_2(%arg0: i32) -> (i32, i32) {
    %c0_i32 = arith.constant 0 : i32
    %c0_i32_0 = arith.constant 0 : i32
    %c0_i32_1 = arith.constant 0 : i32
    return %c0_i32, %c0_i32_0 : i32, i32
  }
  func.func @transform_3(%arg0: i32) -> (i32, i32, i32) {
    %c0_i32 = arith.constant 0 : i32
    %c0_i32_0 = arith.constant 0 : i32
    %c0_i32_1 = arith.constant 0 : i32
    %c0_i32_2 = arith.constant 0 : i32
    return %c0_i32, %c0_i32_0, %c0_i32_1 : i32, i32, i32
  }
  func.func @transform_4(%arg0: i32) -> (i32, i32) {
    %c0_i32 = arith.constant 0 : i32
    %c0_i32_0 = arith.constant 0 : i32
    %c0_i32_1 = arith.constant 0 : i32
    return %c0_i32, %c0_i32_0 : i32, i32
  }
  func.func @transform_5(%arg0: i32) -> (i32, i32, i32) {
    %c0_i32 = arith.constant 0 : i32
    %c0_i32_0 = arith.constant 0 : i32
    %c0_i32_1 = arith.constant 0 : i32
    %c0_i32_2 = arith.constant 0 : i32
    return %c0_i32, %c0_i32_0, %c0_i32_1 : i32, i32, i32
  }
  func.func @transform_6(%arg0: i32) -> (i32, i32) {
    %c0_i32 = arith.constant 0 : i32
    %c0_i32_0 = arith.constant 0 : i32
    %c0_i32_1 = arith.constant 0 : i32
    return %c0_i32, %c0_i32_0 : i32, i32
  }
  func.func @transform_7(%arg0: i32) -> (i32, i32) {
    %c0_i32 = arith.constant 0 : i32
    %c0_i32_0 = arith.constant 0 : i32
    %c0_i32_1 = arith.constant 0 : i32
    return %c0_i32, %c0_i32_0 : i32, i32
  }
  func.func @transform_8(%arg0: i32) -> (i32, i32) {
    %c0_i32 = arith.constant 0 : i32
    %c0_i32_0 = arith.constant 0 : i32
    %c0_i32_1 = arith.constant 0 : i32
    return %c0_i32, %c0_i32_0 : i32, i32
  }
  func.func @transform_9(%arg0: i32) -> (i32, i32) {
    %c0_i32 = arith.constant 0 : i32
    %c0_i32_0 = arith.constant 0 : i32
    %c0_i32_1 = arith.constant 0 : i32
    return %c0_i32, %c0_i32_0 : i32, i32
  }
  func.func @transform_10(%arg0: i32) -> (i32, i32) {
    %c0_i32 = arith.constant 0 : i32
    %c0_i32_0 = arith.constant 0 : i32
    %c0_i32_1 = arith.constant 0 : i32
    return %c0_i32, %c0_i32_0 : i32, i32
  }
  func.func @transform_11(%arg0: i32) -> (i32, i32) {
    %c0_i32 = arith.constant 0 : i32
    %c0_i32_0 = arith.constant 0 : i32
    %c0_i32_1 = arith.constant 0 : i32
    return %c0_i32, %c0_i32_0 : i32, i32
  }
  func.func @transform_12(%arg0: i32) -> (i32, i32) {
    %c0_i32 = arith.constant 0 : i32
    %c0_i32_0 = arith.constant 0 : i32
    %c0_i32_1 = arith.constant 0 : i32
    return %c0_i32, %c0_i32_0 : i32, i32
  }
  func.func @transform_13(%arg0: i32) -> (i32, i32, i32) {
    %c0_i32 = arith.constant 0 : i32
    %c0_i32_0 = arith.constant 0 : i32
    %c0_i32_1 = arith.constant 0 : i32
    return %arg0, %c0_i32, %c0_i32_0 : i32, i32, i32
  }
}

</mosaic_0001>

<llo_original>
// kernel: lenet_forward.1
$region0: #{lenet_forward.1}
  #allocation0 [shape = 'u32[]', space=smem, size = 0x4, offset = 0x4, fixed_abs, tag = 'smem constant byte address 0x4 - core index']
  #allocation1 [shape = 'u32[72,128]{1,0:T(1,128)}', space=vmem, size = 0x9000, scoped, tag = 'internal scratch']
  #allocation2 [shape = 'f32[1600,32]{1,0:T(8,128)}', space=vmem, size = 0xc8000, scoped, tag = 'scratch operand']
  #allocation3 [shape = 'bf16[320,160]{1,0:T(8,128)(2,1)}', space=vmem, size = 0x28000, scoped, tag = 'scratch operand']
  #allocation4 [shape = 'f32[256,64]{1,0:T(8,128)}', space=vmem, size = 0x20000, scoped, tag = 'scratch operand']
  #allocation5 [shape = 'bf16[32,320]{1,0:T(8,128)(2,1)}', space=vmem, size = 0x6000, scoped, tag = 'scratch operand']
  #allocation6 [shape = 'f32[16,64]{1,0:T(8,128)}', space=vmem, size = 0x2000, scoped, tag = 'scratch operand']
  %s0 = inlined_call_operand.vmem [shape: bf16[2,1600,32], index: 0, kind: input, shape index: {}]
  %s1 = inlined_call_operand.vmem [shape: bf16[32,32], index: 1, kind: input, shape index: {}]
  %s2 = inlined_call_operand.vmem [shape: f32[1,32], index: 2, kind: input, shape index: {}]
  %s3 = inlined_call_operand.vmem [shape: bf16[5,160,64], index: 3, kind: input, shape index: {}]
  %s4 = inlined_call_operand.vmem [shape: f32[1,64], index: 4, kind: input, shape index: {}]
  %s5 = inlined_call_operand.vmem [shape: bf16[5,320,64], index: 5, kind: input, shape index: {}]
  %s6 = inlined_call_operand.vmem [shape: f32[1,64], index: 6, kind: input, shape index: {}]
  %s7 = inlined_call_operand.vmem [shape: bf16[256,128], index: 7, kind: input, shape index: {}]
  %s8 = inlined_call_operand.vmem [shape: f32[1,128], index: 8, kind: input, shape index: {}]
  %s9 = inlined_call_operand.vmem [shape: bf16[128,128], index: 9, kind: input, shape index: {}]
  %s10 = inlined_call_operand.vmem [shape: f32[1,128], index: 10, kind: input, shape index: {}]
  %s11 = inlined_call_operand.vmem [shape: bf16[128,128], index: 11, kind: input, shape index: {}]
  %s12 = inlined_call_operand.vmem [shape: f32[1,128], index: 12, kind: input, shape index: {}]
  %s13 = inlined_call_operand.hbm [shape: f32[2,1,128], index: 13, kind: output, shape index: {}]
  %s14 = sld [smem:[#allocation0]]
  $region85: #{lenet_forward.1} parent=0
    _
  %s16 = ssub.s32 1, %s14
  %s17 = scalar_select 0, %s16, %s14
  $region1: #{lenet_forward.1} parent=0
    #allocation7 [shape = 'u8[1024]{0}', space=vmem, size = 0x400, scoped, tag = 'output window, operand 0']
    #allocation8 [shape = 's32[2]{0}', space=sflag, size = 0x8, scoped, tag = 'scoped memory for lenet_forward.1']
    %18 = vsyncpa [#allocation8], 0
    %s19 = scalar_lea.sflag [#allocation8], 1
    %20 = vsyncpa %s19, 0
    loop: start=0, step=1, limit=4
    $region2: #{lenet_forward.1} parent=1 // loop_pre_header
      _
    $region3: #{lenet_forward.1} parent=1 // loop_header
      %s22 = sphi 0, %s26
      %p23 = scmp.ge.s32.totalorder %s22, 4
      %s32 = sphi 0, %s34
      %s35 = sphi 0, %s32
      %s36 = sphi 0, %s35
      %s52 = sphi 0, %s36
      %s56 = sphi 0, %s56
      %s58 = sphi 0, %s56
      %s59 = sphi 0, %s58
      %s73 = sphi 0, %s59
      %s77 = sphi 0, %s77
      %s79 = sphi 0, %s77
      %s80 = sphi 0, %s79
      %s94 = sphi 0, %s80
      %s98 = sphi 0, %s98
      %s100 = sphi 0, %s98
      %s101 = sphi 0, %s100
      %s115 = sphi 0, %s101
      %s119 = sphi 0, %s119
      %s121 = sphi 0, %s119
      %s122 = sphi 0, %s121
      %s136 = sphi 0, %s122
      %s140 = sphi 0, %s140
      %s142 = sphi 0, %s140
      %s143 = sphi 0, %s142
      %s157 = sphi 0, %s143
      %s161 = sphi 0, %s161
      %s163 = sphi 0, %s161
      %s164 = sphi 0, %s163
      %s178 = sphi 0, %s164
      %s182 = sphi 0, %s182
      %s184 = sphi 0, %s182
      %s185 = sphi 0, %s184
      %s199 = sphi 0, %s185
      %s203 = sphi 0, %s203
      %s205 = sphi 0, %s203
      %s206 = sphi 0, %s205
      %s220 = sphi 0, %s206
      %s224 = sphi 0, %s224
      %s226 = sphi 0, %s224
      %s227 = sphi 0, %s226
      %s241 = sphi 0, %s227
      %s245 = sphi 0, %s245
      %s247 = sphi 0, %s245
      %s248 = sphi 0, %s247
      %s262 = sphi 0, %s248
      %s266 = sphi 0, %s266
      %s268 = sphi 0, %s266
      %s269 = sphi 0, %s268
      %s283 = sphi 0, %s269
      %s287 = sphi 0, %s287
      %s289 = sphi 0, %s287
      %s290 = sphi 0, %s289
      %s304 = sphi 0, %s290
      %s310 = sphi 0, %s312
      %s313 = sphi 0, %s310
      %s314 = sphi 0, %s313
      %s330 = sphi 0, %s314
    $region4: #{lenet_forward.1} parent=1 // loop_header_branch
      %25 = sbr.rel (%p23) target = $region8
    $region5: #{lenet_forward.1} parent=1 // loop_body
      %s27 = ssub.s32 %s22, 1
      %s28 = ssub.s32 %s22, 2
      %s29 = sadd.s32 %s22, 1
      %s30 = ssub.s32 %s22, %s29
      %p31 = scmp.eq.s32.totalorder %s30, 0
      %s33 = sadd.s32 %s32, 1
      %s34 = scalar_select %p31, %s32, %s33
      %p37 = pneg %p31
      %p38 = scmp.eq.s32.totalorder %s22, 1
      %p39 = por %p37, %p38
      %p40 = scmp.ne.s32.totalorder %s32, %s35
      %p41 = scmp.eq.s32.totalorder %s22, 0
      %p42 = por %p40, %p41
      %p43 = scmp.ne.s32.totalorder %s32, %s35
      %p44 = scmp.eq.s32.totalorder %s27, 1
      %p45 = por %p43, %p44
      %p46 = scmp.ne.s32.totalorder %s35, %s36
      %p47 = scmp.eq.s32.totalorder %s27, 0
      %p48 = por %p46, %p47
      %p49 = scmp.ne.s32.totalorder %s35, %s36
      %p50 = scmp.eq.s32.totalorder %s28, 1
      %p51 = por %p49, %p50
      %p53 = scmp.ne.s32.totalorder %s36, %s52
      %p54 = scmp.eq.s32.totalorder %s28, 0
      %p55 = por %p53, %p54
      %s57 = sadd.s32 %s56, 1
      %p60 = scmp.eq.s32.totalorder %s22, 1
      %p61 = scmp.ne.s32.totalorder %s56, %s58
      %p62 = scmp.eq.s32.totalorder %s22, 0
      %p63 = por %p61, %p62
      %p64 = scmp.ne.s32.totalorder %s56, %s58
      %p65 = scmp.eq.s32.totalorder %s27, 1
      %p66 = por %p64, %p65
      %p67 = scmp.ne.s32.totalorder %s58, %s59
      %p68 = scmp.eq.s32.totalorder %s27, 0
      %p69 = por %p67, %p68
      %p70 = scmp.ne.s32.totalorder %s58, %s59
      %p71 = scmp.eq.s32.totalorder %s28, 1
      %p72 = por %p70, %p71
      %p74 = scmp.ne.s32.totalorder %s59, %s73
      %p75 = scmp.eq.s32.totalorder %s28, 0
      %p76 = por %p74, %p75
      %s78 = sadd.s32 %s77, 1
      %p81 = scmp.eq.s32.totalorder %s22, 1
      %p82 = scmp.ne.s32.totalorder %s77, %s79
      %p83 = scmp.eq.s32.totalorder %s22, 0
      %p84 = por %p82, %p83
      %p85 = scmp.ne.s32.totalorder %s77, %s79
      %p86 = scmp.eq.s32.totalorder %s27, 1
      %p87 = por %p85, %p86
      %p88 = scmp.ne.s32.totalorder %s79, %s80
      %p89 = scmp.eq.s32.totalorder %s27, 0
      %p90 = por %p88, %p89
      %p91 = scmp.ne.s32.totalorder %s79, %s80
      %p92 = scmp.eq.s32.totalorder %s28, 1
      %p93 = por %p91, %p92
      %p95 = scmp.ne.s32.totalorder %s80, %s94
      %p96 = scmp.eq.s32.totalorder %s28, 0
      %p97 = por %p95, %p96
      %s99 = sadd.s32 %s98, 1
      %p102 = scmp.eq.s32.totalorder %s22, 1
      %p103 = scmp.ne.s32.totalorder %s98, %s100
      %p104 = scmp.eq.s32.totalorder %s22, 0
      %p105 = por %p103, %p104
      %p106 = scmp.ne.s32.totalorder %s98, %s100
      %p107 = scmp.eq.s32.totalorder %s27, 1
      %p108 = por %p106, %p107
      %p109 = scmp.ne.s32.totalorder %s100, %s101
      %p110 = scmp.eq.s32.totalorder %s27, 0
      %p111 = por %p109, %p110
      %p112 = scmp.ne.s32.totalorder %s100, %s101
      %p113 = scmp.eq.s32.totalorder %s28, 1
      %p114 = por %p112, %p113
      %p116 = scmp.ne.s32.totalorder %s101, %s115
      %p117 = scmp.eq.s32.totalorder %s28, 0
      %p118 = por %p116, %p117
      %s120 = sadd.s32 %s119, 1
      %p123 = scmp.eq.s32.totalorder %s22, 1
      %p124 = scmp.ne.s32.totalorder %s119, %s121
      %p125 = scmp.eq.s32.totalorder %s22, 0
      %p126 = por %p124, %p125
      %p127 = scmp.ne.s32.totalorder %s119, %s121
      %p128 = scmp.eq.s32.totalorder %s27, 1
      %p129 = por %p127, %p128
      %p130 = scmp.ne.s32.totalorder %s121, %s122
      %p131 = scmp.eq.s32.totalorder %s27, 0
      %p132 = por %p130, %p131
      %p133 = scmp.ne.s32.totalorder %s121, %s122
      %p134 = scmp.eq.s32.totalorder %s28, 1
      %p135 = por %p133, %p134
      %p137 = scmp.ne.s32.totalorder %s122, %s136
      %p138 = scmp.eq.s32.totalorder %s28, 0
      %p139 = por %p137, %p138
      %s141 = sadd.s32 %s140, 1
      %p144 = scmp.eq.s32.totalorder %s22, 1
      %p145 = scmp.ne.s32.totalorder %s140, %s142
      %p146 = scmp.eq.s32.totalorder %s22, 0
      %p147 = por %p145, %p146
      %p148 = scmp.ne.s32.totalorder %s140, %s142
      %p149 = scmp.eq.s32.totalorder %s27, 1
      %p150 = por %p148, %p149
      %p151 = scmp.ne.s32.totalorder %s142, %s143
      %p152 = scmp.eq.s32.totalorder %s27, 0
      %p153 = por %p151, %p152
      %p154 = scmp.ne.s32.totalorder %s142, %s143
      %p155 = scmp.eq.s32.totalorder %s28, 1
      %p156 = por %p154, %p155
      %p158 = scmp.ne.s32.totalorder %s143, %s157
      %p159 = scmp.eq.s32.totalorder %s28, 0
      %p160 = por %p158, %p159
      %s162 = sadd.s32 %s161, 1
      %p165 = scmp.eq.s32.totalorder %s22, 1
      %p166 = scmp.ne.s32.totalorder %s161, %s163
      %p167 = scmp.eq.s32.totalorder %s22, 0
      %p168 = por %p166, %p167
      %p169 = scmp.ne.s32.totalorder %s161, %s163
      %p170 = scmp.eq.s32.totalorder %s27, 1
      %p171 = por %p169, %p170
      %p172 = scmp.ne.s32.totalorder %s163, %s164
      %p173 = scmp.eq.s32.totalorder %s27, 0
      %p174 = por %p172, %p173
      %p175 = scmp.ne.s32.totalorder %s163, %s164
      %p176 = scmp.eq.s32.totalorder %s28, 1
      %p177 = por %p175, %p176
      %p179 = scmp.ne.s32.totalorder %s164, %s178
      %p180 = scmp.eq.s32.totalorder %s28, 0
      %p181 = por %p179, %p180
      %s183 = sadd.s32 %s182, 1
      %p186 = scmp.eq.s32.totalorder %s22, 1
      %p187 = scmp.ne.s32.totalorder %s182, %s184
      %p188 = scmp.eq.s32.totalorder %s22, 0
      %p189 = por %p187, %p188
      %p190 = scmp.ne.s32.totalorder %s182, %s184
      %p191 = scmp.eq.s32.totalorder %s27, 1
      %p192 = por %p190, %p191
      %p193 = scmp.ne.s32.totalorder %s184, %s185
      %p194 = scmp.eq.s32.totalorder %s27, 0
      %p195 = por %p193, %p194
      %p196 = scmp.ne.s32.totalorder %s184, %s185
      %p197 = scmp.eq.s32.totalorder %s28, 1
      %p198 = por %p196, %p197
      %p200 = scmp.ne.s32.totalorder %s185, %s199
      %p201 = scmp.eq.s32.totalorder %s28, 0
      %p202 = por %p200, %p201
      %s204 = sadd.s32 %s203, 1
      %p207 = scmp.eq.s32.totalorder %s22, 1
      %p208 = scmp.ne.s32.totalorder %s203, %s205
      %p209 = scmp.eq.s32.totalorder %s22, 0
      %p210 = por %p208, %p209
      %p211 = scmp.ne.s32.totalorder %s203, %s205
      %p212 = scmp.eq.s32.totalorder %s27, 1
      %p213 = por %p211, %p212
      %p214 = scmp.ne.s32.totalorder %s205, %s206
      %p215 = scmp.eq.s32.totalorder %s27, 0
      %p216 = por %p214, %p215
      %p217 = scmp.ne.s32.totalorder %s205, %s206
      %p218 = scmp.eq.s32.totalorder %s28, 1
      %p219 = por %p217, %p218
      %p221 = scmp.ne.s32.totalorder %s206, %s220
      %p222 = scmp.eq.s32.totalorder %s28, 0
      %p223 = por %p221, %p222
      %s225 = sadd.s32 %s224, 1
      %p228 = scmp.eq.s32.totalorder %s22, 1
      %p229 = scmp.ne.s32.totalorder %s224, %s226
      %p230 = scmp.eq.s32.totalorder %s22, 0
      %p231 = por %p229, %p230
      %p232 = scmp.ne.s32.totalorder %s224, %s226
      %p233 = scmp.eq.s32.totalorder %s27, 1
      %p234 = por %p232, %p233
      %p235 = scmp.ne.s32.totalorder %s226, %s227
      %p236 = scmp.eq.s32.totalorder %s27, 0
      %p237 = por %p235, %p236
      %p238 = scmp.ne.s32.totalorder %s226, %s227
      %p239 = scmp.eq.s32.totalorder %s28, 1
      %p240 = por %p238, %p239
      %p242 = scmp.ne.s32.totalorder %s227, %s241
      %p243 = scmp.eq.s32.totalorder %s28, 0
      %p244 = por %p242, %p243
      %s246 = sadd.s32 %s245, 1
      %p249 = scmp.eq.s32.totalorder %s22, 1
      %p250 = scmp.ne.s32.totalorder %s245, %s247
      %p251 = scmp.eq.s32.totalorder %s22, 0
      %p252 = por %p250, %p251
      %p253 = scmp.ne.s32.totalorder %s245, %s247
      %p254 = scmp.eq.s32.totalorder %s27, 1
      %p255 = por %p253, %p254
      %p256 = scmp.ne.s32.totalorder %s247, %s248
      %p257 = scmp.eq.s32.totalorder %s27, 0
      %p258 = por %p256, %p257
      %p259 = scmp.ne.s32.totalorder %s247, %s248
      %p260 = scmp.eq.s32.totalorder %s28, 1
      %p261 = por %p259, %p260
      %p263 = scmp.ne.s32.totalorder %s248, %s262
      %p264 = scmp.eq.s32.totalorder %s28, 0
      %p265 = por %p263, %p264
      %s267 = sadd.s32 %s266, 1
      %p270 = scmp.eq.s32.totalorder %s22, 1
      %p271 = scmp.ne.s32.totalorder %s266, %s268
      %p272 = scmp.eq.s32.totalorder %s22, 0
      %p273 = por %p271, %p272
      %p274 = scmp.ne.s32.totalorder %s266, %s268
      %p275 = scmp.eq.s32.totalorder %s27, 1
      %p276 = por %p274, %p275
      %p277 = scmp.ne.s32.totalorder %s268, %s269
      %p278 = scmp.eq.s32.totalorder %s27, 0
      %p279 = por %p277, %p278
      %p280 = scmp.ne.s32.totalorder %s268, %s269
      %p281 = scmp.eq.s32.totalorder %s28, 1
      %p282 = por %p280, %p281
      %p284 = scmp.ne.s32.totalorder %s269, %s283
      %p285 = scmp.eq.s32.totalorder %s28, 0
      %p286 = por %p284, %p285
      %s288 = sadd.s32 %s287, 1
      %p291 = scmp.eq.s32.totalorder %s22, 1
      %p292 = scmp.ne.s32.totalorder %s287, %s289
      %p293 = scmp.eq.s32.totalorder %s22, 0
      %p294 = por %p292, %p293
      %p295 = scmp.ne.s32.totalorder %s287, %s289
      %p296 = scmp.eq.s32.totalorder %s27, 1
      %p297 = por %p295, %p296
      %p298 = scmp.ne.s32.totalorder %s289, %s290
      %p299 = scmp.eq.s32.totalorder %s27, 0
      %p300 = por %p298, %p299
      %p301 = scmp.ne.s32.totalorder %s289, %s290
      %p302 = scmp.eq.s32.totalorder %s28, 1
      %p303 = por %p301, %p302
      %p305 = scmp.ne.s32.totalorder %s290, %s304
      %p306 = scmp.eq.s32.totalorder %s28, 0
      %p307 = por %p305, %p306
      %s308 = ssub.s32 %s22, %s29
      %p309 = scmp.eq.s32.totalorder %s308, 0
      %s311 = sadd.s32 %s310, 1
      %s312 = scalar_select %p309, %s310, %s311
      %p315 = pneg %p309
      %p316 = scmp.eq.s32.totalorder %s22, 1
      %p317 = por %p315, %p316
      %p318 = scmp.ne.s32.totalorder %s310, %s313
      %p319 = scmp.eq.s32.totalorder %s22, 0
      %p320 = por %p318, %p319
      %p321 = scmp.ne.s32.totalorder %s310, %s313
      %p322 = scmp.eq.s32.totalorder %s27, 1
      %p323 = por %p321, %p322
      %p324 = scmp.ne.s32.totalorder %s313, %s314
      %p325 = scmp.eq.s32.totalorder %s27, 0
      %p326 = por %p324, %p325
      %p327 = scmp.ne.s32.totalorder %s313, %s314
      %p328 = scmp.eq.s32.totalorder %s28, 1
      %p329 = por %p327, %p328
      %p331 = scmp.ne.s32.totalorder %s314, %s330
      %p332 = scmp.eq.s32.totalorder %s28, 0
      %p333 = por %p331, %p332
      %p334 = scmp.le.s32.totalorder 1, %s22
      %p335 = scmp.lt.s32.totalorder %s22, 3
      %p336 = pnand %p334, %p335
      %p337 = pneg %p336
      // Predicated region
      $region9: #{lenet_forward.1} parent=5 // pred_check
        _
      $region10: #{lenet_forward.1} parent=5 // pred_check_branch
        %339 = sbr.rel (%p336) target = $region12
      $region11: #{lenet_forward.1} parent=5 // pred_region
        %s340 = ssub.s32 %s22, 1
        // Predicated region
        $region13: #{lenet_forward.1} parent=11 // pred_check
          %p341 = pneg %p69
        $region14: #{lenet_forward.1} parent=11 // pred_check_branch
          %343 = sbr.rel (%p341) target = $region16
        $region15: #{lenet_forward.1} parent=11 // pred_region
          _
        $region16: #{lenet_forward.1} parent=11 // pred_fallthru
          _
        // Predicated region
        $region17: #{lenet_forward.1} parent=11 // pred_check
          %p344 = pneg %p90
        $region18: #{lenet_forward.1} parent=11 // pred_check_branch
          %346 = sbr.rel (%p344) target = $region20
        $region19: #{lenet_forward.1} parent=11 // pred_region
          _
        $region20: #{lenet_forward.1} parent=11 // pred_fallthru
          _
        // Predicated region
        $region21: #{lenet_forward.1} parent=11 // pred_check
          %p347 = pneg %p111
        $region22: #{lenet_forward.1} parent=11 // pred_check_branch
          %349 = sbr.rel (%p347) target = $region24
        $region23: #{lenet_forward.1} parent=11 // pred_region
          _
        $region24: #{lenet_forward.1} parent=11 // pred_fallthru
          _
        // Predicated region
        $region25: #{lenet_forward.1} parent=11 // pred_check
          %p350 = pneg %p132
        $region26: #{lenet_forward.1} parent=11 // pred_check_branch
          %352 = sbr.rel (%p350) target = $region28
        $region27: #{lenet_forward.1} parent=11 // pred_region
          _
        $region28: #{lenet_forward.1} parent=11 // pred_fallthru
          _
        // Predicated region
        $region29: #{lenet_forward.1} parent=11 // pred_check
          %p353 = pneg %p153
        $region30: #{lenet_forward.1} parent=11 // pred_check_branch
          %355 = sbr.rel (%p353) target = $region32
        $region31: #{lenet_forward.1} parent=11 // pred_region
          _
        $region32: #{lenet_forward.1} parent=11 // pred_fallthru
          _
        // Predicated region
        $region33: #{lenet_forward.1} parent=11 // pred_check
          %p356 = pneg %p174
        $region34: #{lenet_forward.1} parent=11 // pred_check_branch
          %358 = sbr.rel (%p356) target = $region36
        $region35: #{lenet_forward.1} parent=11 // pred_region
          _
        $region36: #{lenet_forward.1} parent=11 // pred_fallthru
          _
        // Predicated region
        $region37: #{lenet_forward.1} parent=11 // pred_check
          %p359 = pneg %p195
        $region38: #{lenet_forward.1} parent=11 // pred_check_branch
          %361 = sbr.rel (%p359) target = $region40
        $region39: #{lenet_forward.1} parent=11 // pred_region
          _
        $region40: #{lenet_forward.1} parent=11 // pred_fallthru
          _
        // Predicated region
        $region41: #{lenet_forward.1} parent=11 // pred_check
          %p362 = pneg %p216
        $region42: #{lenet_forward.1} parent=11 // pred_check_branch
          %364 = sbr.rel (%p362) target = $region44
        $region43: #{lenet_forward.1} parent=11 // pred_region
          _
        $region44: #{lenet_forward.1} parent=11 // pred_fallthru
          _
        // Predicated region
        $region45: #{lenet_forward.1} parent=11 // pred_check
          %p365 = pneg %p237
        $region46: #{lenet_forward.1} parent=11 // pred_check_branch
          %367 = sbr.rel (%p365) target = $region48
        $region47: #{lenet_forward.1} parent=11 // pred_region
          _
        $region48: #{lenet_forward.1} parent=11 // pred_fallthru
          _
        // Predicated region
        $region49: #{lenet_forward.1} parent=11 // pred_check
          %p368 = pneg %p258
        $region50: #{lenet_forward.1} parent=11 // pred_check_branch
          %370 = sbr.rel (%p368) target = $region52
        $region51: #{lenet_forward.1} parent=11 // pred_region
          _
        $region52: #{lenet_forward.1} parent=11 // pred_fallthru
          _
        // Predicated region
        $region53: #{lenet_forward.1} parent=11 // pred_check
          %p371 = pneg %p279
        $region54: #{lenet_forward.1} parent=11 // pred_check_branch
          %373 = sbr.rel (%p371) target = $region56
        $region55: #{lenet_forward.1} parent=11 // pred_region
          _
        $region56: #{lenet_forward.1} parent=11 // pred_fallthru
          _
        // Predicated region
        $region57: #{lenet_forward.1} parent=11 // pred_check
          %p374 = pneg %p300
        $region58: #{lenet_forward.1} parent=11 // pred_check_branch
          %376 = sbr.rel (%p374) target = $region60
        $region59: #{lenet_forward.1} parent=11 // pred_region
          _
        $region60: #{lenet_forward.1} parent=11 // pred_fallthru
          _
      $region12: #{lenet_forward.1} parent=5 // pred_fallthru
        _
      %p377 = scmp.lt.s32.totalorder %s22, 2
      // Predicated region
      $region61: #{lenet_forward.1} parent=5 // pred_check
        %p378 = pneg %p377
      $region62: #{lenet_forward.1} parent=5 // pred_check_branch
        %380 = sbr.rel (%p378) target = $region64
      $region63: #{lenet_forward.1} parent=5 // pred_region
        // Predicated region
        $region65: #{lenet_forward.1} parent=63 // pred_check
          %p381 = pneg %p42
        $region66: #{lenet_forward.1} parent=63 // pred_check_branch
          %383 = sbr.rel (%p381) target = $region68
        $region67: #{lenet_forward.1} parent=63 // pred_region
          %p384 = scmp.lt.s32.totalorder %s22, 1
          %s385 = scalar_select %p384, %s22, 1
          %s386 = smul.addr %s385, 200
          %s387 = smul.addr %s386, 4
          %s388 = scalar_lea.vmem %s0, %s387
        $region68: #{lenet_forward.1} parent=63 // pred_fallthru
          _
      $region64: #{lenet_forward.1} parent=5 // pred_fallthru
        _
      %p389 = scmp.le.s32.totalorder 1, %s22
      %p390 = scmp.lt.s32.totalorder %s22, 3
      %p391 = pnand %p389, %p390
      %p392 = pneg %p391
      // Predicated region
      $region69: #{lenet_forward.1} parent=5 // pred_check
        _
      $region70: #{lenet_forward.1} parent=5 // pred_check_branch
        %394 = sbr.rel (%p391) target = $region72
      $region71: #{lenet_forward.1} parent=5 // pred_region
        %s395 = ssub.s32 %s22, 1
        %p396 = scmp.lt.s32.totalorder %s27, 1
        %s397 = scalar_select %p396, %s27, 1
        %s398 = smul.addr %s397, 200
        %s399 = smul.addr %s398, 4
        %s400 = scalar_lea.vmem %s0, %s399
        %p401 = pneg %p48
        %p402 = pneg %p45
        %p403 = pneg %p69
        %p404 = pneg %p66
        %p405 = pneg %p90
        %p406 = pneg %p87
        %p407 = pneg %p111
        %p408 = pneg %p108
        %p409 = pneg %p132
        %p410 = pneg %p129
        %p411 = pneg %p153
        %p412 = pneg %p150
        %p413 = pneg %p174
        %p414 = pneg %p171
        %p415 = pneg %p195
        %p416 = pneg %p192
        %p417 = pneg %p216
        %p418 = pneg %p213
        %p419 = pneg %p237
        %p420 = pneg %p234
        %p421 = pneg %p258
        %p422 = pneg %p255
        %p423 = pneg %p279
        %p424 = pneg %p276
        %p425 = pneg %p300
        %p426 = pneg %p297
        %p427 = pneg %p326
        %p428 = pneg %p323
        %s429 = sand.u32 %s313, 1
        %s430 = scalar_lea.sflag [#allocation8], %s429
        %s431 = sand.u32 %s313, 1
        %s432 = scalar_lea.vmem [#allocation7], %s431
        %p433 = scmp.lt.s32.totalorder %s27, 1
        %s434 = scalar_select %p433, %s27, 1
        %s435 = smul.addr %s434, 200
        %s436 = smul.addr %s435, 4
        %s437 = scalar_lea.vmem %s0, %s436
        %v439 = vld [vmem:[%s2] sm:$0x1]
        %v440 = vld [vmem:[%s4] sm:$0x1]
        %v441 = vld [vmem:[%s6] sm:$0x1]
        %v442 = vld [vmem:[%s437] sm:$0xf]
        %v443 = vld [vmem:[%s437 + $0x4] sm:$0xf]
        %v444 = vld [vmem:[%s437 + $0x8] sm:$0xf]
        %v445 = vld [vmem:[%s437 + $0xc] sm:$0xf]
        %v446 = vld [vmem:[%s437 + $0x10] sm:$0xf]
        %v447 = vld [vmem:[%s437 + $0x14] sm:$0xf]
        %v448 = vld [vmem:[%s437 + $0x18] sm:$0xf]
        %v449 = vld [vmem:[%s437 + $0x1c] sm:$0xf]
        %v450 = vld [vmem:[%s437 + $0x20] sm:$0xf]
        %v451 = vld [vmem:[%s437 + $0x24] sm:$0xf]
        %v452 = vld [vmem:[%s437 + $0x28] sm:$0xf]
        %v453 = vld [vmem:[%s437 + $0x2c] sm:$0xf]
        %v454 = vld [vmem:[%s437 + $0x30] sm:$0xf]
        %v455 = vld [vmem:[%s437 + $0x34] sm:$0xf]
        %v456 = vld [vmem:[%s437 + $0x38] sm:$0xf]
        %v457 = vld [vmem:[%s437 + $0x3c] sm:$0xf]
        %v458 = vld [vmem:[%s437 + $0x40] sm:$0xf]
        %v459 = vld [vmem:[%s437 + $0x44] sm:$0xf]
        %v460 = vld [vmem:[%s437 + $0x48] sm:$0xf]
        %v461 = vld [vmem:[%s437 + $0x4c] sm:$0xf]
        %v462 = vld [vmem:[%s437 + $0x50] sm:$0xf]
        %v463 = vld [vmem:[%s437 + $0x54] sm:$0xf]
        %v464 = vld [vmem:[%s437 + $0x58] sm:$0xf]
        %v465 = vld [vmem:[%s437 + $0x5c] sm:$0xf]
        %v466 = vld [vmem:[%s437 + $0x60] sm:$0xf]
        %v467 = vld [vmem:[%s437 + $0x64] sm:$0xf]
        %v468 = vld [vmem:[%s437 + $0x68] sm:$0xf]
        %v469 = vld [vmem:[%s437 + $0x6c] sm:$0xf]
        %v470 = vld [vmem:[%s437 + $0x70] sm:$0xf]
        %v471 = vld [vmem:[%s437 + $0x74] sm:$0xf]
        %v472 = vld [vmem:[%s437 + $0x78] sm:$0xf]
        %v473 = vld [vmem:[%s437 + $0x7c] sm:$0xf]
        %v474 = vld [vmem:[%s437 + $0x80] sm:$0xf]
        %v475 = vld [vmem:[%s437 + $0x84] sm:$0xf]
        %v476 = vld [vmem:[%s437 + $0x88] sm:$0xf]
        %v477 = vld [vmem:[%s437 + $0x8c] sm:$0xf]
        %v478 = vld [vmem:[%s437 + $0x90] sm:$0xf]
        %v479 = vld [vmem:[%s437 + $0x94] sm:$0xf]
        %v480 = vld [vmem:[%s437 + $0x98] sm:$0xf]
        %v481 = vld [vmem:[%s437 + $0x9c] sm:$0xf]
        %v482 = vld [vmem:[%s437 + $0xa0] sm:$0xf]
        %v483 = vld [vmem:[%s437 + $0xa4] sm:$0xf]
        %v484 = vld [vmem:[%s437 + $0xa8] sm:$0xf]
        %v485 = vld [vmem:[%s437 + $0xac] sm:$0xf]
        %v486 = vld [vmem:[%s437 + $0xb0] sm:$0xf]
        %v487 = vld [vmem:[%s437 + $0xb4] sm:$0xf]
        %v488 = vld [vmem:[%s437 + $0xb8] sm:$0xf]
        %v489 = vld [vmem:[%s437 + $0xbc] sm:$0xf]
        %v490 = vld [vmem:[%s437 + $0xc0] sm:$0xf]
        %v491 = vld [vmem:[%s437 + $0xc4] sm:$0xf]
        %v492 = vld [vmem:[%s437 + $0xc8] sm:$0xf]
        %v493 = vld [vmem:[%s437 + $0xcc] sm:$0xf]
        %v494 = vld [vmem:[%s437 + $0xd0] sm:$0xf]
        %v495 = vld [vmem:[%s437 + $0xd4] sm:$0xf]
        %v496 = vld [vmem:[%s437 + $0xd8] sm:$0xf]
        %v497 = vld [vmem:[%s437 + $0xdc] sm:$0xf]
        %v498 = vld [vmem:[%s437 + $0xe0] sm:$0xf]
        %v499 = vld [vmem:[%s437 + $0xe4] sm:$0xf]
        %v500 = vld [vmem:[%s437 + $0xe8] sm:$0xf]
        %v501 = vld [vmem:[%s437 + $0xec] sm:$0xf]
        %v502 = vld [vmem:[%s437 + $0xf0] sm:$0xf]
        %v503 = vld [vmem:[%s437 + $0xf4] sm:$0xf]
        %v504 = vld [vmem:[%s437 + $0xf8] sm:$0xf]
        %v505 = vld [vmem:[%s437 + $0xfc] sm:$0xf]
        %v506 = vld [vmem:[%s437 + $0x100] sm:$0xf]
        %v507 = vld [vmem:[%s437 + $0x104] sm:$0xf]
        %v508 = vld [vmem:[%s437 + $0x108] sm:$0xf]
        %v509 = vld [vmem:[%s437 + $0x10c] sm:$0xf]
        %v510 = vld [vmem:[%s437 + $0x110] sm:$0xf]
        %v511 = vld [vmem:[%s437 + $0x114] sm:$0xf]
        %v512 = vld [vmem:[%s437 + $0x118] sm:$0xf]
        %v513 = vld [vmem:[%s437 + $0x11c] sm:$0xf]
        %v514 = vld [vmem:[%s437 + $0x120] sm:$0xf]
        %v515 = vld [vmem:[%s437 + $0x124] sm:$0xf]
        %v516 = vld [vmem:[%s437 + $0x128] sm:$0xf]
        %v517 = vld [vmem:[%s437 + $0x12c] sm:$0xf]
        %v518 = vld [vmem:[%s437 + $0x130] sm:$0xf]
        %v519 = vld [vmem:[%s437 + $0x134] sm:$0xf]
        %v520 = vld [vmem:[%s437 + $0x138] sm:$0xf]
        %v521 = vld [vmem:[%s437 + $0x13c] sm:$0xf]
        %v522 = vld [vmem:[%s437 + $0x140] sm:$0xf]
        %v523 = vld [vmem:[%s437 + $0x144] sm:$0xf]
        %v524 = vld [vmem:[%s437 + $0x148] sm:$0xf]
        %v525 = vld [vmem:[%s437 + $0x14c] sm:$0xf]
        %v526 = vld [vmem:[%s437 + $0x150] sm:$0xf]
        %v527 = vld [vmem:[%s437 + $0x154] sm:$0xf]
        %v528 = vld [vmem:[%s437 + $0x158] sm:$0xf]
        %v529 = vld [vmem:[%s437 + $0x15c] sm:$0xf]
        %v530 = vld [vmem:[%s437 + $0x160] sm:$0xf]
        %v531 = vld [vmem:[%s437 + $0x164] sm:$0xf]
        %v532 = vld [vmem:[%s437 + $0x168] sm:$0xf]
        %v533 = vld [vmem:[%s437 + $0x16c] sm:$0xf]
        %v534 = vld [vmem:[%s437 + $0x170] sm:$0xf]
        %v535 = vld [vmem:[%s437 + $0x174] sm:$0xf]
        %v536 = vld [vmem:[%s437 + $0x178] sm:$0xf]
        %v537 = vld [vmem:[%s437 + $0x17c] sm:$0xf]
        %v538 = vld [vmem:[%s437 + $0x180] sm:$0xf]
        %v539 = vld [vmem:[%s437 + $0x184] sm:$0xf]
        %v540 = vld [vmem:[%s437 + $0x188] sm:$0xf]
        %v541 = vld [vmem:[%s437 + $0x18c] sm:$0xf]
        %v542 = vld [vmem:[%s437 + $0x190] sm:$0xf]
        %v543 = vld [vmem:[%s437 + $0x194] sm:$0xf]
        %v544 = vld [vmem:[%s437 + $0x198] sm:$0xf]
        %v545 = vld [vmem:[%s437 + $0x19c] sm:$0xf]
        %v546 = vld [vmem:[%s437 + $0x1a0] sm:$0xf]
        %v547 = vld [vmem:[%s437 + $0x1a4] sm:$0xf]
        %v548 = vld [vmem:[%s437 + $0x1a8] sm:$0xf]
        %v549 = vld [vmem:[%s437 + $0x1ac] sm:$0xf]
        %v550 = vld [vmem:[%s437 + $0x1b0] sm:$0xf]
        %v551 = vld [vmem:[%s437 + $0x1b4] sm:$0xf]
        %v552 = vld [vmem:[%s437 + $0x1b8] sm:$0xf]
        %v553 = vld [vmem:[%s437 + $0x1bc] sm:$0xf]
        %v554 = vld [vmem:[%s437 + $0x1c0] sm:$0xf]
        %v555 = vld [vmem:[%s437 + $0x1c4] sm:$0xf]
        %v556 = vld [vmem:[%s437 + $0x1c8] sm:$0xf]
        %v557 = vld [vmem:[%s437 + $0x1cc] sm:$0xf]
        %v558 = vld [vmem:[%s437 + $0x1d0] sm:$0xf]
        %v559 = vld [vmem:[%s437 + $0x1d4] sm:$0xf]
        %v560 = vld [vmem:[%s437 + $0x1d8] sm:$0xf]
        %v561 = vld [vmem:[%s437 + $0x1dc] sm:$0xf]
        %v562 = vld [vmem:[%s437 + $0x1e0] sm:$0xf]
        %v563 = vld [vmem:[%s437 + $0x1e4] sm:$0xf]
        %v564 = vld [vmem:[%s437 + $0x1e8] sm:$0xf]
        %v565 = vld [vmem:[%s437 + $0x1ec] sm:$0xf]
        %v566 = vld [vmem:[%s437 + $0x1f0] sm:$0xf]
        %v567 = vld [vmem:[%s437 + $0x1f4] sm:$0xf]
        %v568 = vld [vmem:[%s437 + $0x1f8] sm:$0xf]
        %v569 = vld [vmem:[%s437 + $0x1fc] sm:$0xf]
        %v570 = vld [vmem:[%s437 + $0x200] sm:$0xf]
        %v571 = vld [vmem:[%s437 + $0x204] sm:$0xf]
        %v572 = vld [vmem:[%s437 + $0x208] sm:$0xf]
        %v573 = vld [vmem:[%s437 + $0x20c] sm:$0xf]
        %v574 = vld [vmem:[%s437 + $0x210] sm:$0xf]
        %v575 = vld [vmem:[%s437 + $0x214] sm:$0xf]
        %v576 = vld [vmem:[%s437 + $0x218] sm:$0xf]
        %v577 = vld [vmem:[%s437 + $0x21c] sm:$0xf]
        %v578 = vld [vmem:[%s437 + $0x220] sm:$0xf]
        %v579 = vld [vmem:[%s437 + $0x224] sm:$0xf]
        %v580 = vld [vmem:[%s437 + $0x228] sm:$0xf]
        %v581 = vld [vmem:[%s437 + $0x22c] sm:$0xf]
        %v582 = vld [vmem:[%s437 + $0x230] sm:$0xf]
        %v583 = vld [vmem:[%s437 + $0x234] sm:$0xf]
        %v584 = vld [vmem:[%s437 + $0x238] sm:$0xf]
        %v585 = vld [vmem:[%s437 + $0x23c] sm:$0xf]
        %v586 = vld [vmem:[%s437 + $0x240] sm:$0xf]
        %v587 = vld [vmem:[%s437 + $0x244] sm:$0xf]
        %v588 = vld [vmem:[%s437 + $0x248] sm:$0xf]
        %v589 = vld [vmem:[%s437 + $0x24c] sm:$0xf]
        %v590 = vld [vmem:[%s437 + $0x250] sm:$0xf]
        %v591 = vld [vmem:[%s437 + $0x254] sm:$0xf]
        %v592 = vld [vmem:[%s437 + $0x258] sm:$0xf]
        %v593 = vld [vmem:[%s437 + $0x25c] sm:$0xf]
        %v594 = vld [vmem:[%s437 + $0x260] sm:$0xf]
        %v595 = vld [vmem:[%s437 + $0x264] sm:$0xf]
        %v596 = vld [vmem:[%s437 + $0x268] sm:$0xf]
        %v597 = vld [vmem:[%s437 + $0x26c] sm:$0xf]
        %v598 = vld [vmem:[%s437 + $0x270] sm:$0xf]
        %v599 = vld [vmem:[%s437 + $0x274] sm:$0xf]
        %v600 = vld [vmem:[%s437 + $0x278] sm:$0xf]
        %v601 = vld [vmem:[%s437 + $0x27c] sm:$0xf]
        %v602 = vld [vmem:[%s437 + $0x280] sm:$0xf]
        %v603 = vld [vmem:[%s437 + $0x284] sm:$0xf]
        %v604 = vld [vmem:[%s437 + $0x288] sm:$0xf]
        %v605 = vld [vmem:[%s437 + $0x28c] sm:$0xf]
        %v606 = vld [vmem:[%s437 + $0x290] sm:$0xf]
        %v607 = vld [vmem:[%s437 + $0x294] sm:$0xf]
        %v608 = vld [vmem:[%s437 + $0x298] sm:$0xf]
        %v609 = vld [vmem:[%s437 + $0x29c] sm:$0xf]
        %v610 = vld [vmem:[%s437 + $0x2a0] sm:$0xf]
        %v611 = vld [vmem:[%s437 + $0x2a4] sm:$0xf]
        %v612 = vld [vmem:[%s437 + $0x2a8] sm:$0xf]
        %v613 = vld [vmem:[%s437 + $0x2ac] sm:$0xf]
        %v614 = vld [vmem:[%s437 + $0x2b0] sm:$0xf]
        %v615 = vld [vmem:[%s437 + $0x2b4] sm:$0xf]
        %v616 = vld [vmem:[%s437 + $0x2b8] sm:$0xf]
        %v617 = vld [vmem:[%s437 + $0x2bc] sm:$0xf]
        %v618 = vld [vmem:[%s437 + $0x2c0] sm:$0xf]
        %v619 = vld [vmem:[%s437 + $0x2c4] sm:$0xf]
        %v620 = vld [vmem:[%s437 + $0x2c8] sm:$0xf]
        %v621 = vld [vmem:[%s437 + $0x2cc] sm:$0xf]
        %v622 = vld [vmem:[%s437 + $0x2d0] sm:$0xf]
        %v623 = vld [vmem:[%s437 + $0x2d4] sm:$0xf]
        %v624 = vld [vmem:[%s437 + $0x2d8] sm:$0xf]
        %v625 = vld [vmem:[%s437 + $0x2dc] sm:$0xf]
        %v626 = vld [vmem:[%s437 + $0x2e0] sm:$0xf]
        %v627 = vld [vmem:[%s437 + $0x2e4] sm:$0xf]
        %v628 = vld [vmem:[%s437 + $0x2e8] sm:$0xf]
        %v629 = vld [vmem:[%s437 + $0x2ec] sm:$0xf]
        %v630 = vld [vmem:[%s437 + $0x2f0] sm:$0xf]
        %v631 = vld [vmem:[%s437 + $0x2f4] sm:$0xf]
        %v632 = vld [vmem:[%s437 + $0x2f8] sm:$0xf]
        %v633 = vld [vmem:[%s437 + $0x2fc] sm:$0xf]
        %v634 = vld [vmem:[%s437 + $0x300] sm:$0xf]
        %v635 = vld [vmem:[%s437 + $0x304] sm:$0xf]
        %v636 = vld [vmem:[%s437 + $0x308] sm:$0xf]
        %v637 = vld [vmem:[%s437 + $0x30c] sm:$0xf]
        %v638 = vld [vmem:[%s437 + $0x310] sm:$0xf]
        %v639 = vld [vmem:[%s437 + $0x314] sm:$0xf]
        %v640 = vld [vmem:[%s437 + $0x318] sm:$0xf]
        %v641 = vld [vmem:[%s437 + $0x31c] sm:$0xf]
        %v642 = vld [vmem:[%s1] sm:$0xf]
        %v643 = vld [vmem:[%s1 + $0x4] sm:$0xf]
        %v644 = vld [vmem:[%s1 + $0x8] sm:$0xf]
        %v645 = vld [vmem:[%s1 + $0xc] sm:$0xf]
        %v846 = vunpack.c.l.b16 %v442
        %v847 = vunpack.c.l.b16 %v443
        %v848 = vunpack.c.l.b16 %v444
        %v849 = vunpack.c.l.b16 %v445
        %v850 = vunpack.c.l.b16 %v446
        %v851 = vunpack.c.l.b16 %v447
        %v852 = vunpack.c.l.b16 %v448
        %v853 = vunpack.c.l.b16 %v449
        %v854 = vunpack.c.l.b16 %v450
        %v855 = vunpack.c.l.b16 %v451
        %v856 = vunpack.c.l.b16 %v452
        %v857 = vunpack.c.l.b16 %v453
        %v858 = vunpack.c.l.b16 %v454
        %v859 = vunpack.c.l.b16 %v455
        %v860 = vunpack.c.l.b16 %v456
        %v861 = vunpack.c.l.b16 %v457
        %v862 = vunpack.c.l.b16 %v458
        %v863 = vunpack.c.l.b16 %v459
        %v864 = vunpack.c.l.b16 %v460
        %v865 = vunpack.c.l.b16 %v461
        %v866 = vunpack.c.l.b16 %v462
        %v867 = vunpack.c.l.b16 %v463
        %v868 = vunpack.c.l.b16 %v464
        %v869 = vunpack.c.l.b16 %v465
        %v870 = vunpack.c.l.b16 %v466
        %v871 = vunpack.c.l.b16 %v467
        %v872 = vunpack.c.l.b16 %v468
        %v873 = vunpack.c.l.b16 %v469
        %v874 = vunpack.c.l.b16 %v470
        %v875 = vunpack.c.l.b16 %v471
        %v876 = vunpack.c.l.b16 %v472
        %v877 = vunpack.c.l.b16 %v473
        %v878 = vunpack.c.l.b16 %v474
        %v879 = vunpack.c.l.b16 %v475
        %v880 = vunpack.c.l.b16 %v476
        %v881 = vunpack.c.l.b16 %v477
        %v882 = vunpack.c.l.b16 %v478
        %v883 = vunpack.c.l.b16 %v479
        %v884 = vunpack.c.l.b16 %v480
        %v885 = vunpack.c.l.b16 %v481
        %v886 = vunpack.c.l.b16 %v482
        %v887 = vunpack.c.l.b16 %v483
        %v888 = vunpack.c.l.b16 %v484
        %v889 = vunpack.c.l.b16 %v485
        %v890 = vunpack.c.l.b16 %v486
        %v891 = vunpack.c.l.b16 %v487
        %v892 = vunpack.c.l.b16 %v488
        %v893 = vunpack.c.l.b16 %v489
        %v894 = vunpack.c.l.b16 %v490
        %v895 = vunpack.c.l.b16 %v491
        %v896 = vunpack.c.l.b16 %v492
        %v897 = vunpack.c.l.b16 %v493
        %v898 = vunpack.c.l.b16 %v494
        %v899 = vunpack.c.l.b16 %v495
        %v900 = vunpack.c.l.b16 %v496
        %v901 = vunpack.c.l.b16 %v497
        %v902 = vunpack.c.l.b16 %v498
        %v903 = vunpack.c.l.b16 %v499
        %v904 = vunpack.c.l.b16 %v500
        %v905 = vunpack.c.l.b16 %v501
        %v906 = vunpack.c.l.b16 %v502
        %v907 = vunpack.c.l.b16 %v503
        %v908 = vunpack.c.l.b16 %v504
        %v909 = vunpack.c.l.b16 %v505
        %v910 = vunpack.c.l.b16 %v506
        %v911 = vunpack.c.l.b16 %v507
        %v912 = vunpack.c.l.b16 %v508
        %v913 = vunpack.c.l.b16 %v509
        %v914 = vunpack.c.l.b16 %v510
        %v915 = vunpack.c.l.b16 %v511
        %v916 = vunpack.c.l.b16 %v512
        %v917 = vunpack.c.l.b16 %v513
        %v918 = vunpack.c.l.b16 %v514
        %v919 = vunpack.c.l.b16 %v515
        %v920 = vunpack.c.l.b16 %v516
        %v921 = vunpack.c.l.b16 %v517
        %v922 = vunpack.c.l.b16 %v518
        %v923 = vunpack.c.l.b16 %v519
        %v924 = vunpack.c.l.b16 %v520
        %v925 = vunpack.c.l.b16 %v521
        %v926 = vunpack.c.l.b16 %v522
        %v927 = vunpack.c.l.b16 %v523
        %v928 = vunpack.c.l.b16 %v524
        %v929 = vunpack.c.l.b16 %v525
        %v930 = vunpack.c.l.b16 %v526
        %v931 = vunpack.c.l.b16 %v527
        %v932 = vunpack.c.l.b16 %v528
        %v933 = vunpack.c.l.b16 %v529
        %v934 = vunpack.c.l.b16 %v530
        %v935 = vunpack.c.l.b16 %v531
        %v936 = vunpack.c.l.b16 %v532
        %v937 = vunpack.c.l.b16 %v533
        %v938 = vunpack.c.l.b16 %v534
        %v939 = vunpack.c.l.b16 %v535
        %v940 = vunpack.c.l.b16 %v536
        %v941 = vunpack.c.l.b16 %v537
        %v942 = vunpack.c.l.b16 %v538
        %v943 = vunpack.c.l.b16 %v539
        %v944 = vunpack.c.l.b16 %v540
        %v945 = vunpack.c.l.b16 %v541
        %v946 = vunpack.c.l.b16 %v542
        %v947 = vunpack.c.l.b16 %v543
        %v948 = vunpack.c.l.b16 %v544
        %v949 = vunpack.c.l.b16 %v545
        %v950 = vunpack.c.l.b16 %v546
        %v951 = vunpack.c.l.b16 %v547
        %v952 = vunpack.c.l.b16 %v548
        %v953 = vunpack.c.l.b16 %v549
        %v954 = vunpack.c.l.b16 %v550
        %v955 = vunpack.c.l.b16 %v551
        %v956 = vunpack.c.l.b16 %v552
        %v957 = vunpack.c.l.b16 %v553
        %v958 = vunpack.c.l.b16 %v554
        %v959 = vunpack.c.l.b16 %v555
        %v960 = vunpack.c.l.b16 %v556
        %v961 = vunpack.c.l.b16 %v557
        %v962 = vunpack.c.l.b16 %v558
        %v963 = vunpack.c.l.b16 %v559
        %v964 = vunpack.c.l.b16 %v560
        %v965 = vunpack.c.l.b16 %v561
        %v966 = vunpack.c.l.b16 %v562
        %v967 = vunpack.c.l.b16 %v563
        %v968 = vunpack.c.l.b16 %v564
        %v969 = vunpack.c.l.b16 %v565
        %v970 = vunpack.c.l.b16 %v566
        %v971 = vunpack.c.l.b16 %v567
        %v972 = vunpack.c.l.b16 %v568
        %v973 = vunpack.c.l.b16 %v569
        %v974 = vunpack.c.l.b16 %v570
        %v975 = vunpack.c.l.b16 %v571
        %v976 = vunpack.c.l.b16 %v572
        %v977 = vunpack.c.l.b16 %v573
        %v978 = vunpack.c.l.b16 %v574
        %v979 = vunpack.c.l.b16 %v575
        %v980 = vunpack.c.l.b16 %v576
        %v981 = vunpack.c.l.b16 %v577
        %v982 = vunpack.c.l.b16 %v578
        %v983 = vunpack.c.l.b16 %v579
        %v984 = vunpack.c.l.b16 %v580
        %v985 = vunpack.c.l.b16 %v581
        %v986 = vunpack.c.l.b16 %v582
        %v987 = vunpack.c.l.b16 %v583
        %v988 = vunpack.c.l.b16 %v584
        %v989 = vunpack.c.l.b16 %v585
        %v990 = vunpack.c.l.b16 %v586
        %v991 = vunpack.c.l.b16 %v587
        %v992 = vunpack.c.l.b16 %v588
        %v993 = vunpack.c.l.b16 %v589
        %v994 = vunpack.c.l.b16 %v590
        %v995 = vunpack.c.l.b16 %v591
        %v996 = vunpack.c.l.b16 %v592
        %v997 = vunpack.c.l.b16 %v593
        %v998 = vunpack.c.l.b16 %v594
        %v999 = vunpack.c.l.b16 %v595
        %v1000 = vunpack.c.l.b16 %v596
        %v1001 = vunpack.c.l.b16 %v597
        %v1002 = vunpack.c.l.b16 %v598
        %v1003 = vunpack.c.l.b16 %v599
        %v1004 = vunpack.c.l.b16 %v600
        %v1005 = vunpack.c.l.b16 %v601
        %v1006 = vunpack.c.l.b16 %v602
        %v1007 = vunpack.c.l.b16 %v603
        %v1008 = vunpack.c.l.b16 %v604
        %v1009 = vunpack.c.l.b16 %v605
        %v1010 = vunpack.c.l.b16 %v606
        %v1011 = vunpack.c.l.b16 %v607
        %v1012 = vunpack.c.l.b16 %v608
        %v1013 = vunpack.c.l.b16 %v609
        %v1014 = vunpack.c.l.b16 %v610
        %v1015 = vunpack.c.l.b16 %v611
        %v1016 = vunpack.c.l.b16 %v612
        %v1017 = vunpack.c.l.b16 %v613
        %v1018 = vunpack.c.l.b16 %v614
        %v1019 = vunpack.c.l.b16 %v615
        %v1020 = vunpack.c.l.b16 %v616
        %v1021 = vunpack.c.l.b16 %v617
        %v1022 = vunpack.c.l.b16 %v618
        %v1023 = vunpack.c.l.b16 %v619
        %v1024 = vunpack.c.l.b16 %v620
        %v1025 = vunpack.c.l.b16 %v621
        %v1026 = vunpack.c.l.b16 %v622
        %v1027 = vunpack.c.l.b16 %v623
        %v1028 = vunpack.c.l.b16 %v624
        %v1029 = vunpack.c.l.b16 %v625
        %v1030 = vunpack.c.l.b16 %v626
        %v1031 = vunpack.c.l.b16 %v627
        %v1032 = vunpack.c.l.b16 %v628
        %v1033 = vunpack.c.l.b16 %v629
        %v1034 = vunpack.c.l.b16 %v630
        %v1035 = vunpack.c.l.b16 %v631
        %v1036 = vunpack.c.l.b16 %v632
        %v1037 = vunpack.c.l.b16 %v633
        %v1038 = vunpack.c.l.b16 %v634
        %v1039 = vunpack.c.l.b16 %v635
        %v1040 = vunpack.c.l.b16 %v636
        %v1041 = vunpack.c.l.b16 %v637
        %v1042 = vunpack.c.l.b16 %v638
        %v1043 = vunpack.c.l.b16 %v639
        %v1044 = vunpack.c.l.b16 %v640
        %v1045 = vunpack.c.l.b16 %v641
        %v1046 = vpack.c.b16 %v847, %v846
        %v1047 = vpack.c.b16 %v849, %v848
        %v1048 = vpack.c.b16 %v851, %v850
        %v1049 = vpack.c.b16 %v853, %v852
        %v1050 = vpack.c.b16 %v855, %v854
        %v1051 = vpack.c.b16 %v857, %v856
        %v1052 = vpack.c.b16 %v859, %v858
        %v1053 = vpack.c.b16 %v861, %v860
        %v1054 = vpack.c.b16 %v863, %v862
        %v1055 = vpack.c.b16 %v865, %v864
        %v1056 = vpack.c.b16 %v867, %v866
        %v1057 = vpack.c.b16 %v869, %v868
        %v1058 = vpack.c.b16 %v871, %v870
        %v1059 = vpack.c.b16 %v873, %v872
        %v1060 = vpack.c.b16 %v875, %v874
        %v1061 = vpack.c.b16 %v877, %v876
        %v1062 = vpack.c.b16 %v879, %v878
        %v1063 = vpack.c.b16 %v881, %v880
        %v1064 = vpack.c.b16 %v883, %v882
        %v1065 = vpack.c.b16 %v885, %v884
        %v1066 = vpack.c.b16 %v887, %v886
        %v1067 = vpack.c.b16 %v889, %v888
        %v1068 = vpack.c.b16 %v891, %v890
        %v1069 = vpack.c.b16 %v893, %v892
        %v1070 = vpack.c.b16 %v895, %v894
        %v1071 = vpack.c.b16 %v897, %v896
        %v1072 = vpack.c.b16 %v899, %v898
        %v1073 = vpack.c.b16 %v901, %v900
        %v1074 = vpack.c.b16 %v903, %v902
        %v1075 = vpack.c.b16 %v905, %v904
        %v1076 = vpack.c.b16 %v907, %v906
        %v1077 = vpack.c.b16 %v909, %v908
        %v1078 = vpack.c.b16 %v911, %v910
        %v1079 = vpack.c.b16 %v913, %v912
        %v1080 = vpack.c.b16 %v915, %v914
        %v1081 = vpack.c.b16 %v917, %v916
        %v1082 = vpack.c.b16 %v919, %v918
        %v1083 = vpack.c.b16 %v921, %v920
        %v1084 = vpack.c.b16 %v923, %v922
        %v1085 = vpack.c.b16 %v925, %v924
        %v1086 = vpack.c.b16 %v927, %v926
        %v1087 = vpack.c.b16 %v929, %v928
        %v1088 = vpack.c.b16 %v931, %v930
        %v1089 = vpack.c.b16 %v933, %v932
        %v1090 = vpack.c.b16 %v935, %v934
        %v1091 = vpack.c.b16 %v937, %v936
        %v1092 = vpack.c.b16 %v939, %v938
        %v1093 = vpack.c.b16 %v941, %v940
        %v1094 = vpack.c.b16 %v943, %v942
        %v1095 = vpack.c.b16 %v945, %v944
        %v1096 = vpack.c.b16 %v947, %v946
        %v1097 = vpack.c.b16 %v949, %v948
        %v1098 = vpack.c.b16 %v951, %v950
        %v1099 = vpack.c.b16 %v953, %v952
        %v1100 = vpack.c.b16 %v955, %v954
        %v1101 = vpack.c.b16 %v957, %v956
        %v1102 = vpack.c.b16 %v959, %v958
        %v1103 = vpack.c.b16 %v961, %v960
        %v1104 = vpack.c.b16 %v963, %v962
        %v1105 = vpack.c.b16 %v965, %v964
        %v1106 = vpack.c.b16 %v967, %v966
        %v1107 = vpack.c.b16 %v969, %v968
        %v1108 = vpack.c.b16 %v971, %v970
        %v1109 = vpack.c.b16 %v973, %v972
        %v1110 = vpack.c.b16 %v975, %v974
        %v1111 = vpack.c.b16 %v977, %v976
        %v1112 = vpack.c.b16 %v979, %v978
        %v1113 = vpack.c.b16 %v981, %v980
        %v1114 = vpack.c.b16 %v983, %v982
        %v1115 = vpack.c.b16 %v985, %v984
        %v1116 = vpack.c.b16 %v987, %v986
        %v1117 = vpack.c.b16 %v989, %v988
        %v1118 = vpack.c.b16 %v991, %v990
        %v1119 = vpack.c.b16 %v993, %v992
        %v1120 = vpack.c.b16 %v995, %v994
        %v1121 = vpack.c.b16 %v997, %v996
        %v1122 = vpack.c.b16 %v999, %v998
        %v1123 = vpack.c.b16 %v1001, %v1000
        %v1124 = vpack.c.b16 %v1003, %v1002
        %v1125 = vpack.c.b16 %v1005, %v1004
        %v1126 = vpack.c.b16 %v1007, %v1006
        %v1127 = vpack.c.b16 %v1009, %v1008
        %v1128 = vpack.c.b16 %v1011, %v1010
        %v1129 = vpack.c.b16 %v1013, %v1012
        %v1130 = vpack.c.b16 %v1015, %v1014
        %v1131 = vpack.c.b16 %v1017, %v1016
        %v1132 = vpack.c.b16 %v1019, %v1018
        %v1133 = vpack.c.b16 %v1021, %v1020
        %v1134 = vpack.c.b16 %v1023, %v1022
        %v1135 = vpack.c.b16 %v1025, %v1024
        %v1136 = vpack.c.b16 %v1027, %v1026
        %v1137 = vpack.c.b16 %v1029, %v1028
        %v1138 = vpack.c.b16 %v1031, %v1030
        %v1139 = vpack.c.b16 %v1033, %v1032
        %v1140 = vpack.c.b16 %v1035, %v1034
        %v1141 = vpack.c.b16 %v1037, %v1036
        %v1142 = vpack.c.b16 %v1039, %v1038
        %v1143 = vpack.c.b16 %v1041, %v1040
        %v1144 = vpack.c.b16 %v1043, %v1042
        %v1145 = vpack.c.b16 %v1045, %v1044
        %v1150 = vunpack.c.l.b16 %v642
        %v1151 = vunpack.c.l.b16 %v643
        %v1152 = vunpack.c.l.b16 %v644
        %v1153 = vunpack.c.l.b16 %v645
        %v1154 = vpack.c.b16 %v1151, %v1150
        %v1155 = vpack.c.b16 %v1153, %v1152
        %vm1158 = vcmask 261120
        %v1160 = vsel %vm1158, %v1046, 0
        %v1163 = vsel %vm1158, %v1047, 0
        %v1166 = vsel %vm1158, %v1048, 0
        %v1169 = vsel %vm1158, %v1049, 0
        %v1172 = vsel %vm1158, %v1050, 0
        %v1175 = vsel %vm1158, %v1051, 0
        %v1178 = vsel %vm1158, %v1052, 0
        %v1181 = vsel %vm1158, %v1053, 0
        %v1184 = vsel %vm1158, %v1054, 0
        %v1187 = vsel %vm1158, %v1055, 0
        %v1190 = vsel %vm1158, %v1056, 0
        %v1193 = vsel %vm1158, %v1057, 0
        %v1196 = vsel %vm1158, %v1058, 0
        %v1199 = vsel %vm1158, %v1059, 0
        %v1202 = vsel %vm1158, %v1060, 0
        %v1205 = vsel %vm1158, %v1061, 0
        %v1208 = vsel %vm1158, %v1062, 0
        %v1211 = vsel %vm1158, %v1063, 0
        %v1214 = vsel %vm1158, %v1064, 0
        %v1217 = vsel %vm1158, %v1065, 0
        %v1220 = vsel %vm1158, %v1066, 0
        %v1223 = vsel %vm1158, %v1067, 0
        %v1226 = vsel %vm1158, %v1068, 0
        %v1229 = vsel %vm1158, %v1069, 0
        %v1232 = vsel %vm1158, %v1070, 0
        %v1235 = vsel %vm1158, %v1071, 0
        %v1238 = vsel %vm1158, %v1072, 0
        %v1241 = vsel %vm1158, %v1073, 0
        %v1244 = vsel %vm1158, %v1074, 0
        %v1247 = vsel %vm1158, %v1075, 0
        %v1250 = vsel %vm1158, %v1076, 0
        %v1253 = vsel %vm1158, %v1077, 0
        %v1256 = vsel %vm1158, %v1078, 0
        %v1259 = vsel %vm1158, %v1079, 0
        %v1262 = vsel %vm1158, %v1080, 0
        %v1265 = vsel %vm1158, %v1081, 0
        %v1268 = vsel %vm1158, %v1082, 0
        %v1271 = vsel %vm1158, %v1083, 0
        %v1274 = vsel %vm1158, %v1084, 0
        %v1277 = vsel %vm1158, %v1085, 0
        %v1280 = vsel %vm1158, %v1086, 0
        %v1283 = vsel %vm1158, %v1087, 0
        %v1286 = vsel %vm1158, %v1088, 0
        %v1289 = vsel %vm1158, %v1089, 0
        %v1292 = vsel %vm1158, %v1090, 0
        %v1295 = vsel %vm1158, %v1091, 0
        %v1298 = vsel %vm1158, %v1092, 0
        %v1301 = vsel %vm1158, %v1093, 0
        %v1304 = vsel %vm1158, %v1094, 0
        %v1307 = vsel %vm1158, %v1095, 0
        %v1310 = vsel %vm1158, %v1096, 0
        %v1313 = vsel %vm1158, %v1097, 0
        %v1316 = vsel %vm1158, %v1098, 0
        %v1319 = vsel %vm1158, %v1099, 0
        %v1322 = vsel %vm1158, %v1100, 0
        %v1325 = vsel %vm1158, %v1101, 0
        %v1328 = vsel %vm1158, %v1102, 0
        %v1331 = vsel %vm1158, %v1103, 0
        %v1334 = vsel %vm1158, %v1104, 0
        %v1337 = vsel %vm1158, %v1105, 0
        %v1340 = vsel %vm1158, %v1106, 0
        %v1343 = vsel %vm1158, %v1107, 0
        %v1346 = vsel %vm1158, %v1108, 0
        %v1349 = vsel %vm1158, %v1109, 0
        %v1352 = vsel %vm1158, %v1110, 0
        %v1355 = vsel %vm1158, %v1111, 0
        %v1358 = vsel %vm1158, %v1112, 0
        %v1361 = vsel %vm1158, %v1113, 0
        %v1364 = vsel %vm1158, %v1114, 0
        %v1367 = vsel %vm1158, %v1115, 0
        %v1370 = vsel %vm1158, %v1116, 0
        %v1373 = vsel %vm1158, %v1117, 0
        %v1376 = vsel %vm1158, %v1118, 0
        %v1379 = vsel %vm1158, %v1119, 0
        %v1382 = vsel %vm1158, %v1120, 0
        %v1385 = vsel %vm1158, %v1121, 0
        %v1388 = vsel %vm1158, %v1122, 0
        %v1391 = vsel %vm1158, %v1123, 0
        %v1394 = vsel %vm1158, %v1124, 0
        %v1397 = vsel %vm1158, %v1125, 0
        %v1400 = vsel %vm1158, %v1126, 0
        %v1403 = vsel %vm1158, %v1127, 0
        %v1406 = vsel %vm1158, %v1128, 0
        %v1409 = vsel %vm1158, %v1129, 0
        %v1412 = vsel %vm1158, %v1130, 0
        %v1415 = vsel %vm1158, %v1131, 0
        %v1418 = vsel %vm1158, %v1132, 0
        %v1421 = vsel %vm1158, %v1133, 0
        %v1424 = vsel %vm1158, %v1134, 0
        %v1427 = vsel %vm1158, %v1135, 0
        %v1430 = vsel %vm1158, %v1136, 0
        %v1433 = vsel %vm1158, %v1137, 0
        %v1436 = vsel %vm1158, %v1138, 0
        %v1439 = vsel %vm1158, %v1139, 0
        %v1442 = vsel %vm1158, %v1140, 0
        %v1445 = vsel %vm1158, %v1141, 0
        %v1448 = vsel %vm1158, %v1142, 0
        %v1451 = vsel %vm1158, %v1143, 0
        %v1454 = vsel %vm1158, %v1144, 0
        %v1457 = vsel %vm1158, %v1145, 0
        %1459 = vmatpush.bf16.msra.mxu0 0
        %1460 = vmatpush.bf16.msra.mxu0 0
        %1461 = vmatpush.bf16.msra.mxu0 0
        %1462 = vmatpush.bf16.msra.mxu0 0
        %1463 = vmatpush.bf16.msra.mxu0 0
        %1464 = vmatpush.bf16.msra.mxu0 0
        %1465 = vmatpush.bf16.msra.mxu0 %v1155
        %1466 = vmatpush.bf16.msra.mxu0 %v1154
        %1467 = vmatmul.bf16.gmra.mxu0 %v1160
        %v1468 = vpop.f32.mrf.mxu0
        %v1469 = vadd.f32 0.0, %v1468
        %v1470 = vpop.f32.mrf.mxu0
        %v1471 = vadd.f32 0.0, %v1470
        %1472 = vmatmul.bf16.gmra.mxu0 %v1163
        %v1473 = vpop.f32.mrf.mxu0
        %v1474 = vadd.f32 0.0, %v1473
        %v1475 = vpop.f32.mrf.mxu0
        %v1476 = vadd.f32 0.0, %v1475
        %1477 = vmatmul.bf16.gmra.mxu0 %v1166
        %v1478 = vpop.f32.mrf.mxu0
        %v1479 = vadd.f32 0.0, %v1478
        %v1480 = vpop.f32.mrf.mxu0
        %v1481 = vadd.f32 0.0, %v1480
        %1482 = vmatmul.bf16.gmra.mxu0 %v1169
        %v1483 = vpop.f32.mrf.mxu0
        %v1484 = vadd.f32 0.0, %v1483
        %v1485 = vpop.f32.mrf.mxu0
        %v1486 = vadd.f32 0.0, %v1485
        %1487 = vmatmul.bf16.gmra.mxu0 %v1172
        %v1488 = vpop.f32.mrf.mxu0
        %v1489 = vadd.f32 0.0, %v1488
        %v1490 = vpop.f32.mrf.mxu0
        %v1491 = vadd.f32 0.0, %v1490
        %1492 = vmatmul.bf16.gmra.mxu0 %v1175
        %v1493 = vpop.f32.mrf.mxu0
        %v1494 = vadd.f32 0.0, %v1493
        %v1495 = vpop.f32.mrf.mxu0
        %v1496 = vadd.f32 0.0, %v1495
        %1497 = vmatmul.bf16.gmra.mxu0 %v1178
        %v1498 = vpop.f32.mrf.mxu0
        %v1499 = vadd.f32 0.0, %v1498
        %v1500 = vpop.f32.mrf.mxu0
        %v1501 = vadd.f32 0.0, %v1500
        %1502 = vmatmul.bf16.gmra.mxu0 %v1181
        %v1503 = vpop.f32.mrf.mxu0
        %v1504 = vadd.f32 0.0, %v1503
        %v1505 = vpop.f32.mrf.mxu0
        %v1506 = vadd.f32 0.0, %v1505
        %1507 = vmatmul.bf16.gmra.mxu0 %v1184
        %v1508 = vpop.f32.mrf.mxu0
        %v1509 = vadd.f32 0.0, %v1508
        %v1510 = vpop.f32.mrf.mxu0
        %v1511 = vadd.f32 0.0, %v1510
        %1512 = vmatmul.bf16.gmra.mxu0 %v1187
        %v1513 = vpop.f32.mrf.mxu0
        %v1514 = vadd.f32 0.0, %v1513
        %v1515 = vpop.f32.mrf.mxu0
        %v1516 = vadd.f32 0.0, %v1515
        %1517 = vmatmul.bf16.gmra.mxu0 %v1190
        %v1518 = vpop.f32.mrf.mxu0
        %v1519 = vadd.f32 0.0, %v1518
        %v1520 = vpop.f32.mrf.mxu0
        %v1521 = vadd.f32 0.0, %v1520
        %1522 = vmatmul.bf16.gmra.mxu0 %v1193
        %v1523 = vpop.f32.mrf.mxu0
        %v1524 = vadd.f32 0.0, %v1523
        %v1525 = vpop.f32.mrf.mxu0
        %v1526 = vadd.f32 0.0, %v1525
        %1527 = vmatmul.bf16.gmra.mxu0 %v1196
        %v1528 = vpop.f32.mrf.mxu0
        %v1529 = vadd.f32 0.0, %v1528
        %v1530 = vpop.f32.mrf.mxu0
        %v1531 = vadd.f32 0.0, %v1530
        %1532 = vmatmul.bf16.gmra.mxu0 %v1199
        %v1533 = vpop.f32.mrf.mxu0
        %v1534 = vadd.f32 0.0, %v1533
        %v1535 = vpop.f32.mrf.mxu0
        %v1536 = vadd.f32 0.0, %v1535
        %1537 = vmatmul.bf16.gmra.mxu0 %v1202
        %v1538 = vpop.f32.mrf.mxu0
        %v1539 = vadd.f32 0.0, %v1538
        %v1540 = vpop.f32.mrf.mxu0
        %v1541 = vadd.f32 0.0, %v1540
        %1542 = vmatmul.bf16.gmra.mxu0 %v1205
        %v1543 = vpop.f32.mrf.mxu0
        %v1544 = vadd.f32 0.0, %v1543
        %v1545 = vpop.f32.mrf.mxu0
        %v1546 = vadd.f32 0.0, %v1545
        %1547 = vmatmul.bf16.gmra.mxu0 %v1208
        %v1548 = vpop.f32.mrf.mxu0
        %v1549 = vadd.f32 0.0, %v1548
        %v1550 = vpop.f32.mrf.mxu0
        %v1551 = vadd.f32 0.0, %v1550
        %1552 = vmatmul.bf16.gmra.mxu0 %v1211
        %v1553 = vpop.f32.mrf.mxu0
        %v1554 = vadd.f32 0.0, %v1553
        %v1555 = vpop.f32.mrf.mxu0
        %v1556 = vadd.f32 0.0, %v1555
        %1557 = vmatmul.bf16.gmra.mxu0 %v1214
        %v1558 = vpop.f32.mrf.mxu0
        %v1559 = vadd.f32 0.0, %v1558
        %v1560 = vpop.f32.mrf.mxu0
        %v1561 = vadd.f32 0.0, %v1560
        %1562 = vmatmul.bf16.gmra.mxu0 %v1217
        %v1563 = vpop.f32.mrf.mxu0
        %v1564 = vadd.f32 0.0, %v1563
        %v1565 = vpop.f32.mrf.mxu0
        %v1566 = vadd.f32 0.0, %v1565
        %1567 = vmatmul.bf16.gmra.mxu0 %v1220
        %v1568 = vpop.f32.mrf.mxu0
        %v1569 = vadd.f32 0.0, %v1568
        %v1570 = vpop.f32.mrf.mxu0
        %v1571 = vadd.f32 0.0, %v1570
        %1572 = vmatmul.bf16.gmra.mxu0 %v1223
        %v1573 = vpop.f32.mrf.mxu0
        %v1574 = vadd.f32 0.0, %v1573
        %v1575 = vpop.f32.mrf.mxu0
        %v1576 = vadd.f32 0.0, %v1575
        %1577 = vmatmul.bf16.gmra.mxu0 %v1226
        %v1578 = vpop.f32.mrf.mxu0
        %v1579 = vadd.f32 0.0, %v1578
        %v1580 = vpop.f32.mrf.mxu0
        %v1581 = vadd.f32 0.0, %v1580
        %1582 = vmatmul.bf16.gmra.mxu0 %v1229
        %v1583 = vpop.f32.mrf.mxu0
        %v1584 = vadd.f32 0.0, %v1583
        %v1585 = vpop.f32.mrf.mxu0
        %v1586 = vadd.f32 0.0, %v1585
        %1587 = vmatmul.bf16.gmra.mxu0 %v1232
        %v1588 = vpop.f32.mrf.mxu0
        %v1589 = vadd.f32 0.0, %v1588
        %v1590 = vpop.f32.mrf.mxu0
        %v1591 = vadd.f32 0.0, %v1590
        %1592 = vmatmul.bf16.gmra.mxu0 %v1235
        %v1593 = vpop.f32.mrf.mxu0
        %v1594 = vadd.f32 0.0, %v1593
        %v1595 = vpop.f32.mrf.mxu0
        %v1596 = vadd.f32 0.0, %v1595
        %1597 = vmatmul.bf16.gmra.mxu0 %v1238
        %v1598 = vpop.f32.mrf.mxu0
        %v1599 = vadd.f32 0.0, %v1598
        %v1600 = vpop.f32.mrf.mxu0
        %v1601 = vadd.f32 0.0, %v1600
        %1602 = vmatmul.bf16.gmra.mxu0 %v1241
        %v1603 = vpop.f32.mrf.mxu0
        %v1604 = vadd.f32 0.0, %v1603
        %v1605 = vpop.f32.mrf.mxu0
        %v1606 = vadd.f32 0.0, %v1605
        %1607 = vmatmul.bf16.gmra.mxu0 %v1244
        %v1608 = vpop.f32.mrf.mxu0
        %v1609 = vadd.f32 0.0, %v1608
        %v1610 = vpop.f32.mrf.mxu0
        %v1611 = vadd.f32 0.0, %v1610
        %1612 = vmatmul.bf16.gmra.mxu0 %v1247
        %v1613 = vpop.f32.mrf.mxu0
        %v1614 = vadd.f32 0.0, %v1613
        %v1615 = vpop.f32.mrf.mxu0
        %v1616 = vadd.f32 0.0, %v1615
        %1617 = vmatmul.bf16.gmra.mxu0 %v1250
        %v1618 = vpop.f32.mrf.mxu0
        %v1619 = vadd.f32 0.0, %v1618
        %v1620 = vpop.f32.mrf.mxu0
        %v1621 = vadd.f32 0.0, %v1620
        %1622 = vmatmul.bf16.gmra.mxu0 %v1253
        %v1623 = vpop.f32.mrf.mxu0
        %v1624 = vadd.f32 0.0, %v1623
        %v1625 = vpop.f32.mrf.mxu0
        %v1626 = vadd.f32 0.0, %v1625
        %1627 = vmatmul.bf16.gmra.mxu0 %v1256
        %v1628 = vpop.f32.mrf.mxu0
        %v1629 = vadd.f32 0.0, %v1628
        %v1630 = vpop.f32.mrf.mxu0
        %v1631 = vadd.f32 0.0, %v1630
        %1632 = vmatmul.bf16.gmra.mxu0 %v1259
        %v1633 = vpop.f32.mrf.mxu0
        %v1634 = vadd.f32 0.0, %v1633
        %v1635 = vpop.f32.mrf.mxu0
        %v1636 = vadd.f32 0.0, %v1635
        %1637 = vmatmul.bf16.gmra.mxu0 %v1262
        %v1638 = vpop.f32.mrf.mxu0
        %v1639 = vadd.f32 0.0, %v1638
        %v1640 = vpop.f32.mrf.mxu0
        %v1641 = vadd.f32 0.0, %v1640
        %1642 = vmatmul.bf16.gmra.mxu0 %v1265
        %v1643 = vpop.f32.mrf.mxu0
        %v1644 = vadd.f32 0.0, %v1643
        %v1645 = vpop.f32.mrf.mxu0
        %v1646 = vadd.f32 0.0, %v1645
        %1647 = vmatmul.bf16.gmra.mxu0 %v1268
        %v1648 = vpop.f32.mrf.mxu0
        %v1649 = vadd.f32 0.0, %v1648
        %v1650 = vpop.f32.mrf.mxu0
        %v1651 = vadd.f32 0.0, %v1650
        %1652 = vmatmul.bf16.gmra.mxu0 %v1271
        %v1653 = vpop.f32.mrf.mxu0
        %v1654 = vadd.f32 0.0, %v1653
        %v1655 = vpop.f32.mrf.mxu0
        %v1656 = vadd.f32 0.0, %v1655
        %1657 = vmatmul.bf16.gmra.mxu0 %v1274
        %v1658 = vpop.f32.mrf.mxu0
        %v1659 = vadd.f32 0.0, %v1658
        %v1660 = vpop.f32.mrf.mxu0
        %v1661 = vadd.f32 0.0, %v1660
        %1662 = vmatmul.bf16.gmra.mxu0 %v1277
        %v1663 = vpop.f32.mrf.mxu0
        %v1664 = vadd.f32 0.0, %v1663
        %v1665 = vpop.f32.mrf.mxu0
        %v1666 = vadd.f32 0.0, %v1665
        %1667 = vmatmul.bf16.gmra.mxu0 %v1280
        %v1668 = vpop.f32.mrf.mxu0
        %v1669 = vadd.f32 0.0, %v1668
        %v1670 = vpop.f32.mrf.mxu0
        %v1671 = vadd.f32 0.0, %v1670
        %1672 = vmatmul.bf16.gmra.mxu0 %v1283
        %v1673 = vpop.f32.mrf.mxu0
        %v1674 = vadd.f32 0.0, %v1673
        %v1675 = vpop.f32.mrf.mxu0
        %v1676 = vadd.f32 0.0, %v1675
        %1677 = vmatmul.bf16.gmra.mxu0 %v1286
        %v1678 = vpop.f32.mrf.mxu0
        %v1679 = vadd.f32 0.0, %v1678
        %v1680 = vpop.f32.mrf.mxu0
        %v1681 = vadd.f32 0.0, %v1680
        %1682 = vmatmul.bf16.gmra.mxu0 %v1289
        %v1683 = vpop.f32.mrf.mxu0
        %v1684 = vadd.f32 0.0, %v1683
        %v1685 = vpop.f32.mrf.mxu0
        %v1686 = vadd.f32 0.0, %v1685
        %1687 = vmatmul.bf16.gmra.mxu0 %v1292
        %v1688 = vpop.f32.mrf.mxu0
        %v1689 = vadd.f32 0.0, %v1688
        %v1690 = vpop.f32.mrf.mxu0
        %v1691 = vadd.f32 0.0, %v1690
        %1692 = vmatmul.bf16.gmra.mxu0 %v1295
        %v1693 = vpop.f32.mrf.mxu0
        %v1694 = vadd.f32 0.0, %v1693
        %v1695 = vpop.f32.mrf.mxu0
        %v1696 = vadd.f32 0.0, %v1695
        %1697 = vmatmul.bf16.gmra.mxu0 %v1298
        %v1698 = vpop.f32.mrf.mxu0
        %v1699 = vadd.f32 0.0, %v1698
        %v1700 = vpop.f32.mrf.mxu0
        %v1701 = vadd.f32 0.0, %v1700
        %1702 = vmatmul.bf16.gmra.mxu0 %v1301
        %v1703 = vpop.f32.mrf.mxu0
        %v1704 = vadd.f32 0.0, %v1703
        %v1705 = vpop.f32.mrf.mxu0
        %v1706 = vadd.f32 0.0, %v1705
        %1707 = vmatmul.bf16.gmra.mxu0 %v1304
        %v1708 = vpop.f32.mrf.mxu0
        %v1709 = vadd.f32 0.0, %v1708
        %v1710 = vpop.f32.mrf.mxu0
        %v1711 = vadd.f32 0.0, %v1710
        %1712 = vmatmul.bf16.gmra.mxu0 %v1307
        %v1713 = vpop.f32.mrf.mxu0
        %v1714 = vadd.f32 0.0, %v1713
        %v1715 = vpop.f32.mrf.mxu0
        %v1716 = vadd.f32 0.0, %v1715
        %1717 = vmatmul.bf16.gmra.mxu0 %v1310
        %v1718 = vpop.f32.mrf.mxu0
        %v1719 = vadd.f32 0.0, %v1718
        %v1720 = vpop.f32.mrf.mxu0
        %v1721 = vadd.f32 0.0, %v1720
        %1722 = vmatmul.bf16.gmra.mxu0 %v1313
        %v1723 = vpop.f32.mrf.mxu0
        %v1724 = vadd.f32 0.0, %v1723
        %v1725 = vpop.f32.mrf.mxu0
        %v1726 = vadd.f32 0.0, %v1725
        %1727 = vmatmul.bf16.gmra.mxu0 %v1316
        %v1728 = vpop.f32.mrf.mxu0
        %v1729 = vadd.f32 0.0, %v1728
        %v1730 = vpop.f32.mrf.mxu0
        %v1731 = vadd.f32 0.0, %v1730
        %1732 = vmatmul.bf16.gmra.mxu0 %v1319
        %v1733 = vpop.f32.mrf.mxu0
        %v1734 = vadd.f32 0.0, %v1733
        %v1735 = vpop.f32.mrf.mxu0
        %v1736 = vadd.f32 0.0, %v1735
        %1737 = vmatmul.bf16.gmra.mxu0 %v1322
        %v1738 = vpop.f32.mrf.mxu0
        %v1739 = vadd.f32 0.0, %v1738
        %v1740 = vpop.f32.mrf.mxu0
        %v1741 = vadd.f32 0.0, %v1740
        %1742 = vmatmul.bf16.gmra.mxu0 %v1325
        %v1743 = vpop.f32.mrf.mxu0
        %v1744 = vadd.f32 0.0, %v1743
        %v1745 = vpop.f32.mrf.mxu0
        %v1746 = vadd.f32 0.0, %v1745
        %1747 = vmatmul.bf16.gmra.mxu0 %v1328
        %v1748 = vpop.f32.mrf.mxu0
        %v1749 = vadd.f32 0.0, %v1748
        %v1750 = vpop.f32.mrf.mxu0
        %v1751 = vadd.f32 0.0, %v1750
        %1752 = vmatmul.bf16.gmra.mxu0 %v1331
        %v1753 = vpop.f32.mrf.mxu0
        %v1754 = vadd.f32 0.0, %v1753
        %v1755 = vpop.f32.mrf.mxu0
        %v1756 = vadd.f32 0.0, %v1755
        %1757 = vmatmul.bf16.gmra.mxu0 %v1334
        %v1758 = vpop.f32.mrf.mxu0
        %v1759 = vadd.f32 0.0, %v1758
        %v1760 = vpop.f32.mrf.mxu0
        %v1761 = vadd.f32 0.0, %v1760
        %1762 = vmatmul.bf16.gmra.mxu0 %v1337
        %v1763 = vpop.f32.mrf.mxu0
        %v1764 = vadd.f32 0.0, %v1763
        %v1765 = vpop.f32.mrf.mxu0
        %v1766 = vadd.f32 0.0, %v1765
        %1767 = vmatmul.bf16.gmra.mxu0 %v1340
        %v1768 = vpop.f32.mrf.mxu0
        %v1769 = vadd.f32 0.0, %v1768
        %v1770 = vpop.f32.mrf.mxu0
        %v1771 = vadd.f32 0.0, %v1770
        %1772 = vmatmul.bf16.gmra.mxu0 %v1343
        %v1773 = vpop.f32.mrf.mxu0
        %v1774 = vadd.f32 0.0, %v1773
        %v1775 = vpop.f32.mrf.mxu0
        %v1776 = vadd.f32 0.0, %v1775
        %1777 = vmatmul.bf16.gmra.mxu0 %v1346
        %v1778 = vpop.f32.mrf.mxu0
        %v1779 = vadd.f32 0.0, %v1778
        %v1780 = vpop.f32.mrf.mxu0
        %v1781 = vadd.f32 0.0, %v1780
        %1782 = vmatmul.bf16.gmra.mxu0 %v1349
        %v1783 = vpop.f32.mrf.mxu0
        %v1784 = vadd.f32 0.0, %v1783
        %v1785 = vpop.f32.mrf.mxu0
        %v1786 = vadd.f32 0.0, %v1785
        %1787 = vmatmul.bf16.gmra.mxu0 %v1352
        %v1788 = vpop.f32.mrf.mxu0
        %v1789 = vadd.f32 0.0, %v1788
        %v1790 = vpop.f32.mrf.mxu0
        %v1791 = vadd.f32 0.0, %v1790
        %1792 = vmatmul.bf16.gmra.mxu0 %v1355
        %v1793 = vpop.f32.mrf.mxu0
        %v1794 = vadd.f32 0.0, %v1793
        %v1795 = vpop.f32.mrf.mxu0
        %v1796 = vadd.f32 0.0, %v1795
        %1797 = vmatmul.bf16.gmra.mxu0 %v1358
        %v1798 = vpop.f32.mrf.mxu0
        %v1799 = vadd.f32 0.0, %v1798
        %v1800 = vpop.f32.mrf.mxu0
        %v1801 = vadd.f32 0.0, %v1800
        %1802 = vmatmul.bf16.gmra.mxu0 %v1361
        %v1803 = vpop.f32.mrf.mxu0
        %v1804 = vadd.f32 0.0, %v1803
        %v1805 = vpop.f32.mrf.mxu0
        %v1806 = vadd.f32 0.0, %v1805
        %1807 = vmatmul.bf16.gmra.mxu0 %v1364
        %v1808 = vpop.f32.mrf.mxu0
        %v1809 = vadd.f32 0.0, %v1808
        %v1810 = vpop.f32.mrf.mxu0
        %v1811 = vadd.f32 0.0, %v1810
        %1812 = vmatmul.bf16.gmra.mxu0 %v1367
        %v1813 = vpop.f32.mrf.mxu0
        %v1814 = vadd.f32 0.0, %v1813
        %v1815 = vpop.f32.mrf.mxu0
        %v1816 = vadd.f32 0.0, %v1815
        %1817 = vmatmul.bf16.gmra.mxu0 %v1370
        %v1818 = vpop.f32.mrf.mxu0
        %v1819 = vadd.f32 0.0, %v1818
        %v1820 = vpop.f32.mrf.mxu0
        %v1821 = vadd.f32 0.0, %v1820
        %1822 = vmatmul.bf16.gmra.mxu0 %v1373
        %v1823 = vpop.f32.mrf.mxu0
        %v1824 = vadd.f32 0.0, %v1823
        %v1825 = vpop.f32.mrf.mxu0
        %v1826 = vadd.f32 0.0, %v1825
        %1827 = vmatmul.bf16.gmra.mxu0 %v1376
        %v1828 = vpop.f32.mrf.mxu0
        %v1829 = vadd.f32 0.0, %v1828
        %v1830 = vpop.f32.mrf.mxu0
        %v1831 = vadd.f32 0.0, %v1830
        %1832 = vmatmul.bf16.gmra.mxu0 %v1379
        %v1833 = vpop.f32.mrf.mxu0
        %v1834 = vadd.f32 0.0, %v1833
        %v1835 = vpop.f32.mrf.mxu0
        %v1836 = vadd.f32 0.0, %v1835
        %1837 = vmatmul.bf16.gmra.mxu0 %v1382
        %v1838 = vpop.f32.mrf.mxu0
        %v1839 = vadd.f32 0.0, %v1838
        %v1840 = vpop.f32.mrf.mxu0
        %v1841 = vadd.f32 0.0, %v1840
        %1842 = vmatmul.bf16.gmra.mxu0 %v1385
        %v1843 = vpop.f32.mrf.mxu0
        %v1844 = vadd.f32 0.0, %v1843
        %v1845 = vpop.f32.mrf.mxu0
        %v1846 = vadd.f32 0.0, %v1845
        %1847 = vmatmul.bf16.gmra.mxu0 %v1388
        %v1848 = vpop.f32.mrf.mxu0
        %v1849 = vadd.f32 0.0, %v1848
        %v1850 = vpop.f32.mrf.mxu0
        %v1851 = vadd.f32 0.0, %v1850
        %1852 = vmatmul.bf16.gmra.mxu0 %v1391
        %v1853 = vpop.f32.mrf.mxu0
        %v1854 = vadd.f32 0.0, %v1853
        %v1855 = vpop.f32.mrf.mxu0
        %v1856 = vadd.f32 0.0, %v1855
        %1857 = vmatmul.bf16.gmra.mxu0 %v1394
        %v1858 = vpop.f32.mrf.mxu0
        %v1859 = vadd.f32 0.0, %v1858
        %v1860 = vpop.f32.mrf.mxu0
        %v1861 = vadd.f32 0.0, %v1860
        %1862 = vmatmul.bf16.gmra.mxu0 %v1397
        %v1863 = vpop.f32.mrf.mxu0
        %v1864 = vadd.f32 0.0, %v1863
        %v1865 = vpop.f32.mrf.mxu0
        %v1866 = vadd.f32 0.0, %v1865
        %1867 = vmatmul.bf16.gmra.mxu0 %v1400
        %v1868 = vpop.f32.mrf.mxu0
        %v1869 = vadd.f32 0.0, %v1868
        %v1870 = vpop.f32.mrf.mxu0
        %v1871 = vadd.f32 0.0, %v1870
        %1872 = vmatmul.bf16.gmra.mxu0 %v1403
        %v1873 = vpop.f32.mrf.mxu0
        %v1874 = vadd.f32 0.0, %v1873
        %v1875 = vpop.f32.mrf.mxu0
        %v1876 = vadd.f32 0.0, %v1875
        %1877 = vmatmul.bf16.gmra.mxu0 %v1406
        %v1878 = vpop.f32.mrf.mxu0
        %v1879 = vadd.f32 0.0, %v1878
        %v1880 = vpop.f32.mrf.mxu0
        %v1881 = vadd.f32 0.0, %v1880
        %1882 = vmatmul.bf16.gmra.mxu0 %v1409
        %v1883 = vpop.f32.mrf.mxu0
        %v1884 = vadd.f32 0.0, %v1883
        %v1885 = vpop.f32.mrf.mxu0
        %v1886 = vadd.f32 0.0, %v1885
        %1887 = vmatmul.bf16.gmra.mxu0 %v1412
        %v1888 = vpop.f32.mrf.mxu0
        %v1889 = vadd.f32 0.0, %v1888
        %v1890 = vpop.f32.mrf.mxu0
        %v1891 = vadd.f32 0.0, %v1890
        %1892 = vmatmul.bf16.gmra.mxu0 %v1415
        %v1893 = vpop.f32.mrf.mxu0
        %v1894 = vadd.f32 0.0, %v1893
        %v1895 = vpop.f32.mrf.mxu0
        %v1896 = vadd.f32 0.0, %v1895
        %1897 = vmatmul.bf16.gmra.mxu0 %v1418
        %v1898 = vpop.f32.mrf.mxu0
        %v1899 = vadd.f32 0.0, %v1898
        %v1900 = vpop.f32.mrf.mxu0
        %v1901 = vadd.f32 0.0, %v1900
        %1902 = vmatmul.bf16.gmra.mxu0 %v1421
        %v1903 = vpop.f32.mrf.mxu0
        %v1904 = vadd.f32 0.0, %v1903
        %v1905 = vpop.f32.mrf.mxu0
        %v1906 = vadd.f32 0.0, %v1905
        %1907 = vmatmul.bf16.gmra.mxu0 %v1424
        %v1908 = vpop.f32.mrf.mxu0
        %v1909 = vadd.f32 0.0, %v1908
        %v1910 = vpop.f32.mrf.mxu0
        %v1911 = vadd.f32 0.0, %v1910
        %1912 = vmatmul.bf16.gmra.mxu0 %v1427
        %v1913 = vpop.f32.mrf.mxu0
        %v1914 = vadd.f32 0.0, %v1913
        %v1915 = vpop.f32.mrf.mxu0
        %v1916 = vadd.f32 0.0, %v1915
        %1917 = vmatmul.bf16.gmra.mxu0 %v1430
        %v1918 = vpop.f32.mrf.mxu0
        %v1919 = vadd.f32 0.0, %v1918
        %v1920 = vpop.f32.mrf.mxu0
        %v1921 = vadd.f32 0.0, %v1920
        %1922 = vmatmul.bf16.gmra.mxu0 %v1433
        %v1923 = vpop.f32.mrf.mxu0
        %v1924 = vadd.f32 0.0, %v1923
        %v1925 = vpop.f32.mrf.mxu0
        %v1926 = vadd.f32 0.0, %v1925
        %1927 = vmatmul.bf16.gmra.mxu0 %v1436
        %v1928 = vpop.f32.mrf.mxu0
        %v1929 = vadd.f32 0.0, %v1928
        %v1930 = vpop.f32.mrf.mxu0
        %v1931 = vadd.f32 0.0, %v1930
        %1932 = vmatmul.bf16.gmra.mxu0 %v1439
        %v1933 = vpop.f32.mrf.mxu0
        %v1934 = vadd.f32 0.0, %v1933
        %v1935 = vpop.f32.mrf.mxu0
        %v1936 = vadd.f32 0.0, %v1935
        %1937 = vmatmul.bf16.gmra.mxu0 %v1442
        %v1938 = vpop.f32.mrf.mxu0
        %v1939 = vadd.f32 0.0, %v1938
        %v1940 = vpop.f32.mrf.mxu0
        %v1941 = vadd.f32 0.0, %v1940
        %1942 = vmatmul.bf16.gmra.mxu0 %v1445
        %v1943 = vpop.f32.mrf.mxu0
        %v1944 = vadd.f32 0.0, %v1943
        %v1945 = vpop.f32.mrf.mxu0
        %v1946 = vadd.f32 0.0, %v1945
        %1947 = vmatmul.bf16.gmra.mxu0 %v1448
        %v1948 = vpop.f32.mrf.mxu0
        %v1949 = vadd.f32 0.0, %v1948
        %v1950 = vpop.f32.mrf.mxu0
        %v1951 = vadd.f32 0.0, %v1950
        %1952 = vmatmul.bf16.gmra.mxu0 %v1451
        %v1953 = vpop.f32.mrf.mxu0
        %v1954 = vadd.f32 0.0, %v1953
        %v1955 = vpop.f32.mrf.mxu0
        %v1956 = vadd.f32 0.0, %v1955
        %1957 = vmatmul.bf16.gmra.mxu0 %v1454
        %v1958 = vpop.f32.mrf.mxu0
        %v1959 = vadd.f32 0.0, %v1958
        %v1960 = vpop.f32.mrf.mxu0
        %v1961 = vadd.f32 0.0, %v1960
        %1962 = vmatmul.bf16.gmra.mxu0 %v1457
        %v1963 = vpop.f32.mrf.mxu0
        %v1964 = vadd.f32 0.0, %v1963
        %v1965 = vpop.f32.mrf.mxu0
        %v1966 = vadd.f32 0.0, %v1965
        %1967 = vdwg.mxu0
        %1968 = vst.msk [vmem:[#allocation2] sm:$0xff] %vm1158, %v1469
        %1969 = vst.msk [vmem:[#allocation2 + $0x8] sm:$0xff] %vm1158, %v1471
        %1970 = vst.msk [vmem:[#allocation2 + $0x10] sm:$0xff] %vm1158, %v1474
        %1971 = vst.msk [vmem:[#allocation2 + $0x18] sm:$0xff] %vm1158, %v1476
        %1972 = vst.msk [vmem:[#allocation2 + $0x20] sm:$0xff] %vm1158, %v1479
        %1973 = vst.msk [vmem:[#allocation2 + $0x28] sm:$0xff] %vm1158, %v1481
        %1974 = vst.msk [vmem:[#allocation2 + $0x30] sm:$0xff] %vm1158, %v1484
        %1975 = vst.msk [vmem:[#allocation2 + $0x38] sm:$0xff] %vm1158, %v1486
        %1976 = vst.msk [vmem:[#allocation2 + $0x40] sm:$0xff] %vm1158, %v1489
        %1977 = vst.msk [vmem:[#allocation2 + $0x48] sm:$0xff] %vm1158, %v1491
        %1978 = vst.msk [vmem:[#allocation2 + $0x50] sm:$0xff] %vm1158, %v1494
        %1979 = vst.msk [vmem:[#allocation2 + $0x58] sm:$0xff] %vm1158, %v1496
        %1980 = vst.msk [vmem:[#allocation2 + $0x60] sm:$0xff] %vm1158, %v1499
        %1981 = vst.msk [vmem:[#allocation2 + $0x68] sm:$0xff] %vm1158, %v1501
        %1982 = vst.msk [vmem:[#allocation2 + $0x70] sm:$0xff] %vm1158, %v1504
        %1983 = vst.msk [vmem:[#allocation2 + $0x78] sm:$0xff] %vm1158, %v1506
        %1984 = vst.msk [vmem:[#allocation2 + $0x80] sm:$0xff] %vm1158, %v1509
        %1985 = vst.msk [vmem:[#allocation2 + $0x88] sm:$0xff] %vm1158, %v1511
        %1986 = vst.msk [vmem:[#allocation2 + $0x90] sm:$0xff] %vm1158, %v1514
        %1987 = vst.msk [vmem:[#allocation2 + $0x98] sm:$0xff] %vm1158, %v1516
        %1988 = vst.msk [vmem:[#allocation2 + $0xa0] sm:$0xff] %vm1158, %v1519
        %1989 = vst.msk [vmem:[#allocation2 + $0xa8] sm:$0xff] %vm1158, %v1521
        %1990 = vst.msk [vmem:[#allocation2 + $0xb0] sm:$0xff] %vm1158, %v1524
        %1991 = vst.msk [vmem:[#allocation2 + $0xb8] sm:$0xff] %vm1158, %v1526
        %1992 = vst.msk [vmem:[#allocation2 + $0xc0] sm:$0xff] %vm1158, %v1529
        %1993 = vst.msk [vmem:[#allocation2 + $0xc8] sm:$0xff] %vm1158, %v1531
        %1994 = vst.msk [vmem:[#allocation2 + $0xd0] sm:$0xff] %vm1158, %v1534
        %1995 = vst.msk [vmem:[#allocation2 + $0xd8] sm:$0xff] %vm1158, %v1536
        %1996 = vst.msk [vmem:[#allocation2 + $0xe0] sm:$0xff] %vm1158, %v1539
        %1997 = vst.msk [vmem:[#allocation2 + $0xe8] sm:$0xff] %vm1158, %v1541
        %1998 = vst.msk [vmem:[#allocation2 + $0xf0] sm:$0xff] %vm1158, %v1544
        %1999 = vst.msk [vmem:[#allocation2 + $0xf8] sm:$0xff] %vm1158, %v1546
        %2000 = vst.msk [vmem:[#allocation2 + $0x100] sm:$0xff] %vm1158, %v1549
        %2001 = vst.msk [vmem:[#allocation2 + $0x108] sm:$0xff] %vm1158, %v1551
        %2002 = vst.msk [vmem:[#allocation2 + $0x110] sm:$0xff] %vm1158, %v1554
        %2003 = vst.msk [vmem:[#allocation2 + $0x118] sm:$0xff] %vm1158, %v1556
        %2004 = vst.msk [vmem:[#allocation2 + $0x120] sm:$0xff] %vm1158, %v1559
        %2005 = vst.msk [vmem:[#allocation2 + $0x128] sm:$0xff] %vm1158, %v1561
        %2006 = vst.msk [vmem:[#allocation2 + $0x130] sm:$0xff] %vm1158, %v1564
        %2007 = vst.msk [vmem:[#allocation2 + $0x138] sm:$0xff] %vm1158, %v1566
        %2008 = vst.msk [vmem:[#allocation2 + $0x140] sm:$0xff] %vm1158, %v1569
        %2009 = vst.msk [vmem:[#allocation2 + $0x148] sm:$0xff] %vm1158, %v1571
        %2010 = vst.msk [vmem:[#allocation2 + $0x150] sm:$0xff] %vm1158, %v1574
        %2011 = vst.msk [vmem:[#allocation2 + $0x158] sm:$0xff] %vm1158, %v1576
        %2012 = vst.msk [vmem:[#allocation2 + $0x160] sm:$0xff] %vm1158, %v1579
        %2013 = vst.msk [vmem:[#allocation2 + $0x168] sm:$0xff] %vm1158, %v1581
        %2014 = vst.msk [vmem:[#allocation2 + $0x170] sm:$0xff] %vm1158, %v1584
        %2015 = vst.msk [vmem:[#allocation2 + $0x178] sm:$0xff] %vm1158, %v1586
        %2016 = vst.msk [vmem:[#allocation2 + $0x180] sm:$0xff] %vm1158, %v1589
        %2017 = vst.msk [vmem:[#allocation2 + $0x188] sm:$0xff] %vm1158, %v1591
        %2018 = vst.msk [vmem:[#allocation2 + $0x190] sm:$0xff] %vm1158, %v1594
        %2019 = vst.msk [vmem:[#allocation2 + $0x198] sm:$0xff] %vm1158, %v1596
        %2020 = vst.msk [vmem:[#allocation2 + $0x1a0] sm:$0xff] %vm1158, %v1599
        %2021 = vst.msk [vmem:[#allocation2 + $0x1a8] sm:$0xff] %vm1158, %v1601
        %2022 = vst.msk [vmem:[#allocation2 + $0x1b0] sm:$0xff] %vm1158, %v1604
        %2023 = vst.msk [vmem:[#allocation2 + $0x1b8] sm:$0xff] %vm1158, %v1606
        %2024 = vst.msk [vmem:[#allocation2 + $0x1c0] sm:$0xff] %vm1158, %v1609
        %2025 = vst.msk [vmem:[#allocation2 + $0x1c8] sm:$0xff] %vm1158, %v1611
        %2026 = vst.msk [vmem:[#allocation2 + $0x1d0] sm:$0xff] %vm1158, %v1614
        %2027 = vst.msk [vmem:[#allocation2 + $0x1d8] sm:$0xff] %vm1158, %v1616
        %2028 = vst.msk [vmem:[#allocation2 + $0x1e0] sm:$0xff] %vm1158, %v1619
        %2029 = vst.msk [vmem:[#allocation2 + $0x1e8] sm:$0xff] %vm1158, %v1621
        %2030 = vst.msk [vmem:[#allocation2 + $0x1f0] sm:$0xff] %vm1158, %v1624
        %2031 = vst.msk [vmem:[#allocation2 + $0x1f8] sm:$0xff] %vm1158, %v1626
        %2032 = vst.msk [vmem:[#allocation2 + $0x200] sm:$0xff] %vm1158, %v1629
        %2033 = vst.msk [vmem:[#allocation2 + $0x208] sm:$0xff] %vm1158, %v1631
        %2034 = vst.msk [vmem:[#allocation2 + $0x210] sm:$0xff] %vm1158, %v1634
        %2035 = vst.msk [vmem:[#allocation2 + $0x218] sm:$0xff] %vm1158, %v1636
        %2036 = vst.msk [vmem:[#allocation2 + $0x220] sm:$0xff] %vm1158, %v1639
        %2037 = vst.msk [vmem:[#allocation2 + $0x228] sm:$0xff] %vm1158, %v1641
        %2038 = vst.msk [vmem:[#allocation2 + $0x230] sm:$0xff] %vm1158, %v1644
        %2039 = vst.msk [vmem:[#allocation2 + $0x238] sm:$0xff] %vm1158, %v1646
        %2040 = vst.msk [vmem:[#allocation2 + $0x240] sm:$0xff] %vm1158, %v1649
        %2041 = vst.msk [vmem:[#allocation2 + $0x248] sm:$0xff] %vm1158, %v1651
        %2042 = vst.msk [vmem:[#allocation2 + $0x250] sm:$0xff] %vm1158, %v1654
        %2043 = vst.msk [vmem:[#allocation2 + $0x258] sm:$0xff] %vm1158, %v1656
        %2044 = vst.msk [vmem:[#allocation2 + $0x260] sm:$0xff] %vm1158, %v1659
        %2045 = vst.msk [vmem:[#allocation2 + $0x268] sm:$0xff] %vm1158, %v1661
        %2046 = vst.msk [vmem:[#allocation2 + $0x270] sm:$0xff] %vm1158, %v1664
        %2047 = vst.msk [vmem:[#allocation2 + $0x278] sm:$0xff] %vm1158, %v1666
        %2048 = vst.msk [vmem:[#allocation2 + $0x280] sm:$0xff] %vm1158, %v1669
        %2049 = vst.msk [vmem:[#allocation2 + $0x288] sm:$0xff] %vm1158, %v1671
        %2050 = vst.msk [vmem:[#allocation2 + $0x290] sm:$0xff] %vm1158, %v1674
        %2051 = vst.msk [vmem:[#allocation2 + $0x298] sm:$0xff] %vm1158, %v1676
        %2052 = vst.msk [vmem:[#allocation2 + $0x2a0] sm:$0xff] %vm1158, %v1679
        %2053 = vst.msk [vmem:[#allocation2 + $0x2a8] sm:$0xff] %vm1158, %v1681
        %2054 = vst.msk [vmem:[#allocation2 + $0x2b0] sm:$0xff] %vm1158, %v1684
        %2055 = vst.msk [vmem:[#allocation2 + $0x2b8] sm:$0xff] %vm1158, %v1686
        %2056 = vst.msk [vmem:[#allocation2 + $0x2c0] sm:$0xff] %vm1158, %v1689
        %2057 = vst.msk [vmem:[#allocation2 + $0x2c8] sm:$0xff] %vm1158, %v1691
        %2058 = vst.msk [vmem:[#allocation2 + $0x2d0] sm:$0xff] %vm1158, %v1694
        %2059 = vst.msk [vmem:[#allocation2 + $0x2d8] sm:$0xff] %vm1158, %v1696
        %2060 = vst.msk [vmem:[#allocation2 + $0x2e0] sm:$0xff] %vm1158, %v1699
        %2061 = vst.msk [vmem:[#allocation2 + $0x2e8] sm:$0xff] %vm1158, %v1701
        %2062 = vst.msk [vmem:[#allocation2 + $0x2f0] sm:$0xff] %vm1158, %v1704
        %2063 = vst.msk [vmem:[#allocation2 + $0x2f8] sm:$0xff] %vm1158, %v1706
        %2064 = vst.msk [vmem:[#allocation2 + $0x300] sm:$0xff] %vm1158, %v1709
        %2065 = vst.msk [vmem:[#allocation2 + $0x308] sm:$0xff] %vm1158, %v1711
        %2066 = vst.msk [vmem:[#allocation2 + $0x310] sm:$0xff] %vm1158, %v1714
        %2067 = vst.msk [vmem:[#allocation2 + $0x318] sm:$0xff] %vm1158, %v1716
        %2068 = vst.msk [vmem:[#allocation2 + $0x320] sm:$0xff] %vm1158, %v1719
        %2069 = vst.msk [vmem:[#allocation2 + $0x328] sm:$0xff] %vm1158, %v1721
        %2070 = vst.msk [vmem:[#allocation2 + $0x330] sm:$0xff] %vm1158, %v1724
        %2071 = vst.msk [vmem:[#allocation2 + $0x338] sm:$0xff] %vm1158, %v1726
        %2072 = vst.msk [vmem:[#allocation2 + $0x340] sm:$0xff] %vm1158, %v1729
        %2073 = vst.msk [vmem:[#allocation2 + $0x348] sm:$0xff] %vm1158, %v1731
        %2074 = vst.msk [vmem:[#allocation2 + $0x350] sm:$0xff] %vm1158, %v1734
        %2075 = vst.msk [vmem:[#allocation2 + $0x358] sm:$0xff] %vm1158, %v1736
        %2076 = vst.msk [vmem:[#allocation2 + $0x360] sm:$0xff] %vm1158, %v1739
        %2077 = vst.msk [vmem:[#allocation2 + $0x368] sm:$0xff] %vm1158, %v1741
        %2078 = vst.msk [vmem:[#allocation2 + $0x370] sm:$0xff] %vm1158, %v1744
        %2079 = vst.msk [vmem:[#allocation2 + $0x378] sm:$0xff] %vm1158, %v1746
        %2080 = vst.msk [vmem:[#allocation2 + $0x380] sm:$0xff] %vm1158, %v1749
        %2081 = vst.msk [vmem:[#allocation2 + $0x388] sm:$0xff] %vm1158, %v1751
        %2082 = vst.msk [vmem:[#allocation2 + $0x390] sm:$0xff] %vm1158, %v1754
        %2083 = vst.msk [vmem:[#allocation2 + $0x398] sm:$0xff] %vm1158, %v1756
        %2084 = vst.msk [vmem:[#allocation2 + $0x3a0] sm:$0xff] %vm1158, %v1759
        %2085 = vst.msk [vmem:[#allocation2 + $0x3a8] sm:$0xff] %vm1158, %v1761
        %2086 = vst.msk [vmem:[#allocation2 + $0x3b0] sm:$0xff] %vm1158, %v1764
        %2087 = vst.msk [vmem:[#allocation2 + $0x3b8] sm:$0xff] %vm1158, %v1766
        %2088 = vst.msk [vmem:[#allocation2 + $0x3c0] sm:$0xff] %vm1158, %v1769
        %2089 = vst.msk [vmem:[#allocation2 + $0x3c8] sm:$0xff] %vm1158, %v1771
        %2090 = vst.msk [vmem:[#allocation2 + $0x3d0] sm:$0xff] %vm1158, %v1774
        %2091 = vst.msk [vmem:[#allocation2 + $0x3d8] sm:$0xff] %vm1158, %v1776
        %2092 = vst.msk [vmem:[#allocation2 + $0x3e0] sm:$0xff] %vm1158, %v1779
        %2093 = vst.msk [vmem:[#allocation2 + $0x3e8] sm:$0xff] %vm1158, %v1781
        %2094 = vst.msk [vmem:[#allocation2 + $0x3f0] sm:$0xff] %vm1158, %v1784
        %2095 = vst.msk [vmem:[#allocation2 + $0x3f8] sm:$0xff] %vm1158, %v1786
        %2096 = vst.msk [vmem:[#allocation2 + $0x400] sm:$0xff] %vm1158, %v1789
        %2097 = vst.msk [vmem:[#allocation2 + $0x408] sm:$0xff] %vm1158, %v1791
        %2098 = vst.msk [vmem:[#allocation2 + $0x410] sm:$0xff] %vm1158, %v1794
        %2099 = vst.msk [vmem:[#allocation2 + $0x418] sm:$0xff] %vm1158, %v1796
        %2100 = vst.msk [vmem:[#allocation2 + $0x420] sm:$0xff] %vm1158, %v1799
        %2101 = vst.msk [vmem:[#allocation2 + $0x428] sm:$0xff] %vm1158, %v1801
        %2102 = vst.msk [vmem:[#allocation2 + $0x430] sm:$0xff] %vm1158, %v1804
        %2103 = vst.msk [vmem:[#allocation2 + $0x438] sm:$0xff] %vm1158, %v1806
        %2104 = vst.msk [vmem:[#allocation2 + $0x440] sm:$0xff] %vm1158, %v1809
        %2105 = vst.msk [vmem:[#allocation2 + $0x448] sm:$0xff] %vm1158, %v1811
        %2106 = vst.msk [vmem:[#allocation2 + $0x450] sm:$0xff] %vm1158, %v1814
        %2107 = vst.msk [vmem:[#allocation2 + $0x458] sm:$0xff] %vm1158, %v1816
        %2108 = vst.msk [vmem:[#allocation2 + $0x460] sm:$0xff] %vm1158, %v1819
        %2109 = vst.msk [vmem:[#allocation2 + $0x468] sm:$0xff] %vm1158, %v1821
        %2110 = vst.msk [vmem:[#allocation2 + $0x470] sm:$0xff] %vm1158, %v1824
        %2111 = vst.msk [vmem:[#allocation2 + $0x478] sm:$0xff] %vm1158, %v1826
        %2112 = vst.msk [vmem:[#allocation2 + $0x480] sm:$0xff] %vm1158, %v1829
        %2113 = vst.msk [vmem:[#allocation2 + $0x488] sm:$0xff] %vm1158, %v1831
        %2114 = vst.msk [vmem:[#allocation2 + $0x490] sm:$0xff] %vm1158, %v1834
        %2115 = vst.msk [vmem:[#allocation2 + $0x498] sm:$0xff] %vm1158, %v1836
        %2116 = vst.msk [vmem:[#allocation2 + $0x4a0] sm:$0xff] %vm1158, %v1839
        %2117 = vst.msk [vmem:[#allocation2 + $0x4a8] sm:$0xff] %vm1158, %v1841
        %2118 = vst.msk [vmem:[#allocation2 + $0x4b0] sm:$0xff] %vm1158, %v1844
        %2119 = vst.msk [vmem:[#allocation2 + $0x4b8] sm:$0xff] %vm1158, %v1846
        %2120 = vst.msk [vmem:[#allocation2 + $0x4c0] sm:$0xff] %vm1158, %v1849
        %2121 = vst.msk [vmem:[#allocation2 + $0x4c8] sm:$0xff] %vm1158, %v1851
        %2122 = vst.msk [vmem:[#allocation2 + $0x4d0] sm:$0xff] %vm1158, %v1854
        %2123 = vst.msk [vmem:[#allocation2 + $0x4d8] sm:$0xff] %vm1158, %v1856
        %2124 = vst.msk [vmem:[#allocation2 + $0x4e0] sm:$0xff] %vm1158, %v1859
        %2125 = vst.msk [vmem:[#allocation2 + $0x4e8] sm:$0xff] %vm1158, %v1861
        %2126 = vst.msk [vmem:[#allocation2 + $0x4f0] sm:$0xff] %vm1158, %v1864
        %2127 = vst.msk [vmem:[#allocation2 + $0x4f8] sm:$0xff] %vm1158, %v1866
        %2128 = vst.msk [vmem:[#allocation2 + $0x500] sm:$0xff] %vm1158, %v1869
        %2129 = vst.msk [vmem:[#allocation2 + $0x508] sm:$0xff] %vm1158, %v1871
        %2130 = vst.msk [vmem:[#allocation2 + $0x510] sm:$0xff] %vm1158, %v1874
        %2131 = vst.msk [vmem:[#allocation2 + $0x518] sm:$0xff] %vm1158, %v1876
        %2132 = vst.msk [vmem:[#allocation2 + $0x520] sm:$0xff] %vm1158, %v1879
        %2133 = vst.msk [vmem:[#allocation2 + $0x528] sm:$0xff] %vm1158, %v1881
        %2134 = vst.msk [vmem:[#allocation2 + $0x530] sm:$0xff] %vm1158, %v1884
        %2135 = vst.msk [vmem:[#allocation2 + $0x538] sm:$0xff] %vm1158, %v1886
        %2136 = vst.msk [vmem:[#allocation2 + $0x540] sm:$0xff] %vm1158, %v1889
        %2137 = vst.msk [vmem:[#allocation2 + $0x548] sm:$0xff] %vm1158, %v1891
        %2138 = vst.msk [vmem:[#allocation2 + $0x550] sm:$0xff] %vm1158, %v1894
        %2139 = vst.msk [vmem:[#allocation2 + $0x558] sm:$0xff] %vm1158, %v1896
        %2140 = vst.msk [vmem:[#allocation2 + $0x560] sm:$0xff] %vm1158, %v1899
        %2141 = vst.msk [vmem:[#allocation2 + $0x568] sm:$0xff] %vm1158, %v1901
        %2142 = vst.msk [vmem:[#allocation2 + $0x570] sm:$0xff] %vm1158, %v1904
        %2143 = vst.msk [vmem:[#allocation2 + $0x578] sm:$0xff] %vm1158, %v1906
        %2144 = vst.msk [vmem:[#allocation2 + $0x580] sm:$0xff] %vm1158, %v1909
        %2145 = vst.msk [vmem:[#allocation2 + $0x588] sm:$0xff] %vm1158, %v1911
        %2146 = vst.msk [vmem:[#allocation2 + $0x590] sm:$0xff] %vm1158, %v1914
        %2147 = vst.msk [vmem:[#allocation2 + $0x598] sm:$0xff] %vm1158, %v1916
        %2148 = vst.msk [vmem:[#allocation2 + $0x5a0] sm:$0xff] %vm1158, %v1919
        %2149 = vst.msk [vmem:[#allocation2 + $0x5a8] sm:$0xff] %vm1158, %v1921
        %2150 = vst.msk [vmem:[#allocation2 + $0x5b0] sm:$0xff] %vm1158, %v1924
        %2151 = vst.msk [vmem:[#allocation2 + $0x5b8] sm:$0xff] %vm1158, %v1926
        %2152 = vst.msk [vmem:[#allocation2 + $0x5c0] sm:$0xff] %vm1158, %v1929
        %2153 = vst.msk [vmem:[#allocation2 + $0x5c8] sm:$0xff] %vm1158, %v1931
        %2154 = vst.msk [vmem:[#allocation2 + $0x5d0] sm:$0xff] %vm1158, %v1934
        %2155 = vst.msk [vmem:[#allocation2 + $0x5d8] sm:$0xff] %vm1158, %v1936
        %2156 = vst.msk [vmem:[#allocation2 + $0x5e0] sm:$0xff] %vm1158, %v1939
        %2157 = vst.msk [vmem:[#allocation2 + $0x5e8] sm:$0xff] %vm1158, %v1941
        %2158 = vst.msk [vmem:[#allocation2 + $0x5f0] sm:$0xff] %vm1158, %v1944
        %2159 = vst.msk [vmem:[#allocation2 + $0x5f8] sm:$0xff] %vm1158, %v1946
        %2160 = vst.msk [vmem:[#allocation2 + $0x600] sm:$0xff] %vm1158, %v1949
        %2161 = vst.msk [vmem:[#allocation2 + $0x608] sm:$0xff] %vm1158, %v1951
        %2162 = vst.msk [vmem:[#allocation2 + $0x610] sm:$0xff] %vm1158, %v1954
        %2163 = vst.msk [vmem:[#allocation2 + $0x618] sm:$0xff] %vm1158, %v1956
        %2164 = vst.msk [vmem:[#allocation2 + $0x620] sm:$0xff] %vm1158, %v1959
        %2165 = vst.msk [vmem:[#allocation2 + $0x628] sm:$0xff] %vm1158, %v1961
        %2166 = vst.msk [vmem:[#allocation2 + $0x630] sm:$0xff] %vm1158, %v1964
        %2167 = vst.msk [vmem:[#allocation2 + $0x638] sm:$0xff] %vm1158, %v1966
        %v2168 = vld [vmem:[#allocation2] sm:$0xff]
        %v2169 = vld [vmem:[#allocation2 + $0x8] sm:$0xff]
        %v2170 = vld [vmem:[#allocation2 + $0x10] sm:$0xf]
        %v2171 = vld [vmem:[#allocation2 + $0x14] sm:$0xff]
        %v2172 = vld [vmem:[#allocation2 + $0x1c] sm:$0xff]
        %v2173 = vld [vmem:[#allocation2 + $0x24] sm:$0xf]
        %v2174 = vmax.f32 %v2168, %v2171
        %v2175 = vmax.f32 %v2169, %v2172
        %v2176 = vmax.f32 %v2170, %v2173
        %v2177 = vld [vmem:[#allocation2 + $0x28] sm:$0xff]
        %v2178 = vld [vmem:[#allocation2 + $0x30] sm:$0xff]
        %v2179 = vld [vmem:[#allocation2 + $0x38] sm:$0xf]
        %v2180 = vld [vmem:[#allocation2 + $0x3c] sm:$0xff]
        %v2181 = vld [vmem:[#allocation2 + $0x44] sm:$0xff]
        %v2182 = vld [vmem:[#allocation2 + $0x4c] sm:$0xf]
        %v2183 = vmax.f32 %v2177, %v2180
        %v2184 = vmax.f32 %v2178, %v2181
        %v2185 = vmax.f32 %v2179, %v2182
        %v2186 = vmax.f32 %v2174, %v2183
        %v2187 = vmax.f32 %v2175, %v2184
        %v2188 = vmax.f32 %v2176, %v2185
        %v2190 = vperm.slane %v439, 0
        %v2192 = vadd.f32 %v2186, %v2190
        %v2193 = vadd.f32 %v2187, %v2190
        %v2194 = vadd.f32 %v2188, %v2190
        %v2195 = vmax.f32 %v2192, 0.0
        %v2196 = vmax.f32 %v2193, 0.0
        %v2197 = vmax.f32 %v2194, 0.0
        %v2198 = vpack.c.bf16 %v2195, %v2195
        %v2199 = vpack.c.bf16 %v2196, %v2196
        %v2200 = vpack.c.bf16 %v2197, %v2197
        %vm2201 = vcmask 257024
        %2202 = vst.msk [vmem:[#allocation3] sm:$0xf] %vm2201, %v2198
        %2203 = vst.msk [vmem:[#allocation3 + $0x8] sm:$0xf] %vm2201, %v2199
        %vm2204 = vsmask.f32 3328
        %vm2205 = vsmask.f32 7440
        %vm2206 = vmor %vm2204, %vm2205
        %v2208 = vshrl.u32 %v2198, 16
        %v2210 = vrot.slane %v2208, 4
        %v2211 = vshll.u32 %v2198, 16
        %v2213 = vrot.slane %v2211, 5
        %v2214 = vor.u32 %v2210, %v2213
        %v2215 = vrot.slane %v2214, 4
        %v2217 = vshll.u32 %v2199, 16
        %v2219 = vrot.slane %v2217, 5
        %v2220 = vsel %vm2206, %v2215, %v2219
        %v2221 = vshrl.u32 %v2199, 16
        %v2223 = vrot.slane %v2221, 4
        %v2224 = vor.u32 %v2223, %v2219
        %v2225 = vrot.slane %v2224, 4
        %v2227 = vshll.u32 %v2200, 16
        %v2229 = vrot.slane %v2227, 5
        %v2230 = vsel %vm2206, %v2225, %v2229
        %2231 = vrot.lane.b32.xlu0 %v2220, 32
        %v2232 = vpop.permute.xlu0 %2231
        %2233 = vrot.lane.b32.xlu0 %v2230, 32
        %v2234 = vpop.permute.xlu0 %2233
        %vm2237 = vcmask 519424
        %2238 = vst.msk [vmem:[#allocation3] sm:$0xf] %vm2237, %v2232
        %2239 = vst.msk [vmem:[#allocation3 + $0x8] sm:$0xf] %vm2237, %v2234
        %vm2243 = vcmask 1042432
        %vm2244 = vcmask 1046532
        %vm2245 = vmor %vm2243, %vm2244
        %v2246 = vrot.slane %v2198, 5
        %v2247 = vrot.slane %v2246, 4
        %v2248 = vrot.slane %v2199, 5
        %v2249 = vsel %vm2245, %v2247, %v2248
        %v2250 = vrot.slane %v2248, 4
        %v2251 = vrot.slane %v2200, 5
        %v2252 = vsel %vm2245, %v2250, %v2251
        %2253 = vrot.lane.b32.xlu0 %v2249, 64
        %v2254 = vpop.permute.xlu0 %2253
        %2255 = vrot.lane.b32.xlu0 %v2252, 64
        %v2256 = vpop.permute.xlu0 %2255
        %vm2259 = vcmask 781824
        %2260 = vst.msk [vmem:[#allocation3] sm:$0xf] %vm2259, %v2254
        %2261 = vst.msk [vmem:[#allocation3 + $0x8] sm:$0xf] %vm2259, %v2256
        %vm2262 = vsmask.f32 2304
        %vm2263 = vsmask.f32 6416
        %vm2264 = vmor %vm2262, %vm2263
        %v2265 = vrot.slane %v2208, 5
        %v2266 = vrot.slane %v2211, 6
        %v2267 = vor.u32 %v2265, %v2266
        %v2268 = vrot.slane %v2267, 4
        %v2269 = vrot.slane %v2221, 5
        %v2270 = vrot.slane %v2217, 6
        %v2271 = vor.u32 %v2269, %v2270
        %v2272 = vsel %vm2264, %v2268, %v2271
        %v2273 = vrot.slane %v2271, 4
        %v2274 = vshrl.u32 %v2200, 16
        %v2276 = vrot.slane %v2274, 5
        %v2277 = vrot.slane %v2227, 6
        %v2278 = vor.u32 %v2276, %v2277
        %v2279 = vsel %vm2264, %v2273, %v2278
        %2280 = vrot.lane.b32.xlu0 %v2272, 96
        %v2281 = vpop.permute.xlu0 %2280
        %2282 = vrot.lane.b32.xlu0 %v2279, 96
        %v2283 = vpop.permute.xlu0 %2282
        %vm2286 = vcmask 1044224
        %2287 = vst.msk [vmem:[#allocation3] sm:$0xf] %vm2286, %v2281
        %2288 = vst.msk [vmem:[#allocation3 + $0x8] sm:$0xf] %vm2286, %v2283
        %vm2289 = vcmask 1041408
        %vm2290 = vcmask 1045508
        %vm2291 = vmor %vm2289, %vm2290
        %v2292 = vrot.slane %v2198, 6
        %v2293 = vrot.slane %v2292, 4
        %v2294 = vrot.slane %v2199, 6
        %v2295 = vsel %vm2291, %v2293, %v2294
        %v2296 = vrot.slane %v2294, 4
        %v2297 = vrot.slane %v2200, 6
        %v2298 = vsel %vm2291, %v2296, %v2297
        %2301 = vst.msk [vmem:[#allocation3 + $0x4] sm:$0xf] %vm2201, %v2295
        %2302 = vst.msk [vmem:[#allocation3 + $0xc] sm:$0xf] %vm2201, %v2298
        %v2303 = vld [vmem:[#allocation2 + $0x50] sm:$0xff]
        %v2304 = vld [vmem:[#allocation2 + $0x58] sm:$0xff]
        %v2305 = vld [vmem:[#allocation2 + $0x60] sm:$0xf]
        %v2306 = vld [vmem:[#allocation2 + $0x64] sm:$0xff]
        %v2307 = vld [vmem:[#allocation2 + $0x6c] sm:$0xff]
        %v2308 = vld [vmem:[#allocation2 + $0x74] sm:$0xf]
        %v2309 = vmax.f32 %v2303, %v2306
        %v2310 = vmax.f32 %v2304, %v2307
        %v2311 = vmax.f32 %v2305, %v2308
        %v2312 = vld [vmem:[#allocation2 + $0x78] sm:$0xff]
        %v2313 = vld [vmem:[#allocation2 + $0x80] sm:$0xff]
        %v2314 = vld [vmem:[#allocation2 + $0x88] sm:$0xf]
        %v2315 = vld [vmem:[#allocation2 + $0x8c] sm:$0xff]
        %v2316 = vld [vmem:[#allocation2 + $0x94] sm:$0xff]
        %v2317 = vld [vmem:[#allocation2 + $0x9c] sm:$0xf]
        %v2318 = vmax.f32 %v2312, %v2315
        %v2319 = vmax.f32 %v2313, %v2316
        %v2320 = vmax.f32 %v2314, %v2317
        %v2321 = vmax.f32 %v2309, %v2318
        %v2322 = vmax.f32 %v2310, %v2319
        %v2323 = vmax.f32 %v2311, %v2320
        %v2324 = vadd.f32 %v2321, %v2190
        %v2325 = vadd.f32 %v2322, %v2190
        %v2326 = vadd.f32 %v2323, %v2190
        %v2327 = vmax.f32 %v2324, 0.0
        %v2328 = vmax.f32 %v2325, 0.0
        %v2329 = vmax.f32 %v2326, 0.0
        %v2330 = vpack.c.bf16 %v2327, %v2327
        %v2331 = vpack.c.bf16 %v2328, %v2328
        %v2332 = vpack.c.bf16 %v2329, %v2329
        %2333 = vst.msk [vmem:[#allocation3 + $0x10] sm:$0xf] %vm2201, %v2330
        %2334 = vst.msk [vmem:[#allocation3 + $0x18] sm:$0xf] %vm2201, %v2331
        %v2336 = vshrl.u32 %v2330, 16
        %v2338 = vrot.slane %v2336, 4
        %v2339 = vshll.u32 %v2330, 16
        %v2341 = vrot.slane %v2339, 5
        %v2342 = vor.u32 %v2338, %v2341
        %v2343 = vrot.slane %v2342, 4
        %v2345 = vshll.u32 %v2331, 16
        %v2347 = vrot.slane %v2345, 5
        %v2348 = vsel %vm2206, %v2343, %v2347
        %v2349 = vshrl.u32 %v2331, 16
        %v2351 = vrot.slane %v2349, 4
        %v2352 = vor.u32 %v2351, %v2347
        %v2353 = vrot.slane %v2352, 4
        %v2355 = vshll.u32 %v2332, 16
        %v2357 = vrot.slane %v2355, 5
        %v2358 = vsel %vm2206, %v2353, %v2357
        %2359 = vrot.lane.b32.xlu0 %v2348, 32
        %v2360 = vpop.permute.xlu0 %2359
        %2361 = vrot.lane.b32.xlu0 %v2358, 32
        %v2362 = vpop.permute.xlu0 %2361
        %2365 = vst.msk [vmem:[#allocation3 + $0x10] sm:$0xf] %vm2237, %v2360
        %2366 = vst.msk [vmem:[#allocation3 + $0x18] sm:$0xf] %vm2237, %v2362
        %v2370 = vrot.slane %v2330, 5
        %v2371 = vrot.slane %v2370, 4
        %v2372 = vrot.slane %v2331, 5
        %v2373 = vsel %vm2245, %v2371, %v2372
        %v2374 = vrot.slane %v2372, 4
        %v2375 = vrot.slane %v2332, 5
        %v2376 = vsel %vm2245, %v2374, %v2375
        %2377 = vrot.lane.b32.xlu0 %v2373, 64
        %v2378 = vpop.permute.xlu0 %2377
        %2379 = vrot.lane.b32.xlu0 %v2376, 64
        %v2380 = vpop.permute.xlu0 %2379
        %2383 = vst.msk [vmem:[#allocation3 + $0x10] sm:$0xf] %vm2259, %v2378
        %2384 = vst.msk [vmem:[#allocation3 + $0x18] sm:$0xf] %vm2259, %v2380
        %v2385 = vrot.slane %v2336, 5
        %v2386 = vrot.slane %v2339, 6
        %v2387 = vor.u32 %v2385, %v2386
        %v2388 = vrot.slane %v2387, 4
        %v2389 = vrot.slane %v2349, 5
        %v2390 = vrot.slane %v2345, 6
        %v2391 = vor.u32 %v2389, %v2390
        %v2392 = vsel %vm2264, %v2388, %v2391
        %v2393 = vrot.slane %v2391, 4
        %v2394 = vshrl.u32 %v2332, 16
        %v2396 = vrot.slane %v2394, 5
        %v2397 = vrot.slane %v2355, 6
        %v2398 = vor.u32 %v2396, %v2397
        %v2399 = vsel %vm2264, %v2393, %v2398
        %2400 = vrot.lane.b32.xlu0 %v2392, 96
        %v2401 = vpop.permute.xlu0 %2400
        %2402 = vrot.lane.b32.xlu0 %v2399, 96
        %v2403 = vpop.permute.xlu0 %2402
        %2406 = vst.msk [vmem:[#allocation3 + $0x10] sm:$0xf] %vm2286, %v2401
        %2407 = vst.msk [vmem:[#allocation3 + $0x18] sm:$0xf] %vm2286, %v2403
        %v2408 = vrot.slane %v2330, 6
        %v2409 = vrot.slane %v2408, 4
        %v2410 = vrot.slane %v2331, 6
        %v2411 = vsel %vm2291, %v2409, %v2410
        %v2412 = vrot.slane %v2410, 4
        %v2413 = vrot.slane %v2332, 6
        %v2414 = vsel %vm2291, %v2412, %v2413
        %2417 = vst.msk [vmem:[#allocation3 + $0x14] sm:$0xf] %vm2201, %v2411
        %2418 = vst.msk [vmem:[#allocation3 + $0x1c] sm:$0xf] %vm2201, %v2414
        %v2419 = vld [vmem:[#allocation2 + $0xa0] sm:$0xff]
        %v2420 = vld [vmem:[#allocation2 + $0xa8] sm:$0xff]
        %v2421 = vld [vmem:[#allocation2 + $0xb0] sm:$0xf]
        %v2422 = vld [vmem:[#allocation2 + $0xb4] sm:$0xff]
        %v2423 = vld [vmem:[#allocation2 + $0xbc] sm:$0xff]
        %v2424 = vld [vmem:[#allocation2 + $0xc4] sm:$0xf]
        %v2425 = vmax.f32 %v2419, %v2422
        %v2426 = vmax.f32 %v2420, %v2423
        %v2427 = vmax.f32 %v2421, %v2424
        %v2428 = vld [vmem:[#allocation2 + $0xc8] sm:$0xff]
        %v2429 = vld [vmem:[#allocation2 + $0xd0] sm:$0xff]
        %v2430 = vld [vmem:[#allocation2 + $0xd8] sm:$0xf]
        %v2431 = vld [vmem:[#allocation2 + $0xdc] sm:$0xff]
        %v2432 = vld [vmem:[#allocation2 + $0xe4] sm:$0xff]
        %v2433 = vld [vmem:[#allocation2 + $0xec] sm:$0xf]
        %v2434 = vmax.f32 %v2428, %v2431
        %v2435 = vmax.f32 %v2429, %v2432
        %v2436 = vmax.f32 %v2430, %v2433
        %v2437 = vmax.f32 %v2425, %v2434
        %v2438 = vmax.f32 %v2426, %v2435
        %v2439 = vmax.f32 %v2427, %v2436
        %v2440 = vadd.f32 %v2437, %v2190
        %v2441 = vadd.f32 %v2438, %v2190
        %v2442 = vadd.f32 %v2439, %v2190
        %v2443 = vmax.f32 %v2440, 0.0
        %v2444 = vmax.f32 %v2441, 0.0
        %v2445 = vmax.f32 %v2442, 0.0
        %v2446 = vpack.c.bf16 %v2443, %v2443
        %v2447 = vpack.c.bf16 %v2444, %v2444
        %v2448 = vpack.c.bf16 %v2445, %v2445
        %2449 = vst.msk [vmem:[#allocation3 + $0x20] sm:$0xf] %vm2201, %v2446
        %2450 = vst.msk [vmem:[#allocation3 + $0x28] sm:$0xf] %vm2201, %v2447
        %v2452 = vshrl.u32 %v2446, 16
        %v2454 = vrot.slane %v2452, 4
        %v2455 = vshll.u32 %v2446, 16
        %v2457 = vrot.slane %v2455, 5
        %v2458 = vor.u32 %v2454, %v2457
        %v2459 = vrot.slane %v2458, 4
        %v2461 = vshll.u32 %v2447, 16
        %v2463 = vrot.slane %v2461, 5
        %v2464 = vsel %vm2206, %v2459, %v2463
        %v2465 = vshrl.u32 %v2447, 16
        %v2467 = vrot.slane %v2465, 4
        %v2468 = vor.u32 %v2467, %v2463
        %v2469 = vrot.slane %v2468, 4
        %v2471 = vshll.u32 %v2448, 16
        %v2473 = vrot.slane %v2471, 5
        %v2474 = vsel %vm2206, %v2469, %v2473
        %2475 = vrot.lane.b32.xlu0 %v2464, 32
        %v2476 = vpop.permute.xlu0 %2475
        %2477 = vrot.lane.b32.xlu0 %v2474, 32
        %v2478 = vpop.permute.xlu0 %2477
        %2481 = vst.msk [vmem:[#allocation3 + $0x20] sm:$0xf] %vm2237, %v2476
        %2482 = vst.msk [vmem:[#allocation3 + $0x28] sm:$0xf] %vm2237, %v2478
        %v2486 = vrot.slane %v2446, 5
        %v2487 = vrot.slane %v2486, 4
        %v2488 = vrot.slane %v2447, 5
        %v2489 = vsel %vm2245, %v2487, %v2488
        %v2490 = vrot.slane %v2488, 4
        %v2491 = vrot.slane %v2448, 5
        %v2492 = vsel %vm2245, %v2490, %v2491
        %2493 = vrot.lane.b32.xlu0 %v2489, 64
        %v2494 = vpop.permute.xlu0 %2493
        %2495 = vrot.lane.b32.xlu0 %v2492, 64
        %v2496 = vpop.permute.xlu0 %2495
        %2499 = vst.msk [vmem:[#allocation3 + $0x20] sm:$0xf] %vm2259, %v2494
        %2500 = vst.msk [vmem:[#allocation3 + $0x28] sm:$0xf] %vm2259, %v2496
        %v2501 = vrot.slane %v2452, 5
        %v2502 = vrot.slane %v2455, 6
        %v2503 = vor.u32 %v2501, %v2502
        %v2504 = vrot.slane %v2503, 4
        %v2505 = vrot.slane %v2465, 5
        %v2506 = vrot.slane %v2461, 6
        %v2507 = vor.u32 %v2505, %v2506
        %v2508 = vsel %vm2264, %v2504, %v2507
        %v2509 = vrot.slane %v2507, 4
        %v2510 = vshrl.u32 %v2448, 16
        %v2512 = vrot.slane %v2510, 5
        %v2513 = vrot.slane %v2471, 6
        %v2514 = vor.u32 %v2512, %v2513
        %v2515 = vsel %vm2264, %v2509, %v2514
        %2516 = vrot.lane.b32.xlu0 %v2508, 96
        %v2517 = vpop.permute.xlu0 %2516
        %2518 = vrot.lane.b32.xlu0 %v2515, 96
        %v2519 = vpop.permute.xlu0 %2518
        %2522 = vst.msk [vmem:[#allocation3 + $0x20] sm:$0xf] %vm2286, %v2517
        %2523 = vst.msk [vmem:[#allocation3 + $0x28] sm:$0xf] %vm2286, %v2519
        %v2524 = vrot.slane %v2446, 6
        %v2525 = vrot.slane %v2524, 4
        %v2526 = vrot.slane %v2447, 6
        %v2527 = vsel %vm2291, %v2525, %v2526
        %v2528 = vrot.slane %v2526, 4
        %v2529 = vrot.slane %v2448, 6
        %v2530 = vsel %vm2291, %v2528, %v2529
        %2533 = vst.msk [vmem:[#allocation3 + $0x24] sm:$0xf] %vm2201, %v2527
        %2534 = vst.msk [vmem:[#allocation3 + $0x2c] sm:$0xf] %vm2201, %v2530
        %v2535 = vld [vmem:[#allocation2 + $0xf0] sm:$0xff]
        %v2536 = vld [vmem:[#allocation2 + $0xf8] sm:$0xff]
        %v2537 = vld [vmem:[#allocation2 + $0x100] sm:$0xf]
        %v2538 = vld [vmem:[#allocation2 + $0x104] sm:$0xff]
        %v2539 = vld [vmem:[#allocation2 + $0x10c] sm:$0xff]
        %v2540 = vld [vmem:[#allocation2 + $0x114] sm:$0xf]
        %v2541 = vmax.f32 %v2535, %v2538
        %v2542 = vmax.f32 %v2536, %v2539
        %v2543 = vmax.f32 %v2537, %v2540
        %v2544 = vld [vmem:[#allocation2 + $0x118] sm:$0xff]
        %v2545 = vld [vmem:[#allocation2 + $0x120] sm:$0xff]
        %v2546 = vld [vmem:[#allocation2 + $0x128] sm:$0xf]
        %v2547 = vld [vmem:[#allocation2 + $0x12c] sm:$0xff]
        %v2548 = vld [vmem:[#allocation2 + $0x134] sm:$0xff]
        %v2549 = vld [vmem:[#allocation2 + $0x13c] sm:$0xf]
        %v2550 = vmax.f32 %v2544, %v2547
        %v2551 = vmax.f32 %v2545, %v2548
        %v2552 = vmax.f32 %v2546, %v2549
        %v2553 = vmax.f32 %v2541, %v2550
        %v2554 = vmax.f32 %v2542, %v2551
        %v2555 = vmax.f32 %v2543, %v2552
        %v2556 = vadd.f32 %v2553, %v2190
        %v2557 = vadd.f32 %v2554, %v2190
        %v2558 = vadd.f32 %v2555, %v2190
        %v2559 = vmax.f32 %v2556, 0.0
        %v2560 = vmax.f32 %v2557, 0.0
        %v2561 = vmax.f32 %v2558, 0.0
        %v2562 = vpack.c.bf16 %v2559, %v2559
        %v2563 = vpack.c.bf16 %v2560, %v2560
        %v2564 = vpack.c.bf16 %v2561, %v2561
        %2565 = vst.msk [vmem:[#allocation3 + $0x30] sm:$0xf] %vm2201, %v2562
        %2566 = vst.msk [vmem:[#allocation3 + $0x38] sm:$0xf] %vm2201, %v2563
        %v2568 = vshrl.u32 %v2562, 16
        %v2570 = vrot.slane %v2568, 4
        %v2571 = vshll.u32 %v2562, 16
        %v2573 = vrot.slane %v2571, 5
        %v2574 = vor.u32 %v2570, %v2573
        %v2575 = vrot.slane %v2574, 4
        %v2577 = vshll.u32 %v2563, 16
        %v2579 = vrot.slane %v2577, 5
        %v2580 = vsel %vm2206, %v2575, %v2579
        %v2581 = vshrl.u32 %v2563, 16
        %v2583 = vrot.slane %v2581, 4
        %v2584 = vor.u32 %v2583, %v2579
        %v2585 = vrot.slane %v2584, 4
        %v2587 = vshll.u32 %v2564, 16
        %v2589 = vrot.slane %v2587, 5
        %v2590 = vsel %vm2206, %v2585, %v2589
        %2591 = vrot.lane.b32.xlu0 %v2580, 32
        %v2592 = vpop.permute.xlu0 %2591
        %2593 = vrot.lane.b32.xlu0 %v2590, 32
        %v2594 = vpop.permute.xlu0 %2593
        %2597 = vst.msk [vmem:[#allocation3 + $0x30] sm:$0xf] %vm2237, %v2592
        %2598 = vst.msk [vmem:[#allocation3 + $0x38] sm:$0xf] %vm2237, %v2594
        %v2602 = vrot.slane %v2562, 5
        %v2603 = vrot.slane %v2602, 4
        %v2604 = vrot.slane %v2563, 5
        %v2605 = vsel %vm2245, %v2603, %v2604
        %v2606 = vrot.slane %v2604, 4
        %v2607 = vrot.slane %v2564, 5
        %v2608 = vsel %vm2245, %v2606, %v2607
        %2609 = vrot.lane.b32.xlu0 %v2605, 64
        %v2610 = vpop.permute.xlu0 %2609
        %2611 = vrot.lane.b32.xlu0 %v2608, 64
        %v2612 = vpop.permute.xlu0 %2611
        %2615 = vst.msk [vmem:[#allocation3 + $0x30] sm:$0xf] %vm2259, %v2610
        %2616 = vst.msk [vmem:[#allocation3 + $0x38] sm:$0xf] %vm2259, %v2612
        %v2617 = vrot.slane %v2568, 5
        %v2618 = vrot.slane %v2571, 6
        %v2619 = vor.u32 %v2617, %v2618
        %v2620 = vrot.slane %v2619, 4
        %v2621 = vrot.slane %v2581, 5
        %v2622 = vrot.slane %v2577, 6
        %v2623 = vor.u32 %v2621, %v2622
        %v2624 = vsel %vm2264, %v2620, %v2623
        %v2625 = vrot.slane %v2623, 4
        %v2626 = vshrl.u32 %v2564, 16
        %v2628 = vrot.slane %v2626, 5
        %v2629 = vrot.slane %v2587, 6
        %v2630 = vor.u32 %v2628, %v2629
        %v2631 = vsel %vm2264, %v2625, %v2630
        %2632 = vrot.lane.b32.xlu0 %v2624, 96
        %v2633 = vpop.permute.xlu0 %2632
        %2634 = vrot.lane.b32.xlu0 %v2631, 96
        %v2635 = vpop.permute.xlu0 %2634
        %2638 = vst.msk [vmem:[#allocation3 + $0x30] sm:$0xf] %vm2286, %v2633
        %2639 = vst.msk [vmem:[#allocation3 + $0x38] sm:$0xf] %vm2286, %v2635
        %v2640 = vrot.slane %v2562, 6
        %v2641 = vrot.slane %v2640, 4
        %v2642 = vrot.slane %v2563, 6
        %v2643 = vsel %vm2291, %v2641, %v2642
        %v2644 = vrot.slane %v2642, 4
        %v2645 = vrot.slane %v2564, 6
        %v2646 = vsel %vm2291, %v2644, %v2645
        %2649 = vst.msk [vmem:[#allocation3 + $0x34] sm:$0xf] %vm2201, %v2643
        %2650 = vst.msk [vmem:[#allocation3 + $0x3c] sm:$0xf] %vm2201, %v2646
        %v2651 = vld [vmem:[#allocation2 + $0x140] sm:$0xff]
        %v2652 = vld [vmem:[#allocation2 + $0x148] sm:$0xff]
        %v2653 = vld [vmem:[#allocation2 + $0x150] sm:$0xf]
        %v2654 = vld [vmem:[#allocation2 + $0x154] sm:$0xff]
        %v2655 = vld [vmem:[#allocation2 + $0x15c] sm:$0xff]
        %v2656 = vld [vmem:[#allocation2 + $0x164] sm:$0xf]
        %v2657 = vmax.f32 %v2651, %v2654
        %v2658 = vmax.f32 %v2652, %v2655
        %v2659 = vmax.f32 %v2653, %v2656
        %v2660 = vld [vmem:[#allocation2 + $0x168] sm:$0xff]
        %v2661 = vld [vmem:[#allocation2 + $0x170] sm:$0xff]
        %v2662 = vld [vmem:[#allocation2 + $0x178] sm:$0xf]
        %v2663 = vld [vmem:[#allocation2 + $0x17c] sm:$0xff]
        %v2664 = vld [vmem:[#allocation2 + $0x184] sm:$0xff]
        %v2665 = vld [vmem:[#allocation2 + $0x18c] sm:$0xf]
        %v2666 = vmax.f32 %v2660, %v2663
        %v2667 = vmax.f32 %v2661, %v2664
        %v2668 = vmax.f32 %v2662, %v2665
        %v2669 = vmax.f32 %v2657, %v2666
        %v2670 = vmax.f32 %v2658, %v2667
        %v2671 = vmax.f32 %v2659, %v2668
        %v2672 = vadd.f32 %v2669, %v2190
        %v2673 = vadd.f32 %v2670, %v2190
        %v2674 = vadd.f32 %v2671, %v2190
        %v2675 = vmax.f32 %v2672, 0.0
        %v2676 = vmax.f32 %v2673, 0.0
        %v2677 = vmax.f32 %v2674, 0.0
        %v2678 = vpack.c.bf16 %v2675, %v2675
        %v2679 = vpack.c.bf16 %v2676, %v2676
        %v2680 = vpack.c.bf16 %v2677, %v2677
        %2681 = vst.msk [vmem:[#allocation3 + $0x40] sm:$0xf] %vm2201, %v2678
        %2682 = vst.msk [vmem:[#allocation3 + $0x48] sm:$0xf] %vm2201, %v2679
        %v2684 = vshrl.u32 %v2678, 16
        %v2686 = vrot.slane %v2684, 4
        %v2687 = vshll.u32 %v2678, 16
        %v2689 = vrot.slane %v2687, 5
        %v2690 = vor.u32 %v2686, %v2689
        %v2691 = vrot.slane %v2690, 4
        %v2693 = vshll.u32 %v2679, 16
        %v2695 = vrot.slane %v2693, 5
        %v2696 = vsel %vm2206, %v2691, %v2695
        %v2697 = vshrl.u32 %v2679, 16
        %v2699 = vrot.slane %v2697, 4
        %v2700 = vor.u32 %v2699, %v2695
        %v2701 = vrot.slane %v2700, 4
        %v2703 = vshll.u32 %v2680, 16
        %v2705 = vrot.slane %v2703, 5
        %v2706 = vsel %vm2206, %v2701, %v2705
        %2707 = vrot.lane.b32.xlu0 %v2696, 32
        %v2708 = vpop.permute.xlu0 %2707
        %2709 = vrot.lane.b32.xlu0 %v2706, 32
        %v2710 = vpop.permute.xlu0 %2709
        %2713 = vst.msk [vmem:[#allocation3 + $0x40] sm:$0xf] %vm2237, %v2708
        %2714 = vst.msk [vmem:[#allocation3 + $0x48] sm:$0xf] %vm2237, %v2710
        %v2718 = vrot.slane %v2678, 5
        %v2719 = vrot.slane %v2718, 4
        %v2720 = vrot.slane %v2679, 5
        %v2721 = vsel %vm2245, %v2719, %v2720
        %v2722 = vrot.slane %v2720, 4
        %v2723 = vrot.slane %v2680, 5
        %v2724 = vsel %vm2245, %v2722, %v2723
        %2725 = vrot.lane.b32.xlu0 %v2721, 64
        %v2726 = vpop.permute.xlu0 %2725
        %2727 = vrot.lane.b32.xlu0 %v2724, 64
        %v2728 = vpop.permute.xlu0 %2727
        %2731 = vst.msk [vmem:[#allocation3 + $0x40] sm:$0xf] %vm2259, %v2726
        %2732 = vst.msk [vmem:[#allocation3 + $0x48] sm:$0xf] %vm2259, %v2728
        %v2733 = vrot.slane %v2684, 5
        %v2734 = vrot.slane %v2687, 6
        %v2735 = vor.u32 %v2733, %v2734
        %v2736 = vrot.slane %v2735, 4
        %v2737 = vrot.slane %v2697, 5
        %v2738 = vrot.slane %v2693, 6
        %v2739 = vor.u32 %v2737, %v2738
        %v2740 = vsel %vm2264, %v2736, %v2739
        %v2741 = vrot.slane %v2739, 4
        %v2742 = vshrl.u32 %v2680, 16
        %v2744 = vrot.slane %v2742, 5
        %v2745 = vrot.slane %v2703, 6
        %v2746 = vor.u32 %v2744, %v2745
        %v2747 = vsel %vm2264, %v2741, %v2746
        %2748 = vrot.lane.b32.xlu0 %v2740, 96
        %v2749 = vpop.permute.xlu0 %2748
        %2750 = vrot.lane.b32.xlu0 %v2747, 96
        %v2751 = vpop.permute.xlu0 %2750
        %2754 = vst.msk [vmem:[#allocation3 + $0x40] sm:$0xf] %vm2286, %v2749
        %2755 = vst.msk [vmem:[#allocation3 + $0x48] sm:$0xf] %vm2286, %v2751
        %v2756 = vrot.slane %v2678, 6
        %v2757 = vrot.slane %v2756, 4
        %v2758 = vrot.slane %v2679, 6
        %v2759 = vsel %vm2291, %v2757, %v2758
        %v2760 = vrot.slane %v2758, 4
        %v2761 = vrot.slane %v2680, 6
        %v2762 = vsel %vm2291, %v2760, %v2761
        %2765 = vst.msk [vmem:[#allocation3 + $0x44] sm:$0xf] %vm2201, %v2759
        %2766 = vst.msk [vmem:[#allocation3 + $0x4c] sm:$0xf] %vm2201, %v2762
        %v2767 = vld [vmem:[#allocation2 + $0x190] sm:$0xff]
        %v2768 = vld [vmem:[#allocation2 + $0x198] sm:$0xff]
        %v2769 = vld [vmem:[#allocation2 + $0x1a0] sm:$0xf]
        %v2770 = vld [vmem:[#allocation2 + $0x1a4] sm:$0xff]
        %v2771 = vld [vmem:[#allocation2 + $0x1ac] sm:$0xff]
        %v2772 = vld [vmem:[#allocation2 + $0x1b4] sm:$0xf]
        %v2773 = vmax.f32 %v2767, %v2770
        %v2774 = vmax.f32 %v2768, %v2771
        %v2775 = vmax.f32 %v2769, %v2772
        %v2776 = vld [vmem:[#allocation2 + $0x1b8] sm:$0xff]
        %v2777 = vld [vmem:[#allocation2 + $0x1c0] sm:$0xff]
        %v2778 = vld [vmem:[#allocation2 + $0x1c8] sm:$0xf]
        %v2779 = vld [vmem:[#allocation2 + $0x1cc] sm:$0xff]
        %v2780 = vld [vmem:[#allocation2 + $0x1d4] sm:$0xff]
        %v2781 = vld [vmem:[#allocation2 + $0x1dc] sm:$0xf]
        %v2782 = vmax.f32 %v2776, %v2779
        %v2783 = vmax.f32 %v2777, %v2780
        %v2784 = vmax.f32 %v2778, %v2781
        %v2785 = vmax.f32 %v2773, %v2782
        %v2786 = vmax.f32 %v2774, %v2783
        %v2787 = vmax.f32 %v2775, %v2784
        %v2788 = vadd.f32 %v2785, %v2190
        %v2789 = vadd.f32 %v2786, %v2190
        %v2790 = vadd.f32 %v2787, %v2190
        %v2791 = vmax.f32 %v2788, 0.0
        %v2792 = vmax.f32 %v2789, 0.0
        %v2793 = vmax.f32 %v2790, 0.0
        %v2794 = vpack.c.bf16 %v2791, %v2791
        %v2795 = vpack.c.bf16 %v2792, %v2792
        %v2796 = vpack.c.bf16 %v2793, %v2793
        %2797 = vst.msk [vmem:[#allocation3 + $0x50] sm:$0xf] %vm2201, %v2794
        %2798 = vst.msk [vmem:[#allocation3 + $0x58] sm:$0xf] %vm2201, %v2795
        %v2800 = vshrl.u32 %v2794, 16
        %v2802 = vrot.slane %v2800, 4
        %v2803 = vshll.u32 %v2794, 16
        %v2805 = vrot.slane %v2803, 5
        %v2806 = vor.u32 %v2802, %v2805
        %v2807 = vrot.slane %v2806, 4
        %v2809 = vshll.u32 %v2795, 16
        %v2811 = vrot.slane %v2809, 5
        %v2812 = vsel %vm2206, %v2807, %v2811
        %v2813 = vshrl.u32 %v2795, 16
        %v2815 = vrot.slane %v2813, 4
        %v2816 = vor.u32 %v2815, %v2811
        %v2817 = vrot.slane %v2816, 4
        %v2819 = vshll.u32 %v2796, 16
        %v2821 = vrot.slane %v2819, 5
        %v2822 = vsel %vm2206, %v2817, %v2821
        %2823 = vrot.lane.b32.xlu0 %v2812, 32
        %v2824 = vpop.permute.xlu0 %2823
        %2825 = vrot.lane.b32.xlu0 %v2822, 32
        %v2826 = vpop.permute.xlu0 %2825
        %2829 = vst.msk [vmem:[#allocation3 + $0x50] sm:$0xf] %vm2237, %v2824
        %2830 = vst.msk [vmem:[#allocation3 + $0x58] sm:$0xf] %vm2237, %v2826
        %v2834 = vrot.slane %v2794, 5
        %v2835 = vrot.slane %v2834, 4
        %v2836 = vrot.slane %v2795, 5
        %v2837 = vsel %vm2245, %v2835, %v2836
        %v2838 = vrot.slane %v2836, 4
        %v2839 = vrot.slane %v2796, 5
        %v2840 = vsel %vm2245, %v2838, %v2839
        %2841 = vrot.lane.b32.xlu0 %v2837, 64
        %v2842 = vpop.permute.xlu0 %2841
        %2843 = vrot.lane.b32.xlu0 %v2840, 64
        %v2844 = vpop.permute.xlu0 %2843
        %2847 = vst.msk [vmem:[#allocation3 + $0x50] sm:$0xf] %vm2259, %v2842
        %2848 = vst.msk [vmem:[#allocation3 + $0x58] sm:$0xf] %vm2259, %v2844
        %v2849 = vrot.slane %v2800, 5
        %v2850 = vrot.slane %v2803, 6
        %v2851 = vor.u32 %v2849, %v2850
        %v2852 = vrot.slane %v2851, 4
        %v2853 = vrot.slane %v2813, 5
        %v2854 = vrot.slane %v2809, 6
        %v2855 = vor.u32 %v2853, %v2854
        %v2856 = vsel %vm2264, %v2852, %v2855
        %v2857 = vrot.slane %v2855, 4
        %v2858 = vshrl.u32 %v2796, 16
        %v2860 = vrot.slane %v2858, 5
        %v2861 = vrot.slane %v2819, 6
        %v2862 = vor.u32 %v2860, %v2861
        %v2863 = vsel %vm2264, %v2857, %v2862
        %2864 = vrot.lane.b32.xlu0 %v2856, 96
        %v2865 = vpop.permute.xlu0 %2864
        %2866 = vrot.lane.b32.xlu0 %v2863, 96
        %v2867 = vpop.permute.xlu0 %2866
        %2870 = vst.msk [vmem:[#allocation3 + $0x50] sm:$0xf] %vm2286, %v2865
        %2871 = vst.msk [vmem:[#allocation3 + $0x58] sm:$0xf] %vm2286, %v2867
        %v2872 = vrot.slane %v2794, 6
        %v2873 = vrot.slane %v2872, 4
        %v2874 = vrot.slane %v2795, 6
        %v2875 = vsel %vm2291, %v2873, %v2874
        %v2876 = vrot.slane %v2874, 4
        %v2877 = vrot.slane %v2796, 6
        %v2878 = vsel %vm2291, %v2876, %v2877
        %2881 = vst.msk [vmem:[#allocation3 + $0x54] sm:$0xf] %vm2201, %v2875
        %2882 = vst.msk [vmem:[#allocation3 + $0x5c] sm:$0xf] %vm2201, %v2878
        %v2883 = vld [vmem:[#allocation2 + $0x1e0] sm:$0xff]
        %v2884 = vld [vmem:[#allocation2 + $0x1e8] sm:$0xff]
        %v2885 = vld [vmem:[#allocation2 + $0x1f0] sm:$0xf]
        %v2886 = vld [vmem:[#allocation2 + $0x1f4] sm:$0xff]
        %v2887 = vld [vmem:[#allocation2 + $0x1fc] sm:$0xff]
        %v2888 = vld [vmem:[#allocation2 + $0x204] sm:$0xf]
        %v2889 = vmax.f32 %v2883, %v2886
        %v2890 = vmax.f32 %v2884, %v2887
        %v2891 = vmax.f32 %v2885, %v2888
        %v2892 = vld [vmem:[#allocation2 + $0x208] sm:$0xff]
        %v2893 = vld [vmem:[#allocation2 + $0x210] sm:$0xff]
        %v2894 = vld [vmem:[#allocation2 + $0x218] sm:$0xf]
        %v2895 = vld [vmem:[#allocation2 + $0x21c] sm:$0xff]
        %v2896 = vld [vmem:[#allocation2 + $0x224] sm:$0xff]
        %v2897 = vld [vmem:[#allocation2 + $0x22c] sm:$0xf]
        %v2898 = vmax.f32 %v2892, %v2895
        %v2899 = vmax.f32 %v2893, %v2896
        %v2900 = vmax.f32 %v2894, %v2897
        %v2901 = vmax.f32 %v2889, %v2898
        %v2902 = vmax.f32 %v2890, %v2899
        %v2903 = vmax.f32 %v2891, %v2900
        %v2904 = vadd.f32 %v2901, %v2190
        %v2905 = vadd.f32 %v2902, %v2190
        %v2906 = vadd.f32 %v2903, %v2190
        %v2907 = vmax.f32 %v2904, 0.0
        %v2908 = vmax.f32 %v2905, 0.0
        %v2909 = vmax.f32 %v2906, 0.0
        %v2910 = vpack.c.bf16 %v2907, %v2907
        %v2911 = vpack.c.bf16 %v2908, %v2908
        %v2912 = vpack.c.bf16 %v2909, %v2909
        %2913 = vst.msk [vmem:[#allocation3 + $0x60] sm:$0xf] %vm2201, %v2910
        %2914 = vst.msk [vmem:[#allocation3 + $0x68] sm:$0xf] %vm2201, %v2911
        %v2916 = vshrl.u32 %v2910, 16
        %v2918 = vrot.slane %v2916, 4
        %v2919 = vshll.u32 %v2910, 16
        %v2921 = vrot.slane %v2919, 5
        %v2922 = vor.u32 %v2918, %v2921
        %v2923 = vrot.slane %v2922, 4
        %v2925 = vshll.u32 %v2911, 16
        %v2927 = vrot.slane %v2925, 5
        %v2928 = vsel %vm2206, %v2923, %v2927
        %v2929 = vshrl.u32 %v2911, 16
        %v2931 = vrot.slane %v2929, 4
        %v2932 = vor.u32 %v2931, %v2927
        %v2933 = vrot.slane %v2932, 4
        %v2935 = vshll.u32 %v2912, 16
        %v2937 = vrot.slane %v2935, 5
        %v2938 = vsel %vm2206, %v2933, %v2937
        %2939 = vrot.lane.b32.xlu0 %v2928, 32
        %v2940 = vpop.permute.xlu0 %2939
        %2941 = vrot.lane.b32.xlu0 %v2938, 32
        %v2942 = vpop.permute.xlu0 %2941
        %2945 = vst.msk [vmem:[#allocation3 + $0x60] sm:$0xf] %vm2237, %v2940
        %2946 = vst.msk [vmem:[#allocation3 + $0x68] sm:$0xf] %vm2237, %v2942
        %v2950 = vrot.slane %v2910, 5
        %v2951 = vrot.slane %v2950, 4
        %v2952 = vrot.slane %v2911, 5
        %v2953 = vsel %vm2245, %v2951, %v2952
        %v2954 = vrot.slane %v2952, 4
        %v2955 = vrot.slane %v2912, 5
        %v2956 = vsel %vm2245, %v2954, %v2955
        %2957 = vrot.lane.b32.xlu0 %v2953, 64
        %v2958 = vpop.permute.xlu0 %2957
        %2959 = vrot.lane.b32.xlu0 %v2956, 64
        %v2960 = vpop.permute.xlu0 %2959
        %2963 = vst.msk [vmem:[#allocation3 + $0x60] sm:$0xf] %vm2259, %v2958
        %2964 = vst.msk [vmem:[#allocation3 + $0x68] sm:$0xf] %vm2259, %v2960
        %v2965 = vrot.slane %v2916, 5
        %v2966 = vrot.slane %v2919, 6
        %v2967 = vor.u32 %v2965, %v2966
        %v2968 = vrot.slane %v2967, 4
        %v2969 = vrot.slane %v2929, 5
        %v2970 = vrot.slane %v2925, 6
        %v2971 = vor.u32 %v2969, %v2970
        %v2972 = vsel %vm2264, %v2968, %v2971
        %v2973 = vrot.slane %v2971, 4
        %v2974 = vshrl.u32 %v2912, 16
        %v2976 = vrot.slane %v2974, 5
        %v2977 = vrot.slane %v2935, 6
        %v2978 = vor.u32 %v2976, %v2977
        %v2979 = vsel %vm2264, %v2973, %v2978
        %2980 = vrot.lane.b32.xlu0 %v2972, 96
        %v2981 = vpop.permute.xlu0 %2980
        %2982 = vrot.lane.b32.xlu0 %v2979, 96
        %v2983 = vpop.permute.xlu0 %2982
        %2986 = vst.msk [vmem:[#allocation3 + $0x60] sm:$0xf] %vm2286, %v2981
        %2987 = vst.msk [vmem:[#allocation3 + $0x68] sm:$0xf] %vm2286, %v2983
        %v2988 = vrot.slane %v2910, 6
        %v2989 = vrot.slane %v2988, 4
        %v2990 = vrot.slane %v2911, 6
        %v2991 = vsel %vm2291, %v2989, %v2990
        %v2992 = vrot.slane %v2990, 4
        %v2993 = vrot.slane %v2912, 6
        %v2994 = vsel %vm2291, %v2992, %v2993
        %2997 = vst.msk [vmem:[#allocation3 + $0x64] sm:$0xf] %vm2201, %v2991
        %2998 = vst.msk [vmem:[#allocation3 + $0x6c] sm:$0xf] %vm2201, %v2994
        %v2999 = vld [vmem:[#allocation2 + $0x230] sm:$0xff]
        %v3000 = vld [vmem:[#allocation2 + $0x238] sm:$0xff]
        %v3001 = vld [vmem:[#allocation2 + $0x240] sm:$0xf]
        %v3002 = vld [vmem:[#allocation2 + $0x244] sm:$0xff]
        %v3003 = vld [vmem:[#allocation2 + $0x24c] sm:$0xff]
        %v3004 = vld [vmem:[#allocation2 + $0x254] sm:$0xf]
        %v3005 = vmax.f32 %v2999, %v3002
        %v3006 = vmax.f32 %v3000, %v3003
        %v3007 = vmax.f32 %v3001, %v3004
        %v3008 = vld [vmem:[#allocation2 + $0x258] sm:$0xff]
        %v3009 = vld [vmem:[#allocation2 + $0x260] sm:$0xff]
        %v3010 = vld [vmem:[#allocation2 + $0x268] sm:$0xf]
        %v3011 = vld [vmem:[#allocation2 + $0x26c] sm:$0xff]
        %v3012 = vld [vmem:[#allocation2 + $0x274] sm:$0xff]
        %v3013 = vld [vmem:[#allocation2 + $0x27c] sm:$0xf]
        %v3014 = vmax.f32 %v3008, %v3011
        %v3015 = vmax.f32 %v3009, %v3012
        %v3016 = vmax.f32 %v3010, %v3013
        %v3017 = vmax.f32 %v3005, %v3014
        %v3018 = vmax.f32 %v3006, %v3015
        %v3019 = vmax.f32 %v3007, %v3016
        %v3020 = vadd.f32 %v3017, %v2190
        %v3021 = vadd.f32 %v3018, %v2190
        %v3022 = vadd.f32 %v3019, %v2190
        %v3023 = vmax.f32 %v3020, 0.0
        %v3024 = vmax.f32 %v3021, 0.0
        %v3025 = vmax.f32 %v3022, 0.0
        %v3026 = vpack.c.bf16 %v3023, %v3023
        %v3027 = vpack.c.bf16 %v3024, %v3024
        %v3028 = vpack.c.bf16 %v3025, %v3025
        %3029 = vst.msk [vmem:[#allocation3 + $0x70] sm:$0xf] %vm2201, %v3026
        %3030 = vst.msk [vmem:[#allocation3 + $0x78] sm:$0xf] %vm2201, %v3027
        %v3032 = vshrl.u32 %v3026, 16
        %v3034 = vrot.slane %v3032, 4
        %v3035 = vshll.u32 %v3026, 16
        %v3037 = vrot.slane %v3035, 5
        %v3038 = vor.u32 %v3034, %v3037
        %v3039 = vrot.slane %v3038, 4
        %v3041 = vshll.u32 %v3027, 16
        %v3043 = vrot.slane %v3041, 5
        %v3044 = vsel %vm2206, %v3039, %v3043
        %v3045 = vshrl.u32 %v3027, 16
        %v3047 = vrot.slane %v3045, 4
        %v3048 = vor.u32 %v3047, %v3043
        %v3049 = vrot.slane %v3048, 4
        %v3051 = vshll.u32 %v3028, 16
        %v3053 = vrot.slane %v3051, 5
        %v3054 = vsel %vm2206, %v3049, %v3053
        %3055 = vrot.lane.b32.xlu0 %v3044, 32
        %v3056 = vpop.permute.xlu0 %3055
        %3057 = vrot.lane.b32.xlu0 %v3054, 32
        %v3058 = vpop.permute.xlu0 %3057
        %3061 = vst.msk [vmem:[#allocation3 + $0x70] sm:$0xf] %vm2237, %v3056
        %3062 = vst.msk [vmem:[#allocation3 + $0x78] sm:$0xf] %vm2237, %v3058
        %v3066 = vrot.slane %v3026, 5
        %v3067 = vrot.slane %v3066, 4
        %v3068 = vrot.slane %v3027, 5
        %v3069 = vsel %vm2245, %v3067, %v3068
        %v3070 = vrot.slane %v3068, 4
        %v3071 = vrot.slane %v3028, 5
        %v3072 = vsel %vm2245, %v3070, %v3071
        %3073 = vrot.lane.b32.xlu0 %v3069, 64
        %v3074 = vpop.permute.xlu0 %3073
        %3075 = vrot.lane.b32.xlu0 %v3072, 64
        %v3076 = vpop.permute.xlu0 %3075
        %3079 = vst.msk [vmem:[#allocation3 + $0x70] sm:$0xf] %vm2259, %v3074
        %3080 = vst.msk [vmem:[#allocation3 + $0x78] sm:$0xf] %vm2259, %v3076
        %v3081 = vrot.slane %v3032, 5
        %v3082 = vrot.slane %v3035, 6
        %v3083 = vor.u32 %v3081, %v3082
        %v3084 = vrot.slane %v3083, 4
        %v3085 = vrot.slane %v3045, 5
        %v3086 = vrot.slane %v3041, 6
        %v3087 = vor.u32 %v3085, %v3086
        %v3088 = vsel %vm2264, %v3084, %v3087
        %v3089 = vrot.slane %v3087, 4
        %v3090 = vshrl.u32 %v3028, 16
        %v3092 = vrot.slane %v3090, 5
        %v3093 = vrot.slane %v3051, 6
        %v3094 = vor.u32 %v3092, %v3093
        %v3095 = vsel %vm2264, %v3089, %v3094
        %3096 = vrot.lane.b32.xlu0 %v3088, 96
        %v3097 = vpop.permute.xlu0 %3096
        %3098 = vrot.lane.b32.xlu0 %v3095, 96
        %v3099 = vpop.permute.xlu0 %3098
        %3102 = vst.msk [vmem:[#allocation3 + $0x70] sm:$0xf] %vm2286, %v3097
        %3103 = vst.msk [vmem:[#allocation3 + $0x78] sm:$0xf] %vm2286, %v3099
        %v3104 = vrot.slane %v3026, 6
        %v3105 = vrot.slane %v3104, 4
        %v3106 = vrot.slane %v3027, 6
        %v3107 = vsel %vm2291, %v3105, %v3106
        %v3108 = vrot.slane %v3106, 4
        %v3109 = vrot.slane %v3028, 6
        %v3110 = vsel %vm2291, %v3108, %v3109
        %3113 = vst.msk [vmem:[#allocation3 + $0x74] sm:$0xf] %vm2201, %v3107
        %3114 = vst.msk [vmem:[#allocation3 + $0x7c] sm:$0xf] %vm2201, %v3110
        %v3115 = vld [vmem:[#allocation2 + $0x280] sm:$0xff]
        %v3116 = vld [vmem:[#allocation2 + $0x288] sm:$0xff]
        %v3117 = vld [vmem:[#allocation2 + $0x290] sm:$0xf]
        %v3118 = vld [vmem:[#allocation2 + $0x294] sm:$0xff]
        %v3119 = vld [vmem:[#allocation2 + $0x29c] sm:$0xff]
        %v3120 = vld [vmem:[#allocation2 + $0x2a4] sm:$0xf]
        %v3121 = vmax.f32 %v3115, %v3118
        %v3122 = vmax.f32 %v3116, %v3119
        %v3123 = vmax.f32 %v3117, %v3120
        %v3124 = vld [vmem:[#allocation2 + $0x2a8] sm:$0xff]
        %v3125 = vld [vmem:[#allocation2 + $0x2b0] sm:$0xff]
        %v3126 = vld [vmem:[#allocation2 + $0x2b8] sm:$0xf]
        %v3127 = vld [vmem:[#allocation2 + $0x2bc] sm:$0xff]
        %v3128 = vld [vmem:[#allocation2 + $0x2c4] sm:$0xff]
        %v3129 = vld [vmem:[#allocation2 + $0x2cc] sm:$0xf]
        %v3130 = vmax.f32 %v3124, %v3127
        %v3131 = vmax.f32 %v3125, %v3128
        %v3132 = vmax.f32 %v3126, %v3129
        %v3133 = vmax.f32 %v3121, %v3130
        %v3134 = vmax.f32 %v3122, %v3131
        %v3135 = vmax.f32 %v3123, %v3132
        %v3136 = vadd.f32 %v3133, %v2190
        %v3137 = vadd.f32 %v3134, %v2190
        %v3138 = vadd.f32 %v3135, %v2190
        %v3139 = vmax.f32 %v3136, 0.0
        %v3140 = vmax.f32 %v3137, 0.0
        %v3141 = vmax.f32 %v3138, 0.0
        %v3142 = vpack.c.bf16 %v3139, %v3139
        %v3143 = vpack.c.bf16 %v3140, %v3140
        %v3144 = vpack.c.bf16 %v3141, %v3141
        %3145 = vst.msk [vmem:[#allocation3 + $0x80] sm:$0xf] %vm2201, %v3142
        %3146 = vst.msk [vmem:[#allocation3 + $0x88] sm:$0xf] %vm2201, %v3143
        %v3148 = vshrl.u32 %v3142, 16
        %v3150 = vrot.slane %v3148, 4
        %v3151 = vshll.u32 %v3142, 16
        %v3153 = vrot.slane %v3151, 5
        %v3154 = vor.u32 %v3150, %v3153
        %v3155 = vrot.slane %v3154, 4
        %v3157 = vshll.u32 %v3143, 16
        %v3159 = vrot.slane %v3157, 5
        %v3160 = vsel %vm2206, %v3155, %v3159
        %v3161 = vshrl.u32 %v3143, 16
        %v3163 = vrot.slane %v3161, 4
        %v3164 = vor.u32 %v3163, %v3159
        %v3165 = vrot.slane %v3164, 4
        %v3167 = vshll.u32 %v3144, 16
        %v3169 = vrot.slane %v3167, 5
        %v3170 = vsel %vm2206, %v3165, %v3169
        %3171 = vrot.lane.b32.xlu0 %v3160, 32
        %v3172 = vpop.permute.xlu0 %3171
        %3173 = vrot.lane.b32.xlu0 %v3170, 32
        %v3174 = vpop.permute.xlu0 %3173
        %3177 = vst.msk [vmem:[#allocation3 + $0x80] sm:$0xf] %vm2237, %v3172
        %3178 = vst.msk [vmem:[#allocation3 + $0x88] sm:$0xf] %vm2237, %v3174
        %v3182 = vrot.slane %v3142, 5
        %v3183 = vrot.slane %v3182, 4
        %v3184 = vrot.slane %v3143, 5
        %v3185 = vsel %vm2245, %v3183, %v3184
        %v3186 = vrot.slane %v3184, 4
        %v3187 = vrot.slane %v3144, 5
        %v3188 = vsel %vm2245, %v3186, %v3187
        %3189 = vrot.lane.b32.xlu0 %v3185, 64
        %v3190 = vpop.permute.xlu0 %3189
        %3191 = vrot.lane.b32.xlu0 %v3188, 64
        %v3192 = vpop.permute.xlu0 %3191
        %3195 = vst.msk [vmem:[#allocation3 + $0x80] sm:$0xf] %vm2259, %v3190
        %3196 = vst.msk [vmem:[#allocation3 + $0x88] sm:$0xf] %vm2259, %v3192
        %v3197 = vrot.slane %v3148, 5
        %v3198 = vrot.slane %v3151, 6
        %v3199 = vor.u32 %v3197, %v3198
        %v3200 = vrot.slane %v3199, 4
        %v3201 = vrot.slane %v3161, 5
        %v3202 = vrot.slane %v3157, 6
        %v3203 = vor.u32 %v3201, %v3202
        %v3204 = vsel %vm2264, %v3200, %v3203
        %v3205 = vrot.slane %v3203, 4
        %v3206 = vshrl.u32 %v3144, 16
        %v3208 = vrot.slane %v3206, 5
        %v3209 = vrot.slane %v3167, 6
        %v3210 = vor.u32 %v3208, %v3209
        %v3211 = vsel %vm2264, %v3205, %v3210
        %3212 = vrot.lane.b32.xlu0 %v3204, 96
        %v3213 = vpop.permute.xlu0 %3212
        %3214 = vrot.lane.b32.xlu0 %v3211, 96
        %v3215 = vpop.permute.xlu0 %3214
        %3218 = vst.msk [vmem:[#allocation3 + $0x80] sm:$0xf] %vm2286, %v3213
        %3219 = vst.msk [vmem:[#allocation3 + $0x88] sm:$0xf] %vm2286, %v3215
        %v3220 = vrot.slane %v3142, 6
        %v3221 = vrot.slane %v3220, 4
        %v3222 = vrot.slane %v3143, 6
        %v3223 = vsel %vm2291, %v3221, %v3222
        %v3224 = vrot.slane %v3222, 4
        %v3225 = vrot.slane %v3144, 6
        %v3226 = vsel %vm2291, %v3224, %v3225
        %3229 = vst.msk [vmem:[#allocation3 + $0x84] sm:$0xf] %vm2201, %v3223
        %3230 = vst.msk [vmem:[#allocation3 + $0x8c] sm:$0xf] %vm2201, %v3226
        %v3231 = vld [vmem:[#allocation2 + $0x2d0] sm:$0xff]
        %v3232 = vld [vmem:[#allocation2 + $0x2d8] sm:$0xff]
        %v3233 = vld [vmem:[#allocation2 + $0x2e0] sm:$0xf]
        %v3234 = vld [vmem:[#allocation2 + $0x2e4] sm:$0xff]
        %v3235 = vld [vmem:[#allocation2 + $0x2ec] sm:$0xff]
        %v3236 = vld [vmem:[#allocation2 + $0x2f4] sm:$0xf]
        %v3237 = vmax.f32 %v3231, %v3234
        %v3238 = vmax.f32 %v3232, %v3235
        %v3239 = vmax.f32 %v3233, %v3236
        %v3240 = vld [vmem:[#allocation2 + $0x2f8] sm:$0xff]
        %v3241 = vld [vmem:[#allocation2 + $0x300] sm:$0xff]
        %v3242 = vld [vmem:[#allocation2 + $0x308] sm:$0xf]
        %v3243 = vld [vmem:[#allocation2 + $0x30c] sm:$0xff]
        %v3244 = vld [vmem:[#allocation2 + $0x314] sm:$0xff]
        %v3245 = vld [vmem:[#allocation2 + $0x31c] sm:$0xf]
        %v3246 = vmax.f32 %v3240, %v3243
        %v3247 = vmax.f32 %v3241, %v3244
        %v3248 = vmax.f32 %v3242, %v3245
        %v3249 = vmax.f32 %v3237, %v3246
        %v3250 = vmax.f32 %v3238, %v3247
        %v3251 = vmax.f32 %v3239, %v3248
        %v3252 = vadd.f32 %v3249, %v2190
        %v3253 = vadd.f32 %v3250, %v2190
        %v3254 = vadd.f32 %v3251, %v2190
        %v3255 = vmax.f32 %v3252, 0.0
        %v3256 = vmax.f32 %v3253, 0.0
        %v3257 = vmax.f32 %v3254, 0.0
        %v3258 = vpack.c.bf16 %v3255, %v3255
        %v3259 = vpack.c.bf16 %v3256, %v3256
        %v3260 = vpack.c.bf16 %v3257, %v3257
        %3261 = vst.msk [vmem:[#allocation3 + $0x90] sm:$0xf] %vm2201, %v3258
        %3262 = vst.msk [vmem:[#allocation3 + $0x98] sm:$0xf] %vm2201, %v3259
        %v3264 = vshrl.u32 %v3258, 16
        %v3266 = vrot.slane %v3264, 4
        %v3267 = vshll.u32 %v3258, 16
        %v3269 = vrot.slane %v3267, 5
        %v3270 = vor.u32 %v3266, %v3269
        %v3271 = vrot.slane %v3270, 4
        %v3273 = vshll.u32 %v3259, 16
        %v3275 = vrot.slane %v3273, 5
        %v3276 = vsel %vm2206, %v3271, %v3275
        %v3277 = vshrl.u32 %v3259, 16
        %v3279 = vrot.slane %v3277, 4
        %v3280 = vor.u32 %v3279, %v3275
        %v3281 = vrot.slane %v3280, 4
        %v3283 = vshll.u32 %v3260, 16
        %v3285 = vrot.slane %v3283, 5
        %v3286 = vsel %vm2206, %v3281, %v3285
        %3287 = vrot.lane.b32.xlu0 %v3276, 32
        %v3288 = vpop.permute.xlu0 %3287
        %3289 = vrot.lane.b32.xlu0 %v3286, 32
        %v3290 = vpop.permute.xlu0 %3289
        %3293 = vst.msk [vmem:[#allocation3 + $0x90] sm:$0xf] %vm2237, %v3288
        %3294 = vst.msk [vmem:[#allocation3 + $0x98] sm:$0xf] %vm2237, %v3290
        %v3298 = vrot.slane %v3258, 5
        %v3299 = vrot.slane %v3298, 4
        %v3300 = vrot.slane %v3259, 5
        %v3301 = vsel %vm2245, %v3299, %v3300
        %v3302 = vrot.slane %v3300, 4
        %v3303 = vrot.slane %v3260, 5
        %v3304 = vsel %vm2245, %v3302, %v3303
        %3305 = vrot.lane.b32.xlu0 %v3301, 64
        %v3306 = vpop.permute.xlu0 %3305
        %3307 = vrot.lane.b32.xlu0 %v3304, 64
        %v3308 = vpop.permute.xlu0 %3307
        %3311 = vst.msk [vmem:[#allocation3 + $0x90] sm:$0xf] %vm2259, %v3306
        %3312 = vst.msk [vmem:[#allocation3 + $0x98] sm:$0xf] %vm2259, %v3308
        %v3313 = vrot.slane %v3264, 5
        %v3314 = vrot.slane %v3267, 6
        %v3315 = vor.u32 %v3313, %v3314
        %v3316 = vrot.slane %v3315, 4
        %v3317 = vrot.slane %v3277, 5
        %v3318 = vrot.slane %v3273, 6
        %v3319 = vor.u32 %v3317, %v3318
        %v3320 = vsel %vm2264, %v3316, %v3319
        %v3321 = vrot.slane %v3319, 4
        %v3322 = vshrl.u32 %v3260, 16
        %v3324 = vrot.slane %v3322, 5
        %v3325 = vrot.slane %v3283, 6
        %v3326 = vor.u32 %v3324, %v3325
        %v3327 = vsel %vm2264, %v3321, %v3326
        %3328 = vrot.lane.b32.xlu0 %v3320, 96
        %v3329 = vpop.permute.xlu0 %3328
        %3330 = vrot.lane.b32.xlu0 %v3327, 96
        %v3331 = vpop.permute.xlu0 %3330
        %3334 = vst.msk [vmem:[#allocation3 + $0x90] sm:$0xf] %vm2286, %v3329
        %3335 = vst.msk [vmem:[#allocation3 + $0x98] sm:$0xf] %vm2286, %v3331
        %v3336 = vrot.slane %v3258, 6
        %v3337 = vrot.slane %v3336, 4
        %v3338 = vrot.slane %v3259, 6
        %v3339 = vsel %vm2291, %v3337, %v3338
        %v3340 = vrot.slane %v3338, 4
        %v3341 = vrot.slane %v3260, 6
        %v3342 = vsel %vm2291, %v3340, %v3341
        %3345 = vst.msk [vmem:[#allocation3 + $0x94] sm:$0xf] %vm2201, %v3339
        %3346 = vst.msk [vmem:[#allocation3 + $0x9c] sm:$0xf] %vm2201, %v3342
        %v3347 = vld [vmem:[#allocation2 + $0x320] sm:$0xff]
        %v3348 = vld [vmem:[#allocation2 + $0x328] sm:$0xff]
        %v3349 = vld [vmem:[#allocation2 + $0x330] sm:$0xf]
        %v3350 = vld [vmem:[#allocation2 + $0x334] sm:$0xff]
        %v3351 = vld [vmem:[#allocation2 + $0x33c] sm:$0xff]
        %v3352 = vld [vmem:[#allocation2 + $0x344] sm:$0xf]
        %v3353 = vmax.f32 %v3347, %v3350
        %v3354 = vmax.f32 %v3348, %v3351
        %v3355 = vmax.f32 %v3349, %v3352
        %v3356 = vld [vmem:[#allocation2 + $0x348] sm:$0xff]
        %v3357 = vld [vmem:[#allocation2 + $0x350] sm:$0xff]
        %v3358 = vld [vmem:[#allocation2 + $0x358] sm:$0xf]
        %v3359 = vld [vmem:[#allocation2 + $0x35c] sm:$0xff]
        %v3360 = vld [vmem:[#allocation2 + $0x364] sm:$0xff]
        %v3361 = vld [vmem:[#allocation2 + $0x36c] sm:$0xf]
        %v3362 = vmax.f32 %v3356, %v3359
        %v3363 = vmax.f32 %v3357, %v3360
        %v3364 = vmax.f32 %v3358, %v3361
        %v3365 = vmax.f32 %v3353, %v3362
        %v3366 = vmax.f32 %v3354, %v3363
        %v3367 = vmax.f32 %v3355, %v3364
        %v3368 = vadd.f32 %v3365, %v2190
        %v3369 = vadd.f32 %v3366, %v2190
        %v3370 = vadd.f32 %v3367, %v2190
        %v3371 = vmax.f32 %v3368, 0.0
        %v3372 = vmax.f32 %v3369, 0.0
        %v3373 = vmax.f32 %v3370, 0.0
        %v3374 = vpack.c.bf16 %v3371, %v3371
        %v3375 = vpack.c.bf16 %v3372, %v3372
        %v3376 = vpack.c.bf16 %v3373, %v3373
        %3377 = vst.msk [vmem:[#allocation3 + $0xa0] sm:$0xf] %vm2201, %v3374
        %3378 = vst.msk [vmem:[#allocation3 + $0xa8] sm:$0xf] %vm2201, %v3375
        %v3380 = vshrl.u32 %v3374, 16
        %v3382 = vrot.slane %v3380, 4
        %v3383 = vshll.u32 %v3374, 16
        %v3385 = vrot.slane %v3383, 5
        %v3386 = vor.u32 %v3382, %v3385
        %v3387 = vrot.slane %v3386, 4
        %v3389 = vshll.u32 %v3375, 16
        %v3391 = vrot.slane %v3389, 5
        %v3392 = vsel %vm2206, %v3387, %v3391
        %v3393 = vshrl.u32 %v3375, 16
        %v3395 = vrot.slane %v3393, 4
        %v3396 = vor.u32 %v3395, %v3391
        %v3397 = vrot.slane %v3396, 4
        %v3399 = vshll.u32 %v3376, 16
        %v3401 = vrot.slane %v3399, 5
        %v3402 = vsel %vm2206, %v3397, %v3401
        %3403 = vrot.lane.b32.xlu0 %v3392, 32
        %v3404 = vpop.permute.xlu0 %3403
        %3405 = vrot.lane.b32.xlu0 %v3402, 32
        %v3406 = vpop.permute.xlu0 %3405
        %3409 = vst.msk [vmem:[#allocation3 + $0xa0] sm:$0xf] %vm2237, %v3404
        %3410 = vst.msk [vmem:[#allocation3 + $0xa8] sm:$0xf] %vm2237, %v3406
        %v3414 = vrot.slane %v3374, 5
        %v3415 = vrot.slane %v3414, 4
        %v3416 = vrot.slane %v3375, 5
        %v3417 = vsel %vm2245, %v3415, %v3416
        %v3418 = vrot.slane %v3416, 4
        %v3419 = vrot.slane %v3376, 5
        %v3420 = vsel %vm2245, %v3418, %v3419
        %3421 = vrot.lane.b32.xlu0 %v3417, 64
        %v3422 = vpop.permute.xlu0 %3421
        %3423 = vrot.lane.b32.xlu0 %v3420, 64
        %v3424 = vpop.permute.xlu0 %3423
        %3427 = vst.msk [vmem:[#allocation3 + $0xa0] sm:$0xf] %vm2259, %v3422
        %3428 = vst.msk [vmem:[#allocation3 + $0xa8] sm:$0xf] %vm2259, %v3424
        %v3429 = vrot.slane %v3380, 5
        %v3430 = vrot.slane %v3383, 6
        %v3431 = vor.u32 %v3429, %v3430
        %v3432 = vrot.slane %v3431, 4
        %v3433 = vrot.slane %v3393, 5
        %v3434 = vrot.slane %v3389, 6
        %v3435 = vor.u32 %v3433, %v3434
        %v3436 = vsel %vm2264, %v3432, %v3435
        %v3437 = vrot.slane %v3435, 4
        %v3438 = vshrl.u32 %v3376, 16
        %v3440 = vrot.slane %v3438, 5
        %v3441 = vrot.slane %v3399, 6
        %v3442 = vor.u32 %v3440, %v3441
        %v3443 = vsel %vm2264, %v3437, %v3442
        %3444 = vrot.lane.b32.xlu0 %v3436, 96
        %v3445 = vpop.permute.xlu0 %3444
        %3446 = vrot.lane.b32.xlu0 %v3443, 96
        %v3447 = vpop.permute.xlu0 %3446
        %3450 = vst.msk [vmem:[#allocation3 + $0xa0] sm:$0xf] %vm2286, %v3445
        %3451 = vst.msk [vmem:[#allocation3 + $0xa8] sm:$0xf] %vm2286, %v3447
        %v3452 = vrot.slane %v3374, 6
        %v3453 = vrot.slane %v3452, 4
        %v3454 = vrot.slane %v3375, 6
        %v3455 = vsel %vm2291, %v3453, %v3454
        %v3456 = vrot.slane %v3454, 4
        %v3457 = vrot.slane %v3376, 6
        %v3458 = vsel %vm2291, %v3456, %v3457
        %3461 = vst.msk [vmem:[#allocation3 + $0xa4] sm:$0xf] %vm2201, %v3455
        %3462 = vst.msk [vmem:[#allocation3 + $0xac] sm:$0xf] %vm2201, %v3458
        %v3463 = vld [vmem:[#allocation2 + $0x370] sm:$0xff]
        %v3464 = vld [vmem:[#allocation2 + $0x378] sm:$0xff]
        %v3465 = vld [vmem:[#allocation2 + $0x380] sm:$0xf]
        %v3466 = vld [vmem:[#allocation2 + $0x384] sm:$0xff]
        %v3467 = vld [vmem:[#allocation2 + $0x38c] sm:$0xff]
        %v3468 = vld [vmem:[#allocation2 + $0x394] sm:$0xf]
        %v3469 = vmax.f32 %v3463, %v3466
        %v3470 = vmax.f32 %v3464, %v3467
        %v3471 = vmax.f32 %v3465, %v3468
        %v3472 = vld [vmem:[#allocation2 + $0x398] sm:$0xff]
        %v3473 = vld [vmem:[#allocation2 + $0x3a0] sm:$0xff]
        %v3474 = vld [vmem:[#allocation2 + $0x3a8] sm:$0xf]
        %v3475 = vld [vmem:[#allocation2 + $0x3ac] sm:$0xff]
        %v3476 = vld [vmem:[#allocation2 + $0x3b4] sm:$0xff]
        %v3477 = vld [vmem:[#allocation2 + $0x3bc] sm:$0xf]
        %v3478 = vmax.f32 %v3472, %v3475
        %v3479 = vmax.f32 %v3473, %v3476
        %v3480 = vmax.f32 %v3474, %v3477
        %v3481 = vmax.f32 %v3469, %v3478
        %v3482 = vmax.f32 %v3470, %v3479
        %v3483 = vmax.f32 %v3471, %v3480
        %v3484 = vadd.f32 %v3481, %v2190
        %v3485 = vadd.f32 %v3482, %v2190
        %v3486 = vadd.f32 %v3483, %v2190
        %v3487 = vmax.f32 %v3484, 0.0
        %v3488 = vmax.f32 %v3485, 0.0
        %v3489 = vmax.f32 %v3486, 0.0
        %v3490 = vpack.c.bf16 %v3487, %v3487
        %v3491 = vpack.c.bf16 %v3488, %v3488
        %v3492 = vpack.c.bf16 %v3489, %v3489
        %3493 = vst.msk [vmem:[#allocation3 + $0xb0] sm:$0xf] %vm2201, %v3490
        %3494 = vst.msk [vmem:[#allocation3 + $0xb8] sm:$0xf] %vm2201, %v3491
        %v3496 = vshrl.u32 %v3490, 16
        %v3498 = vrot.slane %v3496, 4
        %v3499 = vshll.u32 %v3490, 16
        %v3501 = vrot.slane %v3499, 5
        %v3502 = vor.u32 %v3498, %v3501
        %v3503 = vrot.slane %v3502, 4
        %v3505 = vshll.u32 %v3491, 16
        %v3507 = vrot.slane %v3505, 5
        %v3508 = vsel %vm2206, %v3503, %v3507
        %v3509 = vshrl.u32 %v3491, 16
        %v3511 = vrot.slane %v3509, 4
        %v3512 = vor.u32 %v3511, %v3507
        %v3513 = vrot.slane %v3512, 4
        %v3515 = vshll.u32 %v3492, 16
        %v3517 = vrot.slane %v3515, 5
        %v3518 = vsel %vm2206, %v3513, %v3517
        %3519 = vrot.lane.b32.xlu0 %v3508, 32
        %v3520 = vpop.permute.xlu0 %3519
        %3521 = vrot.lane.b32.xlu0 %v3518, 32
        %v3522 = vpop.permute.xlu0 %3521
        %3525 = vst.msk [vmem:[#allocation3 + $0xb0] sm:$0xf] %vm2237, %v3520
        %3526 = vst.msk [vmem:[#allocation3 + $0xb8] sm:$0xf] %vm2237, %v3522
        %v3530 = vrot.slane %v3490, 5
        %v3531 = vrot.slane %v3530, 4
        %v3532 = vrot.slane %v3491, 5
        %v3533 = vsel %vm2245, %v3531, %v3532
        %v3534 = vrot.slane %v3532, 4
        %v3535 = vrot.slane %v3492, 5
        %v3536 = vsel %vm2245, %v3534, %v3535
        %3537 = vrot.lane.b32.xlu0 %v3533, 64
        %v3538 = vpop.permute.xlu0 %3537
        %3539 = vrot.lane.b32.xlu0 %v3536, 64
        %v3540 = vpop.permute.xlu0 %3539
        %3543 = vst.msk [vmem:[#allocation3 + $0xb0] sm:$0xf] %vm2259, %v3538
        %3544 = vst.msk [vmem:[#allocation3 + $0xb8] sm:$0xf] %vm2259, %v3540
        %v3545 = vrot.slane %v3496, 5
        %v3546 = vrot.slane %v3499, 6
        %v3547 = vor.u32 %v3545, %v3546
        %v3548 = vrot.slane %v3547, 4
        %v3549 = vrot.slane %v3509, 5
        %v3550 = vrot.slane %v3505, 6
        %v3551 = vor.u32 %v3549, %v3550
        %v3552 = vsel %vm2264, %v3548, %v3551
        %v3553 = vrot.slane %v3551, 4
        %v3554 = vshrl.u32 %v3492, 16
        %v3556 = vrot.slane %v3554, 5
        %v3557 = vrot.slane %v3515, 6
        %v3558 = vor.u32 %v3556, %v3557
        %v3559 = vsel %vm2264, %v3553, %v3558
        %3560 = vrot.lane.b32.xlu0 %v3552, 96
        %v3561 = vpop.permute.xlu0 %3560
        %3562 = vrot.lane.b32.xlu0 %v3559, 96
        %v3563 = vpop.permute.xlu0 %3562
        %3566 = vst.msk [vmem:[#allocation3 + $0xb0] sm:$0xf] %vm2286, %v3561
        %3567 = vst.msk [vmem:[#allocation3 + $0xb8] sm:$0xf] %vm2286, %v3563
        %v3568 = vrot.slane %v3490, 6
        %v3569 = vrot.slane %v3568, 4
        %v3570 = vrot.slane %v3491, 6
        %v3571 = vsel %vm2291, %v3569, %v3570
        %v3572 = vrot.slane %v3570, 4
        %v3573 = vrot.slane %v3492, 6
        %v3574 = vsel %vm2291, %v3572, %v3573
        %3577 = vst.msk [vmem:[#allocation3 + $0xb4] sm:$0xf] %vm2201, %v3571
        %3578 = vst.msk [vmem:[#allocation3 + $0xbc] sm:$0xf] %vm2201, %v3574
        %v3579 = vld [vmem:[#allocation2 + $0x3c0] sm:$0xff]
        %v3580 = vld [vmem:[#allocation2 + $0x3c8] sm:$0xff]
        %v3581 = vld [vmem:[#allocation2 + $0x3d0] sm:$0xf]
        %v3582 = vld [vmem:[#allocation2 + $0x3d4] sm:$0xff]
        %v3583 = vld [vmem:[#allocation2 + $0x3dc] sm:$0xff]
        %v3584 = vld [vmem:[#allocation2 + $0x3e4] sm:$0xf]
        %v3585 = vmax.f32 %v3579, %v3582
        %v3586 = vmax.f32 %v3580, %v3583
        %v3587 = vmax.f32 %v3581, %v3584
        %v3588 = vld [vmem:[#allocation2 + $0x3e8] sm:$0xff]
        %v3589 = vld [vmem:[#allocation2 + $0x3f0] sm:$0xff]
        %v3590 = vld [vmem:[#allocation2 + $0x3f8] sm:$0xf]
        %v3591 = vld [vmem:[#allocation2 + $0x3fc] sm:$0xff]
        %v3592 = vld [vmem:[#allocation2 + $0x404] sm:$0xff]
        %v3593 = vld [vmem:[#allocation2 + $0x40c] sm:$0xf]
        %v3594 = vmax.f32 %v3588, %v3591
        %v3595 = vmax.f32 %v3589, %v3592
        %v3596 = vmax.f32 %v3590, %v3593
        %v3597 = vmax.f32 %v3585, %v3594
        %v3598 = vmax.f32 %v3586, %v3595
        %v3599 = vmax.f32 %v3587, %v3596
        %v3600 = vadd.f32 %v3597, %v2190
        %v3601 = vadd.f32 %v3598, %v2190
        %v3602 = vadd.f32 %v3599, %v2190
        %v3603 = vmax.f32 %v3600, 0.0
        %v3604 = vmax.f32 %v3601, 0.0
        %v3605 = vmax.f32 %v3602, 0.0
        %v3606 = vpack.c.bf16 %v3603, %v3603
        %v3607 = vpack.c.bf16 %v3604, %v3604
        %v3608 = vpack.c.bf16 %v3605, %v3605
        %3609 = vst.msk [vmem:[#allocation3 + $0xc0] sm:$0xf] %vm2201, %v3606
        %3610 = vst.msk [vmem:[#allocation3 + $0xc8] sm:$0xf] %vm2201, %v3607
        %v3612 = vshrl.u32 %v3606, 16
        %v3614 = vrot.slane %v3612, 4
        %v3615 = vshll.u32 %v3606, 16
        %v3617 = vrot.slane %v3615, 5
        %v3618 = vor.u32 %v3614, %v3617
        %v3619 = vrot.slane %v3618, 4
        %v3621 = vshll.u32 %v3607, 16
        %v3623 = vrot.slane %v3621, 5
        %v3624 = vsel %vm2206, %v3619, %v3623
        %v3625 = vshrl.u32 %v3607, 16
        %v3627 = vrot.slane %v3625, 4
        %v3628 = vor.u32 %v3627, %v3623
        %v3629 = vrot.slane %v3628, 4
        %v3631 = vshll.u32 %v3608, 16
        %v3633 = vrot.slane %v3631, 5
        %v3634 = vsel %vm2206, %v3629, %v3633
        %3635 = vrot.lane.b32.xlu0 %v3624, 32
        %v3636 = vpop.permute.xlu0 %3635
        %3637 = vrot.lane.b32.xlu0 %v3634, 32
        %v3638 = vpop.permute.xlu0 %3637
        %3641 = vst.msk [vmem:[#allocation3 + $0xc0] sm:$0xf] %vm2237, %v3636
        %3642 = vst.msk [vmem:[#allocation3 + $0xc8] sm:$0xf] %vm2237, %v3638
        %v3646 = vrot.slane %v3606, 5
        %v3647 = vrot.slane %v3646, 4
        %v3648 = vrot.slane %v3607, 5
        %v3649 = vsel %vm2245, %v3647, %v3648
        %v3650 = vrot.slane %v3648, 4
        %v3651 = vrot.slane %v3608, 5
        %v3652 = vsel %vm2245, %v3650, %v3651
        %3653 = vrot.lane.b32.xlu0 %v3649, 64
        %v3654 = vpop.permute.xlu0 %3653
        %3655 = vrot.lane.b32.xlu0 %v3652, 64
        %v3656 = vpop.permute.xlu0 %3655
        %3659 = vst.msk [vmem:[#allocation3 + $0xc0] sm:$0xf] %vm2259, %v3654
        %3660 = vst.msk [vmem:[#allocation3 + $0xc8] sm:$0xf] %vm2259, %v3656
        %v3661 = vrot.slane %v3612, 5
        %v3662 = vrot.slane %v3615, 6
        %v3663 = vor.u32 %v3661, %v3662
        %v3664 = vrot.slane %v3663, 4
        %v3665 = vrot.slane %v3625, 5
        %v3666 = vrot.slane %v3621, 6
        %v3667 = vor.u32 %v3665, %v3666
        %v3668 = vsel %vm2264, %v3664, %v3667
        %v3669 = vrot.slane %v3667, 4
        %v3670 = vshrl.u32 %v3608, 16
        %v3672 = vrot.slane %v3670, 5
        %v3673 = vrot.slane %v3631, 6
        %v3674 = vor.u32 %v3672, %v3673
        %v3675 = vsel %vm2264, %v3669, %v3674
        %3676 = vrot.lane.b32.xlu0 %v3668, 96
        %v3677 = vpop.permute.xlu0 %3676
        %3678 = vrot.lane.b32.xlu0 %v3675, 96
        %v3679 = vpop.permute.xlu0 %3678
        %3682 = vst.msk [vmem:[#allocation3 + $0xc0] sm:$0xf] %vm2286, %v3677
        %3683 = vst.msk [vmem:[#allocation3 + $0xc8] sm:$0xf] %vm2286, %v3679
        %v3684 = vrot.slane %v3606, 6
        %v3685 = vrot.slane %v3684, 4
        %v3686 = vrot.slane %v3607, 6
        %v3687 = vsel %vm2291, %v3685, %v3686
        %v3688 = vrot.slane %v3686, 4
        %v3689 = vrot.slane %v3608, 6
        %v3690 = vsel %vm2291, %v3688, %v3689
        %3693 = vst.msk [vmem:[#allocation3 + $0xc4] sm:$0xf] %vm2201, %v3687
        %3694 = vst.msk [vmem:[#allocation3 + $0xcc] sm:$0xf] %vm2201, %v3690
        %v3695 = vld [vmem:[#allocation2 + $0x410] sm:$0xff]
        %v3696 = vld [vmem:[#allocation2 + $0x418] sm:$0xff]
        %v3697 = vld [vmem:[#allocation2 + $0x420] sm:$0xf]
        %v3698 = vld [vmem:[#allocation2 + $0x424] sm:$0xff]
        %v3699 = vld [vmem:[#allocation2 + $0x42c] sm:$0xff]
        %v3700 = vld [vmem:[#allocation2 + $0x434] sm:$0xf]
        %v3701 = vmax.f32 %v3695, %v3698
        %v3702 = vmax.f32 %v3696, %v3699
        %v3703 = vmax.f32 %v3697, %v3700
        %v3704 = vld [vmem:[#allocation2 + $0x438] sm:$0xff]
        %v3705 = vld [vmem:[#allocation2 + $0x440] sm:$0xff]
        %v3706 = vld [vmem:[#allocation2 + $0x448] sm:$0xf]
        %v3707 = vld [vmem:[#allocation2 + $0x44c] sm:$0xff]
        %v3708 = vld [vmem:[#allocation2 + $0x454] sm:$0xff]
        %v3709 = vld [vmem:[#allocation2 + $0x45c] sm:$0xf]
        %v3710 = vmax.f32 %v3704, %v3707
        %v3711 = vmax.f32 %v3705, %v3708
        %v3712 = vmax.f32 %v3706, %v3709
        %v3713 = vmax.f32 %v3701, %v3710
        %v3714 = vmax.f32 %v3702, %v3711
        %v3715 = vmax.f32 %v3703, %v3712
        %v3716 = vadd.f32 %v3713, %v2190
        %v3717 = vadd.f32 %v3714, %v2190
        %v3718 = vadd.f32 %v3715, %v2190
        %v3719 = vmax.f32 %v3716, 0.0
        %v3720 = vmax.f32 %v3717, 0.0
        %v3721 = vmax.f32 %v3718, 0.0
        %v3722 = vpack.c.bf16 %v3719, %v3719
        %v3723 = vpack.c.bf16 %v3720, %v3720
        %v3724 = vpack.c.bf16 %v3721, %v3721
        %3725 = vst.msk [vmem:[#allocation3 + $0xd0] sm:$0xf] %vm2201, %v3722
        %3726 = vst.msk [vmem:[#allocation3 + $0xd8] sm:$0xf] %vm2201, %v3723
        %v3728 = vshrl.u32 %v3722, 16
        %v3730 = vrot.slane %v3728, 4
        %v3731 = vshll.u32 %v3722, 16
        %v3733 = vrot.slane %v3731, 5
        %v3734 = vor.u32 %v3730, %v3733
        %v3735 = vrot.slane %v3734, 4
        %v3737 = vshll.u32 %v3723, 16
        %v3739 = vrot.slane %v3737, 5
        %v3740 = vsel %vm2206, %v3735, %v3739
        %v3741 = vshrl.u32 %v3723, 16
        %v3743 = vrot.slane %v3741, 4
        %v3744 = vor.u32 %v3743, %v3739
        %v3745 = vrot.slane %v3744, 4
        %v3747 = vshll.u32 %v3724, 16
        %v3749 = vrot.slane %v3747, 5
        %v3750 = vsel %vm2206, %v3745, %v3749
        %3751 = vrot.lane.b32.xlu0 %v3740, 32
        %v3752 = vpop.permute.xlu0 %3751
        %3753 = vrot.lane.b32.xlu0 %v3750, 32
        %v3754 = vpop.permute.xlu0 %3753
        %3757 = vst.msk [vmem:[#allocation3 + $0xd0] sm:$0xf] %vm2237, %v3752
        %3758 = vst.msk [vmem:[#allocation3 + $0xd8] sm:$0xf] %vm2237, %v3754
        %v3762 = vrot.slane %v3722, 5
        %v3763 = vrot.slane %v3762, 4
        %v3764 = vrot.slane %v3723, 5
        %v3765 = vsel %vm2245, %v3763, %v3764
        %v3766 = vrot.slane %v3764, 4
        %v3767 = vrot.slane %v3724, 5
        %v3768 = vsel %vm2245, %v3766, %v3767
        %3769 = vrot.lane.b32.xlu0 %v3765, 64
        %v3770 = vpop.permute.xlu0 %3769
        %3771 = vrot.lane.b32.xlu0 %v3768, 64
        %v3772 = vpop.permute.xlu0 %3771
        %3775 = vst.msk [vmem:[#allocation3 + $0xd0] sm:$0xf] %vm2259, %v3770
        %3776 = vst.msk [vmem:[#allocation3 + $0xd8] sm:$0xf] %vm2259, %v3772
        %v3777 = vrot.slane %v3728, 5
        %v3778 = vrot.slane %v3731, 6
        %v3779 = vor.u32 %v3777, %v3778
        %v3780 = vrot.slane %v3779, 4
        %v3781 = vrot.slane %v3741, 5
        %v3782 = vrot.slane %v3737, 6
        %v3783 = vor.u32 %v3781, %v3782
        %v3784 = vsel %vm2264, %v3780, %v3783
        %v3785 = vrot.slane %v3783, 4
        %v3786 = vshrl.u32 %v3724, 16
        %v3788 = vrot.slane %v3786, 5
        %v3789 = vrot.slane %v3747, 6
        %v3790 = vor.u32 %v3788, %v3789
        %v3791 = vsel %vm2264, %v3785, %v3790
        %3792 = vrot.lane.b32.xlu0 %v3784, 96
        %v3793 = vpop.permute.xlu0 %3792
        %3794 = vrot.lane.b32.xlu0 %v3791, 96
        %v3795 = vpop.permute.xlu0 %3794
        %3798 = vst.msk [vmem:[#allocation3 + $0xd0] sm:$0xf] %vm2286, %v3793
        %3799 = vst.msk [vmem:[#allocation3 + $0xd8] sm:$0xf] %vm2286, %v3795
        %v3800 = vrot.slane %v3722, 6
        %v3801 = vrot.slane %v3800, 4
        %v3802 = vrot.slane %v3723, 6
        %v3803 = vsel %vm2291, %v3801, %v3802
        %v3804 = vrot.slane %v3802, 4
        %v3805 = vrot.slane %v3724, 6
        %v3806 = vsel %vm2291, %v3804, %v3805
        %3809 = vst.msk [vmem:[#allocation3 + $0xd4] sm:$0xf] %vm2201, %v3803
        %3810 = vst.msk [vmem:[#allocation3 + $0xdc] sm:$0xf] %vm2201, %v3806
        %v3811 = vld [vmem:[#allocation2 + $0x460] sm:$0xff]
        %v3812 = vld [vmem:[#allocation2 + $0x468] sm:$0xff]
        %v3813 = vld [vmem:[#allocation2 + $0x470] sm:$0xf]
        %v3814 = vld [vmem:[#allocation2 + $0x474] sm:$0xff]
        %v3815 = vld [vmem:[#allocation2 + $0x47c] sm:$0xff]
        %v3816 = vld [vmem:[#allocation2 + $0x484] sm:$0xf]
        %v3817 = vmax.f32 %v3811, %v3814
        %v3818 = vmax.f32 %v3812, %v3815
        %v3819 = vmax.f32 %v3813, %v3816
        %v3820 = vld [vmem:[#allocation2 + $0x488] sm:$0xff]
        %v3821 = vld [vmem:[#allocation2 + $0x490] sm:$0xff]
        %v3822 = vld [vmem:[#allocation2 + $0x498] sm:$0xf]
        %v3823 = vld [vmem:[#allocation2 + $0x49c] sm:$0xff]
        %v3824 = vld [vmem:[#allocation2 + $0x4a4] sm:$0xff]
        %v3825 = vld [vmem:[#allocation2 + $0x4ac] sm:$0xf]
        %v3826 = vmax.f32 %v3820, %v3823
        %v3827 = vmax.f32 %v3821, %v3824
        %v3828 = vmax.f32 %v3822, %v3825
        %v3829 = vmax.f32 %v3817, %v3826
        %v3830 = vmax.f32 %v3818, %v3827
        %v3831 = vmax.f32 %v3819, %v3828
        %v3832 = vadd.f32 %v3829, %v2190
        %v3833 = vadd.f32 %v3830, %v2190
        %v3834 = vadd.f32 %v3831, %v2190
        %v3835 = vmax.f32 %v3832, 0.0
        %v3836 = vmax.f32 %v3833, 0.0
        %v3837 = vmax.f32 %v3834, 0.0
        %v3838 = vpack.c.bf16 %v3835, %v3835
        %v3839 = vpack.c.bf16 %v3836, %v3836
        %v3840 = vpack.c.bf16 %v3837, %v3837
        %3841 = vst.msk [vmem:[#allocation3 + $0xe0] sm:$0xf] %vm2201, %v3838
        %3842 = vst.msk [vmem:[#allocation3 + $0xe8] sm:$0xf] %vm2201, %v3839
        %v3844 = vshrl.u32 %v3838, 16
        %v3846 = vrot.slane %v3844, 4
        %v3847 = vshll.u32 %v3838, 16
        %v3849 = vrot.slane %v3847, 5
        %v3850 = vor.u32 %v3846, %v3849
        %v3851 = vrot.slane %v3850, 4
        %v3853 = vshll.u32 %v3839, 16
        %v3855 = vrot.slane %v3853, 5
        %v3856 = vsel %vm2206, %v3851, %v3855
        %v3857 = vshrl.u32 %v3839, 16
        %v3859 = vrot.slane %v3857, 4
        %v3860 = vor.u32 %v3859, %v3855
        %v3861 = vrot.slane %v3860, 4
        %v3863 = vshll.u32 %v3840, 16
        %v3865 = vrot.slane %v3863, 5
        %v3866 = vsel %vm2206, %v3861, %v3865
        %3867 = vrot.lane.b32.xlu0 %v3856, 32
        %v3868 = vpop.permute.xlu0 %3867
        %3869 = vrot.lane.b32.xlu0 %v3866, 32
        %v3870 = vpop.permute.xlu0 %3869
        %3873 = vst.msk [vmem:[#allocation3 + $0xe0] sm:$0xf] %vm2237, %v3868
        %3874 = vst.msk [vmem:[#allocation3 + $0xe8] sm:$0xf] %vm2237, %v3870
        %v3878 = vrot.slane %v3838, 5
        %v3879 = vrot.slane %v3878, 4
        %v3880 = vrot.slane %v3839, 5
        %v3881 = vsel %vm2245, %v3879, %v3880
        %v3882 = vrot.slane %v3880, 4
        %v3883 = vrot.slane %v3840, 5
        %v3884 = vsel %vm2245, %v3882, %v3883
        %3885 = vrot.lane.b32.xlu0 %v3881, 64
        %v3886 = vpop.permute.xlu0 %3885
        %3887 = vrot.lane.b32.xlu0 %v3884, 64
        %v3888 = vpop.permute.xlu0 %3887
        %3891 = vst.msk [vmem:[#allocation3 + $0xe0] sm:$0xf] %vm2259, %v3886
        %3892 = vst.msk [vmem:[#allocation3 + $0xe8] sm:$0xf] %vm2259, %v3888
        %v3893 = vrot.slane %v3844, 5
        %v3894 = vrot.slane %v3847, 6
        %v3895 = vor.u32 %v3893, %v3894
        %v3896 = vrot.slane %v3895, 4
        %v3897 = vrot.slane %v3857, 5
        %v3898 = vrot.slane %v3853, 6
        %v3899 = vor.u32 %v3897, %v3898
        %v3900 = vsel %vm2264, %v3896, %v3899
        %v3901 = vrot.slane %v3899, 4
        %v3902 = vshrl.u32 %v3840, 16
        %v3904 = vrot.slane %v3902, 5
        %v3905 = vrot.slane %v3863, 6
        %v3906 = vor.u32 %v3904, %v3905
        %v3907 = vsel %vm2264, %v3901, %v3906
        %3908 = vrot.lane.b32.xlu0 %v3900, 96
        %v3909 = vpop.permute.xlu0 %3908
        %3910 = vrot.lane.b32.xlu0 %v3907, 96
        %v3911 = vpop.permute.xlu0 %3910
        %3914 = vst.msk [vmem:[#allocation3 + $0xe0] sm:$0xf] %vm2286, %v3909
        %3915 = vst.msk [vmem:[#allocation3 + $0xe8] sm:$0xf] %vm2286, %v3911
        %v3916 = vrot.slane %v3838, 6
        %v3917 = vrot.slane %v3916, 4
        %v3918 = vrot.slane %v3839, 6
        %v3919 = vsel %vm2291, %v3917, %v3918
        %v3920 = vrot.slane %v3918, 4
        %v3921 = vrot.slane %v3840, 6
        %v3922 = vsel %vm2291, %v3920, %v3921
        %3925 = vst.msk [vmem:[#allocation3 + $0xe4] sm:$0xf] %vm2201, %v3919
        %3926 = vst.msk [vmem:[#allocation3 + $0xec] sm:$0xf] %vm2201, %v3922
        %v3927 = vld [vmem:[#allocation2 + $0x4b0] sm:$0xff]
        %v3928 = vld [vmem:[#allocation2 + $0x4b8] sm:$0xff]
        %v3929 = vld [vmem:[#allocation2 + $0x4c0] sm:$0xf]
        %v3930 = vld [vmem:[#allocation2 + $0x4c4] sm:$0xff]
        %v3931 = vld [vmem:[#allocation2 + $0x4cc] sm:$0xff]
        %v3932 = vld [vmem:[#allocation2 + $0x4d4] sm:$0xf]
        %v3933 = vmax.f32 %v3927, %v3930
        %v3934 = vmax.f32 %v3928, %v3931
        %v3935 = vmax.f32 %v3929, %v3932
        %v3936 = vld [vmem:[#allocation2 + $0x4d8] sm:$0xff]
        %v3937 = vld [vmem:[#allocation2 + $0x4e0] sm:$0xff]
        %v3938 = vld [vmem:[#allocation2 + $0x4e8] sm:$0xf]
        %v3939 = vld [vmem:[#allocation2 + $0x4ec] sm:$0xff]
        %v3940 = vld [vmem:[#allocation2 + $0x4f4] sm:$0xff]
        %v3941 = vld [vmem:[#allocation2 + $0x4fc] sm:$0xf]
        %v3942 = vmax.f32 %v3936, %v3939
        %v3943 = vmax.f32 %v3937, %v3940
        %v3944 = vmax.f32 %v3938, %v3941
        %v3945 = vmax.f32 %v3933, %v3942
        %v3946 = vmax.f32 %v3934, %v3943
        %v3947 = vmax.f32 %v3935, %v3944
        %v3948 = vadd.f32 %v3945, %v2190
        %v3949 = vadd.f32 %v3946, %v2190
        %v3950 = vadd.f32 %v3947, %v2190
        %v3951 = vmax.f32 %v3948, 0.0
        %v3952 = vmax.f32 %v3949, 0.0
        %v3953 = vmax.f32 %v3950, 0.0
        %v3954 = vpack.c.bf16 %v3951, %v3951
        %v3955 = vpack.c.bf16 %v3952, %v3952
        %v3956 = vpack.c.bf16 %v3953, %v3953
        %3957 = vst.msk [vmem:[#allocation3 + $0xf0] sm:$0xf] %vm2201, %v3954
        %3958 = vst.msk [vmem:[#allocation3 + $0xf8] sm:$0xf] %vm2201, %v3955
        %v3960 = vshrl.u32 %v3954, 16
        %v3962 = vrot.slane %v3960, 4
        %v3963 = vshll.u32 %v3954, 16
        %v3965 = vrot.slane %v3963, 5
        %v3966 = vor.u32 %v3962, %v3965
        %v3967 = vrot.slane %v3966, 4
        %v3969 = vshll.u32 %v3955, 16
        %v3971 = vrot.slane %v3969, 5
        %v3972 = vsel %vm2206, %v3967, %v3971
        %v3973 = vshrl.u32 %v3955, 16
        %v3975 = vrot.slane %v3973, 4
        %v3976 = vor.u32 %v3975, %v3971
        %v3977 = vrot.slane %v3976, 4
        %v3979 = vshll.u32 %v3956, 16
        %v3981 = vrot.slane %v3979, 5
        %v3982 = vsel %vm2206, %v3977, %v3981
        %3983 = vrot.lane.b32.xlu0 %v3972, 32
        %v3984 = vpop.permute.xlu0 %3983
        %3985 = vrot.lane.b32.xlu0 %v3982, 32
        %v3986 = vpop.permute.xlu0 %3985
        %3989 = vst.msk [vmem:[#allocation3 + $0xf0] sm:$0xf] %vm2237, %v3984
        %3990 = vst.msk [vmem:[#allocation3 + $0xf8] sm:$0xf] %vm2237, %v3986
        %v3994 = vrot.slane %v3954, 5
        %v3995 = vrot.slane %v3994, 4
        %v3996 = vrot.slane %v3955, 5
        %v3997 = vsel %vm2245, %v3995, %v3996
        %v3998 = vrot.slane %v3996, 4
        %v3999 = vrot.slane %v3956, 5
        %v4000 = vsel %vm2245, %v3998, %v3999
        %4001 = vrot.lane.b32.xlu0 %v3997, 64
        %v4002 = vpop.permute.xlu0 %4001
        %4003 = vrot.lane.b32.xlu0 %v4000, 64
        %v4004 = vpop.permute.xlu0 %4003
        %4007 = vst.msk [vmem:[#allocation3 + $0xf0] sm:$0xf] %vm2259, %v4002
        %4008 = vst.msk [vmem:[#allocation3 + $0xf8] sm:$0xf] %vm2259, %v4004
        %v4009 = vrot.slane %v3960, 5
        %v4010 = vrot.slane %v3963, 6
        %v4011 = vor.u32 %v4009, %v4010
        %v4012 = vrot.slane %v4011, 4
        %v4013 = vrot.slane %v3973, 5
        %v4014 = vrot.slane %v3969, 6
        %v4015 = vor.u32 %v4013, %v4014
        %v4016 = vsel %vm2264, %v4012, %v4015
        %v4017 = vrot.slane %v4015, 4
        %v4018 = vshrl.u32 %v3956, 16
        %v4020 = vrot.slane %v4018, 5
        %v4021 = vrot.slane %v3979, 6
        %v4022 = vor.u32 %v4020, %v4021
        %v4023 = vsel %vm2264, %v4017, %v4022
        %4024 = vrot.lane.b32.xlu0 %v4016, 96
        %v4025 = vpop.permute.xlu0 %4024
        %4026 = vrot.lane.b32.xlu0 %v4023, 96
        %v4027 = vpop.permute.xlu0 %4026
        %4030 = vst.msk [vmem:[#allocation3 + $0xf0] sm:$0xf] %vm2286, %v4025
        %4031 = vst.msk [vmem:[#allocation3 + $0xf8] sm:$0xf] %vm2286, %v4027
        %v4032 = vrot.slane %v3954, 6
        %v4033 = vrot.slane %v4032, 4
        %v4034 = vrot.slane %v3955, 6
        %v4035 = vsel %vm2291, %v4033, %v4034
        %v4036 = vrot.slane %v4034, 4
        %v4037 = vrot.slane %v3956, 6
        %v4038 = vsel %vm2291, %v4036, %v4037
        %4041 = vst.msk [vmem:[#allocation3 + $0xf4] sm:$0xf] %vm2201, %v4035
        %4042 = vst.msk [vmem:[#allocation3 + $0xfc] sm:$0xf] %vm2201, %v4038
        %v4043 = vld [vmem:[#allocation2 + $0x500] sm:$0xff]
        %v4044 = vld [vmem:[#allocation2 + $0x508] sm:$0xff]
        %v4045 = vld [vmem:[#allocation2 + $0x510] sm:$0xf]
        %v4046 = vld [vmem:[#allocation2 + $0x514] sm:$0xff]
        %v4047 = vld [vmem:[#allocation2 + $0x51c] sm:$0xff]
        %v4048 = vld [vmem:[#allocation2 + $0x524] sm:$0xf]
        %v4049 = vmax.f32 %v4043, %v4046
        %v4050 = vmax.f32 %v4044, %v4047
        %v4051 = vmax.f32 %v4045, %v4048
        %v4052 = vld [vmem:[#allocation2 + $0x528] sm:$0xff]
        %v4053 = vld [vmem:[#allocation2 + $0x530] sm:$0xff]
        %v4054 = vld [vmem:[#allocation2 + $0x538] sm:$0xf]
        %v4055 = vld [vmem:[#allocation2 + $0x53c] sm:$0xff]
        %v4056 = vld [vmem:[#allocation2 + $0x544] sm:$0xff]
        %v4057 = vld [vmem:[#allocation2 + $0x54c] sm:$0xf]
        %v4058 = vmax.f32 %v4052, %v4055
        %v4059 = vmax.f32 %v4053, %v4056
        %v4060 = vmax.f32 %v4054, %v4057
        %v4061 = vmax.f32 %v4049, %v4058
        %v4062 = vmax.f32 %v4050, %v4059
        %v4063 = vmax.f32 %v4051, %v4060
        %v4064 = vadd.f32 %v4061, %v2190
        %v4065 = vadd.f32 %v4062, %v2190
        %v4066 = vadd.f32 %v4063, %v2190
        %v4067 = vmax.f32 %v4064, 0.0
        %v4068 = vmax.f32 %v4065, 0.0
        %v4069 = vmax.f32 %v4066, 0.0
        %v4070 = vpack.c.bf16 %v4067, %v4067
        %v4071 = vpack.c.bf16 %v4068, %v4068
        %v4072 = vpack.c.bf16 %v4069, %v4069
        %4073 = vst.msk [vmem:[#allocation3 + $0x100] sm:$0xf] %vm2201, %v4070
        %4074 = vst.msk [vmem:[#allocation3 + $0x108] sm:$0xf] %vm2201, %v4071
        %v4076 = vshrl.u32 %v4070, 16
        %v4078 = vrot.slane %v4076, 4
        %v4079 = vshll.u32 %v4070, 16
        %v4081 = vrot.slane %v4079, 5
        %v4082 = vor.u32 %v4078, %v4081
        %v4083 = vrot.slane %v4082, 4
        %v4085 = vshll.u32 %v4071, 16
        %v4087 = vrot.slane %v4085, 5
        %v4088 = vsel %vm2206, %v4083, %v4087
        %v4089 = vshrl.u32 %v4071, 16
        %v4091 = vrot.slane %v4089, 4
        %v4092 = vor.u32 %v4091, %v4087
        %v4093 = vrot.slane %v4092, 4
        %v4095 = vshll.u32 %v4072, 16
        %v4097 = vrot.slane %v4095, 5
        %v4098 = vsel %vm2206, %v4093, %v4097
        %4099 = vrot.lane.b32.xlu0 %v4088, 32
        %v4100 = vpop.permute.xlu0 %4099
        %4101 = vrot.lane.b32.xlu0 %v4098, 32
        %v4102 = vpop.permute.xlu0 %4101
        %4105 = vst.msk [vmem:[#allocation3 + $0x100] sm:$0xf] %vm2237, %v4100
        %4106 = vst.msk [vmem:[#allocation3 + $0x108] sm:$0xf] %vm2237, %v4102
        %v4110 = vrot.slane %v4070, 5
        %v4111 = vrot.slane %v4110, 4
        %v4112 = vrot.slane %v4071, 5
        %v4113 = vsel %vm2245, %v4111, %v4112
        %v4114 = vrot.slane %v4112, 4
        %v4115 = vrot.slane %v4072, 5
        %v4116 = vsel %vm2245, %v4114, %v4115
        %4117 = vrot.lane.b32.xlu0 %v4113, 64
        %v4118 = vpop.permute.xlu0 %4117
        %4119 = vrot.lane.b32.xlu0 %v4116, 64
        %v4120 = vpop.permute.xlu0 %4119
        %4123 = vst.msk [vmem:[#allocation3 + $0x100] sm:$0xf] %vm2259, %v4118
        %4124 = vst.msk [vmem:[#allocation3 + $0x108] sm:$0xf] %vm2259, %v4120
        %v4125 = vrot.slane %v4076, 5
        %v4126 = vrot.slane %v4079, 6
        %v4127 = vor.u32 %v4125, %v4126
        %v4128 = vrot.slane %v4127, 4
        %v4129 = vrot.slane %v4089, 5
        %v4130 = vrot.slane %v4085, 6
        %v4131 = vor.u32 %v4129, %v4130
        %v4132 = vsel %vm2264, %v4128, %v4131
        %v4133 = vrot.slane %v4131, 4
        %v4134 = vshrl.u32 %v4072, 16
        %v4136 = vrot.slane %v4134, 5
        %v4137 = vrot.slane %v4095, 6
        %v4138 = vor.u32 %v4136, %v4137
        %v4139 = vsel %vm2264, %v4133, %v4138
        %4140 = vrot.lane.b32.xlu0 %v4132, 96
        %v4141 = vpop.permute.xlu0 %4140
        %4142 = vrot.lane.b32.xlu0 %v4139, 96
        %v4143 = vpop.permute.xlu0 %4142
        %4146 = vst.msk [vmem:[#allocation3 + $0x100] sm:$0xf] %vm2286, %v4141
        %4147 = vst.msk [vmem:[#allocation3 + $0x108] sm:$0xf] %vm2286, %v4143
        %v4148 = vrot.slane %v4070, 6
        %v4149 = vrot.slane %v4148, 4
        %v4150 = vrot.slane %v4071, 6
        %v4151 = vsel %vm2291, %v4149, %v4150
        %v4152 = vrot.slane %v4150, 4
        %v4153 = vrot.slane %v4072, 6
        %v4154 = vsel %vm2291, %v4152, %v4153
        %4157 = vst.msk [vmem:[#allocation3 + $0x104] sm:$0xf] %vm2201, %v4151
        %4158 = vst.msk [vmem:[#allocation3 + $0x10c] sm:$0xf] %vm2201, %v4154
        %v4159 = vld [vmem:[#allocation2 + $0x550] sm:$0xff]
        %v4160 = vld [vmem:[#allocation2 + $0x558] sm:$0xff]
        %v4161 = vld [vmem:[#allocation2 + $0x560] sm:$0xf]
        %v4162 = vld [vmem:[#allocation2 + $0x564] sm:$0xff]
        %v4163 = vld [vmem:[#allocation2 + $0x56c] sm:$0xff]
        %v4164 = vld [vmem:[#allocation2 + $0x574] sm:$0xf]
        %v4165 = vmax.f32 %v4159, %v4162
        %v4166 = vmax.f32 %v4160, %v4163
        %v4167 = vmax.f32 %v4161, %v4164
        %v4168 = vld [vmem:[#allocation2 + $0x578] sm:$0xff]
        %v4169 = vld [vmem:[#allocation2 + $0x580] sm:$0xff]
        %v4170 = vld [vmem:[#allocation2 + $0x588] sm:$0xf]
        %v4171 = vld [vmem:[#allocation2 + $0x58c] sm:$0xff]
        %v4172 = vld [vmem:[#allocation2 + $0x594] sm:$0xff]
        %v4173 = vld [vmem:[#allocation2 + $0x59c] sm:$0xf]
        %v4174 = vmax.f32 %v4168, %v4171
        %v4175 = vmax.f32 %v4169, %v4172
        %v4176 = vmax.f32 %v4170, %v4173
        %v4177 = vmax.f32 %v4165, %v4174
        %v4178 = vmax.f32 %v4166, %v4175
        %v4179 = vmax.f32 %v4167, %v4176
        %v4180 = vadd.f32 %v4177, %v2190
        %v4181 = vadd.f32 %v4178, %v2190
        %v4182 = vadd.f32 %v4179, %v2190
        %v4183 = vmax.f32 %v4180, 0.0
        %v4184 = vmax.f32 %v4181, 0.0
        %v4185 = vmax.f32 %v4182, 0.0
        %v4186 = vpack.c.bf16 %v4183, %v4183
        %v4187 = vpack.c.bf16 %v4184, %v4184
        %v4188 = vpack.c.bf16 %v4185, %v4185
        %4189 = vst.msk [vmem:[#allocation3 + $0x110] sm:$0xf] %vm2201, %v4186
        %4190 = vst.msk [vmem:[#allocation3 + $0x118] sm:$0xf] %vm2201, %v4187
        %v4192 = vshrl.u32 %v4186, 16
        %v4194 = vrot.slane %v4192, 4
        %v4195 = vshll.u32 %v4186, 16
        %v4197 = vrot.slane %v4195, 5
        %v4198 = vor.u32 %v4194, %v4197
        %v4199 = vrot.slane %v4198, 4
        %v4201 = vshll.u32 %v4187, 16
        %v4203 = vrot.slane %v4201, 5
        %v4204 = vsel %vm2206, %v4199, %v4203
        %v4205 = vshrl.u32 %v4187, 16
        %v4207 = vrot.slane %v4205, 4
        %v4208 = vor.u32 %v4207, %v4203
        %v4209 = vrot.slane %v4208, 4
        %v4211 = vshll.u32 %v4188, 16
        %v4213 = vrot.slane %v4211, 5
        %v4214 = vsel %vm2206, %v4209, %v4213
        %4215 = vrot.lane.b32.xlu0 %v4204, 32
        %v4216 = vpop.permute.xlu0 %4215
        %4217 = vrot.lane.b32.xlu0 %v4214, 32
        %v4218 = vpop.permute.xlu0 %4217
        %4221 = vst.msk [vmem:[#allocation3 + $0x110] sm:$0xf] %vm2237, %v4216
        %4222 = vst.msk [vmem:[#allocation3 + $0x118] sm:$0xf] %vm2237, %v4218
        %v4226 = vrot.slane %v4186, 5
        %v4227 = vrot.slane %v4226, 4
        %v4228 = vrot.slane %v4187, 5
        %v4229 = vsel %vm2245, %v4227, %v4228
        %v4230 = vrot.slane %v4228, 4
        %v4231 = vrot.slane %v4188, 5
        %v4232 = vsel %vm2245, %v4230, %v4231
        %4233 = vrot.lane.b32.xlu0 %v4229, 64
        %v4234 = vpop.permute.xlu0 %4233
        %4235 = vrot.lane.b32.xlu0 %v4232, 64
        %v4236 = vpop.permute.xlu0 %4235
        %4239 = vst.msk [vmem:[#allocation3 + $0x110] sm:$0xf] %vm2259, %v4234
        %4240 = vst.msk [vmem:[#allocation3 + $0x118] sm:$0xf] %vm2259, %v4236
        %v4241 = vrot.slane %v4192, 5
        %v4242 = vrot.slane %v4195, 6
        %v4243 = vor.u32 %v4241, %v4242
        %v4244 = vrot.slane %v4243, 4
        %v4245 = vrot.slane %v4205, 5
        %v4246 = vrot.slane %v4201, 6
        %v4247 = vor.u32 %v4245, %v4246
        %v4248 = vsel %vm2264, %v4244, %v4247
        %v4249 = vrot.slane %v4247, 4
        %v4250 = vshrl.u32 %v4188, 16
        %v4252 = vrot.slane %v4250, 5
        %v4253 = vrot.slane %v4211, 6
        %v4254 = vor.u32 %v4252, %v4253
        %v4255 = vsel %vm2264, %v4249, %v4254
        %4256 = vrot.lane.b32.xlu0 %v4248, 96
        %v4257 = vpop.permute.xlu0 %4256
        %4258 = vrot.lane.b32.xlu0 %v4255, 96
        %v4259 = vpop.permute.xlu0 %4258
        %4262 = vst.msk [vmem:[#allocation3 + $0x110] sm:$0xf] %vm2286, %v4257
        %4263 = vst.msk [vmem:[#allocation3 + $0x118] sm:$0xf] %vm2286, %v4259
        %v4264 = vrot.slane %v4186, 6
        %v4265 = vrot.slane %v4264, 4
        %v4266 = vrot.slane %v4187, 6
        %v4267 = vsel %vm2291, %v4265, %v4266
        %v4268 = vrot.slane %v4266, 4
        %v4269 = vrot.slane %v4188, 6
        %v4270 = vsel %vm2291, %v4268, %v4269
        %4273 = vst.msk [vmem:[#allocation3 + $0x114] sm:$0xf] %vm2201, %v4267
        %4274 = vst.msk [vmem:[#allocation3 + $0x11c] sm:$0xf] %vm2201, %v4270
        %v4275 = vld [vmem:[#allocation2 + $0x5a0] sm:$0xff]
        %v4276 = vld [vmem:[#allocation2 + $0x5a8] sm:$0xff]
        %v4277 = vld [vmem:[#allocation2 + $0x5b0] sm:$0xf]
        %v4278 = vld [vmem:[#allocation2 + $0x5b4] sm:$0xff]
        %v4279 = vld [vmem:[#allocation2 + $0x5bc] sm:$0xff]
        %v4280 = vld [vmem:[#allocation2 + $0x5c4] sm:$0xf]
        %v4281 = vmax.f32 %v4275, %v4278
        %v4282 = vmax.f32 %v4276, %v4279
        %v4283 = vmax.f32 %v4277, %v4280
        %v4284 = vld [vmem:[#allocation2 + $0x5c8] sm:$0xff]
        %v4285 = vld [vmem:[#allocation2 + $0x5d0] sm:$0xff]
        %v4286 = vld [vmem:[#allocation2 + $0x5d8] sm:$0xf]
        %v4287 = vld [vmem:[#allocation2 + $0x5dc] sm:$0xff]
        %v4288 = vld [vmem:[#allocation2 + $0x5e4] sm:$0xff]
        %v4289 = vld [vmem:[#allocation2 + $0x5ec] sm:$0xf]
        %v4290 = vmax.f32 %v4284, %v4287
        %v4291 = vmax.f32 %v4285, %v4288
        %v4292 = vmax.f32 %v4286, %v4289
        %v4293 = vmax.f32 %v4281, %v4290
        %v4294 = vmax.f32 %v4282, %v4291
        %v4295 = vmax.f32 %v4283, %v4292
        %v4296 = vadd.f32 %v4293, %v2190
        %v4297 = vadd.f32 %v4294, %v2190
        %v4298 = vadd.f32 %v4295, %v2190
        %v4299 = vmax.f32 %v4296, 0.0
        %v4300 = vmax.f32 %v4297, 0.0
        %v4301 = vmax.f32 %v4298, 0.0
        %v4302 = vpack.c.bf16 %v4299, %v4299
        %v4303 = vpack.c.bf16 %v4300, %v4300
        %v4304 = vpack.c.bf16 %v4301, %v4301
        %4305 = vst.msk [vmem:[#allocation3 + $0x120] sm:$0xf] %vm2201, %v4302
        %4306 = vst.msk [vmem:[#allocation3 + $0x128] sm:$0xf] %vm2201, %v4303
        %v4308 = vshrl.u32 %v4302, 16
        %v4310 = vrot.slane %v4308, 4
        %v4311 = vshll.u32 %v4302, 16
        %v4313 = vrot.slane %v4311, 5
        %v4314 = vor.u32 %v4310, %v4313
        %v4315 = vrot.slane %v4314, 4
        %v4317 = vshll.u32 %v4303, 16
        %v4319 = vrot.slane %v4317, 5
        %v4320 = vsel %vm2206, %v4315, %v4319
        %v4321 = vshrl.u32 %v4303, 16
        %v4323 = vrot.slane %v4321, 4
        %v4324 = vor.u32 %v4323, %v4319
        %v4325 = vrot.slane %v4324, 4
        %v4327 = vshll.u32 %v4304, 16
        %v4329 = vrot.slane %v4327, 5
        %v4330 = vsel %vm2206, %v4325, %v4329
        %4331 = vrot.lane.b32.xlu0 %v4320, 32
        %v4332 = vpop.permute.xlu0 %4331
        %4333 = vrot.lane.b32.xlu0 %v4330, 32
        %v4334 = vpop.permute.xlu0 %4333
        %4337 = vst.msk [vmem:[#allocation3 + $0x120] sm:$0xf] %vm2237, %v4332
        %4338 = vst.msk [vmem:[#allocation3 + $0x128] sm:$0xf] %vm2237, %v4334
        %v4342 = vrot.slane %v4302, 5
        %v4343 = vrot.slane %v4342, 4
        %v4344 = vrot.slane %v4303, 5
        %v4345 = vsel %vm2245, %v4343, %v4344
        %v4346 = vrot.slane %v4344, 4
        %v4347 = vrot.slane %v4304, 5
        %v4348 = vsel %vm2245, %v4346, %v4347
        %4349 = vrot.lane.b32.xlu0 %v4345, 64
        %v4350 = vpop.permute.xlu0 %4349
        %4351 = vrot.lane.b32.xlu0 %v4348, 64
        %v4352 = vpop.permute.xlu0 %4351
        %4355 = vst.msk [vmem:[#allocation3 + $0x120] sm:$0xf] %vm2259, %v4350
        %4356 = vst.msk [vmem:[#allocation3 + $0x128] sm:$0xf] %vm2259, %v4352
        %v4357 = vrot.slane %v4308, 5
        %v4358 = vrot.slane %v4311, 6
        %v4359 = vor.u32 %v4357, %v4358
        %v4360 = vrot.slane %v4359, 4
        %v4361 = vrot.slane %v4321, 5
        %v4362 = vrot.slane %v4317, 6
        %v4363 = vor.u32 %v4361, %v4362
        %v4364 = vsel %vm2264, %v4360, %v4363
        %v4365 = vrot.slane %v4363, 4
        %v4366 = vshrl.u32 %v4304, 16
        %v4368 = vrot.slane %v4366, 5
        %v4369 = vrot.slane %v4327, 6
        %v4370 = vor.u32 %v4368, %v4369
        %v4371 = vsel %vm2264, %v4365, %v4370
        %4372 = vrot.lane.b32.xlu0 %v4364, 96
        %v4373 = vpop.permute.xlu0 %4372
        %4374 = vrot.lane.b32.xlu0 %v4371, 96
        %v4375 = vpop.permute.xlu0 %4374
        %4378 = vst.msk [vmem:[#allocation3 + $0x120] sm:$0xf] %vm2286, %v4373
        %4379 = vst.msk [vmem:[#allocation3 + $0x128] sm:$0xf] %vm2286, %v4375
        %v4380 = vrot.slane %v4302, 6
        %v4381 = vrot.slane %v4380, 4
        %v4382 = vrot.slane %v4303, 6
        %v4383 = vsel %vm2291, %v4381, %v4382
        %v4384 = vrot.slane %v4382, 4
        %v4385 = vrot.slane %v4304, 6
        %v4386 = vsel %vm2291, %v4384, %v4385
        %4389 = vst.msk [vmem:[#allocation3 + $0x124] sm:$0xf] %vm2201, %v4383
        %4390 = vst.msk [vmem:[#allocation3 + $0x12c] sm:$0xf] %vm2201, %v4386
        %v4391 = vld [vmem:[#allocation2 + $0x5f0] sm:$0xff]
        %v4392 = vld [vmem:[#allocation2 + $0x5f8] sm:$0xff]
        %v4393 = vld [vmem:[#allocation2 + $0x600] sm:$0xf]
        %v4394 = vld [vmem:[#allocation2 + $0x604] sm:$0xff]
        %v4395 = vld [vmem:[#allocation2 + $0x60c] sm:$0xff]
        %v4396 = vld [vmem:[#allocation2 + $0x614] sm:$0xf]
        %v4397 = vmax.f32 %v4391, %v4394
        %v4398 = vmax.f32 %v4392, %v4395
        %v4399 = vmax.f32 %v4393, %v4396
        %v4400 = vld [vmem:[#allocation2 + $0x618] sm:$0xff]
        %v4401 = vld [vmem:[#allocation2 + $0x620] sm:$0xff]
        %v4402 = vld [vmem:[#allocation2 + $0x628] sm:$0xf]
        %v4403 = vld [vmem:[#allocation2 + $0x62c] sm:$0xff]
        %v4404 = vld [vmem:[#allocation2 + $0x634] sm:$0xff]
        %v4405 = vld [vmem:[#allocation2 + $0x63c] sm:$0xf]
        %v4406 = vmax.f32 %v4400, %v4403
        %v4407 = vmax.f32 %v4401, %v4404
        %v4408 = vmax.f32 %v4402, %v4405
        %v4409 = vmax.f32 %v4397, %v4406
        %v4410 = vmax.f32 %v4398, %v4407
        %v4411 = vmax.f32 %v4399, %v4408
        %v4412 = vadd.f32 %v4409, %v2190
        %v4413 = vadd.f32 %v4410, %v2190
        %v4414 = vadd.f32 %v4411, %v2190
        %v4415 = vmax.f32 %v4412, 0.0
        %v4416 = vmax.f32 %v4413, 0.0
        %v4417 = vmax.f32 %v4414, 0.0
        %v4418 = vpack.c.bf16 %v4415, %v4415
        %v4419 = vpack.c.bf16 %v4416, %v4416
        %v4420 = vpack.c.bf16 %v4417, %v4417
        %4421 = vst.msk [vmem:[#allocation3 + $0x130] sm:$0xf] %vm2201, %v4418
        %4422 = vst.msk [vmem:[#allocation3 + $0x138] sm:$0xf] %vm2201, %v4419
        %v4424 = vshrl.u32 %v4418, 16
        %v4426 = vrot.slane %v4424, 4
        %v4427 = vshll.u32 %v4418, 16
        %v4429 = vrot.slane %v4427, 5
        %v4430 = vor.u32 %v4426, %v4429
        %v4431 = vrot.slane %v4430, 4
        %v4433 = vshll.u32 %v4419, 16
        %v4435 = vrot.slane %v4433, 5
        %v4436 = vsel %vm2206, %v4431, %v4435
        %v4437 = vshrl.u32 %v4419, 16
        %v4439 = vrot.slane %v4437, 4
        %v4440 = vor.u32 %v4439, %v4435
        %v4441 = vrot.slane %v4440, 4
        %v4443 = vshll.u32 %v4420, 16
        %v4445 = vrot.slane %v4443, 5
        %v4446 = vsel %vm2206, %v4441, %v4445
        %4447 = vrot.lane.b32.xlu0 %v4436, 32
        %v4448 = vpop.permute.xlu0 %4447
        %4449 = vrot.lane.b32.xlu0 %v4446, 32
        %v4450 = vpop.permute.xlu0 %4449
        %4453 = vst.msk [vmem:[#allocation3 + $0x130] sm:$0xf] %vm2237, %v4448
        %4454 = vst.msk [vmem:[#allocation3 + $0x138] sm:$0xf] %vm2237, %v4450
        %v4458 = vrot.slane %v4418, 5
        %v4459 = vrot.slane %v4458, 4
        %v4460 = vrot.slane %v4419, 5
        %v4461 = vsel %vm2245, %v4459, %v4460
        %v4462 = vrot.slane %v4460, 4
        %v4463 = vrot.slane %v4420, 5
        %v4464 = vsel %vm2245, %v4462, %v4463
        %4465 = vrot.lane.b32.xlu0 %v4461, 64
        %v4466 = vpop.permute.xlu0 %4465
        %4467 = vrot.lane.b32.xlu0 %v4464, 64
        %v4468 = vpop.permute.xlu0 %4467
        %4471 = vst.msk [vmem:[#allocation3 + $0x130] sm:$0xf] %vm2259, %v4466
        %4472 = vst.msk [vmem:[#allocation3 + $0x138] sm:$0xf] %vm2259, %v4468
        %v4473 = vrot.slane %v4424, 5
        %v4474 = vrot.slane %v4427, 6
        %v4475 = vor.u32 %v4473, %v4474
        %v4476 = vrot.slane %v4475, 4
        %v4477 = vrot.slane %v4437, 5
        %v4478 = vrot.slane %v4433, 6
        %v4479 = vor.u32 %v4477, %v4478
        %v4480 = vsel %vm2264, %v4476, %v4479
        %v4481 = vrot.slane %v4479, 4
        %v4482 = vshrl.u32 %v4420, 16
        %v4484 = vrot.slane %v4482, 5
        %v4485 = vrot.slane %v4443, 6
        %v4486 = vor.u32 %v4484, %v4485
        %v4487 = vsel %vm2264, %v4481, %v4486
        %4488 = vrot.lane.b32.xlu0 %v4480, 96
        %v4489 = vpop.permute.xlu0 %4488
        %4490 = vrot.lane.b32.xlu0 %v4487, 96
        %v4491 = vpop.permute.xlu0 %4490
        %4494 = vst.msk [vmem:[#allocation3 + $0x130] sm:$0xf] %vm2286, %v4489
        %4495 = vst.msk [vmem:[#allocation3 + $0x138] sm:$0xf] %vm2286, %v4491
        %v4496 = vrot.slane %v4418, 6
        %v4497 = vrot.slane %v4496, 4
        %v4498 = vrot.slane %v4419, 6
        %v4499 = vsel %vm2291, %v4497, %v4498
        %v4500 = vrot.slane %v4498, 4
        %v4501 = vrot.slane %v4420, 6
        %v4502 = vsel %vm2291, %v4500, %v4501
        %4505 = vst.msk [vmem:[#allocation3 + $0x134] sm:$0xf] %vm2201, %v4499
        %4506 = vst.msk [vmem:[#allocation3 + $0x13c] sm:$0xf] %vm2201, %v4502
        %v4507 = vld [vmem:[#allocation3] sm:$0xff]
        %v4508 = vld [vmem:[#allocation3 + $0x8] sm:$0xff]
        %v4509 = vld [vmem:[#allocation3 + $0x10] sm:$0xff]
        %v4510 = vld [vmem:[#allocation3 + $0x18] sm:$0xff]
        %v4511 = vld [vmem:[#allocation3 + $0x20] sm:$0xff]
        %v4512 = vld [vmem:[#allocation3 + $0x28] sm:$0xff]
        %v4513 = vld [vmem:[#allocation3 + $0x30] sm:$0xff]
        %v4514 = vld [vmem:[#allocation3 + $0x38] sm:$0xff]
        %v4515 = vld [vmem:[#allocation3 + $0x40] sm:$0xff]
        %v4516 = vld [vmem:[#allocation3 + $0x48] sm:$0xff]
        %v4517 = vld [vmem:[#allocation3 + $0x50] sm:$0xff]
        %v4518 = vld [vmem:[#allocation3 + $0x58] sm:$0xff]
        %v4519 = vld [vmem:[#allocation3 + $0x60] sm:$0xff]
        %v4520 = vld [vmem:[#allocation3 + $0x68] sm:$0xff]
        %v4521 = vld [vmem:[#allocation3 + $0x70] sm:$0xff]
        %v4522 = vld [vmem:[#allocation3 + $0x78] sm:$0xff]
        %v4523 = vld [vmem:[#allocation3 + $0x80] sm:$0xff]
        %v4524 = vld [vmem:[#allocation3 + $0x88] sm:$0xff]
        %v4525 = vld [vmem:[#allocation3 + $0x90] sm:$0xff]
        %v4526 = vld [vmem:[#allocation3 + $0x98] sm:$0xff]
        %v4527 = vld [vmem:[#allocation3 + $0xa0] sm:$0xff]
        %v4528 = vld [vmem:[#allocation3 + $0xa8] sm:$0xff]
        %v4529 = vld [vmem:[#allocation3 + $0xb0] sm:$0xff]
        %v4530 = vld [vmem:[#allocation3 + $0xb8] sm:$0xff]
        %v4531 = vld [vmem:[#allocation3 + $0xc0] sm:$0xff]
        %v4532 = vld [vmem:[#allocation3 + $0xc8] sm:$0xff]
        %v4533 = vld [vmem:[#allocation3 + $0xd0] sm:$0xff]
        %v4534 = vld [vmem:[#allocation3 + $0xd8] sm:$0xff]
        %v4535 = vld [vmem:[#allocation3 + $0xe0] sm:$0xff]
        %v4536 = vld [vmem:[#allocation3 + $0xe8] sm:$0xff]
        %v4537 = vld [vmem:[#allocation3 + $0xf0] sm:$0xff]
        %v4538 = vld [vmem:[#allocation3 + $0xf8] sm:$0xff]
        %v4539 = vld [vmem:[%s3] sm:$0xf]
        %v4540 = vld [vmem:[%s3 + $0x4] sm:$0xf]
        %v4541 = vld [vmem:[%s3 + $0x8] sm:$0xf]
        %v4542 = vld [vmem:[%s3 + $0xc] sm:$0xf]
        %v4543 = vld [vmem:[%s3 + $0x10] sm:$0xf]
        %v4544 = vld [vmem:[%s3 + $0x14] sm:$0xf]
        %v4545 = vld [vmem:[%s3 + $0x18] sm:$0xf]
        %v4546 = vld [vmem:[%s3 + $0x1c] sm:$0xf]
        %v4547 = vld [vmem:[%s3 + $0x20] sm:$0xf]
        %v4548 = vld [vmem:[%s3 + $0x24] sm:$0xf]
        %v4549 = vld [vmem:[%s3 + $0x28] sm:$0xf]
        %v4550 = vld [vmem:[%s3 + $0x2c] sm:$0xf]
        %v4551 = vld [vmem:[%s3 + $0x30] sm:$0xf]
        %v4552 = vld [vmem:[%s3 + $0x34] sm:$0xf]
        %v4553 = vld [vmem:[%s3 + $0x38] sm:$0xf]
        %v4554 = vld [vmem:[%s3 + $0x3c] sm:$0xf]
        %v4555 = vld [vmem:[%s3 + $0x40] sm:$0xf]
        %v4556 = vld [vmem:[%s3 + $0x44] sm:$0xf]
        %v4557 = vld [vmem:[%s3 + $0x48] sm:$0xf]
        %v4558 = vld [vmem:[%s3 + $0x4c] sm:$0xf]
        %v4559 = vld [vmem:[#allocation3 + $0x100] sm:$0xff]
        %v4560 = vld [vmem:[#allocation3 + $0x108] sm:$0xff]
        %s4561 = scalar_lea.vmem %s3, 80
        %v4562 = vld [vmem:[%s4561] sm:$0xf]
        %v4563 = vld [vmem:[%s4561 + $0x4] sm:$0xf]
        %v4564 = vld [vmem:[%s4561 + $0x8] sm:$0xf]
        %v4565 = vld [vmem:[%s4561 + $0xc] sm:$0xf]
        %v4566 = vld [vmem:[%s4561 + $0x10] sm:$0xf]
        %v4567 = vld [vmem:[%s4561 + $0x14] sm:$0xf]
        %v4568 = vld [vmem:[%s4561 + $0x18] sm:$0xf]
        %v4569 = vld [vmem:[%s4561 + $0x1c] sm:$0xf]
        %v4570 = vld [vmem:[%s4561 + $0x20] sm:$0xf]
        %v4571 = vld [vmem:[%s4561 + $0x24] sm:$0xf]
        %v4572 = vld [vmem:[%s4561 + $0x28] sm:$0xf]
        %v4573 = vld [vmem:[%s4561 + $0x2c] sm:$0xf]
        %v4574 = vld [vmem:[%s4561 + $0x30] sm:$0xf]
        %v4575 = vld [vmem:[%s4561 + $0x34] sm:$0xf]
        %v4576 = vld [vmem:[%s4561 + $0x38] sm:$0xf]
        %v4577 = vld [vmem:[%s4561 + $0x3c] sm:$0xf]
        %v4578 = vld [vmem:[%s4561 + $0x40] sm:$0xf]
        %v4579 = vld [vmem:[%s4561 + $0x44] sm:$0xf]
        %v4580 = vld [vmem:[%s4561 + $0x48] sm:$0xf]
        %v4581 = vld [vmem:[%s4561 + $0x4c] sm:$0xf]
        %v4614 = vunpack.c.l.b16 %v4509
        %v4615 = vunpack.c.h.b16 %v4509
        %v4616 = vunpack.c.l.b16 %v4510
        %v4617 = vunpack.c.h.b16 %v4510
        %v4618 = vunpack.c.l.b16 %v4511
        %v4619 = vunpack.c.h.b16 %v4511
        %v4620 = vunpack.c.l.b16 %v4512
        %v4621 = vunpack.c.h.b16 %v4512
        %v4622 = vunpack.c.l.b16 %v4513
        %v4623 = vunpack.c.h.b16 %v4513
        %v4624 = vunpack.c.l.b16 %v4514
        %v4625 = vunpack.c.h.b16 %v4514
        %v4626 = vunpack.c.l.b16 %v4515
        %v4627 = vunpack.c.h.b16 %v4515
        %v4628 = vunpack.c.l.b16 %v4516
        %v4629 = vunpack.c.h.b16 %v4516
        %v4630 = vunpack.c.l.b16 %v4517
        %v4631 = vunpack.c.h.b16 %v4517
        %v4632 = vunpack.c.l.b16 %v4518
        %v4633 = vunpack.c.h.b16 %v4518
        %v4634 = vunpack.c.l.b16 %v4519
        %v4635 = vunpack.c.h.b16 %v4519
        %v4636 = vunpack.c.l.b16 %v4520
        %v4637 = vunpack.c.h.b16 %v4520
        %v4638 = vunpack.c.l.b16 %v4521
        %v4639 = vunpack.c.h.b16 %v4521
        %v4640 = vunpack.c.l.b16 %v4522
        %v4641 = vunpack.c.h.b16 %v4522
        %v4642 = vunpack.c.l.b16 %v4523
        %v4643 = vunpack.c.h.b16 %v4523
        %v4644 = vunpack.c.l.b16 %v4524
        %v4645 = vunpack.c.h.b16 %v4524
        %v4646 = vunpack.c.l.b16 %v4525
        %v4647 = vunpack.c.h.b16 %v4525
        %v4648 = vunpack.c.l.b16 %v4526
        %v4649 = vunpack.c.h.b16 %v4526
        %v4650 = vunpack.c.l.b16 %v4527
        %v4651 = vunpack.c.h.b16 %v4527
        %v4652 = vunpack.c.l.b16 %v4528
        %v4653 = vunpack.c.h.b16 %v4528
        %v4654 = vunpack.c.l.b16 %v4529
        %v4655 = vunpack.c.h.b16 %v4529
        %v4656 = vunpack.c.l.b16 %v4530
        %v4657 = vunpack.c.h.b16 %v4530
        %v4658 = vunpack.c.l.b16 %v4531
        %v4659 = vunpack.c.h.b16 %v4531
        %v4660 = vunpack.c.l.b16 %v4532
        %v4661 = vunpack.c.h.b16 %v4532
        %v4662 = vunpack.c.l.b16 %v4533
        %v4663 = vunpack.c.h.b16 %v4533
        %v4664 = vunpack.c.l.b16 %v4534
        %v4665 = vunpack.c.h.b16 %v4534
        %v4666 = vunpack.c.l.b16 %v4535
        %v4667 = vunpack.c.h.b16 %v4535
        %v4668 = vunpack.c.l.b16 %v4536
        %v4669 = vunpack.c.h.b16 %v4536
        %v4670 = vunpack.c.l.b16 %v4537
        %v4671 = vunpack.c.h.b16 %v4537
        %v4672 = vunpack.c.l.b16 %v4538
        %v4673 = vunpack.c.h.b16 %v4538
        %v4674 = vunpack.c.l.b16 %v4559
        %v4675 = vunpack.c.h.b16 %v4559
        %v4676 = vunpack.c.l.b16 %v4560
        %v4677 = vunpack.c.h.b16 %v4560
        %v4678 = vpack.c.b16 %v4616, %v4614
        %v4679 = vpack.c.b16 %v4617, %v4615
        %v4680 = vpack.c.b16 %v4620, %v4618
        %v4681 = vpack.c.b16 %v4621, %v4619
        %v4682 = vpack.c.b16 %v4624, %v4622
        %v4683 = vpack.c.b16 %v4625, %v4623
        %v4684 = vpack.c.b16 %v4628, %v4626
        %v4685 = vpack.c.b16 %v4629, %v4627
        %v4686 = vpack.c.b16 %v4632, %v4630
        %v4687 = vpack.c.b16 %v4633, %v4631
        %v4688 = vpack.c.b16 %v4636, %v4634
        %v4689 = vpack.c.b16 %v4637, %v4635
        %v4690 = vpack.c.b16 %v4640, %v4638
        %v4691 = vpack.c.b16 %v4641, %v4639
        %v4692 = vpack.c.b16 %v4644, %v4642
        %v4693 = vpack.c.b16 %v4645, %v4643
        %v4694 = vpack.c.b16 %v4648, %v4646
        %v4695 = vpack.c.b16 %v4649, %v4647
        %v4696 = vpack.c.b16 %v4652, %v4650
        %v4697 = vpack.c.b16 %v4653, %v4651
        %v4698 = vpack.c.b16 %v4656, %v4654
        %v4699 = vpack.c.b16 %v4657, %v4655
        %v4700 = vpack.c.b16 %v4660, %v4658
        %v4701 = vpack.c.b16 %v4661, %v4659
        %v4702 = vpack.c.b16 %v4664, %v4662
        %v4703 = vpack.c.b16 %v4665, %v4663
        %v4704 = vpack.c.b16 %v4668, %v4666
        %v4705 = vpack.c.b16 %v4669, %v4667
        %v4706 = vpack.c.b16 %v4672, %v4670
        %v4707 = vpack.c.b16 %v4673, %v4671
        %v4708 = vpack.c.b16 %v4676, %v4674
        %v4709 = vpack.c.b16 %v4677, %v4675
        %v4746 = vunpack.c.l.b16 %v4562
        %v4747 = vunpack.c.l.b16 %v4563
        %v4748 = vunpack.c.l.b16 %v4564
        %v4749 = vunpack.c.l.b16 %v4565
        %v4750 = vunpack.c.l.b16 %v4566
        %v4751 = vunpack.c.l.b16 %v4567
        %v4752 = vunpack.c.l.b16 %v4568
        %v4753 = vunpack.c.l.b16 %v4569
        %v4754 = vunpack.c.l.b16 %v4570
        %v4755 = vunpack.c.l.b16 %v4571
        %v4756 = vunpack.c.l.b16 %v4572
        %v4757 = vunpack.c.l.b16 %v4573
        %v4758 = vunpack.c.l.b16 %v4574
        %v4759 = vunpack.c.l.b16 %v4575
        %v4760 = vunpack.c.l.b16 %v4576
        %v4761 = vunpack.c.l.b16 %v4577
        %v4762 = vunpack.c.l.b16 %v4578
        %v4763 = vunpack.c.l.b16 %v4579
        %v4764 = vunpack.c.l.b16 %v4580
        %v4765 = vunpack.c.l.b16 %v4581
        %v4766 = vpack.c.b16 %v4747, %v4746
        %v4767 = vpack.c.b16 %v4749, %v4748
        %v4768 = vpack.c.b16 %v4751, %v4750
        %v4769 = vpack.c.b16 %v4753, %v4752
        %v4770 = vpack.c.b16 %v4755, %v4754
        %v4771 = vpack.c.b16 %v4757, %v4756
        %v4772 = vpack.c.b16 %v4759, %v4758
        %v4773 = vpack.c.b16 %v4761, %v4760
        %v4774 = vpack.c.b16 %v4763, %v4762
        %v4775 = vpack.c.b16 %v4765, %v4764
        %v4787 = vsel %vm1158, %v4679, 0
        %v4790 = vsel %vm1158, %v4681, 0
        %v4793 = vsel %vm1158, %v4683, 0
        %v4796 = vsel %vm1158, %v4685, 0
        %v4799 = vsel %vm1158, %v4687, 0
        %v4802 = vsel %vm1158, %v4689, 0
        %v4805 = vsel %vm1158, %v4691, 0
        %v4808 = vsel %vm1158, %v4693, 0
        %v4811 = vsel %vm1158, %v4695, 0
        %v4814 = vsel %vm1158, %v4697, 0
        %v4817 = vsel %vm1158, %v4699, 0
        %v4820 = vsel %vm1158, %v4701, 0
        %v4823 = vsel %vm1158, %v4703, 0
        %v4826 = vsel %vm1158, %v4705, 0
        %v4829 = vsel %vm1158, %v4707, 0
        %v4832 = vsel %vm1158, %v4709, 0
        %4834 = vmatpush.bf16.msra.mxu0 %v4773
        %4835 = vmatpush.bf16.msra.mxu0 %v4772
        %4836 = vmatpush.bf16.msra.mxu0 %v4771
        %4837 = vmatpush.bf16.msra.mxu0 %v4770
        %4838 = vmatpush.bf16.msra.mxu0 %v4769
        %4839 = vmatpush.bf16.msra.mxu0 %v4768
        %4840 = vmatpush.bf16.msra.mxu0 %v4767
        %4841 = vmatpush.bf16.msra.mxu0 %v4766
        %4842 = vmatmul.bf16.gmra.mxu0 %v4678
        %v4843 = vpop.f32.mrf.mxu0
        %v4844 = vadd.f32 0.0, %v4843
        %v4845 = vpop.f32.mrf.mxu0
        %v4846 = vadd.f32 0.0, %v4845
        %4847 = vmatmul.bf16.gmra.mxu0 %v4680
        %v4848 = vpop.f32.mrf.mxu0
        %v4849 = vadd.f32 0.0, %v4848
        %v4850 = vpop.f32.mrf.mxu0
        %v4851 = vadd.f32 0.0, %v4850
        %4852 = vmatmul.bf16.gmra.mxu0 %v4682
        %v4853 = vpop.f32.mrf.mxu0
        %v4854 = vadd.f32 0.0, %v4853
        %v4855 = vpop.f32.mrf.mxu0
        %v4856 = vadd.f32 0.0, %v4855
        %4857 = vmatmul.bf16.gmra.mxu0 %v4684
        %v4858 = vpop.f32.mrf.mxu0
        %v4859 = vadd.f32 0.0, %v4858
        %v4860 = vpop.f32.mrf.mxu0
        %v4861 = vadd.f32 0.0, %v4860
        %4862 = vmatmul.bf16.gmra.mxu0 %v4686
        %v4863 = vpop.f32.mrf.mxu0
        %v4864 = vadd.f32 0.0, %v4863
        %v4865 = vpop.f32.mrf.mxu0
        %v4866 = vadd.f32 0.0, %v4865
        %4867 = vmatmul.bf16.gmra.mxu0 %v4688
        %v4868 = vpop.f32.mrf.mxu0
        %v4869 = vadd.f32 0.0, %v4868
        %v4870 = vpop.f32.mrf.mxu0
        %v4871 = vadd.f32 0.0, %v4870
        %4872 = vmatmul.bf16.gmra.mxu0 %v4690
        %v4873 = vpop.f32.mrf.mxu0
        %v4874 = vadd.f32 0.0, %v4873
        %v4875 = vpop.f32.mrf.mxu0
        %v4876 = vadd.f32 0.0, %v4875
        %4877 = vmatmul.bf16.gmra.mxu0 %v4692
        %v4878 = vpop.f32.mrf.mxu0
        %v4879 = vadd.f32 0.0, %v4878
        %v4880 = vpop.f32.mrf.mxu0
        %v4881 = vadd.f32 0.0, %v4880
        %4882 = vmatmul.bf16.gmra.mxu0 %v4694
        %v4883 = vpop.f32.mrf.mxu0
        %v4884 = vadd.f32 0.0, %v4883
        %v4885 = vpop.f32.mrf.mxu0
        %v4886 = vadd.f32 0.0, %v4885
        %4887 = vmatmul.bf16.gmra.mxu0 %v4696
        %v4888 = vpop.f32.mrf.mxu0
        %v4889 = vadd.f32 0.0, %v4888
        %v4890 = vpop.f32.mrf.mxu0
        %v4891 = vadd.f32 0.0, %v4890
        %4892 = vmatmul.bf16.gmra.mxu0 %v4698
        %v4893 = vpop.f32.mrf.mxu0
        %v4894 = vadd.f32 0.0, %v4893
        %v4895 = vpop.f32.mrf.mxu0
        %v4896 = vadd.f32 0.0, %v4895
        %4897 = vmatmul.bf16.gmra.mxu0 %v4700
        %v4898 = vpop.f32.mrf.mxu0
        %v4899 = vadd.f32 0.0, %v4898
        %v4900 = vpop.f32.mrf.mxu0
        %v4901 = vadd.f32 0.0, %v4900
        %4902 = vmatmul.bf16.gmra.mxu0 %v4702
        %v4903 = vpop.f32.mrf.mxu0
        %v4904 = vadd.f32 0.0, %v4903
        %v4905 = vpop.f32.mrf.mxu0
        %v4906 = vadd.f32 0.0, %v4905
        %4907 = vmatmul.bf16.gmra.mxu0 %v4704
        %v4908 = vpop.f32.mrf.mxu0
        %v4909 = vadd.f32 0.0, %v4908
        %v4910 = vpop.f32.mrf.mxu0
        %v4911 = vadd.f32 0.0, %v4910
        %4912 = vmatmul.bf16.gmra.mxu0 %v4706
        %v4913 = vpop.f32.mrf.mxu0
        %v4914 = vadd.f32 0.0, %v4913
        %v4915 = vpop.f32.mrf.mxu0
        %v4916 = vadd.f32 0.0, %v4915
        %4917 = vmatmul.bf16.gmra.mxu0 %v4708
        %v4918 = vpop.f32.mrf.mxu0
        %v4919 = vadd.f32 0.0, %v4918
        %v4920 = vpop.f32.mrf.mxu0
        %v4921 = vadd.f32 0.0, %v4920
        %4922 = vdwg.mxu0
        %4923 = vmatpush.bf16.msra.mxu0 0
        %4924 = vmatpush.bf16.msra.mxu0 0
        %4925 = vmatpush.bf16.msra.mxu0 0
        %4926 = vmatpush.bf16.msra.mxu0 0
        %4927 = vmatpush.bf16.msra.mxu0 0
        %4928 = vmatpush.bf16.msra.mxu0 0
        %4929 = vmatpush.bf16.msra.mxu0 %v4775
        %4930 = vmatpush.bf16.msra.mxu0 %v4774
        %4931 = vmatmul.bf16.gmra.mxu0 %v4787
        %v4932 = vpop.f32.mrf.mxu0
        %v4933 = vadd.f32 %v4844, %v4932
        %v4934 = vpop.f32.mrf.mxu0
        %v4935 = vadd.f32 %v4846, %v4934
        %4936 = vmatmul.bf16.gmra.mxu0 %v4790
        %v4937 = vpop.f32.mrf.mxu0
        %v4938 = vadd.f32 %v4849, %v4937
        %v4939 = vpop.f32.mrf.mxu0
        %v4940 = vadd.f32 %v4851, %v4939
        %4941 = vmatmul.bf16.gmra.mxu0 %v4793
        %v4942 = vpop.f32.mrf.mxu0
        %v4943 = vadd.f32 %v4854, %v4942
        %v4944 = vpop.f32.mrf.mxu0
        %v4945 = vadd.f32 %v4856, %v4944
        %4946 = vmatmul.bf16.gmra.mxu0 %v4796
        %v4947 = vpop.f32.mrf.mxu0
        %v4948 = vadd.f32 %v4859, %v4947
        %v4949 = vpop.f32.mrf.mxu0
        %v4950 = vadd.f32 %v4861, %v4949
        %4951 = vmatmul.bf16.gmra.mxu0 %v4799
        %v4952 = vpop.f32.mrf.mxu0
        %v4953 = vadd.f32 %v4864, %v4952
        %v4954 = vpop.f32.mrf.mxu0
        %v4955 = vadd.f32 %v4866, %v4954
        %4956 = vmatmul.bf16.gmra.mxu0 %v4802
        %v4957 = vpop.f32.mrf.mxu0
        %v4958 = vadd.f32 %v4869, %v4957
        %v4959 = vpop.f32.mrf.mxu0
        %v4960 = vadd.f32 %v4871, %v4959
        %4961 = vmatmul.bf16.gmra.mxu0 %v4805
        %v4962 = vpop.f32.mrf.mxu0
        %v4963 = vadd.f32 %v4874, %v4962
        %v4964 = vpop.f32.mrf.mxu0
        %v4965 = vadd.f32 %v4876, %v4964
        %4966 = vmatmul.bf16.gmra.mxu0 %v4808
        %v4967 = vpop.f32.mrf.mxu0
        %v4968 = vadd.f32 %v4879, %v4967
        %v4969 = vpop.f32.mrf.mxu0
        %v4970 = vadd.f32 %v4881, %v4969
        %4971 = vmatmul.bf16.gmra.mxu0 %v4811
        %v4972 = vpop.f32.mrf.mxu0
        %v4973 = vadd.f32 %v4884, %v4972
        %v4974 = vpop.f32.mrf.mxu0
        %v4975 = vadd.f32 %v4886, %v4974
        %4976 = vmatmul.bf16.gmra.mxu0 %v4814
        %v4977 = vpop.f32.mrf.mxu0
        %v4978 = vadd.f32 %v4889, %v4977
        %v4979 = vpop.f32.mrf.mxu0
        %v4980 = vadd.f32 %v4891, %v4979
        %4981 = vmatmul.bf16.gmra.mxu0 %v4817
        %v4982 = vpop.f32.mrf.mxu0
        %v4983 = vadd.f32 %v4894, %v4982
        %v4984 = vpop.f32.mrf.mxu0
        %v4985 = vadd.f32 %v4896, %v4984
        %4986 = vmatmul.bf16.gmra.mxu0 %v4820
        %v4987 = vpop.f32.mrf.mxu0
        %v4988 = vadd.f32 %v4899, %v4987
        %v4989 = vpop.f32.mrf.mxu0
        %v4990 = vadd.f32 %v4901, %v4989
        %4991 = vmatmul.bf16.gmra.mxu0 %v4823
        %v4992 = vpop.f32.mrf.mxu0
        %v4993 = vadd.f32 %v4904, %v4992
        %v4994 = vpop.f32.mrf.mxu0
        %v4995 = vadd.f32 %v4906, %v4994
        %4996 = vmatmul.bf16.gmra.mxu0 %v4826
        %v4997 = vpop.f32.mrf.mxu0
        %v4998 = vadd.f32 %v4909, %v4997
        %v4999 = vpop.f32.mrf.mxu0
        %v5000 = vadd.f32 %v4911, %v4999
        %5001 = vmatmul.bf16.gmra.mxu0 %v4829
        %v5002 = vpop.f32.mrf.mxu0
        %v5003 = vadd.f32 %v4914, %v5002
        %v5004 = vpop.f32.mrf.mxu0
        %v5005 = vadd.f32 %v4916, %v5004
        %5006 = vmatmul.bf16.gmra.mxu0 %v4832
        %v5007 = vpop.f32.mrf.mxu0
        %v5008 = vadd.f32 %v4919, %v5007
        %v5009 = vpop.f32.mrf.mxu0
        %v5010 = vadd.f32 %v4921, %v5009
        %5011 = vdwg.mxu0
        %v5014 = vunpack.c.l.b16 %v4507
        %v5015 = vunpack.c.h.b16 %v4507
        %v5016 = vunpack.c.l.b16 %v4508
        %v5017 = vunpack.c.h.b16 %v4508
        %v5018 = vpack.c.b16 %v5016, %v5014
        %v5019 = vpack.c.b16 %v5017, %v5015
        %v5041 = vunpack.c.l.b16 %v4539
        %v5042 = vunpack.c.l.b16 %v4540
        %v5043 = vunpack.c.l.b16 %v4541
        %v5044 = vunpack.c.l.b16 %v4542
        %v5045 = vunpack.c.l.b16 %v4543
        %v5046 = vunpack.c.l.b16 %v4544
        %v5047 = vunpack.c.l.b16 %v4545
        %v5048 = vunpack.c.l.b16 %v4546
        %v5049 = vunpack.c.l.b16 %v4547
        %v5050 = vunpack.c.l.b16 %v4548
        %v5051 = vunpack.c.l.b16 %v4549
        %v5052 = vunpack.c.l.b16 %v4550
        %v5053 = vunpack.c.l.b16 %v4551
        %v5054 = vunpack.c.l.b16 %v4552
        %v5055 = vunpack.c.l.b16 %v4553
        %v5056 = vunpack.c.l.b16 %v4554
        %v5057 = vunpack.c.l.b16 %v4555
        %v5058 = vunpack.c.l.b16 %v4556
        %v5059 = vunpack.c.l.b16 %v4557
        %v5060 = vunpack.c.l.b16 %v4558
        %v5061 = vpack.c.b16 %v5042, %v5041
        %v5062 = vpack.c.b16 %v5044, %v5043
        %v5063 = vpack.c.b16 %v5046, %v5045
        %v5064 = vpack.c.b16 %v5048, %v5047
        %v5065 = vpack.c.b16 %v5050, %v5049
        %v5066 = vpack.c.b16 %v5052, %v5051
        %v5067 = vpack.c.b16 %v5054, %v5053
        %v5068 = vpack.c.b16 %v5056, %v5055
        %v5069 = vpack.c.b16 %v5058, %v5057
        %v5070 = vpack.c.b16 %v5060, %v5059
        %v5082 = vsel %vm1158, %v5019, 0
        %5084 = vmatpush.bf16.msra.mxu0 %v5068
        %5085 = vmatpush.bf16.msra.mxu0 %v5067
        %5086 = vmatpush.bf16.msra.mxu0 %v5066
        %5087 = vmatpush.bf16.msra.mxu0 %v5065
        %5088 = vmatpush.bf16.msra.mxu0 %v5064
        %5089 = vmatpush.bf16.msra.mxu0 %v5063
        %5090 = vmatpush.bf16.msra.mxu0 %v5062
        %5091 = vmatpush.bf16.msra.mxu0 %v5061
        %5092 = vmatmul.bf16.gmra.mxu0 %v5018
        %v5093 = vpop.f32.mrf.mxu0
        %v5094 = vadd.f32 %v4933, %v5093
        %v5095 = vpop.f32.mrf.mxu0
        %v5096 = vadd.f32 %v4935, %v5095
        %5097 = vmatmul.bf16.gmra.mxu0 %v4678
        %v5098 = vpop.f32.mrf.mxu0
        %v5099 = vadd.f32 %v4938, %v5098
        %v5100 = vpop.f32.mrf.mxu0
        %v5101 = vadd.f32 %v4940, %v5100
        %5102 = vmatmul.bf16.gmra.mxu0 %v4680
        %v5103 = vpop.f32.mrf.mxu0
        %v5104 = vadd.f32 %v4943, %v5103
        %v5105 = vpop.f32.mrf.mxu0
        %v5106 = vadd.f32 %v4945, %v5105
        %5107 = vmatmul.bf16.gmra.mxu0 %v4682
        %v5108 = vpop.f32.mrf.mxu0
        %v5109 = vadd.f32 %v4948, %v5108
        %v5110 = vpop.f32.mrf.mxu0
        %v5111 = vadd.f32 %v4950, %v5110
        %5112 = vmatmul.bf16.gmra.mxu0 %v4684
        %v5113 = vpop.f32.mrf.mxu0
        %v5114 = vadd.f32 %v4953, %v5113
        %v5115 = vpop.f32.mrf.mxu0
        %v5116 = vadd.f32 %v4955, %v5115
        %5117 = vmatmul.bf16.gmra.mxu0 %v4686
        %v5118 = vpop.f32.mrf.mxu0
        %v5119 = vadd.f32 %v4958, %v5118
        %v5120 = vpop.f32.mrf.mxu0
        %v5121 = vadd.f32 %v4960, %v5120
        %5122 = vmatmul.bf16.gmra.mxu0 %v4688
        %v5123 = vpop.f32.mrf.mxu0
        %v5124 = vadd.f32 %v4963, %v5123
        %v5125 = vpop.f32.mrf.mxu0
        %v5126 = vadd.f32 %v4965, %v5125
        %5127 = vmatmul.bf16.gmra.mxu0 %v4690
        %v5128 = vpop.f32.mrf.mxu0
        %v5129 = vadd.f32 %v4968, %v5128
        %v5130 = vpop.f32.mrf.mxu0
        %v5131 = vadd.f32 %v4970, %v5130
        %5132 = vmatmul.bf16.gmra.mxu0 %v4692
        %v5133 = vpop.f32.mrf.mxu0
        %v5134 = vadd.f32 %v4973, %v5133
        %v5135 = vpop.f32.mrf.mxu0
        %v5136 = vadd.f32 %v4975, %v5135
        %5137 = vmatmul.bf16.gmra.mxu0 %v4694
        %v5138 = vpop.f32.mrf.mxu0
        %v5139 = vadd.f32 %v4978, %v5138
        %v5140 = vpop.f32.mrf.mxu0
        %v5141 = vadd.f32 %v4980, %v5140
        %5142 = vmatmul.bf16.gmra.mxu0 %v4696
        %v5143 = vpop.f32.mrf.mxu0
        %v5144 = vadd.f32 %v4983, %v5143
        %v5145 = vpop.f32.mrf.mxu0
        %v5146 = vadd.f32 %v4985, %v5145
        %5147 = vmatmul.bf16.gmra.mxu0 %v4698
        %v5148 = vpop.f32.mrf.mxu0
        %v5149 = vadd.f32 %v4988, %v5148
        %v5150 = vpop.f32.mrf.mxu0
        %v5151 = vadd.f32 %v4990, %v5150
        %5152 = vmatmul.bf16.gmra.mxu0 %v4700
        %v5153 = vpop.f32.mrf.mxu0
        %v5154 = vadd.f32 %v4993, %v5153
        %v5155 = vpop.f32.mrf.mxu0
        %v5156 = vadd.f32 %v4995, %v5155
        %5157 = vmatmul.bf16.gmra.mxu0 %v4702
        %v5158 = vpop.f32.mrf.mxu0
        %v5159 = vadd.f32 %v4998, %v5158
        %v5160 = vpop.f32.mrf.mxu0
        %v5161 = vadd.f32 %v5000, %v5160
        %5162 = vmatmul.bf16.gmra.mxu0 %v4704
        %v5163 = vpop.f32.mrf.mxu0
        %v5164 = vadd.f32 %v5003, %v5163
        %v5165 = vpop.f32.mrf.mxu0
        %v5166 = vadd.f32 %v5005, %v5165
        %5167 = vmatmul.bf16.gmra.mxu0 %v4706
        %v5168 = vpop.f32.mrf.mxu0
        %v5169 = vadd.f32 %v5008, %v5168
        %v5170 = vpop.f32.mrf.mxu0
        %v5171 = vadd.f32 %v5010, %v5170
        %5172 = vdwg.mxu0
        %5173 = vmatpush.bf16.msra.mxu0 0
        %5174 = vmatpush.bf16.msra.mxu0 0
        %5175 = vmatpush.bf16.msra.mxu0 0
        %5176 = vmatpush.bf16.msra.mxu0 0
        %5177 = vmatpush.bf16.msra.mxu0 0
        %5178 = vmatpush.bf16.msra.mxu0 0
        %5179 = vmatpush.bf16.msra.mxu0 %v5070
        %5180 = vmatpush.bf16.msra.mxu0 %v5069
        %5181 = vmatmul.bf16.gmra.mxu0 %v5082
        %v5182 = vpop.f32.mrf.mxu0
        %v5183 = vadd.f32 %v5094, %v5182
        %v5184 = vpop.f32.mrf.mxu0
        %v5185 = vadd.f32 %v5096, %v5184
        %5186 = vmatmul.bf16.gmra.mxu0 %v4787
        %v5187 = vpop.f32.mrf.mxu0
        %v5188 = vadd.f32 %v5099, %v5187
        %v5189 = vpop.f32.mrf.mxu0
        %v5190 = vadd.f32 %v5101, %v5189
        %5191 = vmatmul.bf16.gmra.mxu0 %v4790
        %v5192 = vpop.f32.mrf.mxu0
        %v5193 = vadd.f32 %v5104, %v5192
        %v5194 = vpop.f32.mrf.mxu0
        %v5195 = vadd.f32 %v5106, %v5194
        %5196 = vmatmul.bf16.gmra.mxu0 %v4793
        %v5197 = vpop.f32.mrf.mxu0
        %v5198 = vadd.f32 %v5109, %v5197
        %v5199 = vpop.f32.mrf.mxu0
        %v5200 = vadd.f32 %v5111, %v5199
        %5201 = vmatmul.bf16.gmra.mxu0 %v4796
        %v5202 = vpop.f32.mrf.mxu0
        %v5203 = vadd.f32 %v5114, %v5202
        %v5204 = vpop.f32.mrf.mxu0
        %v5205 = vadd.f32 %v5116, %v5204
        %5206 = vmatmul.bf16.gmra.mxu0 %v4799
        %v5207 = vpop.f32.mrf.mxu0
        %v5208 = vadd.f32 %v5119, %v5207
        %v5209 = vpop.f32.mrf.mxu0
        %v5210 = vadd.f32 %v5121, %v5209
        %5211 = vmatmul.bf16.gmra.mxu0 %v4802
        %v5212 = vpop.f32.mrf.mxu0
        %v5213 = vadd.f32 %v5124, %v5212
        %v5214 = vpop.f32.mrf.mxu0
        %v5215 = vadd.f32 %v5126, %v5214
        %5216 = vmatmul.bf16.gmra.mxu0 %v4805
        %v5217 = vpop.f32.mrf.mxu0
        %v5218 = vadd.f32 %v5129, %v5217
        %v5219 = vpop.f32.mrf.mxu0
        %v5220 = vadd.f32 %v5131, %v5219
        %5221 = vmatmul.bf16.gmra.mxu0 %v4808
        %v5222 = vpop.f32.mrf.mxu0
        %v5223 = vadd.f32 %v5134, %v5222
        %v5224 = vpop.f32.mrf.mxu0
        %v5225 = vadd.f32 %v5136, %v5224
        %5226 = vmatmul.bf16.gmra.mxu0 %v4811
        %v5227 = vpop.f32.mrf.mxu0
        %v5228 = vadd.f32 %v5139, %v5227
        %v5229 = vpop.f32.mrf.mxu0
        %v5230 = vadd.f32 %v5141, %v5229
        %5231 = vmatmul.bf16.gmra.mxu0 %v4814
        %v5232 = vpop.f32.mrf.mxu0
        %v5233 = vadd.f32 %v5144, %v5232
        %v5234 = vpop.f32.mrf.mxu0
        %v5235 = vadd.f32 %v5146, %v5234
        %5236 = vmatmul.bf16.gmra.mxu0 %v4817
        %v5237 = vpop.f32.mrf.mxu0
        %v5238 = vadd.f32 %v5149, %v5237
        %v5239 = vpop.f32.mrf.mxu0
        %v5240 = vadd.f32 %v5151, %v5239
        %5241 = vmatmul.bf16.gmra.mxu0 %v4820
        %v5242 = vpop.f32.mrf.mxu0
        %v5243 = vadd.f32 %v5154, %v5242
        %v5244 = vpop.f32.mrf.mxu0
        %v5245 = vadd.f32 %v5156, %v5244
        %5246 = vmatmul.bf16.gmra.mxu0 %v4823
        %v5247 = vpop.f32.mrf.mxu0
        %v5248 = vadd.f32 %v5159, %v5247
        %v5249 = vpop.f32.mrf.mxu0
        %v5250 = vadd.f32 %v5161, %v5249
        %5251 = vmatmul.bf16.gmra.mxu0 %v4826
        %v5252 = vpop.f32.mrf.mxu0
        %v5253 = vadd.f32 %v5164, %v5252
        %v5254 = vpop.f32.mrf.mxu0
        %v5255 = vadd.f32 %v5166, %v5254
        %5256 = vmatmul.bf16.gmra.mxu0 %v4829
        %v5257 = vpop.f32.mrf.mxu0
        %v5258 = vadd.f32 %v5169, %v5257
        %v5259 = vpop.f32.mrf.mxu0
        %v5260 = vadd.f32 %v5171, %v5259
        %5261 = vdwg.mxu0
        %v5262 = vld [vmem:[#allocation3 + $0x20] sm:$0xff]
        %v5263 = vld [vmem:[#allocation3 + $0x28] sm:$0xff]
        %v5264 = vld [vmem:[#allocation3 + $0x30] sm:$0xff]
        %v5265 = vld [vmem:[#allocation3 + $0x38] sm:$0xff]
        %v5266 = vld [vmem:[#allocation3 + $0x40] sm:$0xff]
        %v5267 = vld [vmem:[#allocation3 + $0x48] sm:$0xff]
        %v5268 = vld [vmem:[#allocation3 + $0x50] sm:$0xff]
        %v5269 = vld [vmem:[#allocation3 + $0x58] sm:$0xff]
        %v5270 = vld [vmem:[#allocation3 + $0x60] sm:$0xff]
        %v5271 = vld [vmem:[#allocation3 + $0x68] sm:$0xff]
        %v5272 = vld [vmem:[#allocation3 + $0x70] sm:$0xff]
        %v5273 = vld [vmem:[#allocation3 + $0x78] sm:$0xff]
        %v5274 = vld [vmem:[#allocation3 + $0x80] sm:$0xff]
        %v5275 = vld [vmem:[#allocation3 + $0x88] sm:$0xff]
        %v5276 = vld [vmem:[#allocation3 + $0x90] sm:$0xff]
        %v5277 = vld [vmem:[#allocation3 + $0x98] sm:$0xff]
        %v5278 = vld [vmem:[#allocation3 + $0xa0] sm:$0xff]
        %v5279 = vld [vmem:[#allocation3 + $0xa8] sm:$0xff]
        %v5280 = vld [vmem:[#allocation3 + $0xb0] sm:$0xff]
        %v5281 = vld [vmem:[#allocation3 + $0xb8] sm:$0xff]
        %v5282 = vld [vmem:[#allocation3 + $0xc0] sm:$0xff]
        %v5283 = vld [vmem:[#allocation3 + $0xc8] sm:$0xff]
        %v5284 = vld [vmem:[#allocation3 + $0xd0] sm:$0xff]
        %v5285 = vld [vmem:[#allocation3 + $0xd8] sm:$0xff]
        %v5286 = vld [vmem:[#allocation3 + $0xe0] sm:$0xff]
        %v5287 = vld [vmem:[#allocation3 + $0xe8] sm:$0xff]
        %v5288 = vld [vmem:[#allocation3 + $0xf0] sm:$0xff]
        %v5289 = vld [vmem:[#allocation3 + $0xf8] sm:$0xff]
        %v5290 = vld [vmem:[#allocation3 + $0x100] sm:$0xff]
        %v5291 = vld [vmem:[#allocation3 + $0x108] sm:$0xff]
        %v5292 = vld [vmem:[#allocation3 + $0x110] sm:$0xff]
        %v5293 = vld [vmem:[#allocation3 + $0x118] sm:$0xff]
        %s5294 = scalar_lea.vmem %s3, 160
        %v5295 = vld [vmem:[%s5294] sm:$0xf]
        %v5296 = vld [vmem:[%s5294 + $0x4] sm:$0xf]
        %v5297 = vld [vmem:[%s5294 + $0x8] sm:$0xf]
        %v5298 = vld [vmem:[%s5294 + $0xc] sm:$0xf]
        %v5299 = vld [vmem:[%s5294 + $0x10] sm:$0xf]
        %v5300 = vld [vmem:[%s5294 + $0x14] sm:$0xf]
        %v5301 = vld [vmem:[%s5294 + $0x18] sm:$0xf]
        %v5302 = vld [vmem:[%s5294 + $0x1c] sm:$0xf]
        %v5303 = vld [vmem:[%s5294 + $0x20] sm:$0xf]
        %v5304 = vld [vmem:[%s5294 + $0x24] sm:$0xf]
        %v5305 = vld [vmem:[%s5294 + $0x28] sm:$0xf]
        %v5306 = vld [vmem:[%s5294 + $0x2c] sm:$0xf]
        %v5307 = vld [vmem:[%s5294 + $0x30] sm:$0xf]
        %v5308 = vld [vmem:[%s5294 + $0x34] sm:$0xf]
        %v5309 = vld [vmem:[%s5294 + $0x38] sm:$0xf]
        %v5310 = vld [vmem:[%s5294 + $0x3c] sm:$0xf]
        %v5311 = vld [vmem:[%s5294 + $0x40] sm:$0xf]
        %v5312 = vld [vmem:[%s5294 + $0x44] sm:$0xf]
        %v5313 = vld [vmem:[%s5294 + $0x48] sm:$0xf]
        %v5314 = vld [vmem:[%s5294 + $0x4c] sm:$0xf]
        %v5347 = vunpack.c.l.b16 %v5262
        %v5348 = vunpack.c.h.b16 %v5262
        %v5349 = vunpack.c.l.b16 %v5263
        %v5350 = vunpack.c.h.b16 %v5263
        %v5351 = vunpack.c.l.b16 %v5264
        %v5352 = vunpack.c.h.b16 %v5264
        %v5353 = vunpack.c.l.b16 %v5265
        %v5354 = vunpack.c.h.b16 %v5265
        %v5355 = vunpack.c.l.b16 %v5266
        %v5356 = vunpack.c.h.b16 %v5266
        %v5357 = vunpack.c.l.b16 %v5267
        %v5358 = vunpack.c.h.b16 %v5267
        %v5359 = vunpack.c.l.b16 %v5268
        %v5360 = vunpack.c.h.b16 %v5268
        %v5361 = vunpack.c.l.b16 %v5269
        %v5362 = vunpack.c.h.b16 %v5269
        %v5363 = vunpack.c.l.b16 %v5270
        %v5364 = vunpack.c.h.b16 %v5270
        %v5365 = vunpack.c.l.b16 %v5271
        %v5366 = vunpack.c.h.b16 %v5271
        %v5367 = vunpack.c.l.b16 %v5272
        %v5368 = vunpack.c.h.b16 %v5272
        %v5369 = vunpack.c.l.b16 %v5273
        %v5370 = vunpack.c.h.b16 %v5273
        %v5371 = vunpack.c.l.b16 %v5274
        %v5372 = vunpack.c.h.b16 %v5274
        %v5373 = vunpack.c.l.b16 %v5275
        %v5374 = vunpack.c.h.b16 %v5275
        %v5375 = vunpack.c.l.b16 %v5276
        %v5376 = vunpack.c.h.b16 %v5276
        %v5377 = vunpack.c.l.b16 %v5277
        %v5378 = vunpack.c.h.b16 %v5277
        %v5379 = vunpack.c.l.b16 %v5278
        %v5380 = vunpack.c.h.b16 %v5278
        %v5381 = vunpack.c.l.b16 %v5279
        %v5382 = vunpack.c.h.b16 %v5279
        %v5383 = vunpack.c.l.b16 %v5280
        %v5384 = vunpack.c.h.b16 %v5280
        %v5385 = vunpack.c.l.b16 %v5281
        %v5386 = vunpack.c.h.b16 %v5281
        %v5387 = vunpack.c.l.b16 %v5282
        %v5388 = vunpack.c.h.b16 %v5282
        %v5389 = vunpack.c.l.b16 %v5283
        %v5390 = vunpack.c.h.b16 %v5283
        %v5391 = vunpack.c.l.b16 %v5284
        %v5392 = vunpack.c.h.b16 %v5284
        %v5393 = vunpack.c.l.b16 %v5285
        %v5394 = vunpack.c.h.b16 %v5285
        %v5395 = vunpack.c.l.b16 %v5286
        %v5396 = vunpack.c.h.b16 %v5286
        %v5397 = vunpack.c.l.b16 %v5287
        %v5398 = vunpack.c.h.b16 %v5287
        %v5399 = vunpack.c.l.b16 %v5288
        %v5400 = vunpack.c.h.b16 %v5288
        %v5401 = vunpack.c.l.b16 %v5289
        %v5402 = vunpack.c.h.b16 %v5289
        %v5403 = vunpack.c.l.b16 %v5290
        %v5404 = vunpack.c.h.b16 %v5290
        %v5405 = vunpack.c.l.b16 %v5291
        %v5406 = vunpack.c.h.b16 %v5291
        %v5407 = vunpack.c.l.b16 %v5292
        %v5408 = vunpack.c.h.b16 %v5292
        %v5409 = vunpack.c.l.b16 %v5293
        %v5410 = vunpack.c.h.b16 %v5293
        %v5411 = vpack.c.b16 %v5349, %v5347
        %v5412 = vpack.c.b16 %v5350, %v5348
        %v5413 = vpack.c.b16 %v5353, %v5351
        %v5414 = vpack.c.b16 %v5354, %v5352
        %v5415 = vpack.c.b16 %v5357, %v5355
        %v5416 = vpack.c.b16 %v5358, %v5356
        %v5417 = vpack.c.b16 %v5361, %v5359
        %v5418 = vpack.c.b16 %v5362, %v5360
        %v5419 = vpack.c.b16 %v5365, %v5363
        %v5420 = vpack.c.b16 %v5366, %v5364
        %v5421 = vpack.c.b16 %v5369, %v5367
        %v5422 = vpack.c.b16 %v5370, %v5368
        %v5423 = vpack.c.b16 %v5373, %v5371
        %v5424 = vpack.c.b16 %v5374, %v5372
        %v5425 = vpack.c.b16 %v5377, %v5375
        %v5426 = vpack.c.b16 %v5378, %v5376
        %v5427 = vpack.c.b16 %v5381, %v5379
        %v5428 = vpack.c.b16 %v5382, %v5380
        %v5429 = vpack.c.b16 %v5385, %v5383
        %v5430 = vpack.c.b16 %v5386, %v5384
        %v5431 = vpack.c.b16 %v5389, %v5387
        %v5432 = vpack.c.b16 %v5390, %v5388
        %v5433 = vpack.c.b16 %v5393, %v5391
        %v5434 = vpack.c.b16 %v5394, %v5392
        %v5435 = vpack.c.b16 %v5397, %v5395
        %v5436 = vpack.c.b16 %v5398, %v5396
        %v5437 = vpack.c.b16 %v5401, %v5399
        %v5438 = vpack.c.b16 %v5402, %v5400
        %v5439 = vpack.c.b16 %v5405, %v5403
        %v5440 = vpack.c.b16 %v5406, %v5404
        %v5441 = vpack.c.b16 %v5409, %v5407
        %v5442 = vpack.c.b16 %v5410, %v5408
        %v5479 = vunpack.c.l.b16 %v5295
        %v5480 = vunpack.c.l.b16 %v5296
        %v5481 = vunpack.c.l.b16 %v5297
        %v5482 = vunpack.c.l.b16 %v5298
        %v5483 = vunpack.c.l.b16 %v5299
        %v5484 = vunpack.c.l.b16 %v5300
        %v5485 = vunpack.c.l.b16 %v5301
        %v5486 = vunpack.c.l.b16 %v5302
        %v5487 = vunpack.c.l.b16 %v5303
        %v5488 = vunpack.c.l.b16 %v5304
        %v5489 = vunpack.c.l.b16 %v5305
        %v5490 = vunpack.c.l.b16 %v5306
        %v5491 = vunpack.c.l.b16 %v5307
        %v5492 = vunpack.c.l.b16 %v5308
        %v5493 = vunpack.c.l.b16 %v5309
        %v5494 = vunpack.c.l.b16 %v5310
        %v5495 = vunpack.c.l.b16 %v5311
        %v5496 = vunpack.c.l.b16 %v5312
        %v5497 = vunpack.c.l.b16 %v5313
        %v5498 = vunpack.c.l.b16 %v5314
        %v5499 = vpack.c.b16 %v5480, %v5479
        %v5500 = vpack.c.b16 %v5482, %v5481
        %v5501 = vpack.c.b16 %v5484, %v5483
        %v5502 = vpack.c.b16 %v5486, %v5485
        %v5503 = vpack.c.b16 %v5488, %v5487
        %v5504 = vpack.c.b16 %v5490, %v5489
        %v5505 = vpack.c.b16 %v5492, %v5491
        %v5506 = vpack.c.b16 %v5494, %v5493
        %v5507 = vpack.c.b16 %v5496, %v5495
        %v5508 = vpack.c.b16 %v5498, %v5497
        %v5520 = vsel %vm1158, %v5412, 0
        %v5523 = vsel %vm1158, %v5414, 0
        %v5526 = vsel %vm1158, %v5416, 0
        %v5529 = vsel %vm1158, %v5418, 0
        %v5532 = vsel %vm1158, %v5420, 0
        %v5535 = vsel %vm1158, %v5422, 0
        %v5538 = vsel %vm1158, %v5424, 0
        %v5541 = vsel %vm1158, %v5426, 0
        %v5544 = vsel %vm1158, %v5428, 0
        %v5547 = vsel %vm1158, %v5430, 0
        %v5550 = vsel %vm1158, %v5432, 0
        %v5553 = vsel %vm1158, %v5434, 0
        %v5556 = vsel %vm1158, %v5436, 0
        %v5559 = vsel %vm1158, %v5438, 0
        %v5562 = vsel %vm1158, %v5440, 0
        %v5565 = vsel %vm1158, %v5442, 0
        %5567 = vmatpush.bf16.msra.mxu0 %v5506
        %5568 = vmatpush.bf16.msra.mxu0 %v5505
        %5569 = vmatpush.bf16.msra.mxu0 %v5504
        %5570 = vmatpush.bf16.msra.mxu0 %v5503
        %5571 = vmatpush.bf16.msra.mxu0 %v5502
        %5572 = vmatpush.bf16.msra.mxu0 %v5501
        %5573 = vmatpush.bf16.msra.mxu0 %v5500
        %5574 = vmatpush.bf16.msra.mxu0 %v5499
        %5575 = vmatmul.bf16.gmra.mxu0 %v5411
        %v5576 = vpop.f32.mrf.mxu0
        %v5577 = vadd.f32 0.0, %v5576
        %v5578 = vpop.f32.mrf.mxu0
        %v5579 = vadd.f32 0.0, %v5578
        %5580 = vmatmul.bf16.gmra.mxu0 %v5413
        %v5581 = vpop.f32.mrf.mxu0
        %v5582 = vadd.f32 0.0, %v5581
        %v5583 = vpop.f32.mrf.mxu0
        %v5584 = vadd.f32 0.0, %v5583
        %5585 = vmatmul.bf16.gmra.mxu0 %v5415
        %v5586 = vpop.f32.mrf.mxu0
        %v5587 = vadd.f32 0.0, %v5586
        %v5588 = vpop.f32.mrf.mxu0
        %v5589 = vadd.f32 0.0, %v5588
        %5590 = vmatmul.bf16.gmra.mxu0 %v5417
        %v5591 = vpop.f32.mrf.mxu0
        %v5592 = vadd.f32 0.0, %v5591
        %v5593 = vpop.f32.mrf.mxu0
        %v5594 = vadd.f32 0.0, %v5593
        %5595 = vmatmul.bf16.gmra.mxu0 %v5419
        %v5596 = vpop.f32.mrf.mxu0
        %v5597 = vadd.f32 0.0, %v5596
        %v5598 = vpop.f32.mrf.mxu0
        %v5599 = vadd.f32 0.0, %v5598
        %5600 = vmatmul.bf16.gmra.mxu0 %v5421
        %v5601 = vpop.f32.mrf.mxu0
        %v5602 = vadd.f32 0.0, %v5601
        %v5603 = vpop.f32.mrf.mxu0
        %v5604 = vadd.f32 0.0, %v5603
        %5605 = vmatmul.bf16.gmra.mxu0 %v5423
        %v5606 = vpop.f32.mrf.mxu0
        %v5607 = vadd.f32 0.0, %v5606
        %v5608 = vpop.f32.mrf.mxu0
        %v5609 = vadd.f32 0.0, %v5608
        %5610 = vmatmul.bf16.gmra.mxu0 %v5425
        %v5611 = vpop.f32.mrf.mxu0
        %v5612 = vadd.f32 0.0, %v5611
        %v5613 = vpop.f32.mrf.mxu0
        %v5614 = vadd.f32 0.0, %v5613
        %5615 = vmatmul.bf16.gmra.mxu0 %v5427
        %v5616 = vpop.f32.mrf.mxu0
        %v5617 = vadd.f32 0.0, %v5616
        %v5618 = vpop.f32.mrf.mxu0
        %v5619 = vadd.f32 0.0, %v5618
        %5620 = vmatmul.bf16.gmra.mxu0 %v5429
        %v5621 = vpop.f32.mrf.mxu0
        %v5622 = vadd.f32 0.0, %v5621
        %v5623 = vpop.f32.mrf.mxu0
        %v5624 = vadd.f32 0.0, %v5623
        %5625 = vmatmul.bf16.gmra.mxu0 %v5431
        %v5626 = vpop.f32.mrf.mxu0
        %v5627 = vadd.f32 0.0, %v5626
        %v5628 = vpop.f32.mrf.mxu0
        %v5629 = vadd.f32 0.0, %v5628
        %5630 = vmatmul.bf16.gmra.mxu0 %v5433
        %v5631 = vpop.f32.mrf.mxu0
        %v5632 = vadd.f32 0.0, %v5631
        %v5633 = vpop.f32.mrf.mxu0
        %v5634 = vadd.f32 0.0, %v5633
        %5635 = vmatmul.bf16.gmra.mxu0 %v5435
        %v5636 = vpop.f32.mrf.mxu0
        %v5637 = vadd.f32 0.0, %v5636
        %v5638 = vpop.f32.mrf.mxu0
        %v5639 = vadd.f32 0.0, %v5638
        %5640 = vmatmul.bf16.gmra.mxu0 %v5437
        %v5641 = vpop.f32.mrf.mxu0
        %v5642 = vadd.f32 0.0, %v5641
        %v5643 = vpop.f32.mrf.mxu0
        %v5644 = vadd.f32 0.0, %v5643
        %5645 = vmatmul.bf16.gmra.mxu0 %v5439
        %v5646 = vpop.f32.mrf.mxu0
        %v5647 = vadd.f32 0.0, %v5646
        %v5648 = vpop.f32.mrf.mxu0
        %v5649 = vadd.f32 0.0, %v5648
        %5650 = vmatmul.bf16.gmra.mxu0 %v5441
        %v5651 = vpop.f32.mrf.mxu0
        %v5652 = vadd.f32 0.0, %v5651
        %v5653 = vpop.f32.mrf.mxu0
        %v5654 = vadd.f32 0.0, %v5653
        %5655 = vdwg.mxu0
        %5656 = vmatpush.bf16.msra.mxu0 0
        %5657 = vmatpush.bf16.msra.mxu0 0
        %5658 = vmatpush.bf16.msra.mxu0 0
        %5659 = vmatpush.bf16.msra.mxu0 0
        %5660 = vmatpush.bf16.msra.mxu0 0
        %5661 = vmatpush.bf16.msra.mxu0 0
        %5662 = vmatpush.bf16.msra.mxu0 %v5508
        %5663 = vmatpush.bf16.msra.mxu0 %v5507
        %5664 = vmatmul.bf16.gmra.mxu0 %v5520
        %v5665 = vpop.f32.mrf.mxu0
        %v5666 = vadd.f32 %v5577, %v5665
        %v5667 = vpop.f32.mrf.mxu0
        %v5668 = vadd.f32 %v5579, %v5667
        %5669 = vmatmul.bf16.gmra.mxu0 %v5523
        %v5670 = vpop.f32.mrf.mxu0
        %v5671 = vadd.f32 %v5582, %v5670
        %v5672 = vpop.f32.mrf.mxu0
        %v5673 = vadd.f32 %v5584, %v5672
        %5674 = vmatmul.bf16.gmra.mxu0 %v5526
        %v5675 = vpop.f32.mrf.mxu0
        %v5676 = vadd.f32 %v5587, %v5675
        %v5677 = vpop.f32.mrf.mxu0
        %v5678 = vadd.f32 %v5589, %v5677
        %5679 = vmatmul.bf16.gmra.mxu0 %v5529
        %v5680 = vpop.f32.mrf.mxu0
        %v5681 = vadd.f32 %v5592, %v5680
        %v5682 = vpop.f32.mrf.mxu0
        %v5683 = vadd.f32 %v5594, %v5682
        %5684 = vmatmul.bf16.gmra.mxu0 %v5532
        %v5685 = vpop.f32.mrf.mxu0
        %v5686 = vadd.f32 %v5597, %v5685
        %v5687 = vpop.f32.mrf.mxu0
        %v5688 = vadd.f32 %v5599, %v5687
        %5689 = vmatmul.bf16.gmra.mxu0 %v5535
        %v5690 = vpop.f32.mrf.mxu0
        %v5691 = vadd.f32 %v5602, %v5690
        %v5692 = vpop.f32.mrf.mxu0
        %v5693 = vadd.f32 %v5604, %v5692
        %5694 = vmatmul.bf16.gmra.mxu0 %v5538
        %v5695 = vpop.f32.mrf.mxu0
        %v5696 = vadd.f32 %v5607, %v5695
        %v5697 = vpop.f32.mrf.mxu0
        %v5698 = vadd.f32 %v5609, %v5697
        %5699 = vmatmul.bf16.gmra.mxu0 %v5541
        %v5700 = vpop.f32.mrf.mxu0
        %v5701 = vadd.f32 %v5612, %v5700
        %v5702 = vpop.f32.mrf.mxu0
        %v5703 = vadd.f32 %v5614, %v5702
        %5704 = vmatmul.bf16.gmra.mxu0 %v5544
        %v5705 = vpop.f32.mrf.mxu0
        %v5706 = vadd.f32 %v5617, %v5705
        %v5707 = vpop.f32.mrf.mxu0
        %v5708 = vadd.f32 %v5619, %v5707
        %5709 = vmatmul.bf16.gmra.mxu0 %v5547
        %v5710 = vpop.f32.mrf.mxu0
        %v5711 = vadd.f32 %v5622, %v5710
        %v5712 = vpop.f32.mrf.mxu0
        %v5713 = vadd.f32 %v5624, %v5712
        %5714 = vmatmul.bf16.gmra.mxu0 %v5550
        %v5715 = vpop.f32.mrf.mxu0
        %v5716 = vadd.f32 %v5627, %v5715
        %v5717 = vpop.f32.mrf.mxu0
        %v5718 = vadd.f32 %v5629, %v5717
        %5719 = vmatmul.bf16.gmra.mxu0 %v5553
        %v5720 = vpop.f32.mrf.mxu0
        %v5721 = vadd.f32 %v5632, %v5720
        %v5722 = vpop.f32.mrf.mxu0
        %v5723 = vadd.f32 %v5634, %v5722
        %5724 = vmatmul.bf16.gmra.mxu0 %v5556
        %v5725 = vpop.f32.mrf.mxu0
        %v5726 = vadd.f32 %v5637, %v5725
        %v5727 = vpop.f32.mrf.mxu0
        %v5728 = vadd.f32 %v5639, %v5727
        %5729 = vmatmul.bf16.gmra.mxu0 %v5559
        %v5730 = vpop.f32.mrf.mxu0
        %v5731 = vadd.f32 %v5642, %v5730
        %v5732 = vpop.f32.mrf.mxu0
        %v5733 = vadd.f32 %v5644, %v5732
        %5734 = vmatmul.bf16.gmra.mxu0 %v5562
        %v5735 = vpop.f32.mrf.mxu0
        %v5736 = vadd.f32 %v5647, %v5735
        %v5737 = vpop.f32.mrf.mxu0
        %v5738 = vadd.f32 %v5649, %v5737
        %5739 = vmatmul.bf16.gmra.mxu0 %v5565
        %v5740 = vpop.f32.mrf.mxu0
        %v5741 = vadd.f32 %v5652, %v5740
        %v5742 = vpop.f32.mrf.mxu0
        %v5743 = vadd.f32 %v5654, %v5742
        %5744 = vdwg.mxu0
        %v5745 = vadd.f32 %v5183, %v5666
        %v5746 = vadd.f32 %v5185, %v5668
        %v5747 = vadd.f32 %v5188, %v5671
        %v5748 = vadd.f32 %v5190, %v5673
        %v5749 = vadd.f32 %v5193, %v5676
        %v5750 = vadd.f32 %v5195, %v5678
        %v5751 = vadd.f32 %v5198, %v5681
        %v5752 = vadd.f32 %v5200, %v5683
        %v5753 = vadd.f32 %v5203, %v5686
        %v5754 = vadd.f32 %v5205, %v5688
        %v5755 = vadd.f32 %v5208, %v5691
        %v5756 = vadd.f32 %v5210, %v5693
        %v5757 = vadd.f32 %v5213, %v5696
        %v5758 = vadd.f32 %v5215, %v5698
        %v5759 = vadd.f32 %v5218, %v5701
        %v5760 = vadd.f32 %v5220, %v5703
        %v5761 = vadd.f32 %v5223, %v5706
        %v5762 = vadd.f32 %v5225, %v5708
        %v5763 = vadd.f32 %v5228, %v5711
        %v5764 = vadd.f32 %v5230, %v5713
        %v5765 = vadd.f32 %v5233, %v5716
        %v5766 = vadd.f32 %v5235, %v5718
        %v5767 = vadd.f32 %v5238, %v5721
        %v5768 = vadd.f32 %v5240, %v5723
        %v5769 = vadd.f32 %v5243, %v5726
        %v5770 = vadd.f32 %v5245, %v5728
        %v5771 = vadd.f32 %v5248, %v5731
        %v5772 = vadd.f32 %v5250, %v5733
        %v5773 = vadd.f32 %v5253, %v5736
        %v5774 = vadd.f32 %v5255, %v5738
        %v5775 = vadd.f32 %v5258, %v5741
        %v5776 = vadd.f32 %v5260, %v5743
        %v5777 = vld [vmem:[#allocation3 + $0x30] sm:$0xff]
        %v5778 = vld [vmem:[#allocation3 + $0x38] sm:$0xff]
        %v5779 = vld [vmem:[#allocation3 + $0x40] sm:$0xff]
        %v5780 = vld [vmem:[#allocation3 + $0x48] sm:$0xff]
        %v5781 = vld [vmem:[#allocation3 + $0x50] sm:$0xff]
        %v5782 = vld [vmem:[#allocation3 + $0x58] sm:$0xff]
        %v5783 = vld [vmem:[#allocation3 + $0x60] sm:$0xff]
        %v5784 = vld [vmem:[#allocation3 + $0x68] sm:$0xff]
        %v5785 = vld [vmem:[#allocation3 + $0x70] sm:$0xff]
        %v5786 = vld [vmem:[#allocation3 + $0x78] sm:$0xff]
        %v5787 = vld [vmem:[#allocation3 + $0x80] sm:$0xff]
        %v5788 = vld [vmem:[#allocation3 + $0x88] sm:$0xff]
        %v5789 = vld [vmem:[#allocation3 + $0x90] sm:$0xff]
        %v5790 = vld [vmem:[#allocation3 + $0x98] sm:$0xff]
        %v5791 = vld [vmem:[#allocation3 + $0xa0] sm:$0xff]
        %v5792 = vld [vmem:[#allocation3 + $0xa8] sm:$0xff]
        %v5793 = vld [vmem:[#allocation3 + $0xb0] sm:$0xff]
        %v5794 = vld [vmem:[#allocation3 + $0xb8] sm:$0xff]
        %v5795 = vld [vmem:[#allocation3 + $0xc0] sm:$0xff]
        %v5796 = vld [vmem:[#allocation3 + $0xc8] sm:$0xff]
        %v5797 = vld [vmem:[#allocation3 + $0xd0] sm:$0xff]
        %v5798 = vld [vmem:[#allocation3 + $0xd8] sm:$0xff]
        %v5799 = vld [vmem:[#allocation3 + $0xe0] sm:$0xff]
        %v5800 = vld [vmem:[#allocation3 + $0xe8] sm:$0xff]
        %v5801 = vld [vmem:[#allocation3 + $0xf0] sm:$0xff]
        %v5802 = vld [vmem:[#allocation3 + $0xf8] sm:$0xff]
        %v5803 = vld [vmem:[#allocation3 + $0x100] sm:$0xff]
        %v5804 = vld [vmem:[#allocation3 + $0x108] sm:$0xff]
        %v5805 = vld [vmem:[#allocation3 + $0x110] sm:$0xff]
        %v5806 = vld [vmem:[#allocation3 + $0x118] sm:$0xff]
        %v5807 = vld [vmem:[#allocation3 + $0x120] sm:$0xff]
        %v5808 = vld [vmem:[#allocation3 + $0x128] sm:$0xff]
        %s5809 = scalar_lea.vmem %s3, 240
        %v5810 = vld [vmem:[%s5809] sm:$0xf]
        %v5811 = vld [vmem:[%s5809 + $0x4] sm:$0xf]
        %v5812 = vld [vmem:[%s5809 + $0x8] sm:$0xf]
        %v5813 = vld [vmem:[%s5809 + $0xc] sm:$0xf]
        %v5814 = vld [vmem:[%s5809 + $0x10] sm:$0xf]
        %v5815 = vld [vmem:[%s5809 + $0x14] sm:$0xf]
        %v5816 = vld [vmem:[%s5809 + $0x18] sm:$0xf]
        %v5817 = vld [vmem:[%s5809 + $0x1c] sm:$0xf]
        %v5818 = vld [vmem:[%s5809 + $0x20] sm:$0xf]
        %v5819 = vld [vmem:[%s5809 + $0x24] sm:$0xf]
        %v5820 = vld [vmem:[%s5809 + $0x28] sm:$0xf]
        %v5821 = vld [vmem:[%s5809 + $0x2c] sm:$0xf]
        %v5822 = vld [vmem:[%s5809 + $0x30] sm:$0xf]
        %v5823 = vld [vmem:[%s5809 + $0x34] sm:$0xf]
        %v5824 = vld [vmem:[%s5809 + $0x38] sm:$0xf]
        %v5825 = vld [vmem:[%s5809 + $0x3c] sm:$0xf]
        %v5826 = vld [vmem:[%s5809 + $0x40] sm:$0xf]
        %v5827 = vld [vmem:[%s5809 + $0x44] sm:$0xf]
        %v5828 = vld [vmem:[%s5809 + $0x48] sm:$0xf]
        %v5829 = vld [vmem:[%s5809 + $0x4c] sm:$0xf]
        %v5862 = vunpack.c.l.b16 %v5777
        %v5863 = vunpack.c.h.b16 %v5777
        %v5864 = vunpack.c.l.b16 %v5778
        %v5865 = vunpack.c.h.b16 %v5778
        %v5866 = vunpack.c.l.b16 %v5779
        %v5867 = vunpack.c.h.b16 %v5779
        %v5868 = vunpack.c.l.b16 %v5780
        %v5869 = vunpack.c.h.b16 %v5780
        %v5870 = vunpack.c.l.b16 %v5781
        %v5871 = vunpack.c.h.b16 %v5781
        %v5872 = vunpack.c.l.b16 %v5782
        %v5873 = vunpack.c.h.b16 %v5782
        %v5874 = vunpack.c.l.b16 %v5783
        %v5875 = vunpack.c.h.b16 %v5783
        %v5876 = vunpack.c.l.b16 %v5784
        %v5877 = vunpack.c.h.b16 %v5784
        %v5878 = vunpack.c.l.b16 %v5785
        %v5879 = vunpack.c.h.b16 %v5785
        %v5880 = vunpack.c.l.b16 %v5786
        %v5881 = vunpack.c.h.b16 %v5786
        %v5882 = vunpack.c.l.b16 %v5787
        %v5883 = vunpack.c.h.b16 %v5787
        %v5884 = vunpack.c.l.b16 %v5788
        %v5885 = vunpack.c.h.b16 %v5788
        %v5886 = vunpack.c.l.b16 %v5789
        %v5887 = vunpack.c.h.b16 %v5789
        %v5888 = vunpack.c.l.b16 %v5790
        %v5889 = vunpack.c.h.b16 %v5790
        %v5890 = vunpack.c.l.b16 %v5791
        %v5891 = vunpack.c.h.b16 %v5791
        %v5892 = vunpack.c.l.b16 %v5792
        %v5893 = vunpack.c.h.b16 %v5792
        %v5894 = vunpack.c.l.b16 %v5793
        %v5895 = vunpack.c.h.b16 %v5793
        %v5896 = vunpack.c.l.b16 %v5794
        %v5897 = vunpack.c.h.b16 %v5794
        %v5898 = vunpack.c.l.b16 %v5795
        %v5899 = vunpack.c.h.b16 %v5795
        %v5900 = vunpack.c.l.b16 %v5796
        %v5901 = vunpack.c.h.b16 %v5796
        %v5902 = vunpack.c.l.b16 %v5797
        %v5903 = vunpack.c.h.b16 %v5797
        %v5904 = vunpack.c.l.b16 %v5798
        %v5905 = vunpack.c.h.b16 %v5798
        %v5906 = vunpack.c.l.b16 %v5799
        %v5907 = vunpack.c.h.b16 %v5799
        %v5908 = vunpack.c.l.b16 %v5800
        %v5909 = vunpack.c.h.b16 %v5800
        %v5910 = vunpack.c.l.b16 %v5801
        %v5911 = vunpack.c.h.b16 %v5801
        %v5912 = vunpack.c.l.b16 %v5802
        %v5913 = vunpack.c.h.b16 %v5802
        %v5914 = vunpack.c.l.b16 %v5803
        %v5915 = vunpack.c.h.b16 %v5803
        %v5916 = vunpack.c.l.b16 %v5804
        %v5917 = vunpack.c.h.b16 %v5804
        %v5918 = vunpack.c.l.b16 %v5805
        %v5919 = vunpack.c.h.b16 %v5805
        %v5920 = vunpack.c.l.b16 %v5806
        %v5921 = vunpack.c.h.b16 %v5806
        %v5922 = vunpack.c.l.b16 %v5807
        %v5923 = vunpack.c.h.b16 %v5807
        %v5924 = vunpack.c.l.b16 %v5808
        %v5925 = vunpack.c.h.b16 %v5808
        %v5926 = vpack.c.b16 %v5864, %v5862
        %v5927 = vpack.c.b16 %v5865, %v5863
        %v5928 = vpack.c.b16 %v5868, %v5866
        %v5929 = vpack.c.b16 %v5869, %v5867
        %v5930 = vpack.c.b16 %v5872, %v5870
        %v5931 = vpack.c.b16 %v5873, %v5871
        %v5932 = vpack.c.b16 %v5876, %v5874
        %v5933 = vpack.c.b16 %v5877, %v5875
        %v5934 = vpack.c.b16 %v5880, %v5878
        %v5935 = vpack.c.b16 %v5881, %v5879
        %v5936 = vpack.c.b16 %v5884, %v5882
        %v5937 = vpack.c.b16 %v5885, %v5883
        %v5938 = vpack.c.b16 %v5888, %v5886
        %v5939 = vpack.c.b16 %v5889, %v5887
        %v5940 = vpack.c.b16 %v5892, %v5890
        %v5941 = vpack.c.b16 %v5893, %v5891
        %v5942 = vpack.c.b16 %v5896, %v5894
        %v5943 = vpack.c.b16 %v5897, %v5895
        %v5944 = vpack.c.b16 %v5900, %v5898
        %v5945 = vpack.c.b16 %v5901, %v5899
        %v5946 = vpack.c.b16 %v5904, %v5902
        %v5947 = vpack.c.b16 %v5905, %v5903
        %v5948 = vpack.c.b16 %v5908, %v5906
        %v5949 = vpack.c.b16 %v5909, %v5907
        %v5950 = vpack.c.b16 %v5912, %v5910
        %v5951 = vpack.c.b16 %v5913, %v5911
        %v5952 = vpack.c.b16 %v5916, %v5914
        %v5953 = vpack.c.b16 %v5917, %v5915
        %v5954 = vpack.c.b16 %v5920, %v5918
        %v5955 = vpack.c.b16 %v5921, %v5919
        %v5956 = vpack.c.b16 %v5924, %v5922
        %v5957 = vpack.c.b16 %v5925, %v5923
        %v5994 = vunpack.c.l.b16 %v5810
        %v5995 = vunpack.c.l.b16 %v5811
        %v5996 = vunpack.c.l.b16 %v5812
        %v5997 = vunpack.c.l.b16 %v5813
        %v5998 = vunpack.c.l.b16 %v5814
        %v5999 = vunpack.c.l.b16 %v5815
        %v6000 = vunpack.c.l.b16 %v5816
        %v6001 = vunpack.c.l.b16 %v5817
        %v6002 = vunpack.c.l.b16 %v5818
        %v6003 = vunpack.c.l.b16 %v5819
        %v6004 = vunpack.c.l.b16 %v5820
        %v6005 = vunpack.c.l.b16 %v5821
        %v6006 = vunpack.c.l.b16 %v5822
        %v6007 = vunpack.c.l.b16 %v5823
        %v6008 = vunpack.c.l.b16 %v5824
        %v6009 = vunpack.c.l.b16 %v5825
        %v6010 = vunpack.c.l.b16 %v5826
        %v6011 = vunpack.c.l.b16 %v5827
        %v6012 = vunpack.c.l.b16 %v5828
        %v6013 = vunpack.c.l.b16 %v5829
        %v6014 = vpack.c.b16 %v5995, %v5994
        %v6015 = vpack.c.b16 %v5997, %v5996
        %v6016 = vpack.c.b16 %v5999, %v5998
        %v6017 = vpack.c.b16 %v6001, %v6000
        %v6018 = vpack.c.b16 %v6003, %v6002
        %v6019 = vpack.c.b16 %v6005, %v6004
        %v6020 = vpack.c.b16 %v6007, %v6006
        %v6021 = vpack.c.b16 %v6009, %v6008
        %v6022 = vpack.c.b16 %v6011, %v6010
        %v6023 = vpack.c.b16 %v6013, %v6012
        %v6035 = vsel %vm1158, %v5927, 0
        %v6038 = vsel %vm1158, %v5929, 0
        %v6041 = vsel %vm1158, %v5931, 0
        %v6044 = vsel %vm1158, %v5933, 0
        %v6047 = vsel %vm1158, %v5935, 0
        %v6050 = vsel %vm1158, %v5937, 0
        %v6053 = vsel %vm1158, %v5939, 0
        %v6056 = vsel %vm1158, %v5941, 0
        %v6059 = vsel %vm1158, %v5943, 0
        %v6062 = vsel %vm1158, %v5945, 0
        %v6065 = vsel %vm1158, %v5947, 0
        %v6068 = vsel %vm1158, %v5949, 0
        %v6071 = vsel %vm1158, %v5951, 0
        %v6074 = vsel %vm1158, %v5953, 0
        %v6077 = vsel %vm1158, %v5955, 0
        %v6080 = vsel %vm1158, %v5957, 0
        %6082 = vmatpush.bf16.msra.mxu0 %v6021
        %6083 = vmatpush.bf16.msra.mxu0 %v6020
        %6084 = vmatpush.bf16.msra.mxu0 %v6019
        %6085 = vmatpush.bf16.msra.mxu0 %v6018
        %6086 = vmatpush.bf16.msra.mxu0 %v6017
        %6087 = vmatpush.bf16.msra.mxu0 %v6016
        %6088 = vmatpush.bf16.msra.mxu0 %v6015
        %6089 = vmatpush.bf16.msra.mxu0 %v6014
        %6090 = vmatmul.bf16.gmra.mxu0 %v5926
        %v6091 = vpop.f32.mrf.mxu0
        %v6092 = vadd.f32 0.0, %v6091
        %v6093 = vpop.f32.mrf.mxu0
        %v6094 = vadd.f32 0.0, %v6093
        %6095 = vmatmul.bf16.gmra.mxu0 %v5928
        %v6096 = vpop.f32.mrf.mxu0
        %v6097 = vadd.f32 0.0, %v6096
        %v6098 = vpop.f32.mrf.mxu0
        %v6099 = vadd.f32 0.0, %v6098
        %6100 = vmatmul.bf16.gmra.mxu0 %v5930
        %v6101 = vpop.f32.mrf.mxu0
        %v6102 = vadd.f32 0.0, %v6101
        %v6103 = vpop.f32.mrf.mxu0
        %v6104 = vadd.f32 0.0, %v6103
        %6105 = vmatmul.bf16.gmra.mxu0 %v5932
        %v6106 = vpop.f32.mrf.mxu0
        %v6107 = vadd.f32 0.0, %v6106
        %v6108 = vpop.f32.mrf.mxu0
        %v6109 = vadd.f32 0.0, %v6108
        %6110 = vmatmul.bf16.gmra.mxu0 %v5934
        %v6111 = vpop.f32.mrf.mxu0
        %v6112 = vadd.f32 0.0, %v6111
        %v6113 = vpop.f32.mrf.mxu0
        %v6114 = vadd.f32 0.0, %v6113
        %6115 = vmatmul.bf16.gmra.mxu0 %v5936
        %v6116 = vpop.f32.mrf.mxu0
        %v6117 = vadd.f32 0.0, %v6116
        %v6118 = vpop.f32.mrf.mxu0
        %v6119 = vadd.f32 0.0, %v6118
        %6120 = vmatmul.bf16.gmra.mxu0 %v5938
        %v6121 = vpop.f32.mrf.mxu0
        %v6122 = vadd.f32 0.0, %v6121
        %v6123 = vpop.f32.mrf.mxu0
        %v6124 = vadd.f32 0.0, %v6123
        %6125 = vmatmul.bf16.gmra.mxu0 %v5940
        %v6126 = vpop.f32.mrf.mxu0
        %v6127 = vadd.f32 0.0, %v6126
        %v6128 = vpop.f32.mrf.mxu0
        %v6129 = vadd.f32 0.0, %v6128
        %6130 = vmatmul.bf16.gmra.mxu0 %v5942
        %v6131 = vpop.f32.mrf.mxu0
        %v6132 = vadd.f32 0.0, %v6131
        %v6133 = vpop.f32.mrf.mxu0
        %v6134 = vadd.f32 0.0, %v6133
        %6135 = vmatmul.bf16.gmra.mxu0 %v5944
        %v6136 = vpop.f32.mrf.mxu0
        %v6137 = vadd.f32 0.0, %v6136
        %v6138 = vpop.f32.mrf.mxu0
        %v6139 = vadd.f32 0.0, %v6138
        %6140 = vmatmul.bf16.gmra.mxu0 %v5946
        %v6141 = vpop.f32.mrf.mxu0
        %v6142 = vadd.f32 0.0, %v6141
        %v6143 = vpop.f32.mrf.mxu0
        %v6144 = vadd.f32 0.0, %v6143
        %6145 = vmatmul.bf16.gmra.mxu0 %v5948
        %v6146 = vpop.f32.mrf.mxu0
        %v6147 = vadd.f32 0.0, %v6146
        %v6148 = vpop.f32.mrf.mxu0
        %v6149 = vadd.f32 0.0, %v6148
        %6150 = vmatmul.bf16.gmra.mxu0 %v5950
        %v6151 = vpop.f32.mrf.mxu0
        %v6152 = vadd.f32 0.0, %v6151
        %v6153 = vpop.f32.mrf.mxu0
        %v6154 = vadd.f32 0.0, %v6153
        %6155 = vmatmul.bf16.gmra.mxu0 %v5952
        %v6156 = vpop.f32.mrf.mxu0
        %v6157 = vadd.f32 0.0, %v6156
        %v6158 = vpop.f32.mrf.mxu0
        %v6159 = vadd.f32 0.0, %v6158
        %6160 = vmatmul.bf16.gmra.mxu0 %v5954
        %v6161 = vpop.f32.mrf.mxu0
        %v6162 = vadd.f32 0.0, %v6161
        %v6163 = vpop.f32.mrf.mxu0
        %v6164 = vadd.f32 0.0, %v6163
        %6165 = vmatmul.bf16.gmra.mxu0 %v5956
        %v6166 = vpop.f32.mrf.mxu0
        %v6167 = vadd.f32 0.0, %v6166
        %v6168 = vpop.f32.mrf.mxu0
        %v6169 = vadd.f32 0.0, %v6168
        %6170 = vdwg.mxu0
        %6171 = vmatpush.bf16.msra.mxu0 0
        %6172 = vmatpush.bf16.msra.mxu0 0
        %6173 = vmatpush.bf16.msra.mxu0 0
        %6174 = vmatpush.bf16.msra.mxu0 0
        %6175 = vmatpush.bf16.msra.mxu0 0
        %6176 = vmatpush.bf16.msra.mxu0 0
        %6177 = vmatpush.bf16.msra.mxu0 %v6023
        %6178 = vmatpush.bf16.msra.mxu0 %v6022
        %6179 = vmatmul.bf16.gmra.mxu0 %v6035
        %v6180 = vpop.f32.mrf.mxu0
        %v6181 = vadd.f32 %v6092, %v6180
        %v6182 = vpop.f32.mrf.mxu0
        %v6183 = vadd.f32 %v6094, %v6182
        %6184 = vmatmul.bf16.gmra.mxu0 %v6038
        %v6185 = vpop.f32.mrf.mxu0
        %v6186 = vadd.f32 %v6097, %v6185
        %v6187 = vpop.f32.mrf.mxu0
        %v6188 = vadd.f32 %v6099, %v6187
        %6189 = vmatmul.bf16.gmra.mxu0 %v6041
        %v6190 = vpop.f32.mrf.mxu0
        %v6191 = vadd.f32 %v6102, %v6190
        %v6192 = vpop.f32.mrf.mxu0
        %v6193 = vadd.f32 %v6104, %v6192
        %6194 = vmatmul.bf16.gmra.mxu0 %v6044
        %v6195 = vpop.f32.mrf.mxu0
        %v6196 = vadd.f32 %v6107, %v6195
        %v6197 = vpop.f32.mrf.mxu0
        %v6198 = vadd.f32 %v6109, %v6197
        %6199 = vmatmul.bf16.gmra.mxu0 %v6047
        %v6200 = vpop.f32.mrf.mxu0
        %v6201 = vadd.f32 %v6112, %v6200
        %v6202 = vpop.f32.mrf.mxu0
        %v6203 = vadd.f32 %v6114, %v6202
        %6204 = vmatmul.bf16.gmra.mxu0 %v6050
        %v6205 = vpop.f32.mrf.mxu0
        %v6206 = vadd.f32 %v6117, %v6205
        %v6207 = vpop.f32.mrf.mxu0
        %v6208 = vadd.f32 %v6119, %v6207
        %6209 = vmatmul.bf16.gmra.mxu0 %v6053
        %v6210 = vpop.f32.mrf.mxu0
        %v6211 = vadd.f32 %v6122, %v6210
        %v6212 = vpop.f32.mrf.mxu0
        %v6213 = vadd.f32 %v6124, %v6212
        %6214 = vmatmul.bf16.gmra.mxu0 %v6056
        %v6215 = vpop.f32.mrf.mxu0
        %v6216 = vadd.f32 %v6127, %v6215
        %v6217 = vpop.f32.mrf.mxu0
        %v6218 = vadd.f32 %v6129, %v6217
        %6219 = vmatmul.bf16.gmra.mxu0 %v6059
        %v6220 = vpop.f32.mrf.mxu0
        %v6221 = vadd.f32 %v6132, %v6220
        %v6222 = vpop.f32.mrf.mxu0
        %v6223 = vadd.f32 %v6134, %v6222
        %6224 = vmatmul.bf16.gmra.mxu0 %v6062
        %v6225 = vpop.f32.mrf.mxu0
        %v6226 = vadd.f32 %v6137, %v6225
        %v6227 = vpop.f32.mrf.mxu0
        %v6228 = vadd.f32 %v6139, %v6227
        %6229 = vmatmul.bf16.gmra.mxu0 %v6065
        %v6230 = vpop.f32.mrf.mxu0
        %v6231 = vadd.f32 %v6142, %v6230
        %v6232 = vpop.f32.mrf.mxu0
        %v6233 = vadd.f32 %v6144, %v6232
        %6234 = vmatmul.bf16.gmra.mxu0 %v6068
        %v6235 = vpop.f32.mrf.mxu0
        %v6236 = vadd.f32 %v6147, %v6235
        %v6237 = vpop.f32.mrf.mxu0
        %v6238 = vadd.f32 %v6149, %v6237
        %6239 = vmatmul.bf16.gmra.mxu0 %v6071
        %v6240 = vpop.f32.mrf.mxu0
        %v6241 = vadd.f32 %v6152, %v6240
        %v6242 = vpop.f32.mrf.mxu0
        %v6243 = vadd.f32 %v6154, %v6242
        %6244 = vmatmul.bf16.gmra.mxu0 %v6074
        %v6245 = vpop.f32.mrf.mxu0
        %v6246 = vadd.f32 %v6157, %v6245
        %v6247 = vpop.f32.mrf.mxu0
        %v6248 = vadd.f32 %v6159, %v6247
        %6249 = vmatmul.bf16.gmra.mxu0 %v6077
        %v6250 = vpop.f32.mrf.mxu0
        %v6251 = vadd.f32 %v6162, %v6250
        %v6252 = vpop.f32.mrf.mxu0
        %v6253 = vadd.f32 %v6164, %v6252
        %6254 = vmatmul.bf16.gmra.mxu0 %v6080
        %v6255 = vpop.f32.mrf.mxu0
        %v6256 = vadd.f32 %v6167, %v6255
        %v6257 = vpop.f32.mrf.mxu0
        %v6258 = vadd.f32 %v6169, %v6257
        %6259 = vdwg.mxu0
        %v6260 = vadd.f32 %v5745, %v6181
        %v6261 = vadd.f32 %v5746, %v6183
        %v6262 = vadd.f32 %v5747, %v6186
        %v6263 = vadd.f32 %v5748, %v6188
        %v6264 = vadd.f32 %v5749, %v6191
        %v6265 = vadd.f32 %v5750, %v6193
        %v6266 = vadd.f32 %v5751, %v6196
        %v6267 = vadd.f32 %v5752, %v6198
        %v6268 = vadd.f32 %v5753, %v6201
        %v6269 = vadd.f32 %v5754, %v6203
        %v6270 = vadd.f32 %v5755, %v6206
        %v6271 = vadd.f32 %v5756, %v6208
        %v6272 = vadd.f32 %v5757, %v6211
        %v6273 = vadd.f32 %v5758, %v6213
        %v6274 = vadd.f32 %v5759, %v6216
        %v6275 = vadd.f32 %v5760, %v6218
        %v6276 = vadd.f32 %v5761, %v6221
        %v6277 = vadd.f32 %v5762, %v6223
        %v6278 = vadd.f32 %v5763, %v6226
        %v6279 = vadd.f32 %v5764, %v6228
        %v6280 = vadd.f32 %v5765, %v6231
        %v6281 = vadd.f32 %v5766, %v6233
        %v6282 = vadd.f32 %v5767, %v6236
        %v6283 = vadd.f32 %v5768, %v6238
        %v6284 = vadd.f32 %v5769, %v6241
        %v6285 = vadd.f32 %v5770, %v6243
        %v6286 = vadd.f32 %v5771, %v6246
        %v6287 = vadd.f32 %v5772, %v6248
        %v6288 = vadd.f32 %v5773, %v6251
        %v6289 = vadd.f32 %v5774, %v6253
        %v6290 = vadd.f32 %v5775, %v6256
        %v6291 = vadd.f32 %v5776, %v6258
        %v6292 = vld [vmem:[#allocation3 + $0x40] sm:$0xff]
        %v6293 = vld [vmem:[#allocation3 + $0x48] sm:$0xff]
        %v6294 = vld [vmem:[#allocation3 + $0x50] sm:$0xff]
        %v6295 = vld [vmem:[#allocation3 + $0x58] sm:$0xff]
        %v6296 = vld [vmem:[#allocation3 + $0x60] sm:$0xff]
        %v6297 = vld [vmem:[#allocation3 + $0x68] sm:$0xff]
        %v6298 = vld [vmem:[#allocation3 + $0x70] sm:$0xff]
        %v6299 = vld [vmem:[#allocation3 + $0x78] sm:$0xff]
        %v6300 = vld [vmem:[#allocation3 + $0x80] sm:$0xff]
        %v6301 = vld [vmem:[#allocation3 + $0x88] sm:$0xff]
        %v6302 = vld [vmem:[#allocation3 + $0x90] sm:$0xff]
        %v6303 = vld [vmem:[#allocation3 + $0x98] sm:$0xff]
        %v6304 = vld [vmem:[#allocation3 + $0xa0] sm:$0xff]
        %v6305 = vld [vmem:[#allocation3 + $0xa8] sm:$0xff]
        %v6306 = vld [vmem:[#allocation3 + $0xb0] sm:$0xff]
        %v6307 = vld [vmem:[#allocation3 + $0xb8] sm:$0xff]
        %v6308 = vld [vmem:[#allocation3 + $0xc0] sm:$0xff]
        %v6309 = vld [vmem:[#allocation3 + $0xc8] sm:$0xff]
        %v6310 = vld [vmem:[#allocation3 + $0xd0] sm:$0xff]
        %v6311 = vld [vmem:[#allocation3 + $0xd8] sm:$0xff]
        %v6312 = vld [vmem:[#allocation3 + $0xe0] sm:$0xff]
        %v6313 = vld [vmem:[#allocation3 + $0xe8] sm:$0xff]
        %v6314 = vld [vmem:[#allocation3 + $0xf0] sm:$0xff]
        %v6315 = vld [vmem:[#allocation3 + $0xf8] sm:$0xff]
        %v6316 = vld [vmem:[#allocation3 + $0x100] sm:$0xff]
        %v6317 = vld [vmem:[#allocation3 + $0x108] sm:$0xff]
        %v6318 = vld [vmem:[#allocation3 + $0x110] sm:$0xff]
        %v6319 = vld [vmem:[#allocation3 + $0x118] sm:$0xff]
        %v6320 = vld [vmem:[#allocation3 + $0x120] sm:$0xff]
        %v6321 = vld [vmem:[#allocation3 + $0x128] sm:$0xff]
        %v6322 = vld [vmem:[#allocation3 + $0x130] sm:$0xff]
        %v6323 = vld [vmem:[#allocation3 + $0x138] sm:$0xff]
        %s6324 = scalar_lea.vmem %s3, 320
        %v6325 = vld [vmem:[%s6324] sm:$0xf]
        %v6326 = vld [vmem:[%s6324 + $0x4] sm:$0xf]
        %v6327 = vld [vmem:[%s6324 + $0x8] sm:$0xf]
        %v6328 = vld [vmem:[%s6324 + $0xc] sm:$0xf]
        %v6329 = vld [vmem:[%s6324 + $0x10] sm:$0xf]
        %v6330 = vld [vmem:[%s6324 + $0x14] sm:$0xf]
        %v6331 = vld [vmem:[%s6324 + $0x18] sm:$0xf]
        %v6332 = vld [vmem:[%s6324 + $0x1c] sm:$0xf]
        %v6333 = vld [vmem:[%s6324 + $0x20] sm:$0xf]
        %v6334 = vld [vmem:[%s6324 + $0x24] sm:$0xf]
        %v6335 = vld [vmem:[%s6324 + $0x28] sm:$0xf]
        %v6336 = vld [vmem:[%s6324 + $0x2c] sm:$0xf]
        %v6337 = vld [vmem:[%s6324 + $0x30] sm:$0xf]
        %v6338 = vld [vmem:[%s6324 + $0x34] sm:$0xf]
        %v6339 = vld [vmem:[%s6324 + $0x38] sm:$0xf]
        %v6340 = vld [vmem:[%s6324 + $0x3c] sm:$0xf]
        %v6341 = vld [vmem:[%s6324 + $0x40] sm:$0xf]
        %v6342 = vld [vmem:[%s6324 + $0x44] sm:$0xf]
        %v6343 = vld [vmem:[%s6324 + $0x48] sm:$0xf]
        %v6344 = vld [vmem:[%s6324 + $0x4c] sm:$0xf]
        %v6377 = vunpack.c.l.b16 %v6292
        %v6378 = vunpack.c.h.b16 %v6292
        %v6379 = vunpack.c.l.b16 %v6293
        %v6380 = vunpack.c.h.b16 %v6293
        %v6381 = vunpack.c.l.b16 %v6294
        %v6382 = vunpack.c.h.b16 %v6294
        %v6383 = vunpack.c.l.b16 %v6295
        %v6384 = vunpack.c.h.b16 %v6295
        %v6385 = vunpack.c.l.b16 %v6296
        %v6386 = vunpack.c.h.b16 %v6296
        %v6387 = vunpack.c.l.b16 %v6297
        %v6388 = vunpack.c.h.b16 %v6297
        %v6389 = vunpack.c.l.b16 %v6298
        %v6390 = vunpack.c.h.b16 %v6298
        %v6391 = vunpack.c.l.b16 %v6299
        %v6392 = vunpack.c.h.b16 %v6299
        %v6393 = vunpack.c.l.b16 %v6300
        %v6394 = vunpack.c.h.b16 %v6300
        %v6395 = vunpack.c.l.b16 %v6301
        %v6396 = vunpack.c.h.b16 %v6301
        %v6397 = vunpack.c.l.b16 %v6302
        %v6398 = vunpack.c.h.b16 %v6302
        %v6399 = vunpack.c.l.b16 %v6303
        %v6400 = vunpack.c.h.b16 %v6303
        %v6401 = vunpack.c.l.b16 %v6304
        %v6402 = vunpack.c.h.b16 %v6304
        %v6403 = vunpack.c.l.b16 %v6305
        %v6404 = vunpack.c.h.b16 %v6305
        %v6405 = vunpack.c.l.b16 %v6306
        %v6406 = vunpack.c.h.b16 %v6306
        %v6407 = vunpack.c.l.b16 %v6307
        %v6408 = vunpack.c.h.b16 %v6307
        %v6409 = vunpack.c.l.b16 %v6308
        %v6410 = vunpack.c.h.b16 %v6308
        %v6411 = vunpack.c.l.b16 %v6309
        %v6412 = vunpack.c.h.b16 %v6309
        %v6413 = vunpack.c.l.b16 %v6310
        %v6414 = vunpack.c.h.b16 %v6310
        %v6415 = vunpack.c.l.b16 %v6311
        %v6416 = vunpack.c.h.b16 %v6311
        %v6417 = vunpack.c.l.b16 %v6312
        %v6418 = vunpack.c.h.b16 %v6312
        %v6419 = vunpack.c.l.b16 %v6313
        %v6420 = vunpack.c.h.b16 %v6313
        %v6421 = vunpack.c.l.b16 %v6314
        %v6422 = vunpack.c.h.b16 %v6314
        %v6423 = vunpack.c.l.b16 %v6315
        %v6424 = vunpack.c.h.b16 %v6315
        %v6425 = vunpack.c.l.b16 %v6316
        %v6426 = vunpack.c.h.b16 %v6316
        %v6427 = vunpack.c.l.b16 %v6317
        %v6428 = vunpack.c.h.b16 %v6317
        %v6429 = vunpack.c.l.b16 %v6318
        %v6430 = vunpack.c.h.b16 %v6318
        %v6431 = vunpack.c.l.b16 %v6319
        %v6432 = vunpack.c.h.b16 %v6319
        %v6433 = vunpack.c.l.b16 %v6320
        %v6434 = vunpack.c.h.b16 %v6320
        %v6435 = vunpack.c.l.b16 %v6321
        %v6436 = vunpack.c.h.b16 %v6321
        %v6437 = vunpack.c.l.b16 %v6322
        %v6438 = vunpack.c.h.b16 %v6322
        %v6439 = vunpack.c.l.b16 %v6323
        %v6440 = vunpack.c.h.b16 %v6323
        %v6441 = vpack.c.b16 %v6379, %v6377
        %v6442 = vpack.c.b16 %v6380, %v6378
        %v6443 = vpack.c.b16 %v6383, %v6381
        %v6444 = vpack.c.b16 %v6384, %v6382
        %v6445 = vpack.c.b16 %v6387, %v6385
        %v6446 = vpack.c.b16 %v6388, %v6386
        %v6447 = vpack.c.b16 %v6391, %v6389
        %v6448 = vpack.c.b16 %v6392, %v6390
        %v6449 = vpack.c.b16 %v6395, %v6393
        %v6450 = vpack.c.b16 %v6396, %v6394
        %v6451 = vpack.c.b16 %v6399, %v6397
        %v6452 = vpack.c.b16 %v6400, %v6398
        %v6453 = vpack.c.b16 %v6403, %v6401
        %v6454 = vpack.c.b16 %v6404, %v6402
        %v6455 = vpack.c.b16 %v6407, %v6405
        %v6456 = vpack.c.b16 %v6408, %v6406
        %v6457 = vpack.c.b16 %v6411, %v6409
        %v6458 = vpack.c.b16 %v6412, %v6410
        %v6459 = vpack.c.b16 %v6415, %v6413
        %v6460 = vpack.c.b16 %v6416, %v6414
        %v6461 = vpack.c.b16 %v6419, %v6417
        %v6462 = vpack.c.b16 %v6420, %v6418
        %v6463 = vpack.c.b16 %v6423, %v6421
        %v6464 = vpack.c.b16 %v6424, %v6422
        %v6465 = vpack.c.b16 %v6427, %v6425
        %v6466 = vpack.c.b16 %v6428, %v6426
        %v6467 = vpack.c.b16 %v6431, %v6429
        %v6468 = vpack.c.b16 %v6432, %v6430
        %v6469 = vpack.c.b16 %v6435, %v6433
        %v6470 = vpack.c.b16 %v6436, %v6434
        %v6471 = vpack.c.b16 %v6439, %v6437
        %v6472 = vpack.c.b16 %v6440, %v6438
        %v6509 = vunpack.c.l.b16 %v6325
        %v6510 = vunpack.c.l.b16 %v6326
        %v6511 = vunpack.c.l.b16 %v6327
        %v6512 = vunpack.c.l.b16 %v6328
        %v6513 = vunpack.c.l.b16 %v6329
        %v6514 = vunpack.c.l.b16 %v6330
        %v6515 = vunpack.c.l.b16 %v6331
        %v6516 = vunpack.c.l.b16 %v6332
        %v6517 = vunpack.c.l.b16 %v6333
        %v6518 = vunpack.c.l.b16 %v6334
        %v6519 = vunpack.c.l.b16 %v6335
        %v6520 = vunpack.c.l.b16 %v6336
        %v6521 = vunpack.c.l.b16 %v6337
        %v6522 = vunpack.c.l.b16 %v6338
        %v6523 = vunpack.c.l.b16 %v6339
        %v6524 = vunpack.c.l.b16 %v6340
        %v6525 = vunpack.c.l.b16 %v6341
        %v6526 = vunpack.c.l.b16 %v6342
        %v6527 = vunpack.c.l.b16 %v6343
        %v6528 = vunpack.c.l.b16 %v6344
        %v6529 = vpack.c.b16 %v6510, %v6509
        %v6530 = vpack.c.b16 %v6512, %v6511
        %v6531 = vpack.c.b16 %v6514, %v6513
        %v6532 = vpack.c.b16 %v6516, %v6515
        %v6533 = vpack.c.b16 %v6518, %v6517
        %v6534 = vpack.c.b16 %v6520, %v6519
        %v6535 = vpack.c.b16 %v6522, %v6521
        %v6536 = vpack.c.b16 %v6524, %v6523
        %v6537 = vpack.c.b16 %v6526, %v6525
        %v6538 = vpack.c.b16 %v6528, %v6527
        %v6550 = vsel %vm1158, %v6442, 0
        %v6553 = vsel %vm1158, %v6444, 0
        %v6556 = vsel %vm1158, %v6446, 0
        %v6559 = vsel %vm1158, %v6448, 0
        %v6562 = vsel %vm1158, %v6450, 0
        %v6565 = vsel %vm1158, %v6452, 0
        %v6568 = vsel %vm1158, %v6454, 0
        %v6571 = vsel %vm1158, %v6456, 0
        %v6574 = vsel %vm1158, %v6458, 0
        %v6577 = vsel %vm1158, %v6460, 0
        %v6580 = vsel %vm1158, %v6462, 0
        %v6583 = vsel %vm1158, %v6464, 0
        %v6586 = vsel %vm1158, %v6466, 0
        %v6589 = vsel %vm1158, %v6468, 0
        %v6592 = vsel %vm1158, %v6470, 0
        %v6595 = vsel %vm1158, %v6472, 0
        %6597 = vmatpush.bf16.msra.mxu0 %v6536
        %6598 = vmatpush.bf16.msra.mxu0 %v6535
        %6599 = vmatpush.bf16.msra.mxu0 %v6534
        %6600 = vmatpush.bf16.msra.mxu0 %v6533
        %6601 = vmatpush.bf16.msra.mxu0 %v6532
        %6602 = vmatpush.bf16.msra.mxu0 %v6531
        %6603 = vmatpush.bf16.msra.mxu0 %v6530
        %6604 = vmatpush.bf16.msra.mxu0 %v6529
        %6605 = vmatmul.bf16.gmra.mxu0 %v6441
        %v6606 = vpop.f32.mrf.mxu0
        %v6607 = vadd.f32 0.0, %v6606
        %v6608 = vpop.f32.mrf.mxu0
        %v6609 = vadd.f32 0.0, %v6608
        %6610 = vmatmul.bf16.gmra.mxu0 %v6443
        %v6611 = vpop.f32.mrf.mxu0
        %v6612 = vadd.f32 0.0, %v6611
        %v6613 = vpop.f32.mrf.mxu0
        %v6614 = vadd.f32 0.0, %v6613
        %6615 = vmatmul.bf16.gmra.mxu0 %v6445
        %v6616 = vpop.f32.mrf.mxu0
        %v6617 = vadd.f32 0.0, %v6616
        %v6618 = vpop.f32.mrf.mxu0
        %v6619 = vadd.f32 0.0, %v6618
        %6620 = vmatmul.bf16.gmra.mxu0 %v6447
        %v6621 = vpop.f32.mrf.mxu0
        %v6622 = vadd.f32 0.0, %v6621
        %v6623 = vpop.f32.mrf.mxu0
        %v6624 = vadd.f32 0.0, %v6623
        %6625 = vmatmul.bf16.gmra.mxu0 %v6449
        %v6626 = vpop.f32.mrf.mxu0
        %v6627 = vadd.f32 0.0, %v6626
        %v6628 = vpop.f32.mrf.mxu0
        %v6629 = vadd.f32 0.0, %v6628
        %6630 = vmatmul.bf16.gmra.mxu0 %v6451
        %v6631 = vpop.f32.mrf.mxu0
        %v6632 = vadd.f32 0.0, %v6631
        %v6633 = vpop.f32.mrf.mxu0
        %v6634 = vadd.f32 0.0, %v6633
        %6635 = vmatmul.bf16.gmra.mxu0 %v6453
        %v6636 = vpop.f32.mrf.mxu0
        %v6637 = vadd.f32 0.0, %v6636
        %v6638 = vpop.f32.mrf.mxu0
        %v6639 = vadd.f32 0.0, %v6638
        %6640 = vmatmul.bf16.gmra.mxu0 %v6455
        %v6641 = vpop.f32.mrf.mxu0
        %v6642 = vadd.f32 0.0, %v6641
        %v6643 = vpop.f32.mrf.mxu0
        %v6644 = vadd.f32 0.0, %v6643
        %6645 = vmatmul.bf16.gmra.mxu0 %v6457
        %v6646 = vpop.f32.mrf.mxu0
        %v6647 = vadd.f32 0.0, %v6646
        %v6648 = vpop.f32.mrf.mxu0
        %v6649 = vadd.f32 0.0, %v6648
        %6650 = vmatmul.bf16.gmra.mxu0 %v6459
        %v6651 = vpop.f32.mrf.mxu0
        %v6652 = vadd.f32 0.0, %v6651
        %v6653 = vpop.f32.mrf.mxu0
        %v6654 = vadd.f32 0.0, %v6653
        %6655 = vmatmul.bf16.gmra.mxu0 %v6461
        %v6656 = vpop.f32.mrf.mxu0
        %v6657 = vadd.f32 0.0, %v6656
        %v6658 = vpop.f32.mrf.mxu0
        %v6659 = vadd.f32 0.0, %v6658
        %6660 = vmatmul.bf16.gmra.mxu0 %v6463
        %v6661 = vpop.f32.mrf.mxu0
        %v6662 = vadd.f32 0.0, %v6661
        %v6663 = vpop.f32.mrf.mxu0
        %v6664 = vadd.f32 0.0, %v6663
        %6665 = vmatmul.bf16.gmra.mxu0 %v6465
        %v6666 = vpop.f32.mrf.mxu0
        %v6667 = vadd.f32 0.0, %v6666
        %v6668 = vpop.f32.mrf.mxu0
        %v6669 = vadd.f32 0.0, %v6668
        %6670 = vmatmul.bf16.gmra.mxu0 %v6467
        %v6671 = vpop.f32.mrf.mxu0
        %v6672 = vadd.f32 0.0, %v6671
        %v6673 = vpop.f32.mrf.mxu0
        %v6674 = vadd.f32 0.0, %v6673
        %6675 = vmatmul.bf16.gmra.mxu0 %v6469
        %v6676 = vpop.f32.mrf.mxu0
        %v6677 = vadd.f32 0.0, %v6676
        %v6678 = vpop.f32.mrf.mxu0
        %v6679 = vadd.f32 0.0, %v6678
        %6680 = vmatmul.bf16.gmra.mxu0 %v6471
        %v6681 = vpop.f32.mrf.mxu0
        %v6682 = vadd.f32 0.0, %v6681
        %v6683 = vpop.f32.mrf.mxu0
        %v6684 = vadd.f32 0.0, %v6683
        %6685 = vdwg.mxu0
        %6686 = vmatpush.bf16.msra.mxu0 0
        %6687 = vmatpush.bf16.msra.mxu0 0
        %6688 = vmatpush.bf16.msra.mxu0 0
        %6689 = vmatpush.bf16.msra.mxu0 0
        %6690 = vmatpush.bf16.msra.mxu0 0
        %6691 = vmatpush.bf16.msra.mxu0 0
        %6692 = vmatpush.bf16.msra.mxu0 %v6538
        %6693 = vmatpush.bf16.msra.mxu0 %v6537
        %6694 = vmatmul.bf16.gmra.mxu0 %v6550
        %v6695 = vpop.f32.mrf.mxu0
        %v6696 = vadd.f32 %v6607, %v6695
        %v6697 = vpop.f32.mrf.mxu0
        %v6698 = vadd.f32 %v6609, %v6697
        %6699 = vmatmul.bf16.gmra.mxu0 %v6553
        %v6700 = vpop.f32.mrf.mxu0
        %v6701 = vadd.f32 %v6612, %v6700
        %v6702 = vpop.f32.mrf.mxu0
        %v6703 = vadd.f32 %v6614, %v6702
        %6704 = vmatmul.bf16.gmra.mxu0 %v6556
        %v6705 = vpop.f32.mrf.mxu0
        %v6706 = vadd.f32 %v6617, %v6705
        %v6707 = vpop.f32.mrf.mxu0
        %v6708 = vadd.f32 %v6619, %v6707
        %6709 = vmatmul.bf16.gmra.mxu0 %v6559
        %v6710 = vpop.f32.mrf.mxu0
        %v6711 = vadd.f32 %v6622, %v6710
        %v6712 = vpop.f32.mrf.mxu0
        %v6713 = vadd.f32 %v6624, %v6712
        %6714 = vmatmul.bf16.gmra.mxu0 %v6562
        %v6715 = vpop.f32.mrf.mxu0
        %v6716 = vadd.f32 %v6627, %v6715
        %v6717 = vpop.f32.mrf.mxu0
        %v6718 = vadd.f32 %v6629, %v6717
        %6719 = vmatmul.bf16.gmra.mxu0 %v6565
        %v6720 = vpop.f32.mrf.mxu0
        %v6721 = vadd.f32 %v6632, %v6720
        %v6722 = vpop.f32.mrf.mxu0
        %v6723 = vadd.f32 %v6634, %v6722
        %6724 = vmatmul.bf16.gmra.mxu0 %v6568
        %v6725 = vpop.f32.mrf.mxu0
        %v6726 = vadd.f32 %v6637, %v6725
        %v6727 = vpop.f32.mrf.mxu0
        %v6728 = vadd.f32 %v6639, %v6727
        %6729 = vmatmul.bf16.gmra.mxu0 %v6571
        %v6730 = vpop.f32.mrf.mxu0
        %v6731 = vadd.f32 %v6642, %v6730
        %v6732 = vpop.f32.mrf.mxu0
        %v6733 = vadd.f32 %v6644, %v6732
        %6734 = vmatmul.bf16.gmra.mxu0 %v6574
        %v6735 = vpop.f32.mrf.mxu0
        %v6736 = vadd.f32 %v6647, %v6735
        %v6737 = vpop.f32.mrf.mxu0
        %v6738 = vadd.f32 %v6649, %v6737
        %6739 = vmatmul.bf16.gmra.mxu0 %v6577
        %v6740 = vpop.f32.mrf.mxu0
        %v6741 = vadd.f32 %v6652, %v6740
        %v6742 = vpop.f32.mrf.mxu0
        %v6743 = vadd.f32 %v6654, %v6742
        %6744 = vmatmul.bf16.gmra.mxu0 %v6580
        %v6745 = vpop.f32.mrf.mxu0
        %v6746 = vadd.f32 %v6657, %v6745
        %v6747 = vpop.f32.mrf.mxu0
        %v6748 = vadd.f32 %v6659, %v6747
        %6749 = vmatmul.bf16.gmra.mxu0 %v6583
        %v6750 = vpop.f32.mrf.mxu0
        %v6751 = vadd.f32 %v6662, %v6750
        %v6752 = vpop.f32.mrf.mxu0
        %v6753 = vadd.f32 %v6664, %v6752
        %6754 = vmatmul.bf16.gmra.mxu0 %v6586
        %v6755 = vpop.f32.mrf.mxu0
        %v6756 = vadd.f32 %v6667, %v6755
        %v6757 = vpop.f32.mrf.mxu0
        %v6758 = vadd.f32 %v6669, %v6757
        %6759 = vmatmul.bf16.gmra.mxu0 %v6589
        %v6760 = vpop.f32.mrf.mxu0
        %v6761 = vadd.f32 %v6672, %v6760
        %v6762 = vpop.f32.mrf.mxu0
        %v6763 = vadd.f32 %v6674, %v6762
        %6764 = vmatmul.bf16.gmra.mxu0 %v6592
        %v6765 = vpop.f32.mrf.mxu0
        %v6766 = vadd.f32 %v6677, %v6765
        %v6767 = vpop.f32.mrf.mxu0
        %v6768 = vadd.f32 %v6679, %v6767
        %6769 = vmatmul.bf16.gmra.mxu0 %v6595
        %v6770 = vpop.f32.mrf.mxu0
        %v6771 = vadd.f32 %v6682, %v6770
        %v6772 = vpop.f32.mrf.mxu0
        %v6773 = vadd.f32 %v6684, %v6772
        %6774 = vdwg.mxu0
        %v6775 = vadd.f32 %v6260, %v6696
        %v6776 = vadd.f32 %v6261, %v6698
        %v6777 = vadd.f32 %v6262, %v6701
        %v6778 = vadd.f32 %v6263, %v6703
        %v6779 = vadd.f32 %v6264, %v6706
        %v6780 = vadd.f32 %v6265, %v6708
        %v6781 = vadd.f32 %v6266, %v6711
        %v6782 = vadd.f32 %v6267, %v6713
        %v6783 = vadd.f32 %v6268, %v6716
        %v6784 = vadd.f32 %v6269, %v6718
        %v6785 = vadd.f32 %v6270, %v6721
        %v6786 = vadd.f32 %v6271, %v6723
        %v6787 = vadd.f32 %v6272, %v6726
        %v6788 = vadd.f32 %v6273, %v6728
        %v6789 = vadd.f32 %v6274, %v6731
        %v6790 = vadd.f32 %v6275, %v6733
        %v6791 = vadd.f32 %v6276, %v6736
        %v6792 = vadd.f32 %v6277, %v6738
        %v6793 = vadd.f32 %v6278, %v6741
        %v6794 = vadd.f32 %v6279, %v6743
        %v6795 = vadd.f32 %v6280, %v6746
        %v6796 = vadd.f32 %v6281, %v6748
        %v6797 = vadd.f32 %v6282, %v6751
        %v6798 = vadd.f32 %v6283, %v6753
        %v6799 = vadd.f32 %v6284, %v6756
        %v6800 = vadd.f32 %v6285, %v6758
        %v6801 = vadd.f32 %v6286, %v6761
        %v6802 = vadd.f32 %v6287, %v6763
        %v6803 = vadd.f32 %v6288, %v6766
        %v6804 = vadd.f32 %v6289, %v6768
        %v6805 = vadd.f32 %v6290, %v6771
        %v6806 = vadd.f32 %v6291, %v6773
        %vm6807 = vcmask 523264
        %6808 = vst.msk [vmem:[#allocation4] sm:$0xff] %vm6807, %v6775
        %6809 = vst.msk [vmem:[#allocation4 + $0x8] sm:$0xff] %vm6807, %v6776
        %6810 = vst.msk [vmem:[#allocation4 + $0x10] sm:$0xff] %vm6807, %v6777
        %6811 = vst.msk [vmem:[#allocation4 + $0x18] sm:$0xff] %vm6807, %v6778
        %6812 = vst.msk [vmem:[#allocation4 + $0x20] sm:$0xff] %vm6807, %v6779
        %6813 = vst.msk [vmem:[#allocation4 + $0x28] sm:$0xff] %vm6807, %v6780
        %6814 = vst.msk [vmem:[#allocation4 + $0x30] sm:$0xff] %vm6807, %v6781
        %6815 = vst.msk [vmem:[#allocation4 + $0x38] sm:$0xff] %vm6807, %v6782
        %6816 = vst.msk [vmem:[#allocation4 + $0x40] sm:$0xff] %vm6807, %v6783
        %6817 = vst.msk [vmem:[#allocation4 + $0x48] sm:$0xff] %vm6807, %v6784
        %6818 = vst.msk [vmem:[#allocation4 + $0x50] sm:$0xff] %vm6807, %v6785
        %6819 = vst.msk [vmem:[#allocation4 + $0x58] sm:$0xff] %vm6807, %v6786
        %6820 = vst.msk [vmem:[#allocation4 + $0x60] sm:$0xff] %vm6807, %v6787
        %6821 = vst.msk [vmem:[#allocation4 + $0x68] sm:$0xff] %vm6807, %v6788
        %6822 = vst.msk [vmem:[#allocation4 + $0x70] sm:$0xff] %vm6807, %v6789
        %6823 = vst.msk [vmem:[#allocation4 + $0x78] sm:$0xff] %vm6807, %v6790
        %6824 = vst.msk [vmem:[#allocation4 + $0x80] sm:$0xff] %vm6807, %v6791
        %6825 = vst.msk [vmem:[#allocation4 + $0x88] sm:$0xff] %vm6807, %v6792
        %6826 = vst.msk [vmem:[#allocation4 + $0x90] sm:$0xff] %vm6807, %v6793
        %6827 = vst.msk [vmem:[#allocation4 + $0x98] sm:$0xff] %vm6807, %v6794
        %6828 = vst.msk [vmem:[#allocation4 + $0xa0] sm:$0xff] %vm6807, %v6795
        %6829 = vst.msk [vmem:[#allocation4 + $0xa8] sm:$0xff] %vm6807, %v6796
        %6830 = vst.msk [vmem:[#allocation4 + $0xb0] sm:$0xff] %vm6807, %v6797
        %6831 = vst.msk [vmem:[#allocation4 + $0xb8] sm:$0xff] %vm6807, %v6798
        %6832 = vst.msk [vmem:[#allocation4 + $0xc0] sm:$0xff] %vm6807, %v6799
        %6833 = vst.msk [vmem:[#allocation4 + $0xc8] sm:$0xff] %vm6807, %v6800
        %6834 = vst.msk [vmem:[#allocation4 + $0xd0] sm:$0xff] %vm6807, %v6801
        %6835 = vst.msk [vmem:[#allocation4 + $0xd8] sm:$0xff] %vm6807, %v6802
        %6836 = vst.msk [vmem:[#allocation4 + $0xe0] sm:$0xff] %vm6807, %v6803
        %6837 = vst.msk [vmem:[#allocation4 + $0xe8] sm:$0xff] %vm6807, %v6804
        %6838 = vst.msk [vmem:[#allocation4 + $0xf0] sm:$0xff] %vm6807, %v6805
        %6839 = vst.msk [vmem:[#allocation4 + $0xf8] sm:$0xff] %vm6807, %v6806
        %v6840 = vld [vmem:[#allocation4] ss:$2 sm:$0xff]
        %s6841 = scalar_lea.vmem [#allocation4], 1
        %v6842 = vld [vmem:[%s6841] ss:$2 sm:$0xff]
        %v6843 = vmax.f32 %v6840, %v6842
        %s6844 = scalar_lea.vmem [#allocation4], 16
        %v6845 = vld [vmem:[%s6844] ss:$2 sm:$0xff]
        %s6846 = scalar_lea.vmem [#allocation4], 17
        %v6847 = vld [vmem:[%s6846] ss:$2 sm:$0xff]
        %v6848 = vmax.f32 %v6845, %v6847
        %v6849 = vmax.f32 %v6843, %v6848
        %v6851 = vperm.slane %v440, 0
        %v6853 = vadd.f32 %v6849, %v6851
        %v6854 = vmax.f32 %v6853, 0.0
        %v6855 = vpack.c.bf16 %v6854, %v6854
        %vm6856 = vcmask 517120
        %6857 = vst.msk [vmem:[#allocation5] sm:$0x3] %vm6856, %v6855
        %v6859 = vshrl.u32 %v6855, 16
        %v6861 = vrot.slane %v6859, 4
        %v6862 = vshll.u32 %v6855, 16
        %v6864 = vrot.slane %v6862, 5
        %v6865 = vor.u32 %v6861, %v6864
        %v6866 = vrot.slane %v6865, 4
        %6867 = vrot.lane.b32.xlu0 %v6866, 64
        %v6868 = vpop.permute.xlu0 %6867
        %vm6870 = vcmask 1041920
        %6871 = vst.msk [vmem:[#allocation5] sm:$0x3] %vm6870, %v6868
        %v6873 = vrot.slane %v6855, 5
        %v6874 = vrot.slane %v6873, 4
        %6876 = vst.msk [vmem:[#allocation5 + $0x4] sm:$0x3] %vm6856, %v6874
        %v6877 = vrot.slane %v6859, 5
        %v6878 = vrot.slane %v6862, 6
        %v6879 = vor.u32 %v6877, %v6878
        %v6880 = vrot.slane %v6879, 4
        %6881 = vrot.lane.b32.xlu0 %v6880, 64
        %v6882 = vpop.permute.xlu0 %6881
        %6884 = vst.msk [vmem:[#allocation5 + $0x4] sm:$0x3] %vm6870, %v6882
        %v6885 = vrot.slane %v6855, 6
        %v6886 = vrot.slane %v6885, 4
        %6888 = vst.msk [vmem:[#allocation5 + $0x8] sm:$0x3] %vm6856, %v6886
        %s6889 = scalar_lea.vmem [#allocation4], 32
        %v6890 = vld [vmem:[%s6889] ss:$2 sm:$0xff]
        %s6891 = scalar_lea.vmem [#allocation4], 33
        %v6892 = vld [vmem:[%s6891] ss:$2 sm:$0xff]
        %v6893 = vmax.f32 %v6890, %v6892
        %s6894 = scalar_lea.vmem [#allocation4], 48
        %v6895 = vld [vmem:[%s6894] ss:$2 sm:$0xff]
        %s6896 = scalar_lea.vmem [#allocation4], 49
        %v6897 = vld [vmem:[%s6896] ss:$2 sm:$0xff]
        %v6898 = vmax.f32 %v6895, %v6897
        %v6899 = vmax.f32 %v6893, %v6898
        %v6900 = vadd.f32 %v6899, %v6851
        %v6901 = vmax.f32 %v6900, 0.0
        %v6902 = vpack.c.bf16 %v6901, %v6901
        %v6904 = vrot.slane %v6902, 6
        %vm6906 = vcmask 519170
        %6907 = vst.msk [vmem:[#allocation5] sm:$0xc] %vm6906, %v6904
        %v6909 = vshrl.u32 %v6902, 16
        %v6911 = vrot.slane %v6909, 6
        %v6912 = vshll.u32 %v6902, 16
        %v6914 = vrot.slane %v6912, 7
        %v6915 = vor.u32 %v6911, %v6914
        %6916 = vrot.lane.b32.xlu0 %v6915, 64
        %v6917 = vpop.permute.xlu0 %6916
        %vm6919 = vcmask 1043970
        %6920 = vst.msk [vmem:[#allocation5] sm:$0xc] %vm6919, %v6917
        %v6921 = vrot.slane %v6902, 7
        %6923 = vst.msk [vmem:[#allocation5 + $0x4] sm:$0xc] %vm6906, %v6921
        %v6924 = vrot.slane %v6909, 7
        %v6925 = vor.u32 %v6924, %v6912
        %6926 = vrot.lane.b32.xlu0 %v6925, 64
        %v6927 = vpop.permute.xlu0 %6926
        %6929 = vst.msk [vmem:[#allocation5 + $0x4] sm:$0xc] %vm6919, %v6927
        %6930 = vst.msk [vmem:[#allocation5 + $0x8] sm:$0xc] %vm6906, %v6902
        %s6931 = scalar_lea.vmem [#allocation4], 64
        %v6932 = vld [vmem:[%s6931] ss:$2 sm:$0xff]
        %s6933 = scalar_lea.vmem [#allocation4], 65
        %v6934 = vld [vmem:[%s6933] ss:$2 sm:$0xff]
        %v6935 = vmax.f32 %v6932, %v6934
        %s6936 = scalar_lea.vmem [#allocation4], 80
        %v6937 = vld [vmem:[%s6936] ss:$2 sm:$0xff]
        %s6938 = scalar_lea.vmem [#allocation4], 81
        %v6939 = vld [vmem:[%s6938] ss:$2 sm:$0xff]
        %v6940 = vmax.f32 %v6937, %v6939
        %v6941 = vmax.f32 %v6935, %v6940
        %v6942 = vadd.f32 %v6941, %v6851
        %v6943 = vmax.f32 %v6942, 0.0
        %v6944 = vpack.c.bf16 %v6943, %v6943
        %6945 = vst.msk [vmem:[#allocation5 + $0xc] sm:$0x3] %vm6856, %v6944
        %v6947 = vshrl.u32 %v6944, 16
        %v6949 = vrot.slane %v6947, 4
        %v6950 = vshll.u32 %v6944, 16
        %v6952 = vrot.slane %v6950, 5
        %v6953 = vor.u32 %v6949, %v6952
        %v6954 = vrot.slane %v6953, 4
        %6955 = vrot.lane.b32.xlu0 %v6954, 64
        %v6956 = vpop.permute.xlu0 %6955
        %6958 = vst.msk [vmem:[#allocation5 + $0xc] sm:$0x3] %vm6870, %v6956
        %v6960 = vrot.slane %v6944, 5
        %v6961 = vrot.slane %v6960, 4
        %6963 = vst.msk [vmem:[#allocation5 + $0x10] sm:$0x3] %vm6856, %v6961
        %v6964 = vrot.slane %v6947, 5
        %v6965 = vrot.slane %v6950, 6
        %v6966 = vor.u32 %v6964, %v6965
        %v6967 = vrot.slane %v6966, 4
        %6968 = vrot.lane.b32.xlu0 %v6967, 64
        %v6969 = vpop.permute.xlu0 %6968
        %6971 = vst.msk [vmem:[#allocation5 + $0x10] sm:$0x3] %vm6870, %v6969
        %v6972 = vrot.slane %v6944, 6
        %v6973 = vrot.slane %v6972, 4
        %6975 = vst.msk [vmem:[#allocation5 + $0x14] sm:$0x3] %vm6856, %v6973
        %s6976 = scalar_lea.vmem [#allocation4], 96
        %v6977 = vld [vmem:[%s6976] ss:$2 sm:$0xff]
        %s6978 = scalar_lea.vmem [#allocation4], 97
        %v6979 = vld [vmem:[%s6978] ss:$2 sm:$0xff]
        %v6980 = vmax.f32 %v6977, %v6979
        %s6981 = scalar_lea.vmem [#allocation4], 112
        %v6982 = vld [vmem:[%s6981] ss:$2 sm:$0xff]
        %s6983 = scalar_lea.vmem [#allocation4], 113
        %v6984 = vld [vmem:[%s6983] ss:$2 sm:$0xff]
        %v6985 = vmax.f32 %v6982, %v6984
        %v6986 = vmax.f32 %v6980, %v6985
        %v6987 = vadd.f32 %v6986, %v6851
        %v6988 = vmax.f32 %v6987, 0.0
        %v6989 = vpack.c.bf16 %v6988, %v6988
        %v6991 = vrot.slane %v6989, 6
        %6993 = vst.msk [vmem:[#allocation5 + $0xc] sm:$0xc] %vm6906, %v6991
        %v6995 = vshrl.u32 %v6989, 16
        %v6997 = vrot.slane %v6995, 6
        %v6998 = vshll.u32 %v6989, 16
        %v7000 = vrot.slane %v6998, 7
        %v7001 = vor.u32 %v6997, %v7000
        %7002 = vrot.lane.b32.xlu0 %v7001, 64
        %v7003 = vpop.permute.xlu0 %7002
        %7005 = vst.msk [vmem:[#allocation5 + $0xc] sm:$0xc] %vm6919, %v7003
        %v7006 = vrot.slane %v6989, 7
        %7008 = vst.msk [vmem:[#allocation5 + $0x10] sm:$0xc] %vm6906, %v7006
        %v7009 = vrot.slane %v6995, 7
        %v7010 = vor.u32 %v7009, %v6998
        %7011 = vrot.lane.b32.xlu0 %v7010, 64
        %v7012 = vpop.permute.xlu0 %7011
        %7014 = vst.msk [vmem:[#allocation5 + $0x10] sm:$0xc] %vm6919, %v7012
        %7015 = vst.msk [vmem:[#allocation5 + $0x14] sm:$0xc] %vm6906, %v6989
        %s7016 = scalar_lea.vmem [#allocation4], 128
        %v7017 = vld [vmem:[%s7016] ss:$2 sm:$0xff]
        %s7018 = scalar_lea.vmem [#allocation4], 129
        %v7019 = vld [vmem:[%s7018] ss:$2 sm:$0xff]
        %v7020 = vmax.f32 %v7017, %v7019
        %s7021 = scalar_lea.vmem [#allocation4], 144
        %v7022 = vld [vmem:[%s7021] ss:$2 sm:$0xff]
        %s7023 = scalar_lea.vmem [#allocation4], 145
        %v7024 = vld [vmem:[%s7023] ss:$2 sm:$0xff]
        %v7025 = vmax.f32 %v7022, %v7024
        %v7026 = vmax.f32 %v7020, %v7025
        %v7027 = vadd.f32 %v7026, %v6851
        %v7028 = vmax.f32 %v7027, 0.0
        %v7029 = vpack.c.bf16 %v7028, %v7028
        %7030 = vst.msk [vmem:[#allocation5 + $0x18] sm:$0x3] %vm6856, %v7029
        %v7032 = vshrl.u32 %v7029, 16
        %v7034 = vrot.slane %v7032, 4
        %v7035 = vshll.u32 %v7029, 16
        %v7037 = vrot.slane %v7035, 5
        %v7038 = vor.u32 %v7034, %v7037
        %v7039 = vrot.slane %v7038, 4
        %7040 = vrot.lane.b32.xlu0 %v7039, 64
        %v7041 = vpop.permute.xlu0 %7040
        %7043 = vst.msk [vmem:[#allocation5 + $0x18] sm:$0x3] %vm6870, %v7041
        %v7045 = vrot.slane %v7029, 5
        %v7046 = vrot.slane %v7045, 4
        %7048 = vst.msk [vmem:[#allocation5 + $0x1c] sm:$0x3] %vm6856, %v7046
        %v7049 = vrot.slane %v7032, 5
        %v7050 = vrot.slane %v7035, 6
        %v7051 = vor.u32 %v7049, %v7050
        %v7052 = vrot.slane %v7051, 4
        %7053 = vrot.lane.b32.xlu0 %v7052, 64
        %v7054 = vpop.permute.xlu0 %7053
        %7056 = vst.msk [vmem:[#allocation5 + $0x1c] sm:$0x3] %vm6870, %v7054
        %v7057 = vrot.slane %v7029, 6
        %v7058 = vrot.slane %v7057, 4
        %7060 = vst.msk [vmem:[#allocation5 + $0x20] sm:$0x3] %vm6856, %v7058
        %s7061 = scalar_lea.vmem [#allocation4], 160
        %v7062 = vld [vmem:[%s7061] ss:$2 sm:$0xff]
        %s7063 = scalar_lea.vmem [#allocation4], 161
        %v7064 = vld [vmem:[%s7063] ss:$2 sm:$0xff]
        %v7065 = vmax.f32 %v7062, %v7064
        %s7066 = scalar_lea.vmem [#allocation4], 176
        %v7067 = vld [vmem:[%s7066] ss:$2 sm:$0xff]
        %s7068 = scalar_lea.vmem [#allocation4], 177
        %v7069 = vld [vmem:[%s7068] ss:$2 sm:$0xff]
        %v7070 = vmax.f32 %v7067, %v7069
        %v7071 = vmax.f32 %v7065, %v7070
        %v7072 = vadd.f32 %v7071, %v6851
        %v7073 = vmax.f32 %v7072, 0.0
        %v7074 = vpack.c.bf16 %v7073, %v7073
        %v7076 = vrot.slane %v7074, 6
        %7078 = vst.msk [vmem:[#allocation5 + $0x18] sm:$0xc] %vm6906, %v7076
        %v7080 = vshrl.u32 %v7074, 16
        %v7082 = vrot.slane %v7080, 6
        %v7083 = vshll.u32 %v7074, 16
        %v7085 = vrot.slane %v7083, 7
        %v7086 = vor.u32 %v7082, %v7085
        %7087 = vrot.lane.b32.xlu0 %v7086, 64
        %v7088 = vpop.permute.xlu0 %7087
        %7090 = vst.msk [vmem:[#allocation5 + $0x18] sm:$0xc] %vm6919, %v7088
        %v7091 = vrot.slane %v7074, 7
        %7093 = vst.msk [vmem:[#allocation5 + $0x1c] sm:$0xc] %vm6906, %v7091
        %v7094 = vrot.slane %v7080, 7
        %v7095 = vor.u32 %v7094, %v7083
        %7096 = vrot.lane.b32.xlu0 %v7095, 64
        %v7097 = vpop.permute.xlu0 %7096
        %7099 = vst.msk [vmem:[#allocation5 + $0x1c] sm:$0xc] %vm6919, %v7097
        %7100 = vst.msk [vmem:[#allocation5 + $0x20] sm:$0xc] %vm6906, %v7074
        %s7101 = scalar_lea.vmem [#allocation4], 192
        %v7102 = vld [vmem:[%s7101] ss:$2 sm:$0xff]
        %s7103 = scalar_lea.vmem [#allocation4], 193
        %v7104 = vld [vmem:[%s7103] ss:$2 sm:$0xff]
        %v7105 = vmax.f32 %v7102, %v7104
        %s7106 = scalar_lea.vmem [#allocation4], 208
        %v7107 = vld [vmem:[%s7106] ss:$2 sm:$0xff]
        %s7108 = scalar_lea.vmem [#allocation4], 209
        %v7109 = vld [vmem:[%s7108] ss:$2 sm:$0xff]
        %v7110 = vmax.f32 %v7107, %v7109
        %v7111 = vmax.f32 %v7105, %v7110
        %v7112 = vadd.f32 %v7111, %v6851
        %v7113 = vmax.f32 %v7112, 0.0
        %v7114 = vpack.c.bf16 %v7113, %v7113
        %7115 = vst.msk [vmem:[#allocation5 + $0x24] sm:$0x3] %vm6856, %v7114
        %v7117 = vshrl.u32 %v7114, 16
        %v7119 = vrot.slane %v7117, 4
        %v7120 = vshll.u32 %v7114, 16
        %v7122 = vrot.slane %v7120, 5
        %v7123 = vor.u32 %v7119, %v7122
        %v7124 = vrot.slane %v7123, 4
        %7125 = vrot.lane.b32.xlu0 %v7124, 64
        %v7126 = vpop.permute.xlu0 %7125
        %7128 = vst.msk [vmem:[#allocation5 + $0x24] sm:$0x3] %vm6870, %v7126
        %v7130 = vrot.slane %v7114, 5
        %v7131 = vrot.slane %v7130, 4
        %7133 = vst.msk [vmem:[#allocation5 + $0x28] sm:$0x3] %vm6856, %v7131
        %v7134 = vrot.slane %v7117, 5
        %v7135 = vrot.slane %v7120, 6
        %v7136 = vor.u32 %v7134, %v7135
        %v7137 = vrot.slane %v7136, 4
        %7138 = vrot.lane.b32.xlu0 %v7137, 64
        %v7139 = vpop.permute.xlu0 %7138
        %7141 = vst.msk [vmem:[#allocation5 + $0x28] sm:$0x3] %vm6870, %v7139
        %v7142 = vrot.slane %v7114, 6
        %v7143 = vrot.slane %v7142, 4
        %7145 = vst.msk [vmem:[#allocation5 + $0x2c] sm:$0x3] %vm6856, %v7143
        %s7146 = scalar_lea.vmem [#allocation4], 224
        %v7147 = vld [vmem:[%s7146] ss:$2 sm:$0xff]
        %s7148 = scalar_lea.vmem [#allocation4], 225
        %v7149 = vld [vmem:[%s7148] ss:$2 sm:$0xff]
        %v7150 = vmax.f32 %v7147, %v7149
        %s7151 = scalar_lea.vmem [#allocation4], 240
        %v7152 = vld [vmem:[%s7151] ss:$2 sm:$0xff]
        %s7153 = scalar_lea.vmem [#allocation4], 241
        %v7154 = vld [vmem:[%s7153] ss:$2 sm:$0xff]
        %v7155 = vmax.f32 %v7152, %v7154
        %v7156 = vmax.f32 %v7150, %v7155
        %v7157 = vadd.f32 %v7156, %v6851
        %v7158 = vmax.f32 %v7157, 0.0
        %v7159 = vpack.c.bf16 %v7158, %v7158
        %v7161 = vrot.slane %v7159, 6
        %7163 = vst.msk [vmem:[#allocation5 + $0x24] sm:$0xc] %vm6906, %v7161
        %v7165 = vshrl.u32 %v7159, 16
        %v7167 = vrot.slane %v7165, 6
        %v7168 = vshll.u32 %v7159, 16
        %v7170 = vrot.slane %v7168, 7
        %v7171 = vor.u32 %v7167, %v7170
        %7172 = vrot.lane.b32.xlu0 %v7171, 64
        %v7173 = vpop.permute.xlu0 %7172
        %7175 = vst.msk [vmem:[#allocation5 + $0x24] sm:$0xc] %vm6919, %v7173
        %v7176 = vrot.slane %v7159, 7
        %7178 = vst.msk [vmem:[#allocation5 + $0x28] sm:$0xc] %vm6906, %v7176
        %v7179 = vrot.slane %v7165, 7
        %v7180 = vor.u32 %v7179, %v7168
        %7181 = vrot.lane.b32.xlu0 %v7180, 64
        %v7182 = vpop.permute.xlu0 %7181
        %7184 = vst.msk [vmem:[#allocation5 + $0x28] sm:$0xc] %vm6919, %v7182
        %7185 = vst.msk [vmem:[#allocation5 + $0x2c] sm:$0xc] %vm6906, %v7159
        %v7186 = vld [vmem:[#allocation5] sm:$0xff]
        %v7187 = vld [vmem:[#allocation5 + $0x8] sm:$0xf]
        %v7188 = vld [vmem:[#allocation5 + $0xc] sm:$0xff]
        %v7189 = vld [vmem:[#allocation5 + $0x14] sm:$0xf]
        %v7190 = vld [vmem:[%s5] sm:$0xf]
        %v7191 = vld [vmem:[%s5 + $0x4] sm:$0xf]
        %v7192 = vld [vmem:[%s5 + $0x8] sm:$0xf]
        %v7193 = vld [vmem:[%s5 + $0xc] sm:$0xf]
        %v7194 = vld [vmem:[%s5 + $0x10] sm:$0xf]
        %v7195 = vld [vmem:[%s5 + $0x14] sm:$0xf]
        %v7196 = vld [vmem:[%s5 + $0x18] sm:$0xf]
        %v7197 = vld [vmem:[%s5 + $0x1c] sm:$0xf]
        %v7198 = vld [vmem:[%s5 + $0x20] sm:$0xf]
        %v7199 = vld [vmem:[%s5 + $0x24] sm:$0xf]
        %v7200 = vld [vmem:[%s5 + $0x28] sm:$0xf]
        %v7201 = vld [vmem:[%s5 + $0x2c] sm:$0xf]
        %v7202 = vld [vmem:[%s5 + $0x30] sm:$0xf]
        %v7203 = vld [vmem:[%s5 + $0x34] sm:$0xf]
        %v7204 = vld [vmem:[%s5 + $0x38] sm:$0xf]
        %v7205 = vld [vmem:[%s5 + $0x3c] sm:$0xf]
        %v7206 = vld [vmem:[%s5 + $0x40] sm:$0xf]
        %v7207 = vld [vmem:[%s5 + $0x44] sm:$0xf]
        %v7208 = vld [vmem:[%s5 + $0x48] sm:$0xf]
        %v7209 = vld [vmem:[%s5 + $0x4c] sm:$0xf]
        %v7210 = vld [vmem:[%s5 + $0x50] sm:$0xf]
        %v7211 = vld [vmem:[%s5 + $0x54] sm:$0xf]
        %v7212 = vld [vmem:[%s5 + $0x58] sm:$0xf]
        %v7213 = vld [vmem:[%s5 + $0x5c] sm:$0xf]
        %v7214 = vld [vmem:[%s5 + $0x60] sm:$0xf]
        %v7215 = vld [vmem:[%s5 + $0x64] sm:$0xf]
        %v7216 = vld [vmem:[%s5 + $0x68] sm:$0xf]
        %v7217 = vld [vmem:[%s5 + $0x6c] sm:$0xf]
        %v7218 = vld [vmem:[%s5 + $0x70] sm:$0xf]
        %v7219 = vld [vmem:[%s5 + $0x74] sm:$0xf]
        %v7220 = vld [vmem:[%s5 + $0x78] sm:$0xf]
        %v7221 = vld [vmem:[%s5 + $0x7c] sm:$0xf]
        %v7222 = vld [vmem:[%s5 + $0x80] sm:$0xf]
        %v7223 = vld [vmem:[%s5 + $0x84] sm:$0xf]
        %v7224 = vld [vmem:[%s5 + $0x88] sm:$0xf]
        %v7225 = vld [vmem:[%s5 + $0x8c] sm:$0xf]
        %v7226 = vld [vmem:[%s5 + $0x90] sm:$0xf]
        %v7227 = vld [vmem:[%s5 + $0x94] sm:$0xf]
        %v7228 = vld [vmem:[%s5 + $0x98] sm:$0xf]
        %v7229 = vld [vmem:[%s5 + $0x9c] sm:$0xf]
        %v7230 = vld [vmem:[#allocation5] sm:$0xcc]
        %v7231 = vld [vmem:[#allocation5 + $0x8] sm:$0xc]
        %v7232 = vld [vmem:[#allocation5 + $0x18] sm:$0x33]
        %v7233 = vld [vmem:[#allocation5 + $0x20] sm:$0x3]
        %s7234 = scalar_lea.vmem %s5, 160
        %v7235 = vld [vmem:[%s7234] sm:$0xf]
        %v7236 = vld [vmem:[%s7234 + $0x4] sm:$0xf]
        %v7237 = vld [vmem:[%s7234 + $0x8] sm:$0xf]
        %v7238 = vld [vmem:[%s7234 + $0xc] sm:$0xf]
        %v7239 = vld [vmem:[%s7234 + $0x10] sm:$0xf]
        %v7240 = vld [vmem:[%s7234 + $0x14] sm:$0xf]
        %v7241 = vld [vmem:[%s7234 + $0x18] sm:$0xf]
        %v7242 = vld [vmem:[%s7234 + $0x1c] sm:$0xf]
        %v7243 = vld [vmem:[%s7234 + $0x20] sm:$0xf]
        %v7244 = vld [vmem:[%s7234 + $0x24] sm:$0xf]
        %v7245 = vld [vmem:[%s7234 + $0x28] sm:$0xf]
        %v7246 = vld [vmem:[%s7234 + $0x2c] sm:$0xf]
        %v7247 = vld [vmem:[%s7234 + $0x30] sm:$0xf]
        %v7248 = vld [vmem:[%s7234 + $0x34] sm:$0xf]
        %v7249 = vld [vmem:[%s7234 + $0x38] sm:$0xf]
        %v7250 = vld [vmem:[%s7234 + $0x3c] sm:$0xf]
        %v7251 = vld [vmem:[%s7234 + $0x40] sm:$0xf]
        %v7252 = vld [vmem:[%s7234 + $0x44] sm:$0xf]
        %v7253 = vld [vmem:[%s7234 + $0x48] sm:$0xf]
        %v7254 = vld [vmem:[%s7234 + $0x4c] sm:$0xf]
        %v7255 = vld [vmem:[%s7234 + $0x50] sm:$0xf]
        %v7256 = vld [vmem:[%s7234 + $0x54] sm:$0xf]
        %v7257 = vld [vmem:[%s7234 + $0x58] sm:$0xf]
        %v7258 = vld [vmem:[%s7234 + $0x5c] sm:$0xf]
        %v7259 = vld [vmem:[%s7234 + $0x60] sm:$0xf]
        %v7260 = vld [vmem:[%s7234 + $0x64] sm:$0xf]
        %v7261 = vld [vmem:[%s7234 + $0x68] sm:$0xf]
        %v7262 = vld [vmem:[%s7234 + $0x6c] sm:$0xf]
        %v7263 = vld [vmem:[%s7234 + $0x70] sm:$0xf]
        %v7264 = vld [vmem:[%s7234 + $0x74] sm:$0xf]
        %v7265 = vld [vmem:[%s7234 + $0x78] sm:$0xf]
        %v7266 = vld [vmem:[%s7234 + $0x7c] sm:$0xf]
        %v7267 = vld [vmem:[%s7234 + $0x80] sm:$0xf]
        %v7268 = vld [vmem:[%s7234 + $0x84] sm:$0xf]
        %v7269 = vld [vmem:[%s7234 + $0x88] sm:$0xf]
        %v7270 = vld [vmem:[%s7234 + $0x8c] sm:$0xf]
        %v7271 = vld [vmem:[%s7234 + $0x90] sm:$0xf]
        %v7272 = vld [vmem:[%s7234 + $0x94] sm:$0xf]
        %v7273 = vld [vmem:[%s7234 + $0x98] sm:$0xf]
        %v7274 = vld [vmem:[%s7234 + $0x9c] sm:$0xf]
        %v7281 = vunpack.c.l.b16 %v7230
        %v7282 = vunpack.c.h.b16 %v7230
        %v7283 = vunpack.c.l.b16 %v7231
        %v7284 = vunpack.c.l.b16 %v7188
        %v7285 = vunpack.c.h.b16 %v7188
        %v7286 = vunpack.c.l.b16 %v7189
        %v7287 = vunpack.c.l.b16 %v7232
        %v7288 = vunpack.c.h.b16 %v7232
        %v7289 = vunpack.c.l.b16 %v7233
        %v7290 = vpack.c.b16 %v7284, %v7281
        %v7291 = vpack.c.b16 %v7285, %v7282
        %v7292 = vpack.c.b16 %v7286, %v7283
        %v7293 = vpack.c.b16 %v7287, %v7287
        %v7294 = vpack.c.b16 %v7288, %v7288
        %v7295 = vpack.c.b16 %v7289, %v7289
        %vm7296 = vcmask 1045504
        %v7297 = vrot.slane %v7290, 2
        %v7298 = vrot.slane %v7293, 2
        %v7299 = vsel %vm7296, %v7297, %v7298
        %v7300 = vrot.slane %v7291, 2
        %v7301 = vrot.slane %v7294, 2
        %v7302 = vsel %vm7296, %v7300, %v7301
        %v7303 = vrot.slane %v7292, 2
        %v7304 = vrot.slane %v7295, 2
        %v7305 = vsel %vm7296, %v7303, %v7304
        %v7348 = vunpack.c.l.b16 %v7235
        %v7349 = vunpack.c.l.b16 %v7236
        %v7350 = vunpack.c.l.b16 %v7237
        %v7351 = vunpack.c.l.b16 %v7238
        %v7352 = vunpack.c.l.b16 %v7239
        %v7353 = vunpack.c.l.b16 %v7240
        %v7354 = vunpack.c.l.b16 %v7241
        %v7355 = vunpack.c.l.b16 %v7242
        %v7356 = vunpack.c.l.b16 %v7243
        %v7357 = vunpack.c.l.b16 %v7244
        %v7358 = vunpack.c.l.b16 %v7245
        %v7359 = vunpack.c.l.b16 %v7246
        %v7360 = vunpack.c.l.b16 %v7247
        %v7361 = vunpack.c.l.b16 %v7248
        %v7362 = vunpack.c.l.b16 %v7249
        %v7363 = vunpack.c.l.b16 %v7250
        %v7364 = vunpack.c.l.b16 %v7251
        %v7365 = vunpack.c.l.b16 %v7252
        %v7366 = vunpack.c.l.b16 %v7253
        %v7367 = vunpack.c.l.b16 %v7254
        %v7368 = vunpack.c.l.b16 %v7255
        %v7369 = vunpack.c.l.b16 %v7256
        %v7370 = vunpack.c.l.b16 %v7257
        %v7371 = vunpack.c.l.b16 %v7258
        %v7372 = vunpack.c.l.b16 %v7259
        %v7373 = vunpack.c.l.b16 %v7260
        %v7374 = vunpack.c.l.b16 %v7261
        %v7375 = vunpack.c.l.b16 %v7262
        %v7376 = vunpack.c.l.b16 %v7263
        %v7377 = vunpack.c.l.b16 %v7264
        %v7378 = vunpack.c.l.b16 %v7265
        %v7379 = vunpack.c.l.b16 %v7266
        %v7380 = vunpack.c.l.b16 %v7267
        %v7381 = vunpack.c.l.b16 %v7268
        %v7382 = vunpack.c.l.b16 %v7269
        %v7383 = vunpack.c.l.b16 %v7270
        %v7384 = vunpack.c.l.b16 %v7271
        %v7385 = vunpack.c.l.b16 %v7272
        %v7386 = vunpack.c.l.b16 %v7273
        %v7387 = vunpack.c.l.b16 %v7274
        %v7388 = vpack.c.b16 %v7349, %v7348
        %v7389 = vpack.c.b16 %v7351, %v7350
        %v7390 = vpack.c.b16 %v7353, %v7352
        %v7391 = vpack.c.b16 %v7355, %v7354
        %v7392 = vpack.c.b16 %v7357, %v7356
        %v7393 = vpack.c.b16 %v7359, %v7358
        %v7394 = vpack.c.b16 %v7361, %v7360
        %v7395 = vpack.c.b16 %v7363, %v7362
        %v7396 = vpack.c.b16 %v7365, %v7364
        %v7397 = vpack.c.b16 %v7367, %v7366
        %v7398 = vpack.c.b16 %v7369, %v7368
        %v7399 = vpack.c.b16 %v7371, %v7370
        %v7400 = vpack.c.b16 %v7373, %v7372
        %v7401 = vpack.c.b16 %v7375, %v7374
        %v7402 = vpack.c.b16 %v7377, %v7376
        %v7403 = vpack.c.b16 %v7379, %v7378
        %v7404 = vpack.c.b16 %v7381, %v7380
        %v7405 = vpack.c.b16 %v7383, %v7382
        %v7406 = vpack.c.b16 %v7385, %v7384
        %v7407 = vpack.c.b16 %v7387, %v7386
        %v7429 = vsel %vm6807, %v7305, 0
        %7431 = vmatpush.bf16.msra.mxu0 %v7395
        %7432 = vmatpush.bf16.msra.mxu0 %v7394
        %7433 = vmatpush.bf16.msra.mxu0 %v7393
        %7434 = vmatpush.bf16.msra.mxu0 %v7392
        %7435 = vmatpush.bf16.msra.mxu0 %v7391
        %7436 = vmatpush.bf16.msra.mxu0 %v7390
        %7437 = vmatpush.bf16.msra.mxu0 %v7389
        %7438 = vmatpush.bf16.msra.mxu0 %v7388
        %7439 = vmatmul.bf16.gmra.mxu0 %v7299
        %v7440 = vpop.f32.mrf.mxu0
        %v7441 = vadd.f32 0.0, %v7440
        %v7442 = vpop.f32.mrf.mxu0
        %v7443 = vadd.f32 0.0, %v7442
        %7444 = vdwg.mxu0
        %7445 = vmatpush.bf16.msra.mxu0 %v7403
        %7446 = vmatpush.bf16.msra.mxu0 %v7402
        %7447 = vmatpush.bf16.msra.mxu0 %v7401
        %7448 = vmatpush.bf16.msra.mxu0 %v7400
        %7449 = vmatpush.bf16.msra.mxu0 %v7399
        %7450 = vmatpush.bf16.msra.mxu0 %v7398
        %7451 = vmatpush.bf16.msra.mxu0 %v7397
        %7452 = vmatpush.bf16.msra.mxu0 %v7396
        %7453 = vmatmul.bf16.gmra.mxu0 %v7302
        %v7454 = vpop.f32.mrf.mxu0
        %v7455 = vadd.f32 %v7441, %v7454
        %v7456 = vpop.f32.mrf.mxu0
        %v7457 = vadd.f32 %v7443, %v7456
        %7458 = vdwg.mxu0
        %7459 = vmatpush.bf16.msra.mxu0 0
        %7460 = vmatpush.bf16.msra.mxu0 0
        %7461 = vmatpush.bf16.msra.mxu0 0
        %7462 = vmatpush.bf16.msra.mxu0 0
        %7463 = vmatpush.bf16.msra.mxu0 %v7407
        %7464 = vmatpush.bf16.msra.mxu0 %v7406
        %7465 = vmatpush.bf16.msra.mxu0 %v7405
        %7466 = vmatpush.bf16.msra.mxu0 %v7404
        %7467 = vmatmul.bf16.gmra.mxu0 %v7429
        %v7468 = vpop.f32.mrf.mxu0
        %v7469 = vadd.f32 %v7455, %v7468
        %v7470 = vpop.f32.mrf.mxu0
        %v7471 = vadd.f32 %v7457, %v7470
        %7472 = vdwg.mxu0
        %v7475 = vunpack.c.l.b16 %v7186
        %v7476 = vunpack.c.h.b16 %v7186
        %v7477 = vunpack.c.l.b16 %v7187
        %v7478 = vpack.c.b16 %v7284, %v7475
        %v7479 = vpack.c.b16 %v7285, %v7476
        %v7480 = vpack.c.b16 %v7286, %v7477
        %v7523 = vunpack.c.l.b16 %v7190
        %v7524 = vunpack.c.l.b16 %v7191
        %v7525 = vunpack.c.l.b16 %v7192
        %v7526 = vunpack.c.l.b16 %v7193
        %v7527 = vunpack.c.l.b16 %v7194
        %v7528 = vunpack.c.l.b16 %v7195
        %v7529 = vunpack.c.l.b16 %v7196
        %v7530 = vunpack.c.l.b16 %v7197
        %v7531 = vunpack.c.l.b16 %v7198
        %v7532 = vunpack.c.l.b16 %v7199
        %v7533 = vunpack.c.l.b16 %v7200
        %v7534 = vunpack.c.l.b16 %v7201
        %v7535 = vunpack.c.l.b16 %v7202
        %v7536 = vunpack.c.l.b16 %v7203
        %v7537 = vunpack.c.l.b16 %v7204
        %v7538 = vunpack.c.l.b16 %v7205
        %v7539 = vunpack.c.l.b16 %v7206
        %v7540 = vunpack.c.l.b16 %v7207
        %v7541 = vunpack.c.l.b16 %v7208
        %v7542 = vunpack.c.l.b16 %v7209
        %v7543 = vunpack.c.l.b16 %v7210
        %v7544 = vunpack.c.l.b16 %v7211
        %v7545 = vunpack.c.l.b16 %v7212
        %v7546 = vunpack.c.l.b16 %v7213
        %v7547 = vunpack.c.l.b16 %v7214
        %v7548 = vunpack.c.l.b16 %v7215
        %v7549 = vunpack.c.l.b16 %v7216
        %v7550 = vunpack.c.l.b16 %v7217
        %v7551 = vunpack.c.l.b16 %v7218
        %v7552 = vunpack.c.l.b16 %v7219
        %v7553 = vunpack.c.l.b16 %v7220
        %v7554 = vunpack.c.l.b16 %v7221
        %v7555 = vunpack.c.l.b16 %v7222
        %v7556 = vunpack.c.l.b16 %v7223
        %v7557 = vunpack.c.l.b16 %v7224
        %v7558 = vunpack.c.l.b16 %v7225
        %v7559 = vunpack.c.l.b16 %v7226
        %v7560 = vunpack.c.l.b16 %v7227
        %v7561 = vunpack.c.l.b16 %v7228
        %v7562 = vunpack.c.l.b16 %v7229
        %v7563 = vpack.c.b16 %v7524, %v7523
        %v7564 = vpack.c.b16 %v7526, %v7525
        %v7565 = vpack.c.b16 %v7528, %v7527
        %v7566 = vpack.c.b16 %v7530, %v7529
        %v7567 = vpack.c.b16 %v7532, %v7531
        %v7568 = vpack.c.b16 %v7534, %v7533
        %v7569 = vpack.c.b16 %v7536, %v7535
        %v7570 = vpack.c.b16 %v7538, %v7537
        %v7571 = vpack.c.b16 %v7540, %v7539
        %v7572 = vpack.c.b16 %v7542, %v7541
        %v7573 = vpack.c.b16 %v7544, %v7543
        %v7574 = vpack.c.b16 %v7546, %v7545
        %v7575 = vpack.c.b16 %v7548, %v7547
        %v7576 = vpack.c.b16 %v7550, %v7549
        %v7577 = vpack.c.b16 %v7552, %v7551
        %v7578 = vpack.c.b16 %v7554, %v7553
        %v7579 = vpack.c.b16 %v7556, %v7555
        %v7580 = vpack.c.b16 %v7558, %v7557
        %v7581 = vpack.c.b16 %v7560, %v7559
        %v7582 = vpack.c.b16 %v7562, %v7561
        %v7604 = vsel %vm6807, %v7480, 0
        %7606 = vmatpush.bf16.msra.mxu0 %v7570
        %7607 = vmatpush.bf16.msra.mxu0 %v7569
        %7608 = vmatpush.bf16.msra.mxu0 %v7568
        %7609 = vmatpush.bf16.msra.mxu0 %v7567
        %7610 = vmatpush.bf16.msra.mxu0 %v7566
        %7611 = vmatpush.bf16.msra.mxu0 %v7565
        %7612 = vmatpush.bf16.msra.mxu0 %v7564
        %7613 = vmatpush.bf16.msra.mxu0 %v7563
        %7614 = vmatmul.bf16.gmra.mxu0 %v7478
        %v7615 = vpop.f32.mrf.mxu0
        %v7616 = vadd.f32 %v7469, %v7615
        %v7617 = vpop.f32.mrf.mxu0
        %v7618 = vadd.f32 %v7471, %v7617
        %7619 = vdwg.mxu0
        %7620 = vmatpush.bf16.msra.mxu0 %v7578
        %7621 = vmatpush.bf16.msra.mxu0 %v7577
        %7622 = vmatpush.bf16.msra.mxu0 %v7576
        %7623 = vmatpush.bf16.msra.mxu0 %v7575
        %7624 = vmatpush.bf16.msra.mxu0 %v7574
        %7625 = vmatpush.bf16.msra.mxu0 %v7573
        %7626 = vmatpush.bf16.msra.mxu0 %v7572
        %7627 = vmatpush.bf16.msra.mxu0 %v7571
        %7628 = vmatmul.bf16.gmra.mxu0 %v7479
        %v7629 = vpop.f32.mrf.mxu0
        %v7630 = vadd.f32 %v7616, %v7629
        %v7631 = vpop.f32.mrf.mxu0
        %v7632 = vadd.f32 %v7618, %v7631
        %7633 = vdwg.mxu0
        %7634 = vmatpush.bf16.msra.mxu0 0
        %7635 = vmatpush.bf16.msra.mxu0 0
        %7636 = vmatpush.bf16.msra.mxu0 0
        %7637 = vmatpush.bf16.msra.mxu0 0
        %7638 = vmatpush.bf16.msra.mxu0 %v7582
        %7639 = vmatpush.bf16.msra.mxu0 %v7581
        %7640 = vmatpush.bf16.msra.mxu0 %v7580
        %7641 = vmatpush.bf16.msra.mxu0 %v7579
        %7642 = vmatmul.bf16.gmra.mxu0 %v7604
        %v7643 = vpop.f32.mrf.mxu0
        %v7644 = vadd.f32 %v7630, %v7643
        %v7645 = vpop.f32.mrf.mxu0
        %v7646 = vadd.f32 %v7632, %v7645
        %7647 = vdwg.mxu0
        %v7648 = vld [vmem:[#allocation5 + $0x18] sm:$0xff]
        %v7649 = vld [vmem:[#allocation5 + $0x20] sm:$0xf]
        %s7650 = scalar_lea.vmem %s5, 320
        %v7651 = vld [vmem:[%s7650] sm:$0xf]
        %v7652 = vld [vmem:[%s7650 + $0x4] sm:$0xf]
        %v7653 = vld [vmem:[%s7650 + $0x8] sm:$0xf]
        %v7654 = vld [vmem:[%s7650 + $0xc] sm:$0xf]
        %v7655 = vld [vmem:[%s7650 + $0x10] sm:$0xf]
        %v7656 = vld [vmem:[%s7650 + $0x14] sm:$0xf]
        %v7657 = vld [vmem:[%s7650 + $0x18] sm:$0xf]
        %v7658 = vld [vmem:[%s7650 + $0x1c] sm:$0xf]
        %v7659 = vld [vmem:[%s7650 + $0x20] sm:$0xf]
        %v7660 = vld [vmem:[%s7650 + $0x24] sm:$0xf]
        %v7661 = vld [vmem:[%s7650 + $0x28] sm:$0xf]
        %v7662 = vld [vmem:[%s7650 + $0x2c] sm:$0xf]
        %v7663 = vld [vmem:[%s7650 + $0x30] sm:$0xf]
        %v7664 = vld [vmem:[%s7650 + $0x34] sm:$0xf]
        %v7665 = vld [vmem:[%s7650 + $0x38] sm:$0xf]
        %v7666 = vld [vmem:[%s7650 + $0x3c] sm:$0xf]
        %v7667 = vld [vmem:[%s7650 + $0x40] sm:$0xf]
        %v7668 = vld [vmem:[%s7650 + $0x44] sm:$0xf]
        %v7669 = vld [vmem:[%s7650 + $0x48] sm:$0xf]
        %v7670 = vld [vmem:[%s7650 + $0x4c] sm:$0xf]
        %v7671 = vld [vmem:[%s7650 + $0x50] sm:$0xf]
        %v7672 = vld [vmem:[%s7650 + $0x54] sm:$0xf]
        %v7673 = vld [vmem:[%s7650 + $0x58] sm:$0xf]
        %v7674 = vld [vmem:[%s7650 + $0x5c] sm:$0xf]
        %v7675 = vld [vmem:[%s7650 + $0x60] sm:$0xf]
        %v7676 = vld [vmem:[%s7650 + $0x64] sm:$0xf]
        %v7677 = vld [vmem:[%s7650 + $0x68] sm:$0xf]
        %v7678 = vld [vmem:[%s7650 + $0x6c] sm:$0xf]
        %v7679 = vld [vmem:[%s7650 + $0x70] sm:$0xf]
        %v7680 = vld [vmem:[%s7650 + $0x74] sm:$0xf]
        %v7681 = vld [vmem:[%s7650 + $0x78] sm:$0xf]
        %v7682 = vld [vmem:[%s7650 + $0x7c] sm:$0xf]
        %v7683 = vld [vmem:[%s7650 + $0x80] sm:$0xf]
        %v7684 = vld [vmem:[%s7650 + $0x84] sm:$0xf]
        %v7685 = vld [vmem:[%s7650 + $0x88] sm:$0xf]
        %v7686 = vld [vmem:[%s7650 + $0x8c] sm:$0xf]
        %v7687 = vld [vmem:[%s7650 + $0x90] sm:$0xf]
        %v7688 = vld [vmem:[%s7650 + $0x94] sm:$0xf]
        %v7689 = vld [vmem:[%s7650 + $0x98] sm:$0xf]
        %v7690 = vld [vmem:[%s7650 + $0x9c] sm:$0xf]
        %v7693 = vunpack.c.l.b16 %v7648
        %v7694 = vunpack.c.h.b16 %v7648
        %v7695 = vunpack.c.l.b16 %v7649
        %v7696 = vpack.c.b16 %v7693, %v7284
        %v7697 = vpack.c.b16 %v7694, %v7285
        %v7698 = vpack.c.b16 %v7695, %v7286
        %v7741 = vunpack.c.l.b16 %v7651
        %v7742 = vunpack.c.l.b16 %v7652
        %v7743 = vunpack.c.l.b16 %v7653
        %v7744 = vunpack.c.l.b16 %v7654
        %v7745 = vunpack.c.l.b16 %v7655
        %v7746 = vunpack.c.l.b16 %v7656
        %v7747 = vunpack.c.l.b16 %v7657
        %v7748 = vunpack.c.l.b16 %v7658
        %v7749 = vunpack.c.l.b16 %v7659
        %v7750 = vunpack.c.l.b16 %v7660
        %v7751 = vunpack.c.l.b16 %v7661
        %v7752 = vunpack.c.l.b16 %v7662
        %v7753 = vunpack.c.l.b16 %v7663
        %v7754 = vunpack.c.l.b16 %v7664
        %v7755 = vunpack.c.l.b16 %v7665
        %v7756 = vunpack.c.l.b16 %v7666
        %v7757 = vunpack.c.l.b16 %v7667
        %v7758 = vunpack.c.l.b16 %v7668
        %v7759 = vunpack.c.l.b16 %v7669
        %v7760 = vunpack.c.l.b16 %v7670
        %v7761 = vunpack.c.l.b16 %v7671
        %v7762 = vunpack.c.l.b16 %v7672
        %v7763 = vunpack.c.l.b16 %v7673
        %v7764 = vunpack.c.l.b16 %v7674
        %v7765 = vunpack.c.l.b16 %v7675
        %v7766 = vunpack.c.l.b16 %v7676
        %v7767 = vunpack.c.l.b16 %v7677
        %v7768 = vunpack.c.l.b16 %v7678
        %v7769 = vunpack.c.l.b16 %v7679
        %v7770 = vunpack.c.l.b16 %v7680
        %v7771 = vunpack.c.l.b16 %v7681
        %v7772 = vunpack.c.l.b16 %v7682
        %v7773 = vunpack.c.l.b16 %v7683
        %v7774 = vunpack.c.l.b16 %v7684
        %v7775 = vunpack.c.l.b16 %v7685
        %v7776 = vunpack.c.l.b16 %v7686
        %v7777 = vunpack.c.l.b16 %v7687
        %v7778 = vunpack.c.l.b16 %v7688
        %v7779 = vunpack.c.l.b16 %v7689
        %v7780 = vunpack.c.l.b16 %v7690
        %v7781 = vpack.c.b16 %v7742, %v7741
        %v7782 = vpack.c.b16 %v7744, %v7743
        %v7783 = vpack.c.b16 %v7746, %v7745
        %v7784 = vpack.c.b16 %v7748, %v7747
        %v7785 = vpack.c.b16 %v7750, %v7749
        %v7786 = vpack.c.b16 %v7752, %v7751
        %v7787 = vpack.c.b16 %v7754, %v7753
        %v7788 = vpack.c.b16 %v7756, %v7755
        %v7789 = vpack.c.b16 %v7758, %v7757
        %v7790 = vpack.c.b16 %v7760, %v7759
        %v7791 = vpack.c.b16 %v7762, %v7761
        %v7792 = vpack.c.b16 %v7764, %v7763
        %v7793 = vpack.c.b16 %v7766, %v7765
        %v7794 = vpack.c.b16 %v7768, %v7767
        %v7795 = vpack.c.b16 %v7770, %v7769
        %v7796 = vpack.c.b16 %v7772, %v7771
        %v7797 = vpack.c.b16 %v7774, %v7773
        %v7798 = vpack.c.b16 %v7776, %v7775
        %v7799 = vpack.c.b16 %v7778, %v7777
        %v7800 = vpack.c.b16 %v7780, %v7779
        %v7822 = vsel %vm6807, %v7698, 0
        %7824 = vmatpush.bf16.msra.mxu0 %v7788
        %7825 = vmatpush.bf16.msra.mxu0 %v7787
        %7826 = vmatpush.bf16.msra.mxu0 %v7786
        %7827 = vmatpush.bf16.msra.mxu0 %v7785
        %7828 = vmatpush.bf16.msra.mxu0 %v7784
        %7829 = vmatpush.bf16.msra.mxu0 %v7783
        %7830 = vmatpush.bf16.msra.mxu0 %v7782
        %7831 = vmatpush.bf16.msra.mxu0 %v7781
        %7832 = vmatmul.bf16.gmra.mxu0 %v7696
        %v7833 = vpop.f32.mrf.mxu0
        %v7834 = vadd.f32 0.0, %v7833
        %v7835 = vpop.f32.mrf.mxu0
        %v7836 = vadd.f32 0.0, %v7835
        %7837 = vdwg.mxu0
        %7838 = vmatpush.bf16.msra.mxu0 %v7796
        %7839 = vmatpush.bf16.msra.mxu0 %v7795
        %7840 = vmatpush.bf16.msra.mxu0 %v7794
        %7841 = vmatpush.bf16.msra.mxu0 %v7793
        %7842 = vmatpush.bf16.msra.mxu0 %v7792
        %7843 = vmatpush.bf16.msra.mxu0 %v7791
        %7844 = vmatpush.bf16.msra.mxu0 %v7790
        %7845 = vmatpush.bf16.msra.mxu0 %v7789
        %7846 = vmatmul.bf16.gmra.mxu0 %v7697
        %v7847 = vpop.f32.mrf.mxu0
        %v7848 = vadd.f32 %v7834, %v7847
        %v7849 = vpop.f32.mrf.mxu0
        %v7850 = vadd.f32 %v7836, %v7849
        %7851 = vdwg.mxu0
        %7852 = vmatpush.bf16.msra.mxu0 0
        %7853 = vmatpush.bf16.msra.mxu0 0
        %7854 = vmatpush.bf16.msra.mxu0 0
        %7855 = vmatpush.bf16.msra.mxu0 0
        %7856 = vmatpush.bf16.msra.mxu0 %v7800
        %7857 = vmatpush.bf16.msra.mxu0 %v7799
        %7858 = vmatpush.bf16.msra.mxu0 %v7798
        %7859 = vmatpush.bf16.msra.mxu0 %v7797
        %7860 = vmatmul.bf16.gmra.mxu0 %v7822
        %v7861 = vpop.f32.mrf.mxu0
        %v7862 = vadd.f32 %v7848, %v7861
        %v7863 = vpop.f32.mrf.mxu0
        %v7864 = vadd.f32 %v7850, %v7863
        %7865 = vdwg.mxu0
        %v7866 = vadd.f32 %v7644, %v7862
        %v7867 = vadd.f32 %v7646, %v7864
        %v7868 = vld [vmem:[#allocation5 + $0xc] sm:$0xcc]
        %v7869 = vld [vmem:[#allocation5 + $0x14] sm:$0xc]
        %v7870 = vld [vmem:[#allocation5 + $0x18] sm:$0xff]
        %v7871 = vld [vmem:[#allocation5 + $0x20] sm:$0xf]
        %v7872 = vld [vmem:[#allocation5 + $0x24] sm:$0x33]
        %v7873 = vld [vmem:[#allocation5 + $0x2c] sm:$0x3]
        %s7874 = scalar_lea.vmem %s5, 480
        %v7875 = vld [vmem:[%s7874] sm:$0xf]
        %v7876 = vld [vmem:[%s7874 + $0x4] sm:$0xf]
        %v7877 = vld [vmem:[%s7874 + $0x8] sm:$0xf]
        %v7878 = vld [vmem:[%s7874 + $0xc] sm:$0xf]
        %v7879 = vld [vmem:[%s7874 + $0x10] sm:$0xf]
        %v7880 = vld [vmem:[%s7874 + $0x14] sm:$0xf]
        %v7881 = vld [vmem:[%s7874 + $0x18] sm:$0xf]
        %v7882 = vld [vmem:[%s7874 + $0x1c] sm:$0xf]
        %v7883 = vld [vmem:[%s7874 + $0x20] sm:$0xf]
        %v7884 = vld [vmem:[%s7874 + $0x24] sm:$0xf]
        %v7885 = vld [vmem:[%s7874 + $0x28] sm:$0xf]
        %v7886 = vld [vmem:[%s7874 + $0x2c] sm:$0xf]
        %v7887 = vld [vmem:[%s7874 + $0x30] sm:$0xf]
        %v7888 = vld [vmem:[%s7874 + $0x34] sm:$0xf]
        %v7889 = vld [vmem:[%s7874 + $0x38] sm:$0xf]
        %v7890 = vld [vmem:[%s7874 + $0x3c] sm:$0xf]
        %v7891 = vld [vmem:[%s7874 + $0x40] sm:$0xf]
        %v7892 = vld [vmem:[%s7874 + $0x44] sm:$0xf]
        %v7893 = vld [vmem:[%s7874 + $0x48] sm:$0xf]
        %v7894 = vld [vmem:[%s7874 + $0x4c] sm:$0xf]
        %v7895 = vld [vmem:[%s7874 + $0x50] sm:$0xf]
        %v7896 = vld [vmem:[%s7874 + $0x54] sm:$0xf]
        %v7897 = vld [vmem:[%s7874 + $0x58] sm:$0xf]
        %v7898 = vld [vmem:[%s7874 + $0x5c] sm:$0xf]
        %v7899 = vld [vmem:[%s7874 + $0x60] sm:$0xf]
        %v7900 = vld [vmem:[%s7874 + $0x64] sm:$0xf]
        %v7901 = vld [vmem:[%s7874 + $0x68] sm:$0xf]
        %v7902 = vld [vmem:[%s7874 + $0x6c] sm:$0xf]
        %v7903 = vld [vmem:[%s7874 + $0x70] sm:$0xf]
        %v7904 = vld [vmem:[%s7874 + $0x74] sm:$0xf]
        %v7905 = vld [vmem:[%s7874 + $0x78] sm:$0xf]
        %v7906 = vld [vmem:[%s7874 + $0x7c] sm:$0xf]
        %v7907 = vld [vmem:[%s7874 + $0x80] sm:$0xf]
        %v7908 = vld [vmem:[%s7874 + $0x84] sm:$0xf]
        %v7909 = vld [vmem:[%s7874 + $0x88] sm:$0xf]
        %v7910 = vld [vmem:[%s7874 + $0x8c] sm:$0xf]
        %v7911 = vld [vmem:[%s7874 + $0x90] sm:$0xf]
        %v7912 = vld [vmem:[%s7874 + $0x94] sm:$0xf]
        %v7913 = vld [vmem:[%s7874 + $0x98] sm:$0xf]
        %v7914 = vld [vmem:[%s7874 + $0x9c] sm:$0xf]
        %v7921 = vunpack.c.l.b16 %v7868
        %v7922 = vunpack.c.h.b16 %v7868
        %v7923 = vunpack.c.l.b16 %v7869
        %v7924 = vunpack.c.l.b16 %v7870
        %v7925 = vunpack.c.h.b16 %v7870
        %v7926 = vunpack.c.l.b16 %v7871
        %v7927 = vunpack.c.l.b16 %v7872
        %v7928 = vunpack.c.h.b16 %v7872
        %v7929 = vunpack.c.l.b16 %v7873
        %v7930 = vpack.c.b16 %v7924, %v7921
        %v7931 = vpack.c.b16 %v7925, %v7922
        %v7932 = vpack.c.b16 %v7926, %v7923
        %v7933 = vpack.c.b16 %v7927, %v7927
        %v7934 = vpack.c.b16 %v7928, %v7928
        %v7935 = vpack.c.b16 %v7929, %v7929
        %v7936 = vrot.slane %v7930, 2
        %v7937 = vrot.slane %v7933, 2
        %v7938 = vsel %vm7296, %v7936, %v7937
        %v7939 = vrot.slane %v7931, 2
        %v7940 = vrot.slane %v7934, 2
        %v7941 = vsel %vm7296, %v7939, %v7940
        %v7942 = vrot.slane %v7932, 2
        %v7943 = vrot.slane %v7935, 2
        %v7944 = vsel %vm7296, %v7942, %v7943
        %v7987 = vunpack.c.l.b16 %v7875
        %v7988 = vunpack.c.l.b16 %v7876
        %v7989 = vunpack.c.l.b16 %v7877
        %v7990 = vunpack.c.l.b16 %v7878
        %v7991 = vunpack.c.l.b16 %v7879
        %v7992 = vunpack.c.l.b16 %v7880
        %v7993 = vunpack.c.l.b16 %v7881
        %v7994 = vunpack.c.l.b16 %v7882
        %v7995 = vunpack.c.l.b16 %v7883
        %v7996 = vunpack.c.l.b16 %v7884
        %v7997 = vunpack.c.l.b16 %v7885
        %v7998 = vunpack.c.l.b16 %v7886
        %v7999 = vunpack.c.l.b16 %v7887
        %v8000 = vunpack.c.l.b16 %v7888
        %v8001 = vunpack.c.l.b16 %v7889
        %v8002 = vunpack.c.l.b16 %v7890
        %v8003 = vunpack.c.l.b16 %v7891
        %v8004 = vunpack.c.l.b16 %v7892
        %v8005 = vunpack.c.l.b16 %v7893
        %v8006 = vunpack.c.l.b16 %v7894
        %v8007 = vunpack.c.l.b16 %v7895
        %v8008 = vunpack.c.l.b16 %v7896
        %v8009 = vunpack.c.l.b16 %v7897
        %v8010 = vunpack.c.l.b16 %v7898
        %v8011 = vunpack.c.l.b16 %v7899
        %v8012 = vunpack.c.l.b16 %v7900
        %v8013 = vunpack.c.l.b16 %v7901
        %v8014 = vunpack.c.l.b16 %v7902
        %v8015 = vunpack.c.l.b16 %v7903
        %v8016 = vunpack.c.l.b16 %v7904
        %v8017 = vunpack.c.l.b16 %v7905
        %v8018 = vunpack.c.l.b16 %v7906
        %v8019 = vunpack.c.l.b16 %v7907
        %v8020 = vunpack.c.l.b16 %v7908
        %v8021 = vunpack.c.l.b16 %v7909
        %v8022 = vunpack.c.l.b16 %v7910
        %v8023 = vunpack.c.l.b16 %v7911
        %v8024 = vunpack.c.l.b16 %v7912
        %v8025 = vunpack.c.l.b16 %v7913
        %v8026 = vunpack.c.l.b16 %v7914
        %v8027 = vpack.c.b16 %v7988, %v7987
        %v8028 = vpack.c.b16 %v7990, %v7989
        %v8029 = vpack.c.b16 %v7992, %v7991
        %v8030 = vpack.c.b16 %v7994, %v7993
        %v8031 = vpack.c.b16 %v7996, %v7995
        %v8032 = vpack.c.b16 %v7998, %v7997
        %v8033 = vpack.c.b16 %v8000, %v7999
        %v8034 = vpack.c.b16 %v8002, %v8001
        %v8035 = vpack.c.b16 %v8004, %v8003
        %v8036 = vpack.c.b16 %v8006, %v8005
        %v8037 = vpack.c.b16 %v8008, %v8007
        %v8038 = vpack.c.b16 %v8010, %v8009
        %v8039 = vpack.c.b16 %v8012, %v8011
        %v8040 = vpack.c.b16 %v8014, %v8013
        %v8041 = vpack.c.b16 %v8016, %v8015
        %v8042 = vpack.c.b16 %v8018, %v8017
        %v8043 = vpack.c.b16 %v8020, %v8019
        %v8044 = vpack.c.b16 %v8022, %v8021
        %v8045 = vpack.c.b16 %v8024, %v8023
        %v8046 = vpack.c.b16 %v8026, %v8025
        %v8068 = vsel %vm6807, %v7944, 0
        %8070 = vmatpush.bf16.msra.mxu0 %v8034
        %8071 = vmatpush.bf16.msra.mxu0 %v8033
        %8072 = vmatpush.bf16.msra.mxu0 %v8032
        %8073 = vmatpush.bf16.msra.mxu0 %v8031
        %8074 = vmatpush.bf16.msra.mxu0 %v8030
        %8075 = vmatpush.bf16.msra.mxu0 %v8029
        %8076 = vmatpush.bf16.msra.mxu0 %v8028
        %8077 = vmatpush.bf16.msra.mxu0 %v8027
        %8078 = vmatmul.bf16.gmra.mxu0 %v7938
        %v8079 = vpop.f32.mrf.mxu0
        %v8080 = vadd.f32 0.0, %v8079
        %v8081 = vpop.f32.mrf.mxu0
        %v8082 = vadd.f32 0.0, %v8081
        %8083 = vdwg.mxu0
        %8084 = vmatpush.bf16.msra.mxu0 %v8042
        %8085 = vmatpush.bf16.msra.mxu0 %v8041
        %8086 = vmatpush.bf16.msra.mxu0 %v8040
        %8087 = vmatpush.bf16.msra.mxu0 %v8039
        %8088 = vmatpush.bf16.msra.mxu0 %v8038
        %8089 = vmatpush.bf16.msra.mxu0 %v8037
        %8090 = vmatpush.bf16.msra.mxu0 %v8036
        %8091 = vmatpush.bf16.msra.mxu0 %v8035
        %8092 = vmatmul.bf16.gmra.mxu0 %v7941
        %v8093 = vpop.f32.mrf.mxu0
        %v8094 = vadd.f32 %v8080, %v8093
        %v8095 = vpop.f32.mrf.mxu0
        %v8096 = vadd.f32 %v8082, %v8095
        %8097 = vdwg.mxu0
        %8098 = vmatpush.bf16.msra.mxu0 0
        %8099 = vmatpush.bf16.msra.mxu0 0
        %8100 = vmatpush.bf16.msra.mxu0 0
        %8101 = vmatpush.bf16.msra.mxu0 0
        %8102 = vmatpush.bf16.msra.mxu0 %v8046
        %8103 = vmatpush.bf16.msra.mxu0 %v8045
        %8104 = vmatpush.bf16.msra.mxu0 %v8044
        %8105 = vmatpush.bf16.msra.mxu0 %v8043
        %8106 = vmatmul.bf16.gmra.mxu0 %v8068
        %v8107 = vpop.f32.mrf.mxu0
        %v8108 = vadd.f32 %v8094, %v8107
        %v8109 = vpop.f32.mrf.mxu0
        %v8110 = vadd.f32 %v8096, %v8109
        %8111 = vdwg.mxu0
        %v8112 = vadd.f32 %v7866, %v8108
        %v8113 = vadd.f32 %v7867, %v8110
        %v8114 = vld [vmem:[#allocation5 + $0x24] sm:$0xff]
        %v8115 = vld [vmem:[#allocation5 + $0x2c] sm:$0xf]
        %s8116 = scalar_lea.vmem %s5, 640
        %v8117 = vld [vmem:[%s8116] sm:$0xf]
        %v8118 = vld [vmem:[%s8116 + $0x4] sm:$0xf]
        %v8119 = vld [vmem:[%s8116 + $0x8] sm:$0xf]
        %v8120 = vld [vmem:[%s8116 + $0xc] sm:$0xf]
        %v8121 = vld [vmem:[%s8116 + $0x10] sm:$0xf]
        %v8122 = vld [vmem:[%s8116 + $0x14] sm:$0xf]
        %v8123 = vld [vmem:[%s8116 + $0x18] sm:$0xf]
        %v8124 = vld [vmem:[%s8116 + $0x1c] sm:$0xf]
        %v8125 = vld [vmem:[%s8116 + $0x20] sm:$0xf]
        %v8126 = vld [vmem:[%s8116 + $0x24] sm:$0xf]
        %v8127 = vld [vmem:[%s8116 + $0x28] sm:$0xf]
        %v8128 = vld [vmem:[%s8116 + $0x2c] sm:$0xf]
        %v8129 = vld [vmem:[%s8116 + $0x30] sm:$0xf]
        %v8130 = vld [vmem:[%s8116 + $0x34] sm:$0xf]
        %v8131 = vld [vmem:[%s8116 + $0x38] sm:$0xf]
        %v8132 = vld [vmem:[%s8116 + $0x3c] sm:$0xf]
        %v8133 = vld [vmem:[%s8116 + $0x40] sm:$0xf]
        %v8134 = vld [vmem:[%s8116 + $0x44] sm:$0xf]
        %v8135 = vld [vmem:[%s8116 + $0x48] sm:$0xf]
        %v8136 = vld [vmem:[%s8116 + $0x4c] sm:$0xf]
        %v8137 = vld [vmem:[%s8116 + $0x50] sm:$0xf]
        %v8138 = vld [vmem:[%s8116 + $0x54] sm:$0xf]
        %v8139 = vld [vmem:[%s8116 + $0x58] sm:$0xf]
        %v8140 = vld [vmem:[%s8116 + $0x5c] sm:$0xf]
        %v8141 = vld [vmem:[%s8116 + $0x60] sm:$0xf]
        %v8142 = vld [vmem:[%s8116 + $0x64] sm:$0xf]
        %v8143 = vld [vmem:[%s8116 + $0x68] sm:$0xf]
        %v8144 = vld [vmem:[%s8116 + $0x6c] sm:$0xf]
        %v8145 = vld [vmem:[%s8116 + $0x70] sm:$0xf]
        %v8146 = vld [vmem:[%s8116 + $0x74] sm:$0xf]
        %v8147 = vld [vmem:[%s8116 + $0x78] sm:$0xf]
        %v8148 = vld [vmem:[%s8116 + $0x7c] sm:$0xf]
        %v8149 = vld [vmem:[%s8116 + $0x80] sm:$0xf]
        %v8150 = vld [vmem:[%s8116 + $0x84] sm:$0xf]
        %v8151 = vld [vmem:[%s8116 + $0x88] sm:$0xf]
        %v8152 = vld [vmem:[%s8116 + $0x8c] sm:$0xf]
        %v8153 = vld [vmem:[%s8116 + $0x90] sm:$0xf]
        %v8154 = vld [vmem:[%s8116 + $0x94] sm:$0xf]
        %v8155 = vld [vmem:[%s8116 + $0x98] sm:$0xf]
        %v8156 = vld [vmem:[%s8116 + $0x9c] sm:$0xf]
        %v8159 = vunpack.c.l.b16 %v8114
        %v8160 = vunpack.c.h.b16 %v8114
        %v8161 = vunpack.c.l.b16 %v8115
        %v8162 = vpack.c.b16 %v8159, %v7924
        %v8163 = vpack.c.b16 %v8160, %v7925
        %v8164 = vpack.c.b16 %v8161, %v7926
        %v8207 = vunpack.c.l.b16 %v8117
        %v8208 = vunpack.c.l.b16 %v8118
        %v8209 = vunpack.c.l.b16 %v8119
        %v8210 = vunpack.c.l.b16 %v8120
        %v8211 = vunpack.c.l.b16 %v8121
        %v8212 = vunpack.c.l.b16 %v8122
        %v8213 = vunpack.c.l.b16 %v8123
        %v8214 = vunpack.c.l.b16 %v8124
        %v8215 = vunpack.c.l.b16 %v8125
        %v8216 = vunpack.c.l.b16 %v8126
        %v8217 = vunpack.c.l.b16 %v8127
        %v8218 = vunpack.c.l.b16 %v8128
        %v8219 = vunpack.c.l.b16 %v8129
        %v8220 = vunpack.c.l.b16 %v8130
        %v8221 = vunpack.c.l.b16 %v8131
        %v8222 = vunpack.c.l.b16 %v8132
        %v8223 = vunpack.c.l.b16 %v8133
        %v8224 = vunpack.c.l.b16 %v8134
        %v8225 = vunpack.c.l.b16 %v8135
        %v8226 = vunpack.c.l.b16 %v8136
        %v8227 = vunpack.c.l.b16 %v8137
        %v8228 = vunpack.c.l.b16 %v8138
        %v8229 = vunpack.c.l.b16 %v8139
        %v8230 = vunpack.c.l.b16 %v8140
        %v8231 = vunpack.c.l.b16 %v8141
        %v8232 = vunpack.c.l.b16 %v8142
        %v8233 = vunpack.c.l.b16 %v8143
        %v8234 = vunpack.c.l.b16 %v8144
        %v8235 = vunpack.c.l.b16 %v8145
        %v8236 = vunpack.c.l.b16 %v8146
        %v8237 = vunpack.c.l.b16 %v8147
        %v8238 = vunpack.c.l.b16 %v8148
        %v8239 = vunpack.c.l.b16 %v8149
        %v8240 = vunpack.c.l.b16 %v8150
        %v8241 = vunpack.c.l.b16 %v8151
        %v8242 = vunpack.c.l.b16 %v8152
        %v8243 = vunpack.c.l.b16 %v8153
        %v8244 = vunpack.c.l.b16 %v8154
        %v8245 = vunpack.c.l.b16 %v8155
        %v8246 = vunpack.c.l.b16 %v8156
        %v8247 = vpack.c.b16 %v8208, %v8207
        %v8248 = vpack.c.b16 %v8210, %v8209
        %v8249 = vpack.c.b16 %v8212, %v8211
        %v8250 = vpack.c.b16 %v8214, %v8213
        %v8251 = vpack.c.b16 %v8216, %v8215
        %v8252 = vpack.c.b16 %v8218, %v8217
        %v8253 = vpack.c.b16 %v8220, %v8219
        %v8254 = vpack.c.b16 %v8222, %v8221
        %v8255 = vpack.c.b16 %v8224, %v8223
        %v8256 = vpack.c.b16 %v8226, %v8225
        %v8257 = vpack.c.b16 %v8228, %v8227
        %v8258 = vpack.c.b16 %v8230, %v8229
        %v8259 = vpack.c.b16 %v8232, %v8231
        %v8260 = vpack.c.b16 %v8234, %v8233
        %v8261 = vpack.c.b16 %v8236, %v8235
        %v8262 = vpack.c.b16 %v8238, %v8237
        %v8263 = vpack.c.b16 %v8240, %v8239
        %v8264 = vpack.c.b16 %v8242, %v8241
        %v8265 = vpack.c.b16 %v8244, %v8243
        %v8266 = vpack.c.b16 %v8246, %v8245
        %v8288 = vsel %vm6807, %v8164, 0
        %8290 = vmatpush.bf16.msra.mxu0 %v8254
        %8291 = vmatpush.bf16.msra.mxu0 %v8253
        %8292 = vmatpush.bf16.msra.mxu0 %v8252
        %8293 = vmatpush.bf16.msra.mxu0 %v8251
        %8294 = vmatpush.bf16.msra.mxu0 %v8250
        %8295 = vmatpush.bf16.msra.mxu0 %v8249
        %8296 = vmatpush.bf16.msra.mxu0 %v8248
        %8297 = vmatpush.bf16.msra.mxu0 %v8247
        %8298 = vmatmul.bf16.gmra.mxu0 %v8162
        %v8299 = vpop.f32.mrf.mxu0
        %v8300 = vadd.f32 0.0, %v8299
        %v8301 = vpop.f32.mrf.mxu0
        %v8302 = vadd.f32 0.0, %v8301
        %8303 = vdwg.mxu0
        %8304 = vmatpush.bf16.msra.mxu0 %v8262
        %8305 = vmatpush.bf16.msra.mxu0 %v8261
        %8306 = vmatpush.bf16.msra.mxu0 %v8260
        %8307 = vmatpush.bf16.msra.mxu0 %v8259
        %8308 = vmatpush.bf16.msra.mxu0 %v8258
        %8309 = vmatpush.bf16.msra.mxu0 %v8257
        %8310 = vmatpush.bf16.msra.mxu0 %v8256
        %8311 = vmatpush.bf16.msra.mxu0 %v8255
        %8312 = vmatmul.bf16.gmra.mxu0 %v8163
        %v8313 = vpop.f32.mrf.mxu0
        %v8314 = vadd.f32 %v8300, %v8313
        %v8315 = vpop.f32.mrf.mxu0
        %v8316 = vadd.f32 %v8302, %v8315
        %8317 = vdwg.mxu0
        %8318 = vmatpush.bf16.msra.mxu0 0
        %8319 = vmatpush.bf16.msra.mxu0 0
        %8320 = vmatpush.bf16.msra.mxu0 0
        %8321 = vmatpush.bf16.msra.mxu0 0
        %8322 = vmatpush.bf16.msra.mxu0 %v8266
        %8323 = vmatpush.bf16.msra.mxu0 %v8265
        %8324 = vmatpush.bf16.msra.mxu0 %v8264
        %8325 = vmatpush.bf16.msra.mxu0 %v8263
        %8326 = vmatmul.bf16.gmra.mxu0 %v8288
        %v8327 = vpop.f32.mrf.mxu0
        %v8328 = vadd.f32 %v8314, %v8327
        %v8329 = vpop.f32.mrf.mxu0
        %v8330 = vadd.f32 %v8316, %v8329
        %8331 = vdwg.mxu0
        %v8332 = vadd.f32 %v8112, %v8328
        %v8333 = vadd.f32 %v8113, %v8330
        %8334 = vst.msk [vmem:[#allocation6] sm:$0xff] %vm6807, %v8332
        %8335 = vst.msk [vmem:[#allocation6 + $0x8] sm:$0xff] %vm6807, %v8333
        %v8336 = vld [vmem:[#allocation6] sm:$0x1]
        %v8337 = vld [vmem:[#allocation6 + $0x1] sm:$0x1]
        %v8338 = vmax.f32 %v8336, %v8337
        %v8339 = vld [vmem:[#allocation6 + $0x4] sm:$0x1]
        %v8340 = vld [vmem:[#allocation6 + $0x5] sm:$0x1]
        %v8341 = vmax.f32 %v8339, %v8340
        %v8342 = vmax.f32 %v8338, %v8341
        %v8343 = vadd.f32 %v8342, %v441
        %v8344 = vmax.f32 %v8343, 0.0
        %v8345 = vpack.c.bf16 %v8344, %v8344
        %v8346 = vld [vmem:[#allocation6 + $0x2] sm:$0x1]
        %v8347 = vld [vmem:[#allocation6 + $0x3] sm:$0x1]
        %v8348 = vmax.f32 %v8346, %v8347
        %v8349 = vld [vmem:[#allocation6 + $0x6] sm:$0x1]
        %v8350 = vld [vmem:[#allocation6 + $0x7] sm:$0x1]
        %v8351 = vmax.f32 %v8349, %v8350
        %v8352 = vmax.f32 %v8348, %v8351
        %v8353 = vadd.f32 %v8352, %v441
        %v8354 = vmax.f32 %v8353, 0.0
        %v8355 = vpack.c.bf16 %v8354, %v8354
        %v8356 = vld [vmem:[#allocation6 + $0x8] sm:$0x1]
        %v8357 = vld [vmem:[#allocation6 + $0x9] sm:$0x1]
        %v8358 = vmax.f32 %v8356, %v8357
        %v8359 = vld [vmem:[#allocation6 + $0xc] sm:$0x1]
        %v8360 = vld [vmem:[#allocation6 + $0xd] sm:$0x1]
        %v8361 = vmax.f32 %v8359, %v8360
        %v8362 = vmax.f32 %v8358, %v8361
        %v8363 = vadd.f32 %v8362, %v441
        %v8364 = vmax.f32 %v8363, 0.0
        %v8365 = vpack.c.bf16 %v8364, %v8364
        %v8366 = vld [vmem:[#allocation6 + $0xa] sm:$0x1]
        %v8367 = vld [vmem:[#allocation6 + $0xb] sm:$0x1]
        %v8368 = vmax.f32 %v8366, %v8367
        %v8369 = vld [vmem:[#allocation6 + $0xe] sm:$0x1]
        %v8370 = vld [vmem:[#allocation6 + $0xf] sm:$0x1]
        %v8371 = vmax.f32 %v8369, %v8370
        %v8372 = vmax.f32 %v8368, %v8371
        %v8373 = vadd.f32 %v8372, %v441
        %v8374 = vmax.f32 %v8373, 0.0
        %v8375 = vpack.c.bf16 %v8374, %v8374
        %v8377 = vunpack.c.l.b16 %v8355
        %v8378 = vpack.c.b16 %v8377, %v8377
        %8379 = vrot.lane.b32.xlu0 %v8378, 64
        %v8380 = vpop.permute.xlu0 %8379
        %v8382 = vunpack.c.l.b16 %v8375
        %v8383 = vpack.c.b16 %v8382, %v8382
        %8384 = vrot.lane.b32.xlu0 %v8383, 64
        %v8385 = vpop.permute.xlu0 %8384
        %v8388 = vsel %vm6807, %v8345, %v8380
        %v8392 = vsel %vm6807, %v8365, %v8385
        %v8394 = vld [vmem:[%s7] sm:$0xf]
        %v8395 = vld [vmem:[%s7 + $0x4] sm:$0xf]
        %v8396 = vld [vmem:[%s7 + $0x8] sm:$0xf]
        %v8397 = vld [vmem:[%s7 + $0xc] sm:$0xf]
        %v8398 = vld [vmem:[%s7 + $0x10] sm:$0xf]
        %v8399 = vld [vmem:[%s7 + $0x14] sm:$0xf]
        %v8400 = vld [vmem:[%s7 + $0x18] sm:$0xf]
        %v8401 = vld [vmem:[%s7 + $0x1c] sm:$0xf]
        %v8402 = vld [vmem:[%s7 + $0x20] sm:$0xf]
        %v8403 = vld [vmem:[%s7 + $0x24] sm:$0xf]
        %v8404 = vld [vmem:[%s7 + $0x28] sm:$0xf]
        %v8405 = vld [vmem:[%s7 + $0x2c] sm:$0xf]
        %v8406 = vld [vmem:[%s7 + $0x30] sm:$0xf]
        %v8407 = vld [vmem:[%s7 + $0x34] sm:$0xf]
        %v8408 = vld [vmem:[%s7 + $0x38] sm:$0xf]
        %v8409 = vld [vmem:[%s7 + $0x3c] sm:$0xf]
        %v8410 = vld [vmem:[%s7 + $0x40] sm:$0xf]
        %v8411 = vld [vmem:[%s7 + $0x44] sm:$0xf]
        %v8412 = vld [vmem:[%s7 + $0x48] sm:$0xf]
        %v8413 = vld [vmem:[%s7 + $0x4c] sm:$0xf]
        %v8414 = vld [vmem:[%s7 + $0x50] sm:$0xf]
        %v8415 = vld [vmem:[%s7 + $0x54] sm:$0xf]
        %v8416 = vld [vmem:[%s7 + $0x58] sm:$0xf]
        %v8417 = vld [vmem:[%s7 + $0x5c] sm:$0xf]
        %v8418 = vld [vmem:[%s7 + $0x60] sm:$0xf]
        %v8419 = vld [vmem:[%s7 + $0x64] sm:$0xf]
        %v8420 = vld [vmem:[%s7 + $0x68] sm:$0xf]
        %v8421 = vld [vmem:[%s7 + $0x6c] sm:$0xf]
        %v8422 = vld [vmem:[%s7 + $0x70] sm:$0xf]
        %v8423 = vld [vmem:[%s7 + $0x74] sm:$0xf]
        %v8424 = vld [vmem:[%s7 + $0x78] sm:$0xf]
        %v8425 = vld [vmem:[%s7 + $0x7c] sm:$0xf]
        %v8426 = vld [vmem:[%s8] sm:$0x1]
        %v8459 = vunpack.c.l.b16 %v8394
        %v8460 = vunpack.c.l.b16 %v8395
        %v8461 = vunpack.c.l.b16 %v8396
        %v8462 = vunpack.c.l.b16 %v8397
        %v8463 = vunpack.c.l.b16 %v8398
        %v8464 = vunpack.c.l.b16 %v8399
        %v8465 = vunpack.c.l.b16 %v8400
        %v8466 = vunpack.c.l.b16 %v8401
        %v8467 = vunpack.c.l.b16 %v8402
        %v8468 = vunpack.c.l.b16 %v8403
        %v8469 = vunpack.c.l.b16 %v8404
        %v8470 = vunpack.c.l.b16 %v8405
        %v8471 = vunpack.c.l.b16 %v8406
        %v8472 = vunpack.c.l.b16 %v8407
        %v8473 = vunpack.c.l.b16 %v8408
        %v8474 = vunpack.c.l.b16 %v8409
        %v8475 = vunpack.c.l.b16 %v8410
        %v8476 = vunpack.c.l.b16 %v8411
        %v8477 = vunpack.c.l.b16 %v8412
        %v8478 = vunpack.c.l.b16 %v8413
        %v8479 = vunpack.c.l.b16 %v8414
        %v8480 = vunpack.c.l.b16 %v8415
        %v8481 = vunpack.c.l.b16 %v8416
        %v8482 = vunpack.c.l.b16 %v8417
        %v8483 = vunpack.c.l.b16 %v8418
        %v8484 = vunpack.c.l.b16 %v8419
        %v8485 = vunpack.c.l.b16 %v8420
        %v8486 = vunpack.c.l.b16 %v8421
        %v8487 = vunpack.c.l.b16 %v8422
        %v8488 = vunpack.c.l.b16 %v8423
        %v8489 = vunpack.c.l.b16 %v8424
        %v8490 = vunpack.c.l.b16 %v8425
        %v8491 = vpack.c.b16 %v8460, %v8459
        %v8492 = vpack.c.b16 %v8462, %v8461
        %v8493 = vpack.c.b16 %v8464, %v8463
        %v8494 = vpack.c.b16 %v8466, %v8465
        %v8495 = vpack.c.b16 %v8468, %v8467
        %v8496 = vpack.c.b16 %v8470, %v8469
        %v8497 = vpack.c.b16 %v8472, %v8471
        %v8498 = vpack.c.b16 %v8474, %v8473
        %v8499 = vpack.c.b16 %v8476, %v8475
        %v8500 = vpack.c.b16 %v8478, %v8477
        %v8501 = vpack.c.b16 %v8480, %v8479
        %v8502 = vpack.c.b16 %v8482, %v8481
        %v8503 = vpack.c.b16 %v8484, %v8483
        %v8504 = vpack.c.b16 %v8486, %v8485
        %v8505 = vpack.c.b16 %v8488, %v8487
        %v8506 = vpack.c.b16 %v8490, %v8489
        %8523 = vmatpush.bf16.msra.mxu0 %v8498
        %8524 = vmatpush.bf16.msra.mxu0 %v8497
        %8525 = vmatpush.bf16.msra.mxu0 %v8496
        %8526 = vmatpush.bf16.msra.mxu0 %v8495
        %8527 = vmatpush.bf16.msra.mxu0 %v8494
        %8528 = vmatpush.bf16.msra.mxu0 %v8493
        %8529 = vmatpush.bf16.msra.mxu0 %v8492
        %8530 = vmatpush.bf16.msra.mxu0 %v8491
        %8531 = vmatmul.bf16.gmra.mxu0 %v8388
        %v8532 = vpop.f32.mrf.mxu0
        %v8533 = vadd.f32 %v8426, %v8532
        %v8534 = vpop.f32.mrf.mxu0
        %8535 = vdwg.mxu0
        %8536 = vmatpush.bf16.msra.mxu0 %v8506
        %8537 = vmatpush.bf16.msra.mxu0 %v8505
        %8538 = vmatpush.bf16.msra.mxu0 %v8504
        %8539 = vmatpush.bf16.msra.mxu0 %v8503
        %8540 = vmatpush.bf16.msra.mxu0 %v8502
        %8541 = vmatpush.bf16.msra.mxu0 %v8501
        %8542 = vmatpush.bf16.msra.mxu0 %v8500
        %8543 = vmatpush.bf16.msra.mxu0 %v8499
        %8544 = vmatmul.bf16.gmra.mxu0 %v8392
        %v8545 = vpop.f32.mrf.mxu0
        %v8546 = vadd.f32 %v8533, %v8545
        %v8547 = vpop.f32.mrf.mxu0
        %8548 = vdwg.mxu0
        %v8549 = vmax.f32 %v8546, 0.0
        %v8550 = vpack.c.bf16 %v8549, %v8549
        %v8551 = vld [vmem:[%s9] sm:$0xf]
        %v8552 = vld [vmem:[%s9 + $0x4] sm:$0xf]
        %v8553 = vld [vmem:[%s9 + $0x8] sm:$0xf]
        %v8554 = vld [vmem:[%s9 + $0xc] sm:$0xf]
        %v8555 = vld [vmem:[%s9 + $0x10] sm:$0xf]
        %v8556 = vld [vmem:[%s9 + $0x14] sm:$0xf]
        %v8557 = vld [vmem:[%s9 + $0x18] sm:$0xf]
        %v8558 = vld [vmem:[%s9 + $0x1c] sm:$0xf]
        %v8559 = vld [vmem:[%s9 + $0x20] sm:$0xf]
        %v8560 = vld [vmem:[%s9 + $0x24] sm:$0xf]
        %v8561 = vld [vmem:[%s9 + $0x28] sm:$0xf]
        %v8562 = vld [vmem:[%s9 + $0x2c] sm:$0xf]
        %v8563 = vld [vmem:[%s9 + $0x30] sm:$0xf]
        %v8564 = vld [vmem:[%s9 + $0x34] sm:$0xf]
        %v8565 = vld [vmem:[%s9 + $0x38] sm:$0xf]
        %v8566 = vld [vmem:[%s9 + $0x3c] sm:$0xf]
        %v8567 = vld [vmem:[%s10] sm:$0x1]
        %v8584 = vunpack.c.l.b16 %v8551
        %v8585 = vunpack.c.l.b16 %v8552
        %v8586 = vunpack.c.l.b16 %v8553
        %v8587 = vunpack.c.l.b16 %v8554
        %v8588 = vunpack.c.l.b16 %v8555
        %v8589 = vunpack.c.l.b16 %v8556
        %v8590 = vunpack.c.l.b16 %v8557
        %v8591 = vunpack.c.l.b16 %v8558
        %v8592 = vunpack.c.l.b16 %v8559
        %v8593 = vunpack.c.l.b16 %v8560
        %v8594 = vunpack.c.l.b16 %v8561
        %v8595 = vunpack.c.l.b16 %v8562
        %v8596 = vunpack.c.l.b16 %v8563
        %v8597 = vunpack.c.l.b16 %v8564
        %v8598 = vunpack.c.l.b16 %v8565
        %v8599 = vunpack.c.l.b16 %v8566
        %v8600 = vpack.c.b16 %v8585, %v8584
        %v8601 = vpack.c.b16 %v8587, %v8586
        %v8602 = vpack.c.b16 %v8589, %v8588
        %v8603 = vpack.c.b16 %v8591, %v8590
        %v8604 = vpack.c.b16 %v8593, %v8592
        %v8605 = vpack.c.b16 %v8595, %v8594
        %v8606 = vpack.c.b16 %v8597, %v8596
        %v8607 = vpack.c.b16 %v8599, %v8598
        %8616 = vmatpush.bf16.msra.mxu0 %v8607
        %8617 = vmatpush.bf16.msra.mxu0 %v8606
        %8618 = vmatpush.bf16.msra.mxu0 %v8605
        %8619 = vmatpush.bf16.msra.mxu0 %v8604
        %8620 = vmatpush.bf16.msra.mxu0 %v8603
        %8621 = vmatpush.bf16.msra.mxu0 %v8602
        %8622 = vmatpush.bf16.msra.mxu0 %v8601
        %8623 = vmatpush.bf16.msra.mxu0 %v8600
        %8624 = vmatmul.bf16.gmra.mxu0 %v8550
        %v8625 = vpop.f32.mrf.mxu0
        %v8626 = vadd.f32 %v8567, %v8625
        %v8627 = vpop.f32.mrf.mxu0
        %8628 = vdwg.mxu0
        %v8629 = vmax.f32 %v8626, 0.0
        %v8630 = vpack.c.bf16 %v8629, %v8629
        %v8631 = vld [vmem:[%s11] sm:$0xf]
        %v8632 = vld [vmem:[%s11 + $0x4] sm:$0xf]
        %v8633 = vld [vmem:[%s11 + $0x8] sm:$0xf]
        %v8634 = vld [vmem:[%s11 + $0xc] sm:$0xf]
        %v8635 = vld [vmem:[%s11 + $0x10] sm:$0xf]
        %v8636 = vld [vmem:[%s11 + $0x14] sm:$0xf]
        %v8637 = vld [vmem:[%s11 + $0x18] sm:$0xf]
        %v8638 = vld [vmem:[%s11 + $0x1c] sm:$0xf]
        %v8639 = vld [vmem:[%s11 + $0x20] sm:$0xf]
        %v8640 = vld [vmem:[%s11 + $0x24] sm:$0xf]
        %v8641 = vld [vmem:[%s11 + $0x28] sm:$0xf]
        %v8642 = vld [vmem:[%s11 + $0x2c] sm:$0xf]
        %v8643 = vld [vmem:[%s11 + $0x30] sm:$0xf]
        %v8644 = vld [vmem:[%s11 + $0x34] sm:$0xf]
        %v8645 = vld [vmem:[%s11 + $0x38] sm:$0xf]
        %v8646 = vld [vmem:[%s11 + $0x3c] sm:$0xf]
        %v8647 = vld [vmem:[%s12] sm:$0x1]
        %v8664 = vunpack.c.l.b16 %v8631
        %v8665 = vunpack.c.l.b16 %v8632
        %v8666 = vunpack.c.l.b16 %v8633
        %v8667 = vunpack.c.l.b16 %v8634
        %v8668 = vunpack.c.l.b16 %v8635
        %v8669 = vunpack.c.l.b16 %v8636
        %v8670 = vunpack.c.l.b16 %v8637
        %v8671 = vunpack.c.l.b16 %v8638
        %v8672 = vunpack.c.l.b16 %v8639
        %v8673 = vunpack.c.l.b16 %v8640
        %v8674 = vunpack.c.l.b16 %v8641
        %v8675 = vunpack.c.l.b16 %v8642
        %v8676 = vunpack.c.l.b16 %v8643
        %v8677 = vunpack.c.l.b16 %v8644
        %v8678 = vunpack.c.l.b16 %v8645
        %v8679 = vunpack.c.l.b16 %v8646
        %v8680 = vpack.c.b16 %v8665, %v8664
        %v8681 = vpack.c.b16 %v8667, %v8666
        %v8682 = vpack.c.b16 %v8669, %v8668
        %v8683 = vpack.c.b16 %v8671, %v8670
        %v8684 = vpack.c.b16 %v8673, %v8672
        %v8685 = vpack.c.b16 %v8675, %v8674
        %v8686 = vpack.c.b16 %v8677, %v8676
        %v8687 = vpack.c.b16 %v8679, %v8678
        %8696 = vmatpush.bf16.msra.mxu0 %v8687
        %8697 = vmatpush.bf16.msra.mxu0 %v8686
        %8698 = vmatpush.bf16.msra.mxu0 %v8685
        %8699 = vmatpush.bf16.msra.mxu0 %v8684
        %8700 = vmatpush.bf16.msra.mxu0 %v8683
        %8701 = vmatpush.bf16.msra.mxu0 %v8682
        %8702 = vmatpush.bf16.msra.mxu0 %v8681
        %8703 = vmatpush.bf16.msra.mxu0 %v8680
        %8704 = vmatmul.bf16.gmra.mxu0 %v8630
        %v8705 = vpop.f32.mrf.mxu0
        %v8706 = vadd.f32 %v8647, %v8705
        %v8707 = vpop.f32.mrf.mxu0
        %8708 = vdwg.mxu0
        %8709 = vst [vmem:[%s432] sm:$0x1] %v8706
        %s8710 = sand.u32 %s313, 1
        %s8711 = scalar_lea.sflag [#allocation8], %s8710
        %s8712 = sand.u32 %s313, 1
        %s8713 = scalar_lea.vmem [#allocation7], %s8712
        // Predicated region
        $region73: #{lenet_forward.1} parent=71 // pred_check
          %p8714 = pneg %p323
        $region74: #{lenet_forward.1} parent=71 // pred_check_branch
          %8716 = sbr.rel (%p8714) target = $region76
        $region75: #{lenet_forward.1} parent=71 // pred_region
          %8718 = vsyncadd %s8711, 0
          %s8719 = scalar_lea.hbm %s13, %s27
          %s8721 = sshll.u32 %s8713, 4
          %s8722 = int_to_ptr.vmem [resolvable:$true] %s8721
          %s8723 = sshll.u32 %s8719, 4
          %s8724 = int_to_ptr.hbm [resolvable:$true] %s8723
          %8726 = dma.vmem_to_hbm [thread:$0]  %s8722, 16, %s8724, %s8711
        $region76: #{lenet_forward.1} parent=71 // pred_fallthru
          _
      $region72: #{lenet_forward.1} parent=5 // pred_fallthru
        _
      %p8727 = scmp.le.s32.totalorder 2, %s22
      // Predicated region
      $region77: #{lenet_forward.1} parent=5 // pred_check
        %p8728 = pneg %p8727
      $region78: #{lenet_forward.1} parent=5 // pred_check_branch
        %8730 = sbr.rel (%p8728) target = $region80
      $region79: #{lenet_forward.1} parent=5 // pred_region
        %s8731 = ssub.s32 %s22, 2
        // Predicated region
        $region81: #{lenet_forward.1} parent=79 // pred_check
          %p8732 = pneg %p329
        $region82: #{lenet_forward.1} parent=79 // pred_check_branch
          %8734 = sbr.rel (%p8732) target = $region84
        $region83: #{lenet_forward.1} parent=79 // pred_region
          %s8735 = sand.u32 %s314, 1
          %s8736 = scalar_lea.sflag [#allocation8], %s8735
          %s8737 = sand.u32 %s314, 1
          %s8738 = scalar_lea.vmem [#allocation7], %s8737
          %8740 = dma.done %s8736, 16
        $region84: #{lenet_forward.1} parent=79 // pred_fallthru
          _
      $region80: #{lenet_forward.1} parent=5 // pred_fallthru
        _
    $region6: #{lenet_forward.1} parent=1 // loop_footer
      %s26 = sadd.s32 1, %s22
    $region7: #{lenet_forward.1} parent=1 // loop_footer_branch
      %21 = sbr.rel target = $region3
    $region8: #{lenet_forward.1} parent=1 // loop_exit
      _
    %8741 = vsyncpa [#allocation8], 1
    %s8742 = scalar_lea.sflag [#allocation8], 1
    %8743 = vsyncpa %s8742, 1

</llo_original>
